<compile_context>
chip_gen: v7x
topology: tpu7x:2x2x1
jax: 0.10.0
libtpu: 0.0.40
codegen_flags: <defaults>
</compile_context>

<pallas_src>
import math
import numpy as np
import jax
import jax.numpy as jnp
from jax.experimental import pallas as pl
from jax.experimental.pallas import tpu as pltpu

# ----------------------------- model sizes ---------------------------------
B = 2                 # batch
IN_DIM = 16           # state dim
OUT_DIM = 8           # action dim
HORIZON = 1
TIME_DIM = 256        # `dim` default in EquivariantDiffusionNet
HIDDEN = [1024, 512, 512, 256]   # EMLPNew hidden_units
DIFFUSION_ITER = 4
ACT = OUT_DIM * HORIZON

B_PAD = 8             # pad batch to a full sublane group
ACT_PAD = 128         # pad action width to a full lane group (unmasked stores)


# ------------------------------ fused kernel --------------------------------
def make_fused_ddpm_kernel(step_coefs):
    """step_coefs: per-step (sqrt_beta_prod, inv_sqrt_alpha_prod, coef_x0,
    coef_xt, sqrt_var) Python floats, in scheduler order t = T-1 .. 0.
    The whole T-step DDPM loop is unrolled inside ONE kernel invocation."""
    T = len(step_coefs)

    def kernel(tctx_ref, cctx_ref, noise_ref,
               w0x_ref, w1_ref, b1_ref, w2_ref, b2_ref,
               w3_ref, b3_ref, w4_ref, b4_ref, out_ref):
        # noise_ref[0] is the initial N(0,1) action; rows 1..T-1 are the per-step
        # scheduler noise (the final t==0 step adds none).
        noisy = noise_ref[0]                     # (B_PAD, ACT_PAD) f32
        cond_ctx = cctx_ref[...]                 # (B_PAD, H0) = cond @ W0_cond (step-invariant)

        for i, (sqrt_bp, inv_sqrt_ap, c_x0, c_xt, sqrt_var) in enumerate(step_coefs):
            # layer 0: precomputed time/bias contribution (broadcast over the 8
            # batch sublanes) + cond contribution + action contribution.
            h = (tctx_ref[i] + cond_ctx
                 + jnp.dot(noisy.astype(jnp.bfloat16), w0x_ref[...],
                           preferred_element_type=jnp.float32))
            h = jnp.maximum(h, 0.0)
            h = jnp.maximum(jnp.dot(h.astype(jnp.bfloat16), w1_ref[...],
                                    preferred_element_type=jnp.float32) + b1_ref[...], 0.0)
            h = jnp.maximum(jnp.dot(h.astype(jnp.bfloat16), w2_ref[...],
                                    preferred_element_type=jnp.float32) + b2_ref[...], 0.0)
            h = jnp.maximum(jnp.dot(h.astype(jnp.bfloat16), w3_ref[...],
                                    preferred_element_type=jnp.float32) + b3_ref[...], 0.0)
            noise_pred = jnp.dot(h.astype(jnp.bfloat16), w4_ref[...],
                                 preferred_element_type=jnp.float32) + b4_ref[...]

            # DDPM step (epsilon prediction, clip_sample=True, fixed_small variance).
            # NOTE: padded action lanes (cols ACT..127) carry junk Gaussian values
            # through this math; they never leak into real lanes (w0x rows >= ACT
            # are zero) and are sliced off by the wrapper.
            pred_x0 = jnp.clip((noisy - sqrt_bp * noise_pred) * inv_sqrt_ap, -1.0, 1.0)
            noisy = c_x0 * pred_x0 + c_xt * noisy
            if i + 1 < T:                        # t > 0: add fixed_small variance noise
                noisy = noisy + sqrt_var * noise_ref[i + 1]

        out_ref[...] = noisy

    return kernel


# --------------------------- parameter init ---------------------------------
def init_params(key):
    def dense(key, fan_in, fan_out):
        k1, k2 = jax.random.split(key)
        w = jax.random.normal(k1, (fan_in, fan_out), jnp.float32) / math.sqrt(fan_in)
        b = jax.random.normal(k2, (1, fan_out), jnp.float32) * 0.01
        return w, b

    keys = jax.random.split(key, 7)
    tw1, tb1 = dense(keys[0], TIME_DIM, TIME_DIM * 4)       # time MLP
    tw2, tb2 = dense(keys[1], TIME_DIM * 4, TIME_DIM)
    in0 = TIME_DIM + IN_DIM + ACT                           # concat([t, cond, x])
    w0, b0 = dense(keys[2], in0, HIDDEN[0])
    w1, b1 = dense(keys[3], HIDDEN[0], HIDDEN[1])
    w2, b2 = dense(keys[4], HIDDEN[1], HIDDEN[2])
    w3, b3 = dense(keys[5], HIDDEN[2], HIDDEN[3])
    w4, b4 = dense(keys[6], HIDDEN[3], ACT)
    return dict(tw1=tw1, tb1=tb1, tw2=tw2, tb2=tb2,
                w0=w0, b0=b0, w1=w1, b1=b1, w2=w2, b2=b2,
                w3=w3, b3=b3, w4=w4, b4=b4)


# --------------------------- DDPM scheduler ----------------------------------
def build_step_coefs(T):
    """Per-step scheduler scalars (Python floats), step order t = T-1 .. 0.
    squaredcos_cap_v2 betas, epsilon prediction, fixed_small variance."""
    def alpha_bar(t):
        return math.cos((t + 0.008) / 1.008 * math.pi / 2) ** 2
    betas = [min(1.0 - alpha_bar((i + 1) / T) / alpha_bar(i / T), 0.999)
             for i in range(T)]
    acp = np.cumprod(1.0 - np.asarray(betas, np.float64))
    coefs = []
    for t in range(T - 1, -1, -1):
        alpha_prod_t = acp[t]
        alpha_prod_prev = acp[t - 1] if t > 0 else 1.0
        beta_prod_t = 1.0 - alpha_prod_t
        beta_prod_prev = 1.0 - alpha_prod_prev
        current_alpha = alpha_prod_t / alpha_prod_prev
        current_beta = 1.0 - current_alpha
        sqrt_var = 0.0
        if t > 0:
            sqrt_var = math.sqrt(max((beta_prod_prev / beta_prod_t) * current_beta, 1e-20))
        coefs.append((float(math.sqrt(beta_prod_t)),
                      float(1.0 / math.sqrt(alpha_prod_t)),
                      float(math.sqrt(alpha_prod_prev) * current_beta / beta_prod_t),
                      float(math.sqrt(current_alpha) * beta_prod_prev / beta_prod_t),
                      float(sqrt_var)))
    return tuple(coefs)


# ------------------------------ policy wrapper -------------------------------
def make_get_actions(params):
    T = DIFFUSION_ITER
    step_coefs = build_step_coefs(T)

    # --- weight prep (once): split/pad layer 0 & 4, cast matmul weights to bf16.
    w0 = params["w0"]
    w0t = w0[:TIME_DIM]                             # time rows -> folded into tctx table below
    w0c = w0[TIME_DIM:TIME_DIM + IN_DIM]            # cond rows -> applied once per call (wrapper)
    w0x = jnp.zeros((ACT_PAD, HIDDEN[0]), jnp.float32)
    w0x = w0x.at[:ACT].set(w0[TIME_DIM + IN_DIM:]).astype(jnp.bfloat16)
    w1 = params["w1"].astype(jnp.bfloat16); b1 = params["b1"]
    w2 = params["w2"].astype(jnp.bfloat16); b2 = params["b2"]
    w3 = params["w3"].astype(jnp.bfloat16); b3 = params["b3"]
    w4 = jnp.zeros((HIDDEN[3], ACT_PAD), jnp.float32)
    w4 = w4.at[:, :ACT].set(params["w4"]).astype(jnp.bfloat16)
    b4 = jnp.zeros((1, ACT_PAD), jnp.float32).at[:, :ACT].set(params["b4"])

    # --- timestep-embedding precompute (depends only on T + fixed weights):
    # SinusoidalPosEmb -> Linear -> Mish -> Linear, folded through layer-0's
    # time rows + bias into a constant (T, 1, H0) additive table.  Computed ONCE
    # here, never on the per-call critical path; broadcast over batch happens
    # inside the kernel's VPU add (free).
    half = TIME_DIM // 2
    freqs = jnp.exp(jnp.arange(half, dtype=jnp.float32)
                    * (-math.log(10000.0) / (half - 1)))
    times = jnp.arange(T - 1, -1, -1, dtype=jnp.float32)    # scheduler.timesteps order
    arg = times[:, None] * freqs[None, :]
    emb = jnp.concatenate([jnp.sin(arg), jnp.cos(arg)], axis=-1)       # (T, dim)
    h = emb @ params["tw1"] + params["tb1"]
    h = h * jnp.tanh(jax.nn.softplus(h))                               # Mish
    temb = h @ params["tw2"] + params["tb2"]                           # (T, dim)
    tctx = (temb @ w0t + params["b0"]).reshape(T, 1, HIDDEN[0])        # (T, 1, H0)

    vmem_spec = pl.BlockSpec(memory_space=pltpu.MemorySpace.VMEM)
    fused_call = pl.pallas_call(
        make_fused_ddpm_kernel(step_coefs),
        out_shape=jax.ShapeDtypeStruct((B_PAD, ACT_PAD), jnp.float32),
        in_specs=[vmem_spec] * 12,                  # whole arrays resident in VMEM
        out_specs=vmem_spec,
        compiler_params=pltpu.CompilerParams(
            vmem_limit_bytes=8 * 1024 * 1024),      # real footprint ~2.3 MiB
    )

    @jax.jit
    def get_actions(state, key):
        bsz = state.shape[0]
        # Row 0: initial noisy action; rows 1..T-1: per-step scheduler noise.
        noise = jax.random.normal(key, (T, B_PAD, ACT_PAD), jnp.float32)
        cond = jnp.zeros((B_PAD, IN_DIM), jnp.float32).at[:bsz].set(state)
        cond_ctx = cond @ w0c                       # (B_PAD, H0), step-invariant
        out = fused_call(tctx, cond_ctx, noise,
                         w0x, w1, b1, w2, b2, w3, b3, w4, b4)
        return out[:bsz, :OUT_DIM]

    return get_actions


# ------------------------------- main ----------------------------------------
if __name__ == "__main__":
    root = jax.random.PRNGKey(0)
    k_params, k_state, k_sample = jax.random.split(root, 3)

    params = init_params(k_params)
    get_actions = make_get_actions(params)

    state = jax.random.normal(k_state, (B, IN_DIM), jnp.float32)

    actions = jax.block_until_ready(get_actions(state, k_sample))

    assert actions.shape == (B, OUT_DIM)
    assert bool(jnp.all(jnp.isfinite(actions)))
    print("KERNEL_OK")
</pallas_src>

<mosaic_0001>
module attributes {stable_mosaic.version = 11 : i64} {
  func.func @kernel(%arg0: memref<4x1x1024xf32, #tpu.memory_space<vmem>>, %arg1: memref<8x1024xf32, #tpu.memory_space<vmem>>, %arg2: memref<4x8x128xf32, #tpu.memory_space<vmem>>, %arg3: memref<128x1024xbf16, #tpu.memory_space<vmem>>, %arg4: memref<1024x512xbf16, #tpu.memory_space<vmem>>, %arg5: memref<1x512xf32, #tpu.memory_space<vmem>>, %arg6: memref<512x512xbf16, #tpu.memory_space<vmem>>, %arg7: memref<1x512xf32, #tpu.memory_space<vmem>>, %arg8: memref<512x256xbf16, #tpu.memory_space<vmem>>, %arg9: memref<1x256xf32, #tpu.memory_space<vmem>>, %arg10: memref<256x128xbf16, #tpu.memory_space<vmem>>, %arg11: memref<1x128xf32, #tpu.memory_space<vmem>>, %arg12: memref<8x128xf32, #tpu.memory_space<vmem>>) attributes {dimension_semantics = [], scalar_prefetch = 0 : i64, scratch_operands = 0 : i64, tpu.core_type = #tpu.core_type<tc>} {
    %c0 = arith.constant 0 : index
    %c0_0 = arith.constant 0 : index
    %c0_1 = arith.constant 0 : index
    %0 = vector.load %arg2[%c0, %c0_0, %c0_1] : memref<4x8x128xf32, #tpu.memory_space<vmem>>, vector<1x8x128xf32>
    %1 = vector.shape_cast %0 : vector<1x8x128xf32> to vector<8x128xf32>
    %c0_2 = arith.constant 0 : index
    %c0_3 = arith.constant 0 : index
    %2 = vector.load %arg1[%c0_2, %c0_3] : memref<8x1024xf32, #tpu.memory_space<vmem>>, vector<8x1024xf32>
    %c0_4 = arith.constant 0 : index
    %c0_5 = arith.constant 0 : index
    %c0_6 = arith.constant 0 : index
    %3 = vector.load %arg0[%c0_4, %c0_5, %c0_6] : memref<4x1x1024xf32, #tpu.memory_space<vmem>>, vector<1x1x1024xf32>
    %4 = vector.shape_cast %3 : vector<1x1x1024xf32> to vector<1x1024xf32>
    %5 = vector.broadcast %4 : vector<1x1024xf32> to vector<8x1024xf32>
    %6 = arith.addf %5, %2 : vector<8x1024xf32>
    %7 = arith.truncf %1 : vector<8x128xf32> to vector<8x128xbf16>
    %c0_7 = arith.constant 0 : index
    %c0_8 = arith.constant 0 : index
    %8 = vector.load %arg3[%c0_7, %c0_8] : memref<128x1024xbf16, #tpu.memory_space<vmem>>, vector<128x1024xbf16>
    %cst = arith.constant dense<0.000000e+00> : vector<8x1024xf32>
    %9 = tpu.matmul %7, %8, %cst {dimension_numbers = #tpu.dot_dimension_numbers<[1], [0], [0], [1], [0, 0, 1, 1], [], []>} : vector<8x128xbf16>, vector<128x1024xbf16>, vector<8x1024xf32> -> vector<8x1024xf32>
    %10 = arith.addf %6, %9 : vector<8x1024xf32>
    %cst_9 = arith.constant 0.000000e+00 : f32
    %11 = vector.broadcast %cst_9 : f32 to vector<8x1024xf32>
    %12 = arith.maximumf %10, %11 : vector<8x1024xf32>
    %13 = arith.truncf %12 : vector<8x1024xf32> to vector<8x1024xbf16>
    %c0_10 = arith.constant 0 : index
    %c0_11 = arith.constant 0 : index
    %14 = vector.load %arg4[%c0_10, %c0_11] : memref<1024x512xbf16, #tpu.memory_space<vmem>>, vector<1024x512xbf16>
    %cst_12 = arith.constant dense<0.000000e+00> : vector<8x512xf32>
    %15 = tpu.matmul %13, %14, %cst_12 {dimension_numbers = #tpu.dot_dimension_numbers<[1], [0], [0], [1], [0, 0, 1, 1], [], []>} : vector<8x1024xbf16>, vector<1024x512xbf16>, vector<8x512xf32> -> vector<8x512xf32>
    %c0_13 = arith.constant 0 : index
    %c0_14 = arith.constant 0 : index
    %16 = vector.load %arg5[%c0_13, %c0_14] : memref<1x512xf32, #tpu.memory_space<vmem>>, vector<1x512xf32>
    %17 = vector.broadcast %16 : vector<1x512xf32> to vector<8x512xf32>
    %18 = arith.addf %15, %17 : vector<8x512xf32>
    %cst_15 = arith.constant 0.000000e+00 : f32
    %19 = vector.broadcast %cst_15 : f32 to vector<8x512xf32>
    %20 = arith.maximumf %18, %19 : vector<8x512xf32>
    %21 = arith.truncf %20 : vector<8x512xf32> to vector<8x512xbf16>
    %c0_16 = arith.constant 0 : index
    %c0_17 = arith.constant 0 : index
    %22 = vector.load %arg6[%c0_16, %c0_17] : memref<512x512xbf16, #tpu.memory_space<vmem>>, vector<512x512xbf16>
    %cst_18 = arith.constant dense<0.000000e+00> : vector<8x512xf32>
    %23 = tpu.matmul %21, %22, %cst_18 {dimension_numbers = #tpu.dot_dimension_numbers<[1], [0], [0], [1], [0, 0, 1, 1], [], []>} : vector<8x512xbf16>, vector<512x512xbf16>, vector<8x512xf32> -> vector<8x512xf32>
    %c0_19 = arith.constant 0 : index
    %c0_20 = arith.constant 0 : index
    %24 = vector.load %arg7[%c0_19, %c0_20] : memref<1x512xf32, #tpu.memory_space<vmem>>, vector<1x512xf32>
    %25 = vector.broadcast %24 : vector<1x512xf32> to vector<8x512xf32>
    %26 = arith.addf %23, %25 : vector<8x512xf32>
    %cst_21 = arith.constant 0.000000e+00 : f32
    %27 = vector.broadcast %cst_21 : f32 to vector<8x512xf32>
    %28 = arith.maximumf %26, %27 : vector<8x512xf32>
    %29 = arith.truncf %28 : vector<8x512xf32> to vector<8x512xbf16>
    %c0_22 = arith.constant 0 : index
    %c0_23 = arith.constant 0 : index
    %30 = vector.load %arg8[%c0_22, %c0_23] : memref<512x256xbf16, #tpu.memory_space<vmem>>, vector<512x256xbf16>
    %cst_24 = arith.constant dense<0.000000e+00> : vector<8x256xf32>
    %31 = tpu.matmul %29, %30, %cst_24 {dimension_numbers = #tpu.dot_dimension_numbers<[1], [0], [0], [1], [0, 0, 1, 1], [], []>} : vector<8x512xbf16>, vector<512x256xbf16>, vector<8x256xf32> -> vector<8x256xf32>
    %c0_25 = arith.constant 0 : index
    %c0_26 = arith.constant 0 : index
    %32 = vector.load %arg9[%c0_25, %c0_26] : memref<1x256xf32, #tpu.memory_space<vmem>>, vector<1x256xf32>
    %33 = vector.broadcast %32 : vector<1x256xf32> to vector<8x256xf32>
    %34 = arith.addf %31, %33 : vector<8x256xf32>
    %cst_27 = arith.constant 0.000000e+00 : f32
    %35 = vector.broadcast %cst_27 : f32 to vector<8x256xf32>
    %36 = arith.maximumf %34, %35 : vector<8x256xf32>
    %37 = arith.truncf %36 : vector<8x256xf32> to vector<8x256xbf16>
    %c0_28 = arith.constant 0 : index
    %c0_29 = arith.constant 0 : index
    %38 = vector.load %arg10[%c0_28, %c0_29] : memref<256x128xbf16, #tpu.memory_space<vmem>>, vector<256x128xbf16>
    %cst_30 = arith.constant dense<0.000000e+00> : vector<8x128xf32>
    %39 = tpu.matmul %37, %38, %cst_30 {dimension_numbers = #tpu.dot_dimension_numbers<[1], [0], [0], [1], [0, 0, 1, 1], [], []>} : vector<8x256xbf16>, vector<256x128xbf16>, vector<8x128xf32> -> vector<8x128xf32>
    %c0_31 = arith.constant 0 : index
    %c0_32 = arith.constant 0 : index
    %40 = vector.load %arg11[%c0_31, %c0_32] : memref<1x128xf32, #tpu.memory_space<vmem>>, vector<1x128xf32>
    %41 = vector.broadcast %40 : vector<1x128xf32> to vector<8x128xf32>
    %42 = arith.addf %39, %41 : vector<8x128xf32>
    %cst_33 = arith.constant 0.999927878 : f32
    %43 = vector.broadcast %cst_33 : f32 to vector<8x128xf32>
    %44 = arith.mulf %43, %42 : vector<8x128xf32>
    %45 = arith.subf %1, %44 : vector<8x128xf32>
    %cst_34 = arith.constant 83.2547149 : f32
    %46 = vector.broadcast %cst_34 : f32 to vector<8x128xf32>
    %47 = arith.mulf %45, %46 : vector<8x128xf32>
    %cst_35 = arith.constant -1.000000e+00 : f32
    %cst_36 = arith.constant 1.000000e+00 : f32
    %48 = vector.broadcast %cst_35 : f32 to vector<8x128xf32>
    %49 = arith.maximumf %48, %47 : vector<8x128xf32>
    %50 = vector.broadcast %cst_36 : f32 to vector<8x128xf32>
    %51 = arith.minimumf %50, %49 : vector<8x128xf32>
    %cst_37 = arith.constant 0.379506588 : f32
    %52 = vector.broadcast %cst_37 : f32 to vector<8x128xf32>
    %53 = arith.mulf %52, %51 : vector<8x128xf32>
    %cst_38 = arith.constant 0.0270643961 : f32
    %54 = vector.broadcast %cst_38 : f32 to vector<8x128xf32>
    %55 = arith.mulf %54, %1 : vector<8x128xf32>
    %56 = arith.addf %53, %55 : vector<8x128xf32>
    %c1 = arith.constant 1 : index
    %c0_39 = arith.constant 0 : index
    %c0_40 = arith.constant 0 : index
    %57 = vector.load %arg2[%c1, %c0_39, %c0_40] : memref<4x8x128xf32, #tpu.memory_space<vmem>>, vector<1x8x128xf32>
    %58 = vector.shape_cast %57 : vector<1x8x128xf32> to vector<8x128xf32>
    %cst_41 = arith.constant 0.924659669 : f32
    %59 = vector.broadcast %cst_41 : f32 to vector<8x128xf32>
    %60 = arith.mulf %59, %58 : vector<8x128xf32>
    %61 = arith.addf %56, %60 : vector<8x128xf32>
    %c1_42 = arith.constant 1 : index
    %c0_43 = arith.constant 0 : index
    %c0_44 = arith.constant 0 : index
    %62 = vector.load %arg0[%c1_42, %c0_43, %c0_44] : memref<4x1x1024xf32, #tpu.memory_space<vmem>>, vector<1x1x1024xf32>
    %63 = vector.shape_cast %62 : vector<1x1x1024xf32> to vector<1x1024xf32>
    %64 = vector.broadcast %63 : vector<1x1024xf32> to vector<8x1024xf32>
    %65 = arith.addf %64, %2 : vector<8x1024xf32>
    %66 = arith.truncf %61 : vector<8x128xf32> to vector<8x128xbf16>
    %c0_45 = arith.constant 0 : index
    %c0_46 = arith.constant 0 : index
    %67 = vector.load %arg3[%c0_45, %c0_46] : memref<128x1024xbf16, #tpu.memory_space<vmem>>, vector<128x1024xbf16>
    %cst_47 = arith.constant dense<0.000000e+00> : vector<8x1024xf32>
    %68 = tpu.matmul %66, %67, %cst_47 {dimension_numbers = #tpu.dot_dimension_numbers<[1], [0], [0], [1], [0, 0, 1, 1], [], []>} : vector<8x128xbf16>, vector<128x1024xbf16>, vector<8x1024xf32> -> vector<8x1024xf32>
    %69 = arith.addf %65, %68 : vector<8x1024xf32>
    %cst_48 = arith.constant 0.000000e+00 : f32
    %70 = vector.broadcast %cst_48 : f32 to vector<8x1024xf32>
    %71 = arith.maximumf %69, %70 : vector<8x1024xf32>
    %72 = arith.truncf %71 : vector<8x1024xf32> to vector<8x1024xbf16>
    %c0_49 = arith.constant 0 : index
    %c0_50 = arith.constant 0 : index
    %73 = vector.load %arg4[%c0_49, %c0_50] : memref<1024x512xbf16, #tpu.memory_space<vmem>>, vector<1024x512xbf16>
    %cst_51 = arith.constant dense<0.000000e+00> : vector<8x512xf32>
    %74 = tpu.matmul %72, %73, %cst_51 {dimension_numbers = #tpu.dot_dimension_numbers<[1], [0], [0], [1], [0, 0, 1, 1], [], []>} : vector<8x1024xbf16>, vector<1024x512xbf16>, vector<8x512xf32> -> vector<8x512xf32>
    %c0_52 = arith.constant 0 : index
    %c0_53 = arith.constant 0 : index
    %75 = vector.load %arg5[%c0_52, %c0_53] : memref<1x512xf32, #tpu.memory_space<vmem>>, vector<1x512xf32>
    %76 = vector.broadcast %75 : vector<1x512xf32> to vector<8x512xf32>
    %77 = arith.addf %74, %76 : vector<8x512xf32>
    %cst_54 = arith.constant 0.000000e+00 : f32
    %78 = vector.broadcast %cst_54 : f32 to vector<8x512xf32>
    %79 = arith.maximumf %77, %78 : vector<8x512xf32>
    %80 = arith.truncf %79 : vector<8x512xf32> to vector<8x512xbf16>
    %c0_55 = arith.constant 0 : index
    %c0_56 = arith.constant 0 : index
    %81 = vector.load %arg6[%c0_55, %c0_56] : memref<512x512xbf16, #tpu.memory_space<vmem>>, vector<512x512xbf16>
    %cst_57 = arith.constant dense<0.000000e+00> : vector<8x512xf32>
    %82 = tpu.matmul %80, %81, %cst_57 {dimension_numbers = #tpu.dot_dimension_numbers<[1], [0], [0], [1], [0, 0, 1, 1], [], []>} : vector<8x512xbf16>, vector<512x512xbf16>, vector<8x512xf32> -> vector<8x512xf32>
    %c0_58 = arith.constant 0 : index
    %c0_59 = arith.constant 0 : index
    %83 = vector.load %arg7[%c0_58, %c0_59] : memref<1x512xf32, #tpu.memory_space<vmem>>, vector<1x512xf32>
    %84 = vector.broadcast %83 : vector<1x512xf32> to vector<8x512xf32>
    %85 = arith.addf %82, %84 : vector<8x512xf32>
    %cst_60 = arith.constant 0.000000e+00 : f32
    %86 = vector.broadcast %cst_60 : f32 to vector<8x512xf32>
    %87 = arith.maximumf %85, %86 : vector<8x512xf32>
    %88 = arith.truncf %87 : vector<8x512xf32> to vector<8x512xbf16>
    %c0_61 = arith.constant 0 : index
    %c0_62 = arith.constant 0 : index
    %89 = vector.load %arg8[%c0_61, %c0_62] : memref<512x256xbf16, #tpu.memory_space<vmem>>, vector<512x256xbf16>
    %cst_63 = arith.constant dense<0.000000e+00> : vector<8x256xf32>
    %90 = tpu.matmul %88, %89, %cst_63 {dimension_numbers = #tpu.dot_dimension_numbers<[1], [0], [0], [1], [0, 0, 1, 1], [], []>} : vector<8x512xbf16>, vector<512x256xbf16>, vector<8x256xf32> -> vector<8x256xf32>
    %c0_64 = arith.constant 0 : index
    %c0_65 = arith.constant 0 : index
    %91 = vector.load %arg9[%c0_64, %c0_65] : memref<1x256xf32, #tpu.memory_space<vmem>>, vector<1x256xf32>
    %92 = vector.broadcast %91 : vector<1x256xf32> to vector<8x256xf32>
    %93 = arith.addf %90, %92 : vector<8x256xf32>
    %cst_66 = arith.constant 0.000000e+00 : f32
    %94 = vector.broadcast %cst_66 : f32 to vector<8x256xf32>
    %95 = arith.maximumf %93, %94 : vector<8x256xf32>
    %96 = arith.truncf %95 : vector<8x256xf32> to vector<8x256xbf16>
    %c0_67 = arith.constant 0 : index
    %c0_68 = arith.constant 0 : index
    %97 = vector.load %arg10[%c0_67, %c0_68] : memref<256x128xbf16, #tpu.memory_space<vmem>>, vector<256x128xbf16>
    %cst_69 = arith.constant dense<0.000000e+00> : vector<8x128xf32>
    %98 = tpu.matmul %96, %97, %cst_69 {dimension_numbers = #tpu.dot_dimension_numbers<[1], [0], [0], [1], [0, 0, 1, 1], [], []>} : vector<8x256xbf16>, vector<256x128xbf16>, vector<8x128xf32> -> vector<8x128xf32>
    %c0_70 = arith.constant 0 : index
    %c0_71 = arith.constant 0 : index
    %99 = vector.load %arg11[%c0_70, %c0_71] : memref<1x128xf32, #tpu.memory_space<vmem>>, vector<1x128xf32>
    %100 = vector.broadcast %99 : vector<1x128xf32> to vector<8x128xf32>
    %101 = arith.addf %98, %100 : vector<8x128xf32>
    %cst_72 = arith.constant 0.925055623 : f32
    %102 = vector.broadcast %cst_72 : f32 to vector<8x128xf32>
    %103 = arith.mulf %102, %101 : vector<8x128xf32>
    %104 = arith.subf %61, %103 : vector<8x128xf32>
    %cst_73 = arith.constant 2.63274503 : f32
    %105 = vector.broadcast %cst_73 : f32 to vector<8x128xf32>
    %106 = arith.mulf %104, %105 : vector<8x128xf32>
    %cst_74 = arith.constant -1.000000e+00 : f32
    %cst_75 = arith.constant 1.000000e+00 : f32
    %107 = vector.broadcast %cst_74 : f32 to vector<8x128xf32>
    %108 = arith.maximumf %107, %106 : vector<8x128xf32>
    %109 = vector.broadcast %cst_75 : f32 to vector<8x128xf32>
    %110 = arith.minimumf %109, %108 : vector<8x128xf32>
    %cst_76 = arith.constant 0.581307054 : f32
    %111 = vector.broadcast %cst_76 : f32 to vector<8x128xf32>
    %112 = arith.mulf %111, %110 : vector<8x128xf32>
    %cst_77 = arith.constant 0.319702119 : f32
    %113 = vector.broadcast %cst_77 : f32 to vector<8x128xf32>
    %114 = arith.mulf %113, %61 : vector<8x128xf32>
    %115 = arith.addf %112, %114 : vector<8x128xf32>
    %c2 = arith.constant 2 : index
    %c0_78 = arith.constant 0 : index
    %c0_79 = arith.constant 0 : index
    %116 = vector.load %arg2[%c2, %c0_78, %c0_79] : memref<4x8x128xf32, #tpu.memory_space<vmem>>, vector<1x8x128xf32>
    %117 = vector.shape_cast %116 : vector<1x8x128xf32> to vector<8x128xf32>
    %cst_80 = arith.constant 0.647064864 : f32
    %118 = vector.broadcast %cst_80 : f32 to vector<8x128xf32>
    %119 = arith.mulf %118, %117 : vector<8x128xf32>
    %120 = arith.addf %115, %119 : vector<8x128xf32>
    %c2_81 = arith.constant 2 : index
    %c0_82 = arith.constant 0 : index
    %c0_83 = arith.constant 0 : index
    %121 = vector.load %arg0[%c2_81, %c0_82, %c0_83] : memref<4x1x1024xf32, #tpu.memory_space<vmem>>, vector<1x1x1024xf32>
    %122 = vector.shape_cast %121 : vector<1x1x1024xf32> to vector<1x1024xf32>
    %123 = vector.broadcast %122 : vector<1x1024xf32> to vector<8x1024xf32>
    %124 = arith.addf %123, %2 : vector<8x1024xf32>
    %125 = arith.truncf %120 : vector<8x128xf32> to vector<8x128xbf16>
    %c0_84 = arith.constant 0 : index
    %c0_85 = arith.constant 0 : index
    %126 = vector.load %arg3[%c0_84, %c0_85] : memref<128x1024xbf16, #tpu.memory_space<vmem>>, vector<128x1024xbf16>
    %cst_86 = arith.constant dense<0.000000e+00> : vector<8x1024xf32>
    %127 = tpu.matmul %125, %126, %cst_86 {dimension_numbers = #tpu.dot_dimension_numbers<[1], [0], [0], [1], [0, 0, 1, 1], [], []>} : vector<8x128xbf16>, vector<128x1024xbf16>, vector<8x1024xf32> -> vector<8x1024xf32>
    %128 = arith.addf %124, %127 : vector<8x1024xf32>
    %cst_87 = arith.constant 0.000000e+00 : f32
    %129 = vector.broadcast %cst_87 : f32 to vector<8x1024xf32>
    %130 = arith.maximumf %128, %129 : vector<8x1024xf32>
    %131 = arith.truncf %130 : vector<8x1024xf32> to vector<8x1024xbf16>
    %c0_88 = arith.constant 0 : index
    %c0_89 = arith.constant 0 : index
    %132 = vector.load %arg4[%c0_88, %c0_89] : memref<1024x512xbf16, #tpu.memory_space<vmem>>, vector<1024x512xbf16>
    %cst_90 = arith.constant dense<0.000000e+00> : vector<8x512xf32>
    %133 = tpu.matmul %131, %132, %cst_90 {dimension_numbers = #tpu.dot_dimension_numbers<[1], [0], [0], [1], [0, 0, 1, 1], [], []>} : vector<8x1024xbf16>, vector<1024x512xbf16>, vector<8x512xf32> -> vector<8x512xf32>
    %c0_91 = arith.constant 0 : index
    %c0_92 = arith.constant 0 : index
    %134 = vector.load %arg5[%c0_91, %c0_92] : memref<1x512xf32, #tpu.memory_space<vmem>>, vector<1x512xf32>
    %135 = vector.broadcast %134 : vector<1x512xf32> to vector<8x512xf32>
    %136 = arith.addf %133, %135 : vector<8x512xf32>
    %cst_93 = arith.constant 0.000000e+00 : f32
    %137 = vector.broadcast %cst_93 : f32 to vector<8x512xf32>
    %138 = arith.maximumf %136, %137 : vector<8x512xf32>
    %139 = arith.truncf %138 : vector<8x512xf32> to vector<8x512xbf16>
    %c0_94 = arith.constant 0 : index
    %c0_95 = arith.constant 0 : index
    %140 = vector.load %arg6[%c0_94, %c0_95] : memref<512x512xbf16, #tpu.memory_space<vmem>>, vector<512x512xbf16>
    %cst_96 = arith.constant dense<0.000000e+00> : vector<8x512xf32>
    %141 = tpu.matmul %139, %140, %cst_96 {dimension_numbers = #tpu.dot_dimension_numbers<[1], [0], [0], [1], [0, 0, 1, 1], [], []>} : vector<8x512xbf16>, vector<512x512xbf16>, vector<8x512xf32> -> vector<8x512xf32>
    %c0_97 = arith.constant 0 : index
    %c0_98 = arith.constant 0 : index
    %142 = vector.load %arg7[%c0_97, %c0_98] : memref<1x512xf32, #tpu.memory_space<vmem>>, vector<1x512xf32>
    %143 = vector.broadcast %142 : vector<1x512xf32> to vector<8x512xf32>
    %144 = arith.addf %141, %143 : vector<8x512xf32>
    %cst_99 = arith.constant 0.000000e+00 : f32
    %145 = vector.broadcast %cst_99 : f32 to vector<8x512xf32>
    %146 = arith.maximumf %144, %145 : vector<8x512xf32>
    %147 = arith.truncf %146 : vector<8x512xf32> to vector<8x512xbf16>
    %c0_100 = arith.constant 0 : index
    %c0_101 = arith.constant 0 : index
    %148 = vector.load %arg8[%c0_100, %c0_101] : memref<512x256xbf16, #tpu.memory_space<vmem>>, vector<512x256xbf16>
    %cst_102 = arith.constant dense<0.000000e+00> : vector<8x256xf32>
    %149 = tpu.matmul %147, %148, %cst_102 {dimension_numbers = #tpu.dot_dimension_numbers<[1], [0], [0], [1], [0, 0, 1, 1], [], []>} : vector<8x512xbf16>, vector<512x256xbf16>, vector<8x256xf32> -> vector<8x256xf32>
    %c0_103 = arith.constant 0 : index
    %c0_104 = arith.constant 0 : index
    %150 = vector.load %arg9[%c0_103, %c0_104] : memref<1x256xf32, #tpu.memory_space<vmem>>, vector<1x256xf32>
    %151 = vector.broadcast %150 : vector<1x256xf32> to vector<8x256xf32>
    %152 = arith.addf %149, %151 : vector<8x256xf32>
    %cst_105 = arith.constant 0.000000e+00 : f32
    %153 = vector.broadcast %cst_105 : f32 to vector<8x256xf32>
    %154 = arith.maximumf %152, %153 : vector<8x256xf32>
    %155 = arith.truncf %154 : vector<8x256xf32> to vector<8x256xbf16>
    %c0_106 = arith.constant 0 : index
    %c0_107 = arith.constant 0 : index
    %156 = vector.load %arg10[%c0_106, %c0_107] : memref<256x128xbf16, #tpu.memory_space<vmem>>, vector<256x128xbf16>
    %cst_108 = arith.constant dense<0.000000e+00> : vector<8x128xf32>
    %157 = tpu.matmul %155, %156, %cst_108 {dimension_numbers = #tpu.dot_dimension_numbers<[1], [0], [0], [1], [0, 0, 1, 1], [], []>} : vector<8x256xbf16>, vector<256x128xbf16>, vector<8x128xf32> -> vector<8x128xf32>
    %c0_109 = arith.constant 0 : index
    %c0_110 = arith.constant 0 : index
    %158 = vector.load %arg11[%c0_109, %c0_110] : memref<1x128xf32, #tpu.memory_space<vmem>>, vector<1x128xf32>
    %159 = vector.broadcast %158 : vector<1x128xf32> to vector<8x128xf32>
    %160 = arith.addf %157, %159 : vector<8x128xf32>
    %cst_111 = arith.constant 0.711446702 : f32
    %161 = vector.broadcast %cst_111 : f32 to vector<8x128xf32>
    %162 = arith.mulf %161, %160 : vector<8x128xf32>
    %163 = arith.subf %120, %162 : vector<8x128xf32>
    %cst_112 = arith.constant 1.42300129 : f32
    %164 = vector.broadcast %cst_112 : f32 to vector<8x128xf32>
    %165 = arith.mulf %163, %164 : vector<8x128xf32>
    %cst_113 = arith.constant -1.000000e+00 : f32
    %cst_114 = arith.constant 1.000000e+00 : f32
    %166 = vector.broadcast %cst_113 : f32 to vector<8x128xf32>
    %167 = arith.maximumf %166, %165 : vector<8x128xf32>
    %168 = vector.broadcast %cst_114 : f32 to vector<8x128xf32>
    %169 = arith.minimumf %168, %167 : vector<8x128xf32>
    %cst_115 = arith.constant 0.758145391 : f32
    %170 = vector.broadcast %cst_115 : f32 to vector<8x128xf32>
    %171 = arith.mulf %170, %169 : vector<8x128xf32>
    %cst_116 = arith.constant 0.230792686 : f32
    %172 = vector.broadcast %cst_116 : f32 to vector<8x128xf32>
    %173 = arith.mulf %172, %120 : vector<8x128xf32>
    %174 = arith.addf %171, %173 : vector<8x128xf32>
    %c3 = arith.constant 3 : index
    %c0_117 = arith.constant 0 : index
    %c0_118 = arith.constant 0 : index
    %175 = vector.load %arg2[%c3, %c0_117, %c0_118] : memref<4x8x128xf32, #tpu.memory_space<vmem>>, vector<1x8x128xf32>
    %176 = vector.shape_cast %175 : vector<1x8x128xf32> to vector<8x128xf32>
    %cst_119 = arith.constant 0.355003208 : f32
    %177 = vector.broadcast %cst_119 : f32 to vector<8x128xf32>
    %178 = arith.mulf %177, %176 : vector<8x128xf32>
    %179 = arith.addf %174, %178 : vector<8x128xf32>
    %c3_120 = arith.constant 3 : index
    %c0_121 = arith.constant 0 : index
    %c0_122 = arith.constant 0 : index
    %180 = vector.load %arg0[%c3_120, %c0_121, %c0_122] : memref<4x1x1024xf32, #tpu.memory_space<vmem>>, vector<1x1x1024xf32>
    %181 = vector.shape_cast %180 : vector<1x1x1024xf32> to vector<1x1024xf32>
    %182 = vector.broadcast %181 : vector<1x1024xf32> to vector<8x1024xf32>
    %183 = arith.addf %182, %2 : vector<8x1024xf32>
    %184 = arith.truncf %179 : vector<8x128xf32> to vector<8x128xbf16>
    %c0_123 = arith.constant 0 : index
    %c0_124 = arith.constant 0 : index
    %185 = vector.load %arg3[%c0_123, %c0_124] : memref<128x1024xbf16, #tpu.memory_space<vmem>>, vector<128x1024xbf16>
    %cst_125 = arith.constant dense<0.000000e+00> : vector<8x1024xf32>
    %186 = tpu.matmul %184, %185, %cst_125 {dimension_numbers = #tpu.dot_dimension_numbers<[1], [0], [0], [1], [0, 0, 1, 1], [], []>} : vector<8x128xbf16>, vector<128x1024xbf16>, vector<8x1024xf32> -> vector<8x1024xf32>
    %187 = arith.addf %183, %186 : vector<8x1024xf32>
    %cst_126 = arith.constant 0.000000e+00 : f32
    %188 = vector.broadcast %cst_126 : f32 to vector<8x1024xf32>
    %189 = arith.maximumf %187, %188 : vector<8x1024xf32>
    %190 = arith.truncf %189 : vector<8x1024xf32> to vector<8x1024xbf16>
    %c0_127 = arith.constant 0 : index
    %c0_128 = arith.constant 0 : index
    %191 = vector.load %arg4[%c0_127, %c0_128] : memref<1024x512xbf16, #tpu.memory_space<vmem>>, vector<1024x512xbf16>
    %cst_129 = arith.constant dense<0.000000e+00> : vector<8x512xf32>
    %192 = tpu.matmul %190, %191, %cst_129 {dimension_numbers = #tpu.dot_dimension_numbers<[1], [0], [0], [1], [0, 0, 1, 1], [], []>} : vector<8x1024xbf16>, vector<1024x512xbf16>, vector<8x512xf32> -> vector<8x512xf32>
    %c0_130 = arith.constant 0 : index
    %c0_131 = arith.constant 0 : index
    %193 = vector.load %arg5[%c0_130, %c0_131] : memref<1x512xf32, #tpu.memory_space<vmem>>, vector<1x512xf32>
    %194 = vector.broadcast %193 : vector<1x512xf32> to vector<8x512xf32>
    %195 = arith.addf %192, %194 : vector<8x512xf32>
    %cst_132 = arith.constant 0.000000e+00 : f32
    %196 = vector.broadcast %cst_132 : f32 to vector<8x512xf32>
    %197 = arith.maximumf %195, %196 : vector<8x512xf32>
    %198 = arith.truncf %197 : vector<8x512xf32> to vector<8x512xbf16>
    %c0_133 = arith.constant 0 : index
    %c0_134 = arith.constant 0 : index
    %199 = vector.load %arg6[%c0_133, %c0_134] : memref<512x512xbf16, #tpu.memory_space<vmem>>, vector<512x512xbf16>
    %cst_135 = arith.constant dense<0.000000e+00> : vector<8x512xf32>
    %200 = tpu.matmul %198, %199, %cst_135 {dimension_numbers = #tpu.dot_dimension_numbers<[1], [0], [0], [1], [0, 0, 1, 1], [], []>} : vector<8x512xbf16>, vector<512x512xbf16>, vector<8x512xf32> -> vector<8x512xf32>
    %c0_136 = arith.constant 0 : index
    %c0_137 = arith.constant 0 : index
    %201 = vector.load %arg7[%c0_136, %c0_137] : memref<1x512xf32, #tpu.memory_space<vmem>>, vector<1x512xf32>
    %202 = vector.broadcast %201 : vector<1x512xf32> to vector<8x512xf32>
    %203 = arith.addf %200, %202 : vector<8x512xf32>
    %cst_138 = arith.constant 0.000000e+00 : f32
    %204 = vector.broadcast %cst_138 : f32 to vector<8x512xf32>
    %205 = arith.maximumf %203, %204 : vector<8x512xf32>
    %206 = arith.truncf %205 : vector<8x512xf32> to vector<8x512xbf16>
    %c0_139 = arith.constant 0 : index
    %c0_140 = arith.constant 0 : index
    %207 = vector.load %arg8[%c0_139, %c0_140] : memref<512x256xbf16, #tpu.memory_space<vmem>>, vector<512x256xbf16>
    %cst_141 = arith.constant dense<0.000000e+00> : vector<8x256xf32>
    %208 = tpu.matmul %206, %207, %cst_141 {dimension_numbers = #tpu.dot_dimension_numbers<[1], [0], [0], [1], [0, 0, 1, 1], [], []>} : vector<8x512xbf16>, vector<512x256xbf16>, vector<8x256xf32> -> vector<8x256xf32>
    %c0_142 = arith.constant 0 : index
    %c0_143 = arith.constant 0 : index
    %209 = vector.load %arg9[%c0_142, %c0_143] : memref<1x256xf32, #tpu.memory_space<vmem>>, vector<1x256xf32>
    %210 = vector.broadcast %209 : vector<1x256xf32> to vector<8x256xf32>
    %211 = arith.addf %208, %210 : vector<8x256xf32>
    %cst_144 = arith.constant 0.000000e+00 : f32
    %212 = vector.broadcast %cst_144 : f32 to vector<8x256xf32>
    %213 = arith.maximumf %211, %212 : vector<8x256xf32>
    %214 = arith.truncf %213 : vector<8x256xf32> to vector<8x256xbf16>
    %c0_145 = arith.constant 0 : index
    %c0_146 = arith.constant 0 : index
    %215 = vector.load %arg10[%c0_145, %c0_146] : memref<256x128xbf16, #tpu.memory_space<vmem>>, vector<256x128xbf16>
    %cst_147 = arith.constant dense<0.000000e+00> : vector<8x128xf32>
    %216 = tpu.matmul %214, %215, %cst_147 {dimension_numbers = #tpu.dot_dimension_numbers<[1], [0], [0], [1], [0, 0, 1, 1], [], []>} : vector<8x256xbf16>, vector<256x128xbf16>, vector<8x128xf32> -> vector<8x128xf32>
    %c0_148 = arith.constant 0 : index
    %c0_149 = arith.constant 0 : index
    %217 = vector.load %arg11[%c0_148, %c0_149] : memref<1x128xf32, #tpu.memory_space<vmem>>, vector<1x128xf32>
    %218 = vector.broadcast %217 : vector<1x128xf32> to vector<8x128xf32>
    %219 = arith.addf %216, %218 : vector<8x128xf32>
    %cst_150 = arith.constant 0.391136587 : f32
    %220 = vector.broadcast %cst_150 : f32 to vector<8x128xf32>
    %221 = arith.mulf %220, %219 : vector<8x128xf32>
    %222 = arith.subf %179, %221 : vector<8x128xf32>
    %cst_151 = arith.constant 1.08656371 : f32
    %223 = vector.broadcast %cst_151 : f32 to vector<8x128xf32>
    %224 = arith.mulf %222, %223 : vector<8x128xf32>
    %cst_152 = arith.constant -1.000000e+00 : f32
    %cst_153 = arith.constant 1.000000e+00 : f32
    %225 = vector.broadcast %cst_152 : f32 to vector<8x128xf32>
    %226 = arith.maximumf %225, %224 : vector<8x128xf32>
    %227 = vector.broadcast %cst_153 : f32 to vector<8x128xf32>
    %228 = arith.minimumf %227, %226 : vector<8x128xf32>
    %cst_154 = arith.constant 1.000000e+00 : f32
    %229 = vector.broadcast %cst_154 : f32 to vector<8x128xf32>
    %230 = arith.mulf %229, %228 : vector<8x128xf32>
    %cst_155 = arith.constant 0.000000e+00 : f32
    %231 = vector.broadcast %cst_155 : f32 to vector<8x128xf32>
    %232 = arith.mulf %231, %179 : vector<8x128xf32>
    %233 = arith.addf %230, %232 : vector<8x128xf32>
    %c0_156 = arith.constant 0 : index
    %c0_157 = arith.constant 0 : index
    %234 = vector.load %arg12[%c0_156, %c0_157] : memref<8x128xf32, #tpu.memory_space<vmem>>, vector<8x128xf32>
    tpu.vector_store %arg12[%c0_156, %c0_157], %233 {strides = array<i32>} : memref<8x128xf32, #tpu.memory_space<vmem>>, vector<8x128xf32>,
    return
  }
}

</mosaic_0001>

<llo_original>
// kernel: get_actions.1
$region0: #{get_actions.1}
  #allocation0 [shape = 'u32[]', space=smem, size = 0x4, offset = 0x4, fixed_abs, tag = 'smem constant byte address 0x4 - core index']
  #allocation1 [shape = 'u32[144,128]{1,0:T(1,128)}', space=vmem, size = 0x12000, scoped, tag = 'internal scratch']
  %s0 = inlined_call_operand.vmem [shape: f32[4,1,1024], index: 0, kind: input, shape index: {}]
  %s1 = inlined_call_operand.vmem [shape: f32[8,1024], index: 1, kind: input, shape index: {}]
  %s2 = inlined_call_operand.vmem [shape: f32[4,8,128], index: 2, kind: input, shape index: {}]
  %s3 = inlined_call_operand.vmem [shape: bf16[128,1024], index: 3, kind: input, shape index: {}]
  %s4 = inlined_call_operand.vmem [shape: bf16[1024,512], index: 4, kind: input, shape index: {}]
  %s5 = inlined_call_operand.vmem [shape: f32[1,512], index: 5, kind: input, shape index: {}]
  %s6 = inlined_call_operand.vmem [shape: bf16[512,512], index: 6, kind: input, shape index: {}]
  %s7 = inlined_call_operand.vmem [shape: f32[1,512], index: 7, kind: input, shape index: {}]
  %s8 = inlined_call_operand.vmem [shape: bf16[512,256], index: 8, kind: input, shape index: {}]
  %s9 = inlined_call_operand.vmem [shape: f32[1,256], index: 9, kind: input, shape index: {}]
  %s10 = inlined_call_operand.vmem [shape: bf16[256,128], index: 10, kind: input, shape index: {}]
  %s11 = inlined_call_operand.vmem [shape: f32[1,128], index: 11, kind: input, shape index: {}]
  %s12 = inlined_call_operand.vmem [shape: f32[8,128], index: 12, kind: output, shape index: {}]
  %s13 = sld [smem:[#allocation0]]
  $region58: #{get_actions.1} parent=0
    _
  %s15 = ssub.s32 1, %s13
  %s16 = scalar_select 0, %s15, %s13
  // Predicated region
  $region2: #{get_actions.1} parent=0 // pred_check
    _
  $region3: #{get_actions.1} parent=0 // pred_check_branch
    %18 = sbr.rel (0) target = $region5
  $region4: #{get_actions.1} parent=0 // pred_region
    _
  $region5: #{get_actions.1} parent=0 // pred_fallthru
    _
  // Predicated region
  $region6: #{get_actions.1} parent=0 // pred_check
    _
  $region7: #{get_actions.1} parent=0 // pred_check_branch
    %20 = sbr.rel (0) target = $region9
  $region8: #{get_actions.1} parent=0 // pred_region
    _
  $region9: #{get_actions.1} parent=0 // pred_fallthru
    _
  // Predicated region
  $region10: #{get_actions.1} parent=0 // pred_check
    _
  $region11: #{get_actions.1} parent=0 // pred_check_branch
    %22 = sbr.rel (0) target = $region13
  $region12: #{get_actions.1} parent=0 // pred_region
    _
  $region13: #{get_actions.1} parent=0 // pred_fallthru
    _
  // Predicated region
  $region14: #{get_actions.1} parent=0 // pred_check
    _
  $region15: #{get_actions.1} parent=0 // pred_check_branch
    %24 = sbr.rel (0) target = $region17
  $region16: #{get_actions.1} parent=0 // pred_region
    _
  $region17: #{get_actions.1} parent=0 // pred_fallthru
    _
  // Predicated region
  $region18: #{get_actions.1} parent=0 // pred_check
    _
  $region19: #{get_actions.1} parent=0 // pred_check_branch
    %26 = sbr.rel (0) target = $region21
  $region20: #{get_actions.1} parent=0 // pred_region
    _
  $region21: #{get_actions.1} parent=0 // pred_fallthru
    _
  // Predicated region
  $region22: #{get_actions.1} parent=0 // pred_check
    _
  $region23: #{get_actions.1} parent=0 // pred_check_branch
    %28 = sbr.rel (0) target = $region25
  $region24: #{get_actions.1} parent=0 // pred_region
    _
  $region25: #{get_actions.1} parent=0 // pred_fallthru
    _
  // Predicated region
  $region26: #{get_actions.1} parent=0 // pred_check
    _
  $region27: #{get_actions.1} parent=0 // pred_check_branch
    %30 = sbr.rel (0) target = $region29
  $region28: #{get_actions.1} parent=0 // pred_region
    _
  $region29: #{get_actions.1} parent=0 // pred_fallthru
    _
  // Predicated region
  $region30: #{get_actions.1} parent=0 // pred_check
    _
  $region31: #{get_actions.1} parent=0 // pred_check_branch
    %32 = sbr.rel (0) target = $region33
  $region32: #{get_actions.1} parent=0 // pred_region
    _
  $region33: #{get_actions.1} parent=0 // pred_fallthru
    _
  // Predicated region
  $region34: #{get_actions.1} parent=0 // pred_check
    _
  $region35: #{get_actions.1} parent=0 // pred_check_branch
    %34 = sbr.rel (0) target = $region37
  $region36: #{get_actions.1} parent=0 // pred_region
    _
  $region37: #{get_actions.1} parent=0 // pred_fallthru
    _
  // Predicated region
  $region38: #{get_actions.1} parent=0 // pred_check
    _
  $region39: #{get_actions.1} parent=0 // pred_check_branch
    %36 = sbr.rel (0) target = $region41
  $region40: #{get_actions.1} parent=0 // pred_region
    _
  $region41: #{get_actions.1} parent=0 // pred_fallthru
    _
  // Predicated region
  $region42: #{get_actions.1} parent=0 // pred_check
    _
  $region43: #{get_actions.1} parent=0 // pred_check_branch
    %38 = sbr.rel (0) target = $region45
  $region44: #{get_actions.1} parent=0 // pred_region
    _
  $region45: #{get_actions.1} parent=0 // pred_fallthru
    _
  // Predicated region
  $region46: #{get_actions.1} parent=0 // pred_check
    _
  $region47: #{get_actions.1} parent=0 // pred_check_branch
    %40 = sbr.rel (0) target = $region49
  $region48: #{get_actions.1} parent=0 // pred_region
    _
  $region49: #{get_actions.1} parent=0 // pred_fallthru
    _
  %v42 = vld [vmem:[%s2] sm:$0xff]
  %v43 = vld [vmem:[%s1] sm:$0xff]
  %v44 = vld [vmem:[%s1 + $0x8] sm:$0xff]
  %v45 = vld [vmem:[%s1 + $0x10] sm:$0xff]
  %v46 = vld [vmem:[%s1 + $0x18] sm:$0xff]
  %v47 = vld [vmem:[%s1 + $0x20] sm:$0xff]
  %v48 = vld [vmem:[%s1 + $0x28] sm:$0xff]
  %v49 = vld [vmem:[%s1 + $0x30] sm:$0xff]
  %v50 = vld [vmem:[%s1 + $0x38] sm:$0xff]
  %v51 = vld [vmem:[%s0] sm:$0xff]
  %v53 = vlaneseq
  %v54 = vshrl.u32 %v53, 7
  %v55 = vsub.s32 0, %v54
  %v56 = vrot.slane %v51, %v55
  %v57 = vlaneseq
  %v58 = vshrl.u32 %v57, 7
  %v59 = vsub.s32 1, %v58
  %v60 = vrot.slane %v51, %v59
  %v61 = vlaneseq
  %v62 = vshrl.u32 %v61, 7
  %v63 = vsub.s32 2, %v62
  %v64 = vrot.slane %v51, %v63
  %v65 = vlaneseq
  %v66 = vshrl.u32 %v65, 7
  %v67 = vsub.s32 3, %v66
  %v68 = vrot.slane %v51, %v67
  %v69 = vlaneseq
  %v70 = vshrl.u32 %v69, 7
  %v71 = vsub.s32 4, %v70
  %v72 = vrot.slane %v51, %v71
  %v73 = vlaneseq
  %v74 = vshrl.u32 %v73, 7
  %v75 = vsub.s32 5, %v74
  %v76 = vrot.slane %v51, %v75
  %v77 = vlaneseq
  %v78 = vshrl.u32 %v77, 7
  %v79 = vsub.s32 6, %v78
  %v80 = vrot.slane %v51, %v79
  %v81 = vlaneseq
  %v82 = vshrl.u32 %v81, 7
  %v83 = vsub.s32 7, %v82
  %v84 = vrot.slane %v51, %v83
  %v93 = vadd.f32 %v56, %v43
  %v94 = vadd.f32 %v60, %v44
  %v95 = vadd.f32 %v64, %v45
  %v96 = vadd.f32 %v68, %v46
  %v97 = vadd.f32 %v72, %v47
  %v98 = vadd.f32 %v76, %v48
  %v99 = vadd.f32 %v80, %v49
  %v100 = vadd.f32 %v84, %v50
  %v101 = vpack.c.bf16 %v42, %v42
  %v102 = vld [vmem:[%s3] sm:$0xff]
  %v103 = vld [vmem:[%s3 + $0x8] sm:$0xff]
  %v104 = vld [vmem:[%s3 + $0x10] sm:$0xff]
  %v105 = vld [vmem:[%s3 + $0x18] sm:$0xff]
  %v106 = vld [vmem:[%s3 + $0x20] sm:$0xff]
  %v107 = vld [vmem:[%s3 + $0x28] sm:$0xff]
  %v108 = vld [vmem:[%s3 + $0x30] sm:$0xff]
  %v109 = vld [vmem:[%s3 + $0x38] sm:$0xff]
  %v110 = vld [vmem:[%s3 + $0x40] sm:$0xff]
  %v111 = vld [vmem:[%s3 + $0x48] sm:$0xff]
  %v112 = vld [vmem:[%s3 + $0x50] sm:$0xff]
  %v113 = vld [vmem:[%s3 + $0x58] sm:$0xff]
  %v114 = vld [vmem:[%s3 + $0x60] sm:$0xff]
  %v115 = vld [vmem:[%s3 + $0x68] sm:$0xff]
  %v116 = vld [vmem:[%s3 + $0x70] sm:$0xff]
  %v117 = vld [vmem:[%s3 + $0x78] sm:$0xff]
  %v118 = vld [vmem:[%s3 + $0x80] sm:$0xff]
  %v119 = vld [vmem:[%s3 + $0x88] sm:$0xff]
  %v120 = vld [vmem:[%s3 + $0x90] sm:$0xff]
  %v121 = vld [vmem:[%s3 + $0x98] sm:$0xff]
  %v122 = vld [vmem:[%s3 + $0xa0] sm:$0xff]
  %v123 = vld [vmem:[%s3 + $0xa8] sm:$0xff]
  %v124 = vld [vmem:[%s3 + $0xb0] sm:$0xff]
  %v125 = vld [vmem:[%s3 + $0xb8] sm:$0xff]
  %v126 = vld [vmem:[%s3 + $0xc0] sm:$0xff]
  %v127 = vld [vmem:[%s3 + $0xc8] sm:$0xff]
  %v128 = vld [vmem:[%s3 + $0xd0] sm:$0xff]
  %v129 = vld [vmem:[%s3 + $0xd8] sm:$0xff]
  %v130 = vld [vmem:[%s3 + $0xe0] sm:$0xff]
  %v131 = vld [vmem:[%s3 + $0xe8] sm:$0xff]
  %v132 = vld [vmem:[%s3 + $0xf0] sm:$0xff]
  %v133 = vld [vmem:[%s3 + $0xf8] sm:$0xff]
  %v134 = vld [vmem:[%s3 + $0x100] sm:$0xff]
  %v135 = vld [vmem:[%s3 + $0x108] sm:$0xff]
  %v136 = vld [vmem:[%s3 + $0x110] sm:$0xff]
  %v137 = vld [vmem:[%s3 + $0x118] sm:$0xff]
  %v138 = vld [vmem:[%s3 + $0x120] sm:$0xff]
  %v139 = vld [vmem:[%s3 + $0x128] sm:$0xff]
  %v140 = vld [vmem:[%s3 + $0x130] sm:$0xff]
  %v141 = vld [vmem:[%s3 + $0x138] sm:$0xff]
  %v142 = vld [vmem:[%s3 + $0x140] sm:$0xff]
  %v143 = vld [vmem:[%s3 + $0x148] sm:$0xff]
  %v144 = vld [vmem:[%s3 + $0x150] sm:$0xff]
  %v145 = vld [vmem:[%s3 + $0x158] sm:$0xff]
  %v146 = vld [vmem:[%s3 + $0x160] sm:$0xff]
  %v147 = vld [vmem:[%s3 + $0x168] sm:$0xff]
  %v148 = vld [vmem:[%s3 + $0x170] sm:$0xff]
  %v149 = vld [vmem:[%s3 + $0x178] sm:$0xff]
  %v150 = vld [vmem:[%s3 + $0x180] sm:$0xff]
  %v151 = vld [vmem:[%s3 + $0x188] sm:$0xff]
  %v152 = vld [vmem:[%s3 + $0x190] sm:$0xff]
  %v153 = vld [vmem:[%s3 + $0x198] sm:$0xff]
  %v154 = vld [vmem:[%s3 + $0x1a0] sm:$0xff]
  %v155 = vld [vmem:[%s3 + $0x1a8] sm:$0xff]
  %v156 = vld [vmem:[%s3 + $0x1b0] sm:$0xff]
  %v157 = vld [vmem:[%s3 + $0x1b8] sm:$0xff]
  %v158 = vld [vmem:[%s3 + $0x1c0] sm:$0xff]
  %v159 = vld [vmem:[%s3 + $0x1c8] sm:$0xff]
  %v160 = vld [vmem:[%s3 + $0x1d0] sm:$0xff]
  %v161 = vld [vmem:[%s3 + $0x1d8] sm:$0xff]
  %v162 = vld [vmem:[%s3 + $0x1e0] sm:$0xff]
  %v163 = vld [vmem:[%s3 + $0x1e8] sm:$0xff]
  %v164 = vld [vmem:[%s3 + $0x1f0] sm:$0xff]
  %v165 = vld [vmem:[%s3 + $0x1f8] sm:$0xff]
  %v230 = vunpack.c.l.b16 %v102
  %v231 = vunpack.c.h.b16 %v102
  %v232 = vunpack.c.l.b16 %v103
  %v233 = vunpack.c.h.b16 %v103
  %v234 = vunpack.c.l.b16 %v104
  %v235 = vunpack.c.h.b16 %v104
  %v236 = vunpack.c.l.b16 %v105
  %v237 = vunpack.c.h.b16 %v105
  %v238 = vunpack.c.l.b16 %v106
  %v239 = vunpack.c.h.b16 %v106
  %v240 = vunpack.c.l.b16 %v107
  %v241 = vunpack.c.h.b16 %v107
  %v242 = vunpack.c.l.b16 %v108
  %v243 = vunpack.c.h.b16 %v108
  %v244 = vunpack.c.l.b16 %v109
  %v245 = vunpack.c.h.b16 %v109
  %v246 = vunpack.c.l.b16 %v110
  %v247 = vunpack.c.h.b16 %v110
  %v248 = vunpack.c.l.b16 %v111
  %v249 = vunpack.c.h.b16 %v111
  %v250 = vunpack.c.l.b16 %v112
  %v251 = vunpack.c.h.b16 %v112
  %v252 = vunpack.c.l.b16 %v113
  %v253 = vunpack.c.h.b16 %v113
  %v254 = vunpack.c.l.b16 %v114
  %v255 = vunpack.c.h.b16 %v114
  %v256 = vunpack.c.l.b16 %v115
  %v257 = vunpack.c.h.b16 %v115
  %v258 = vunpack.c.l.b16 %v116
  %v259 = vunpack.c.h.b16 %v116
  %v260 = vunpack.c.l.b16 %v117
  %v261 = vunpack.c.h.b16 %v117
  %v262 = vunpack.c.l.b16 %v118
  %v263 = vunpack.c.h.b16 %v118
  %v264 = vunpack.c.l.b16 %v119
  %v265 = vunpack.c.h.b16 %v119
  %v266 = vunpack.c.l.b16 %v120
  %v267 = vunpack.c.h.b16 %v120
  %v268 = vunpack.c.l.b16 %v121
  %v269 = vunpack.c.h.b16 %v121
  %v270 = vunpack.c.l.b16 %v122
  %v271 = vunpack.c.h.b16 %v122
  %v272 = vunpack.c.l.b16 %v123
  %v273 = vunpack.c.h.b16 %v123
  %v274 = vunpack.c.l.b16 %v124
  %v275 = vunpack.c.h.b16 %v124
  %v276 = vunpack.c.l.b16 %v125
  %v277 = vunpack.c.h.b16 %v125
  %v278 = vunpack.c.l.b16 %v126
  %v279 = vunpack.c.h.b16 %v126
  %v280 = vunpack.c.l.b16 %v127
  %v281 = vunpack.c.h.b16 %v127
  %v282 = vunpack.c.l.b16 %v128
  %v283 = vunpack.c.h.b16 %v128
  %v284 = vunpack.c.l.b16 %v129
  %v285 = vunpack.c.h.b16 %v129
  %v286 = vunpack.c.l.b16 %v130
  %v287 = vunpack.c.h.b16 %v130
  %v288 = vunpack.c.l.b16 %v131
  %v289 = vunpack.c.h.b16 %v131
  %v290 = vunpack.c.l.b16 %v132
  %v291 = vunpack.c.h.b16 %v132
  %v292 = vunpack.c.l.b16 %v133
  %v293 = vunpack.c.h.b16 %v133
  %v294 = vunpack.c.l.b16 %v134
  %v295 = vunpack.c.h.b16 %v134
  %v296 = vunpack.c.l.b16 %v135
  %v297 = vunpack.c.h.b16 %v135
  %v298 = vunpack.c.l.b16 %v136
  %v299 = vunpack.c.h.b16 %v136
  %v300 = vunpack.c.l.b16 %v137
  %v301 = vunpack.c.h.b16 %v137
  %v302 = vunpack.c.l.b16 %v138
  %v303 = vunpack.c.h.b16 %v138
  %v304 = vunpack.c.l.b16 %v139
  %v305 = vunpack.c.h.b16 %v139
  %v306 = vunpack.c.l.b16 %v140
  %v307 = vunpack.c.h.b16 %v140
  %v308 = vunpack.c.l.b16 %v141
  %v309 = vunpack.c.h.b16 %v141
  %v310 = vunpack.c.l.b16 %v142
  %v311 = vunpack.c.h.b16 %v142
  %v312 = vunpack.c.l.b16 %v143
  %v313 = vunpack.c.h.b16 %v143
  %v314 = vunpack.c.l.b16 %v144
  %v315 = vunpack.c.h.b16 %v144
  %v316 = vunpack.c.l.b16 %v145
  %v317 = vunpack.c.h.b16 %v145
  %v318 = vunpack.c.l.b16 %v146
  %v319 = vunpack.c.h.b16 %v146
  %v320 = vunpack.c.l.b16 %v147
  %v321 = vunpack.c.h.b16 %v147
  %v322 = vunpack.c.l.b16 %v148
  %v323 = vunpack.c.h.b16 %v148
  %v324 = vunpack.c.l.b16 %v149
  %v325 = vunpack.c.h.b16 %v149
  %v326 = vunpack.c.l.b16 %v150
  %v327 = vunpack.c.h.b16 %v150
  %v328 = vunpack.c.l.b16 %v151
  %v329 = vunpack.c.h.b16 %v151
  %v330 = vunpack.c.l.b16 %v152
  %v331 = vunpack.c.h.b16 %v152
  %v332 = vunpack.c.l.b16 %v153
  %v333 = vunpack.c.h.b16 %v153
  %v334 = vunpack.c.l.b16 %v154
  %v335 = vunpack.c.h.b16 %v154
  %v336 = vunpack.c.l.b16 %v155
  %v337 = vunpack.c.h.b16 %v155
  %v338 = vunpack.c.l.b16 %v156
  %v339 = vunpack.c.h.b16 %v156
  %v340 = vunpack.c.l.b16 %v157
  %v341 = vunpack.c.h.b16 %v157
  %v342 = vunpack.c.l.b16 %v158
  %v343 = vunpack.c.h.b16 %v158
  %v344 = vunpack.c.l.b16 %v159
  %v345 = vunpack.c.h.b16 %v159
  %v346 = vunpack.c.l.b16 %v160
  %v347 = vunpack.c.h.b16 %v160
  %v348 = vunpack.c.l.b16 %v161
  %v349 = vunpack.c.h.b16 %v161
  %v350 = vunpack.c.l.b16 %v162
  %v351 = vunpack.c.h.b16 %v162
  %v352 = vunpack.c.l.b16 %v163
  %v353 = vunpack.c.h.b16 %v163
  %v354 = vunpack.c.l.b16 %v164
  %v355 = vunpack.c.h.b16 %v164
  %v356 = vunpack.c.l.b16 %v165
  %v357 = vunpack.c.h.b16 %v165
  %v358 = vpack.c.b16 %v238, %v230
  %v359 = vpack.c.b16 %v239, %v231
  %v360 = vpack.c.b16 %v240, %v232
  %v361 = vpack.c.b16 %v241, %v233
  %v362 = vpack.c.b16 %v242, %v234
  %v363 = vpack.c.b16 %v243, %v235
  %v364 = vpack.c.b16 %v244, %v236
  %v365 = vpack.c.b16 %v245, %v237
  %v366 = vpack.c.b16 %v254, %v246
  %v367 = vpack.c.b16 %v255, %v247
  %v368 = vpack.c.b16 %v256, %v248
  %v369 = vpack.c.b16 %v257, %v249
  %v370 = vpack.c.b16 %v258, %v250
  %v371 = vpack.c.b16 %v259, %v251
  %v372 = vpack.c.b16 %v260, %v252
  %v373 = vpack.c.b16 %v261, %v253
  %v374 = vpack.c.b16 %v270, %v262
  %v375 = vpack.c.b16 %v271, %v263
  %v376 = vpack.c.b16 %v272, %v264
  %v377 = vpack.c.b16 %v273, %v265
  %v378 = vpack.c.b16 %v274, %v266
  %v379 = vpack.c.b16 %v275, %v267
  %v380 = vpack.c.b16 %v276, %v268
  %v381 = vpack.c.b16 %v277, %v269
  %v382 = vpack.c.b16 %v286, %v278
  %v383 = vpack.c.b16 %v287, %v279
  %v384 = vpack.c.b16 %v288, %v280
  %v385 = vpack.c.b16 %v289, %v281
  %v386 = vpack.c.b16 %v290, %v282
  %v387 = vpack.c.b16 %v291, %v283
  %v388 = vpack.c.b16 %v292, %v284
  %v389 = vpack.c.b16 %v293, %v285
  %v390 = vpack.c.b16 %v302, %v294
  %v391 = vpack.c.b16 %v303, %v295
  %v392 = vpack.c.b16 %v304, %v296
  %v393 = vpack.c.b16 %v305, %v297
  %v394 = vpack.c.b16 %v306, %v298
  %v395 = vpack.c.b16 %v307, %v299
  %v396 = vpack.c.b16 %v308, %v300
  %v397 = vpack.c.b16 %v309, %v301
  %v398 = vpack.c.b16 %v318, %v310
  %v399 = vpack.c.b16 %v319, %v311
  %v400 = vpack.c.b16 %v320, %v312
  %v401 = vpack.c.b16 %v321, %v313
  %v402 = vpack.c.b16 %v322, %v314
  %v403 = vpack.c.b16 %v323, %v315
  %v404 = vpack.c.b16 %v324, %v316
  %v405 = vpack.c.b16 %v325, %v317
  %v406 = vpack.c.b16 %v334, %v326
  %v407 = vpack.c.b16 %v335, %v327
  %v408 = vpack.c.b16 %v336, %v328
  %v409 = vpack.c.b16 %v337, %v329
  %v410 = vpack.c.b16 %v338, %v330
  %v411 = vpack.c.b16 %v339, %v331
  %v412 = vpack.c.b16 %v340, %v332
  %v413 = vpack.c.b16 %v341, %v333
  %v414 = vpack.c.b16 %v350, %v342
  %v415 = vpack.c.b16 %v351, %v343
  %v416 = vpack.c.b16 %v352, %v344
  %v417 = vpack.c.b16 %v353, %v345
  %v418 = vpack.c.b16 %v354, %v346
  %v419 = vpack.c.b16 %v355, %v347
  %v420 = vpack.c.b16 %v356, %v348
  %v421 = vpack.c.b16 %v357, %v349
  %486 = vmatprep.subr.bf16.mxu0 %v359
  %487 = vmatpush1.bf16.msra.mxu0 %v358
  %488 = vmatprep.subr.bf16.mxu0 %v367
  %489 = vmatpush1.bf16.msra.mxu0 %v366
  %490 = vmatprep.subr.bf16.mxu0 %v375
  %491 = vmatpush1.bf16.msra.mxu0 %v374
  %492 = vmatprep.subr.bf16.mxu0 %v383
  %493 = vmatpush1.bf16.msra.mxu0 %v382
  %494 = vmatprep.subr.bf16.mxu0 %v391
  %495 = vmatpush1.bf16.msra.mxu0 %v390
  %496 = vmatprep.subr.bf16.mxu0 %v399
  %497 = vmatpush1.bf16.msra.mxu0 %v398
  %498 = vmatprep.subr.bf16.mxu0 %v407
  %499 = vmatpush1.bf16.msra.mxu0 %v406
  %500 = vmatprep.subr.bf16.mxu0 %v415
  %501 = vmatpush1.bf16.msra.mxu0 %v414
  %502 = vmatprep.subr.bf16.mxu0 0
  %503 = vmatpush1.bf16.msra.mxu0 0
  %504 = vmatprep.subr.bf16.mxu0 0
  %505 = vmatpush1.bf16.msra.mxu0 0
  %506 = vmatprep.subr.bf16.mxu0 0
  %507 = vmatpush1.bf16.msra.mxu0 0
  %508 = vmatprep.subr.bf16.mxu0 0
  %509 = vmatpush1.bf16.msra.mxu0 0
  %510 = vmatprep.subr.bf16.mxu0 0
  %511 = vmatpush1.bf16.msra.mxu0 0
  %512 = vmatprep.subr.bf16.mxu0 0
  %513 = vmatpush1.bf16.msra.mxu0 0
  %514 = vmatprep.subr.bf16.mxu0 0
  %515 = vmatpush1.bf16.msra.mxu0 0
  %516 = vmatprep.subr.bf16.mxu0 0
  %517 = vmatpush1.bf16.msra.mxu0 0
  %518 = vmatprep.mubr.bf16.mxu0 0
  %519 = vmatmul.mubr.bf16.gmra.mrb[0].mxu0 %v101
  %v520 = vpop.f32.mrb[0].mxu0
  %v521 = vadd.f32 0.0, %v520
  %v522 = vpop.f32.mrb[0].mxu0
  %v523 = vadd.f32 0.0, %v522
  %v524 = vpop.f32.mrb[0].mxu0
  %v525 = vpop.f32.mrb[0].mxu0
  %526 = vdwg.mxu0
  %527 = vmatprep.subr.bf16.mxu0 %v361
  %528 = vmatpush1.bf16.msra.mxu0 %v360
  %529 = vmatprep.subr.bf16.mxu0 %v369
  %530 = vmatpush1.bf16.msra.mxu0 %v368
  %531 = vmatprep.subr.bf16.mxu0 %v377
  %532 = vmatpush1.bf16.msra.mxu0 %v376
  %533 = vmatprep.subr.bf16.mxu0 %v385
  %534 = vmatpush1.bf16.msra.mxu0 %v384
  %535 = vmatprep.subr.bf16.mxu0 %v393
  %536 = vmatpush1.bf16.msra.mxu0 %v392
  %537 = vmatprep.subr.bf16.mxu0 %v401
  %538 = vmatpush1.bf16.msra.mxu0 %v400
  %539 = vmatprep.subr.bf16.mxu0 %v409
  %540 = vmatpush1.bf16.msra.mxu0 %v408
  %541 = vmatprep.subr.bf16.mxu0 %v417
  %542 = vmatpush1.bf16.msra.mxu0 %v416
  %543 = vmatprep.subr.bf16.mxu0 0
  %544 = vmatpush1.bf16.msra.mxu0 0
  %545 = vmatprep.subr.bf16.mxu0 0
  %546 = vmatpush1.bf16.msra.mxu0 0
  %547 = vmatprep.subr.bf16.mxu0 0
  %548 = vmatpush1.bf16.msra.mxu0 0
  %549 = vmatprep.subr.bf16.mxu0 0
  %550 = vmatpush1.bf16.msra.mxu0 0
  %551 = vmatprep.subr.bf16.mxu0 0
  %552 = vmatpush1.bf16.msra.mxu0 0
  %553 = vmatprep.subr.bf16.mxu0 0
  %554 = vmatpush1.bf16.msra.mxu0 0
  %555 = vmatprep.subr.bf16.mxu0 0
  %556 = vmatpush1.bf16.msra.mxu0 0
  %557 = vmatprep.subr.bf16.mxu0 0
  %558 = vmatpush1.bf16.msra.mxu0 0
  %559 = vmatprep.mubr.bf16.mxu0 0
  %560 = vmatmul.mubr.bf16.gmra.mrb[0].mxu0 %v101
  %v561 = vpop.f32.mrb[0].mxu0
  %v562 = vadd.f32 0.0, %v561
  %v563 = vpop.f32.mrb[0].mxu0
  %v564 = vadd.f32 0.0, %v563
  %v565 = vpop.f32.mrb[0].mxu0
  %v566 = vpop.f32.mrb[0].mxu0
  %567 = vdwg.mxu0
  %568 = vmatprep.subr.bf16.mxu0 %v363
  %569 = vmatpush1.bf16.msra.mxu0 %v362
  %570 = vmatprep.subr.bf16.mxu0 %v371
  %571 = vmatpush1.bf16.msra.mxu0 %v370
  %572 = vmatprep.subr.bf16.mxu0 %v379
  %573 = vmatpush1.bf16.msra.mxu0 %v378
  %574 = vmatprep.subr.bf16.mxu0 %v387
  %575 = vmatpush1.bf16.msra.mxu0 %v386
  %576 = vmatprep.subr.bf16.mxu0 %v395
  %577 = vmatpush1.bf16.msra.mxu0 %v394
  %578 = vmatprep.subr.bf16.mxu0 %v403
  %579 = vmatpush1.bf16.msra.mxu0 %v402
  %580 = vmatprep.subr.bf16.mxu0 %v411
  %581 = vmatpush1.bf16.msra.mxu0 %v410
  %582 = vmatprep.subr.bf16.mxu0 %v419
  %583 = vmatpush1.bf16.msra.mxu0 %v418
  %584 = vmatprep.subr.bf16.mxu0 0
  %585 = vmatpush1.bf16.msra.mxu0 0
  %586 = vmatprep.subr.bf16.mxu0 0
  %587 = vmatpush1.bf16.msra.mxu0 0
  %588 = vmatprep.subr.bf16.mxu0 0
  %589 = vmatpush1.bf16.msra.mxu0 0
  %590 = vmatprep.subr.bf16.mxu0 0
  %591 = vmatpush1.bf16.msra.mxu0 0
  %592 = vmatprep.subr.bf16.mxu0 0
  %593 = vmatpush1.bf16.msra.mxu0 0
  %594 = vmatprep.subr.bf16.mxu0 0
  %595 = vmatpush1.bf16.msra.mxu0 0
  %596 = vmatprep.subr.bf16.mxu0 0
  %597 = vmatpush1.bf16.msra.mxu0 0
  %598 = vmatprep.subr.bf16.mxu0 0
  %599 = vmatpush1.bf16.msra.mxu0 0
  %600 = vmatprep.mubr.bf16.mxu0 0
  %601 = vmatmul.mubr.bf16.gmra.mrb[0].mxu0 %v101
  %v602 = vpop.f32.mrb[0].mxu0
  %v603 = vadd.f32 0.0, %v602
  %v604 = vpop.f32.mrb[0].mxu0
  %v605 = vadd.f32 0.0, %v604
  %v606 = vpop.f32.mrb[0].mxu0
  %v607 = vpop.f32.mrb[0].mxu0
  %608 = vdwg.mxu0
  %609 = vmatprep.subr.bf16.mxu0 %v365
  %610 = vmatpush1.bf16.msra.mxu0 %v364
  %611 = vmatprep.subr.bf16.mxu0 %v373
  %612 = vmatpush1.bf16.msra.mxu0 %v372
  %613 = vmatprep.subr.bf16.mxu0 %v381
  %614 = vmatpush1.bf16.msra.mxu0 %v380
  %615 = vmatprep.subr.bf16.mxu0 %v389
  %616 = vmatpush1.bf16.msra.mxu0 %v388
  %617 = vmatprep.subr.bf16.mxu0 %v397
  %618 = vmatpush1.bf16.msra.mxu0 %v396
  %619 = vmatprep.subr.bf16.mxu0 %v405
  %620 = vmatpush1.bf16.msra.mxu0 %v404
  %621 = vmatprep.subr.bf16.mxu0 %v413
  %622 = vmatpush1.bf16.msra.mxu0 %v412
  %623 = vmatprep.subr.bf16.mxu0 %v421
  %624 = vmatpush1.bf16.msra.mxu0 %v420
  %625 = vmatprep.subr.bf16.mxu0 0
  %626 = vmatpush1.bf16.msra.mxu0 0
  %627 = vmatprep.subr.bf16.mxu0 0
  %628 = vmatpush1.bf16.msra.mxu0 0
  %629 = vmatprep.subr.bf16.mxu0 0
  %630 = vmatpush1.bf16.msra.mxu0 0
  %631 = vmatprep.subr.bf16.mxu0 0
  %632 = vmatpush1.bf16.msra.mxu0 0
  %633 = vmatprep.subr.bf16.mxu0 0
  %634 = vmatpush1.bf16.msra.mxu0 0
  %635 = vmatprep.subr.bf16.mxu0 0
  %636 = vmatpush1.bf16.msra.mxu0 0
  %637 = vmatprep.subr.bf16.mxu0 0
  %638 = vmatpush1.bf16.msra.mxu0 0
  %639 = vmatprep.subr.bf16.mxu0 0
  %640 = vmatpush1.bf16.msra.mxu0 0
  %641 = vmatprep.mubr.bf16.mxu0 0
  %642 = vmatmul.mubr.bf16.gmra.mrb[0].mxu0 %v101
  %v643 = vpop.f32.mrb[0].mxu0
  %v644 = vadd.f32 0.0, %v643
  %v645 = vpop.f32.mrb[0].mxu0
  %v646 = vadd.f32 0.0, %v645
  %v647 = vpop.f32.mrb[0].mxu0
  %v648 = vpop.f32.mrb[0].mxu0
  %649 = vdwg.mxu0
  %v650 = vadd.f32 %v93, %v521
  %v651 = vadd.f32 %v94, %v523
  %v652 = vadd.f32 %v95, %v562
  %v653 = vadd.f32 %v96, %v564
  %v654 = vadd.f32 %v97, %v603
  %v655 = vadd.f32 %v98, %v605
  %v656 = vadd.f32 %v99, %v644
  %v657 = vadd.f32 %v100, %v646
  %v658 = vmax.f32 %v650, 0.0
  %v659 = vmax.f32 %v651, 0.0
  %v660 = vmax.f32 %v652, 0.0
  %v661 = vmax.f32 %v653, 0.0
  %v662 = vmax.f32 %v654, 0.0
  %v663 = vmax.f32 %v655, 0.0
  %v664 = vmax.f32 %v656, 0.0
  %v665 = vmax.f32 %v657, 0.0
  %v666 = vpack.c.bf16 %v658, %v658
  %v667 = vpack.c.bf16 %v659, %v659
  %v668 = vpack.c.bf16 %v660, %v660
  %v669 = vpack.c.bf16 %v661, %v661
  %v670 = vpack.c.bf16 %v662, %v662
  %v671 = vpack.c.bf16 %v663, %v663
  %v672 = vpack.c.bf16 %v664, %v664
  %v673 = vpack.c.bf16 %v665, %v665
  %v674 = vld [vmem:[%s4] sm:$0xff]
  %v675 = vld [vmem:[%s4 + $0x8] sm:$0xff]
  %v676 = vld [vmem:[%s4 + $0x10] sm:$0xff]
  %v677 = vld [vmem:[%s4 + $0x18] sm:$0xff]
  %v678 = vld [vmem:[%s4 + $0x20] sm:$0xff]
  %v679 = vld [vmem:[%s4 + $0x28] sm:$0xff]
  %v680 = vld [vmem:[%s4 + $0x30] sm:$0xff]
  %v681 = vld [vmem:[%s4 + $0x38] sm:$0xff]
  %v682 = vld [vmem:[%s4 + $0x40] sm:$0xff]
  %v683 = vld [vmem:[%s4 + $0x48] sm:$0xff]
  %v684 = vld [vmem:[%s4 + $0x50] sm:$0xff]
  %v685 = vld [vmem:[%s4 + $0x58] sm:$0xff]
  %v686 = vld [vmem:[%s4 + $0x60] sm:$0xff]
  %v687 = vld [vmem:[%s4 + $0x68] sm:$0xff]
  %v688 = vld [vmem:[%s4 + $0x70] sm:$0xff]
  %v689 = vld [vmem:[%s4 + $0x78] sm:$0xff]
  %v690 = vld [vmem:[%s4 + $0x80] sm:$0xff]
  %v691 = vld [vmem:[%s4 + $0x88] sm:$0xff]
  %v692 = vld [vmem:[%s4 + $0x90] sm:$0xff]
  %v693 = vld [vmem:[%s4 + $0x98] sm:$0xff]
  %v694 = vld [vmem:[%s4 + $0xa0] sm:$0xff]
  %v695 = vld [vmem:[%s4 + $0xa8] sm:$0xff]
  %v696 = vld [vmem:[%s4 + $0xb0] sm:$0xff]
  %v697 = vld [vmem:[%s4 + $0xb8] sm:$0xff]
  %v698 = vld [vmem:[%s4 + $0xc0] sm:$0xff]
  %v699 = vld [vmem:[%s4 + $0xc8] sm:$0xff]
  %v700 = vld [vmem:[%s4 + $0xd0] sm:$0xff]
  %v701 = vld [vmem:[%s4 + $0xd8] sm:$0xff]
  %v702 = vld [vmem:[%s4 + $0xe0] sm:$0xff]
  %v703 = vld [vmem:[%s4 + $0xe8] sm:$0xff]
  %v704 = vld [vmem:[%s4 + $0xf0] sm:$0xff]
  %v705 = vld [vmem:[%s4 + $0xf8] sm:$0xff]
  %v706 = vld [vmem:[%s4 + $0x100] sm:$0xff]
  %v707 = vld [vmem:[%s4 + $0x108] sm:$0xff]
  %v708 = vld [vmem:[%s4 + $0x110] sm:$0xff]
  %v709 = vld [vmem:[%s4 + $0x118] sm:$0xff]
  %v710 = vld [vmem:[%s4 + $0x120] sm:$0xff]
  %v711 = vld [vmem:[%s4 + $0x128] sm:$0xff]
  %v712 = vld [vmem:[%s4 + $0x130] sm:$0xff]
  %v713 = vld [vmem:[%s4 + $0x138] sm:$0xff]
  %v714 = vld [vmem:[%s4 + $0x140] sm:$0xff]
  %v715 = vld [vmem:[%s4 + $0x148] sm:$0xff]
  %v716 = vld [vmem:[%s4 + $0x150] sm:$0xff]
  %v717 = vld [vmem:[%s4 + $0x158] sm:$0xff]
  %v718 = vld [vmem:[%s4 + $0x160] sm:$0xff]
  %v719 = vld [vmem:[%s4 + $0x168] sm:$0xff]
  %v720 = vld [vmem:[%s4 + $0x170] sm:$0xff]
  %v721 = vld [vmem:[%s4 + $0x178] sm:$0xff]
  %v722 = vld [vmem:[%s4 + $0x180] sm:$0xff]
  %v723 = vld [vmem:[%s4 + $0x188] sm:$0xff]
  %v724 = vld [vmem:[%s4 + $0x190] sm:$0xff]
  %v725 = vld [vmem:[%s4 + $0x198] sm:$0xff]
  %v726 = vld [vmem:[%s4 + $0x1a0] sm:$0xff]
  %v727 = vld [vmem:[%s4 + $0x1a8] sm:$0xff]
  %v728 = vld [vmem:[%s4 + $0x1b0] sm:$0xff]
  %v729 = vld [vmem:[%s4 + $0x1b8] sm:$0xff]
  %v730 = vld [vmem:[%s4 + $0x1c0] sm:$0xff]
  %v731 = vld [vmem:[%s4 + $0x1c8] sm:$0xff]
  %v732 = vld [vmem:[%s4 + $0x1d0] sm:$0xff]
  %v733 = vld [vmem:[%s4 + $0x1d8] sm:$0xff]
  %v734 = vld [vmem:[%s4 + $0x1e0] sm:$0xff]
  %v735 = vld [vmem:[%s4 + $0x1e8] sm:$0xff]
  %v736 = vld [vmem:[%s4 + $0x1f0] sm:$0xff]
  %v737 = vld [vmem:[%s4 + $0x1f8] sm:$0xff]
  %v738 = vld [vmem:[%s4 + $0x200] sm:$0xff]
  %v739 = vld [vmem:[%s4 + $0x208] sm:$0xff]
  %v740 = vld [vmem:[%s4 + $0x210] sm:$0xff]
  %v741 = vld [vmem:[%s4 + $0x218] sm:$0xff]
  %v742 = vld [vmem:[%s4 + $0x220] sm:$0xff]
  %v743 = vld [vmem:[%s4 + $0x228] sm:$0xff]
  %v744 = vld [vmem:[%s4 + $0x230] sm:$0xff]
  %v745 = vld [vmem:[%s4 + $0x238] sm:$0xff]
  %v746 = vld [vmem:[%s4 + $0x240] sm:$0xff]
  %v747 = vld [vmem:[%s4 + $0x248] sm:$0xff]
  %v748 = vld [vmem:[%s4 + $0x250] sm:$0xff]
  %v749 = vld [vmem:[%s4 + $0x258] sm:$0xff]
  %v750 = vld [vmem:[%s4 + $0x260] sm:$0xff]
  %v751 = vld [vmem:[%s4 + $0x268] sm:$0xff]
  %v752 = vld [vmem:[%s4 + $0x270] sm:$0xff]
  %v753 = vld [vmem:[%s4 + $0x278] sm:$0xff]
  %v754 = vld [vmem:[%s4 + $0x280] sm:$0xff]
  %v755 = vld [vmem:[%s4 + $0x288] sm:$0xff]
  %v756 = vld [vmem:[%s4 + $0x290] sm:$0xff]
  %v757 = vld [vmem:[%s4 + $0x298] sm:$0xff]
  %v758 = vld [vmem:[%s4 + $0x2a0] sm:$0xff]
  %v759 = vld [vmem:[%s4 + $0x2a8] sm:$0xff]
  %v760 = vld [vmem:[%s4 + $0x2b0] sm:$0xff]
  %v761 = vld [vmem:[%s4 + $0x2b8] sm:$0xff]
  %v762 = vld [vmem:[%s4 + $0x2c0] sm:$0xff]
  %v763 = vld [vmem:[%s4 + $0x2c8] sm:$0xff]
  %v764 = vld [vmem:[%s4 + $0x2d0] sm:$0xff]
  %v765 = vld [vmem:[%s4 + $0x2d8] sm:$0xff]
  %v766 = vld [vmem:[%s4 + $0x2e0] sm:$0xff]
  %v767 = vld [vmem:[%s4 + $0x2e8] sm:$0xff]
  %v768 = vld [vmem:[%s4 + $0x2f0] sm:$0xff]
  %v769 = vld [vmem:[%s4 + $0x2f8] sm:$0xff]
  %v770 = vld [vmem:[%s4 + $0x300] sm:$0xff]
  %v771 = vld [vmem:[%s4 + $0x308] sm:$0xff]
  %v772 = vld [vmem:[%s4 + $0x310] sm:$0xff]
  %v773 = vld [vmem:[%s4 + $0x318] sm:$0xff]
  %v774 = vld [vmem:[%s4 + $0x320] sm:$0xff]
  %v775 = vld [vmem:[%s4 + $0x328] sm:$0xff]
  %v776 = vld [vmem:[%s4 + $0x330] sm:$0xff]
  %v777 = vld [vmem:[%s4 + $0x338] sm:$0xff]
  %v778 = vld [vmem:[%s4 + $0x340] sm:$0xff]
  %v779 = vld [vmem:[%s4 + $0x348] sm:$0xff]
  %v780 = vld [vmem:[%s4 + $0x350] sm:$0xff]
  %v781 = vld [vmem:[%s4 + $0x358] sm:$0xff]
  %v782 = vld [vmem:[%s4 + $0x360] sm:$0xff]
  %v783 = vld [vmem:[%s4 + $0x368] sm:$0xff]
  %v784 = vld [vmem:[%s4 + $0x370] sm:$0xff]
  %v785 = vld [vmem:[%s4 + $0x378] sm:$0xff]
  %v786 = vld [vmem:[%s4 + $0x380] sm:$0xff]
  %v787 = vld [vmem:[%s4 + $0x388] sm:$0xff]
  %v788 = vld [vmem:[%s4 + $0x390] sm:$0xff]
  %v789 = vld [vmem:[%s4 + $0x398] sm:$0xff]
  %v790 = vld [vmem:[%s4 + $0x3a0] sm:$0xff]
  %v791 = vld [vmem:[%s4 + $0x3a8] sm:$0xff]
  %v792 = vld [vmem:[%s4 + $0x3b0] sm:$0xff]
  %v793 = vld [vmem:[%s4 + $0x3b8] sm:$0xff]
  %v794 = vld [vmem:[%s4 + $0x3c0] sm:$0xff]
  %v795 = vld [vmem:[%s4 + $0x3c8] sm:$0xff]
  %v796 = vld [vmem:[%s4 + $0x3d0] sm:$0xff]
  %v797 = vld [vmem:[%s4 + $0x3d8] sm:$0xff]
  %v798 = vld [vmem:[%s4 + $0x3e0] sm:$0xff]
  %v799 = vld [vmem:[%s4 + $0x3e8] sm:$0xff]
  %v800 = vld [vmem:[%s4 + $0x3f0] sm:$0xff]
  %v801 = vld [vmem:[%s4 + $0x3f8] sm:$0xff]
  %v802 = vld [vmem:[%s4 + $0x400] sm:$0xff]
  %v803 = vld [vmem:[%s4 + $0x408] sm:$0xff]
  %v804 = vld [vmem:[%s4 + $0x410] sm:$0xff]
  %v805 = vld [vmem:[%s4 + $0x418] sm:$0xff]
  %v806 = vld [vmem:[%s4 + $0x420] sm:$0xff]
  %v807 = vld [vmem:[%s4 + $0x428] sm:$0xff]
  %v808 = vld [vmem:[%s4 + $0x430] sm:$0xff]
  %v809 = vld [vmem:[%s4 + $0x438] sm:$0xff]
  %v810 = vld [vmem:[%s4 + $0x440] sm:$0xff]
  %v811 = vld [vmem:[%s4 + $0x448] sm:$0xff]
  %v812 = vld [vmem:[%s4 + $0x450] sm:$0xff]
  %v813 = vld [vmem:[%s4 + $0x458] sm:$0xff]
  %v814 = vld [vmem:[%s4 + $0x460] sm:$0xff]
  %v815 = vld [vmem:[%s4 + $0x468] sm:$0xff]
  %v816 = vld [vmem:[%s4 + $0x470] sm:$0xff]
  %v817 = vld [vmem:[%s4 + $0x478] sm:$0xff]
  %v818 = vld [vmem:[%s4 + $0x480] sm:$0xff]
  %v819 = vld [vmem:[%s4 + $0x488] sm:$0xff]
  %v820 = vld [vmem:[%s4 + $0x490] sm:$0xff]
  %v821 = vld [vmem:[%s4 + $0x498] sm:$0xff]
  %v822 = vld [vmem:[%s4 + $0x4a0] sm:$0xff]
  %v823 = vld [vmem:[%s4 + $0x4a8] sm:$0xff]
  %v824 = vld [vmem:[%s4 + $0x4b0] sm:$0xff]
  %v825 = vld [vmem:[%s4 + $0x4b8] sm:$0xff]
  %v826 = vld [vmem:[%s4 + $0x4c0] sm:$0xff]
  %v827 = vld [vmem:[%s4 + $0x4c8] sm:$0xff]
  %v828 = vld [vmem:[%s4 + $0x4d0] sm:$0xff]
  %v829 = vld [vmem:[%s4 + $0x4d8] sm:$0xff]
  %v830 = vld [vmem:[%s4 + $0x4e0] sm:$0xff]
  %v831 = vld [vmem:[%s4 + $0x4e8] sm:$0xff]
  %v832 = vld [vmem:[%s4 + $0x4f0] sm:$0xff]
  %v833 = vld [vmem:[%s4 + $0x4f8] sm:$0xff]
  %v834 = vld [vmem:[%s4 + $0x500] sm:$0xff]
  %v835 = vld [vmem:[%s4 + $0x508] sm:$0xff]
  %v836 = vld [vmem:[%s4 + $0x510] sm:$0xff]
  %v837 = vld [vmem:[%s4 + $0x518] sm:$0xff]
  %v838 = vld [vmem:[%s4 + $0x520] sm:$0xff]
  %v839 = vld [vmem:[%s4 + $0x528] sm:$0xff]
  %v840 = vld [vmem:[%s4 + $0x530] sm:$0xff]
  %v841 = vld [vmem:[%s4 + $0x538] sm:$0xff]
  %v842 = vld [vmem:[%s4 + $0x540] sm:$0xff]
  %v843 = vld [vmem:[%s4 + $0x548] sm:$0xff]
  %v844 = vld [vmem:[%s4 + $0x550] sm:$0xff]
  %v845 = vld [vmem:[%s4 + $0x558] sm:$0xff]
  %v846 = vld [vmem:[%s4 + $0x560] sm:$0xff]
  %v847 = vld [vmem:[%s4 + $0x568] sm:$0xff]
  %v848 = vld [vmem:[%s4 + $0x570] sm:$0xff]
  %v849 = vld [vmem:[%s4 + $0x578] sm:$0xff]
  %v850 = vld [vmem:[%s4 + $0x580] sm:$0xff]
  %v851 = vld [vmem:[%s4 + $0x588] sm:$0xff]
  %v852 = vld [vmem:[%s4 + $0x590] sm:$0xff]
  %v853 = vld [vmem:[%s4 + $0x598] sm:$0xff]
  %v854 = vld [vmem:[%s4 + $0x5a0] sm:$0xff]
  %v855 = vld [vmem:[%s4 + $0x5a8] sm:$0xff]
  %v856 = vld [vmem:[%s4 + $0x5b0] sm:$0xff]
  %v857 = vld [vmem:[%s4 + $0x5b8] sm:$0xff]
  %v858 = vld [vmem:[%s4 + $0x5c0] sm:$0xff]
  %v859 = vld [vmem:[%s4 + $0x5c8] sm:$0xff]
  %v860 = vld [vmem:[%s4 + $0x5d0] sm:$0xff]
  %v861 = vld [vmem:[%s4 + $0x5d8] sm:$0xff]
  %v862 = vld [vmem:[%s4 + $0x5e0] sm:$0xff]
  %v863 = vld [vmem:[%s4 + $0x5e8] sm:$0xff]
  %v864 = vld [vmem:[%s4 + $0x5f0] sm:$0xff]
  %v865 = vld [vmem:[%s4 + $0x5f8] sm:$0xff]
  %v866 = vld [vmem:[%s4 + $0x600] sm:$0xff]
  %v867 = vld [vmem:[%s4 + $0x608] sm:$0xff]
  %v868 = vld [vmem:[%s4 + $0x610] sm:$0xff]
  %v869 = vld [vmem:[%s4 + $0x618] sm:$0xff]
  %v870 = vld [vmem:[%s4 + $0x620] sm:$0xff]
  %v871 = vld [vmem:[%s4 + $0x628] sm:$0xff]
  %v872 = vld [vmem:[%s4 + $0x630] sm:$0xff]
  %v873 = vld [vmem:[%s4 + $0x638] sm:$0xff]
  %v874 = vld [vmem:[%s4 + $0x640] sm:$0xff]
  %v875 = vld [vmem:[%s4 + $0x648] sm:$0xff]
  %v876 = vld [vmem:[%s4 + $0x650] sm:$0xff]
  %v877 = vld [vmem:[%s4 + $0x658] sm:$0xff]
  %v878 = vld [vmem:[%s4 + $0x660] sm:$0xff]
  %v879 = vld [vmem:[%s4 + $0x668] sm:$0xff]
  %v880 = vld [vmem:[%s4 + $0x670] sm:$0xff]
  %v881 = vld [vmem:[%s4 + $0x678] sm:$0xff]
  %v882 = vld [vmem:[%s4 + $0x680] sm:$0xff]
  %v883 = vld [vmem:[%s4 + $0x688] sm:$0xff]
  %v884 = vld [vmem:[%s4 + $0x690] sm:$0xff]
  %v885 = vld [vmem:[%s4 + $0x698] sm:$0xff]
  %v886 = vld [vmem:[%s4 + $0x6a0] sm:$0xff]
  %v887 = vld [vmem:[%s4 + $0x6a8] sm:$0xff]
  %v888 = vld [vmem:[%s4 + $0x6b0] sm:$0xff]
  %v889 = vld [vmem:[%s4 + $0x6b8] sm:$0xff]
  %v890 = vld [vmem:[%s4 + $0x6c0] sm:$0xff]
  %v891 = vld [vmem:[%s4 + $0x6c8] sm:$0xff]
  %v892 = vld [vmem:[%s4 + $0x6d0] sm:$0xff]
  %v893 = vld [vmem:[%s4 + $0x6d8] sm:$0xff]
  %v894 = vld [vmem:[%s4 + $0x6e0] sm:$0xff]
  %v895 = vld [vmem:[%s4 + $0x6e8] sm:$0xff]
  %v896 = vld [vmem:[%s4 + $0x6f0] sm:$0xff]
  %v897 = vld [vmem:[%s4 + $0x6f8] sm:$0xff]
  %v898 = vld [vmem:[%s4 + $0x700] sm:$0xff]
  %v899 = vld [vmem:[%s4 + $0x708] sm:$0xff]
  %v900 = vld [vmem:[%s4 + $0x710] sm:$0xff]
  %v901 = vld [vmem:[%s4 + $0x718] sm:$0xff]
  %v902 = vld [vmem:[%s4 + $0x720] sm:$0xff]
  %v903 = vld [vmem:[%s4 + $0x728] sm:$0xff]
  %v904 = vld [vmem:[%s4 + $0x730] sm:$0xff]
  %v905 = vld [vmem:[%s4 + $0x738] sm:$0xff]
  %v906 = vld [vmem:[%s4 + $0x740] sm:$0xff]
  %v907 = vld [vmem:[%s4 + $0x748] sm:$0xff]
  %v908 = vld [vmem:[%s4 + $0x750] sm:$0xff]
  %v909 = vld [vmem:[%s4 + $0x758] sm:$0xff]
  %v910 = vld [vmem:[%s4 + $0x760] sm:$0xff]
  %v911 = vld [vmem:[%s4 + $0x768] sm:$0xff]
  %v912 = vld [vmem:[%s4 + $0x770] sm:$0xff]
  %v913 = vld [vmem:[%s4 + $0x778] sm:$0xff]
  %v914 = vld [vmem:[%s4 + $0x780] sm:$0xff]
  %v915 = vld [vmem:[%s4 + $0x788] sm:$0xff]
  %v916 = vld [vmem:[%s4 + $0x790] sm:$0xff]
  %v917 = vld [vmem:[%s4 + $0x798] sm:$0xff]
  %v918 = vld [vmem:[%s4 + $0x7a0] sm:$0xff]
  %v919 = vld [vmem:[%s4 + $0x7a8] sm:$0xff]
  %v920 = vld [vmem:[%s4 + $0x7b0] sm:$0xff]
  %v921 = vld [vmem:[%s4 + $0x7b8] sm:$0xff]
  %v922 = vld [vmem:[%s4 + $0x7c0] sm:$0xff]
  %v923 = vld [vmem:[%s4 + $0x7c8] sm:$0xff]
  %v924 = vld [vmem:[%s4 + $0x7d0] sm:$0xff]
  %v925 = vld [vmem:[%s4 + $0x7d8] sm:$0xff]
  %v926 = vld [vmem:[%s4 + $0x7e0] sm:$0xff]
  %v927 = vld [vmem:[%s4 + $0x7e8] sm:$0xff]
  %v928 = vld [vmem:[%s4 + $0x7f0] sm:$0xff]
  %v929 = vld [vmem:[%s4 + $0x7f8] sm:$0xff]
  %v930 = vld [vmem:[%s5] sm:$0xf]
  %v932 = vlaneseq
  %v933 = vshrl.u32 %v932, 7
  %v934 = vsub.s32 0, %v933
  %v935 = vrot.slane %v930, %v934
  %v936 = vlaneseq
  %v937 = vshrl.u32 %v936, 7
  %v938 = vsub.s32 1, %v937
  %v939 = vrot.slane %v930, %v938
  %v940 = vlaneseq
  %v941 = vshrl.u32 %v940, 7
  %v942 = vsub.s32 2, %v941
  %v943 = vrot.slane %v930, %v942
  %v944 = vlaneseq
  %v945 = vshrl.u32 %v944, 7
  %v946 = vsub.s32 3, %v945
  %v947 = vrot.slane %v930, %v946
  %v1208 = vunpack.c.l.b16 %v674
  %v1209 = vunpack.c.h.b16 %v674
  %v1210 = vunpack.c.l.b16 %v675
  %v1211 = vunpack.c.h.b16 %v675
  %v1212 = vunpack.c.l.b16 %v676
  %v1213 = vunpack.c.h.b16 %v676
  %v1214 = vunpack.c.l.b16 %v677
  %v1215 = vunpack.c.h.b16 %v677
  %v1216 = vunpack.c.l.b16 %v678
  %v1217 = vunpack.c.h.b16 %v678
  %v1218 = vunpack.c.l.b16 %v679
  %v1219 = vunpack.c.h.b16 %v679
  %v1220 = vunpack.c.l.b16 %v680
  %v1221 = vunpack.c.h.b16 %v680
  %v1222 = vunpack.c.l.b16 %v681
  %v1223 = vunpack.c.h.b16 %v681
  %v1224 = vunpack.c.l.b16 %v682
  %v1225 = vunpack.c.h.b16 %v682
  %v1226 = vunpack.c.l.b16 %v683
  %v1227 = vunpack.c.h.b16 %v683
  %v1228 = vunpack.c.l.b16 %v684
  %v1229 = vunpack.c.h.b16 %v684
  %v1230 = vunpack.c.l.b16 %v685
  %v1231 = vunpack.c.h.b16 %v685
  %v1232 = vunpack.c.l.b16 %v686
  %v1233 = vunpack.c.h.b16 %v686
  %v1234 = vunpack.c.l.b16 %v687
  %v1235 = vunpack.c.h.b16 %v687
  %v1236 = vunpack.c.l.b16 %v688
  %v1237 = vunpack.c.h.b16 %v688
  %v1238 = vunpack.c.l.b16 %v689
  %v1239 = vunpack.c.h.b16 %v689
  %v1240 = vunpack.c.l.b16 %v690
  %v1241 = vunpack.c.h.b16 %v690
  %v1242 = vunpack.c.l.b16 %v691
  %v1243 = vunpack.c.h.b16 %v691
  %v1244 = vunpack.c.l.b16 %v692
  %v1245 = vunpack.c.h.b16 %v692
  %v1246 = vunpack.c.l.b16 %v693
  %v1247 = vunpack.c.h.b16 %v693
  %v1248 = vunpack.c.l.b16 %v694
  %v1249 = vunpack.c.h.b16 %v694
  %v1250 = vunpack.c.l.b16 %v695
  %v1251 = vunpack.c.h.b16 %v695
  %v1252 = vunpack.c.l.b16 %v696
  %v1253 = vunpack.c.h.b16 %v696
  %v1254 = vunpack.c.l.b16 %v697
  %v1255 = vunpack.c.h.b16 %v697
  %v1256 = vunpack.c.l.b16 %v698
  %v1257 = vunpack.c.h.b16 %v698
  %v1258 = vunpack.c.l.b16 %v699
  %v1259 = vunpack.c.h.b16 %v699
  %v1260 = vunpack.c.l.b16 %v700
  %v1261 = vunpack.c.h.b16 %v700
  %v1262 = vunpack.c.l.b16 %v701
  %v1263 = vunpack.c.h.b16 %v701
  %v1264 = vunpack.c.l.b16 %v702
  %v1265 = vunpack.c.h.b16 %v702
  %v1266 = vunpack.c.l.b16 %v703
  %v1267 = vunpack.c.h.b16 %v703
  %v1268 = vunpack.c.l.b16 %v704
  %v1269 = vunpack.c.h.b16 %v704
  %v1270 = vunpack.c.l.b16 %v705
  %v1271 = vunpack.c.h.b16 %v705
  %v1272 = vunpack.c.l.b16 %v706
  %v1273 = vunpack.c.h.b16 %v706
  %v1274 = vunpack.c.l.b16 %v707
  %v1275 = vunpack.c.h.b16 %v707
  %v1276 = vunpack.c.l.b16 %v708
  %v1277 = vunpack.c.h.b16 %v708
  %v1278 = vunpack.c.l.b16 %v709
  %v1279 = vunpack.c.h.b16 %v709
  %v1280 = vunpack.c.l.b16 %v710
  %v1281 = vunpack.c.h.b16 %v710
  %v1282 = vunpack.c.l.b16 %v711
  %v1283 = vunpack.c.h.b16 %v711
  %v1284 = vunpack.c.l.b16 %v712
  %v1285 = vunpack.c.h.b16 %v712
  %v1286 = vunpack.c.l.b16 %v713
  %v1287 = vunpack.c.h.b16 %v713
  %v1288 = vunpack.c.l.b16 %v714
  %v1289 = vunpack.c.h.b16 %v714
  %v1290 = vunpack.c.l.b16 %v715
  %v1291 = vunpack.c.h.b16 %v715
  %v1292 = vunpack.c.l.b16 %v716
  %v1293 = vunpack.c.h.b16 %v716
  %v1294 = vunpack.c.l.b16 %v717
  %v1295 = vunpack.c.h.b16 %v717
  %v1296 = vunpack.c.l.b16 %v718
  %v1297 = vunpack.c.h.b16 %v718
  %v1298 = vunpack.c.l.b16 %v719
  %v1299 = vunpack.c.h.b16 %v719
  %v1300 = vunpack.c.l.b16 %v720
  %v1301 = vunpack.c.h.b16 %v720
  %v1302 = vunpack.c.l.b16 %v721
  %v1303 = vunpack.c.h.b16 %v721
  %v1304 = vunpack.c.l.b16 %v722
  %v1305 = vunpack.c.h.b16 %v722
  %v1306 = vunpack.c.l.b16 %v723
  %v1307 = vunpack.c.h.b16 %v723
  %v1308 = vunpack.c.l.b16 %v724
  %v1309 = vunpack.c.h.b16 %v724
  %v1310 = vunpack.c.l.b16 %v725
  %v1311 = vunpack.c.h.b16 %v725
  %v1312 = vunpack.c.l.b16 %v726
  %v1313 = vunpack.c.h.b16 %v726
  %v1314 = vunpack.c.l.b16 %v727
  %v1315 = vunpack.c.h.b16 %v727
  %v1316 = vunpack.c.l.b16 %v728
  %v1317 = vunpack.c.h.b16 %v728
  %v1318 = vunpack.c.l.b16 %v729
  %v1319 = vunpack.c.h.b16 %v729
  %v1320 = vunpack.c.l.b16 %v730
  %v1321 = vunpack.c.h.b16 %v730
  %v1322 = vunpack.c.l.b16 %v731
  %v1323 = vunpack.c.h.b16 %v731
  %v1324 = vunpack.c.l.b16 %v732
  %v1325 = vunpack.c.h.b16 %v732
  %v1326 = vunpack.c.l.b16 %v733
  %v1327 = vunpack.c.h.b16 %v733
  %v1328 = vunpack.c.l.b16 %v734
  %v1329 = vunpack.c.h.b16 %v734
  %v1330 = vunpack.c.l.b16 %v735
  %v1331 = vunpack.c.h.b16 %v735
  %v1332 = vunpack.c.l.b16 %v736
  %v1333 = vunpack.c.h.b16 %v736
  %v1334 = vunpack.c.l.b16 %v737
  %v1335 = vunpack.c.h.b16 %v737
  %v1336 = vunpack.c.l.b16 %v738
  %v1337 = vunpack.c.h.b16 %v738
  %v1338 = vunpack.c.l.b16 %v739
  %v1339 = vunpack.c.h.b16 %v739
  %v1340 = vunpack.c.l.b16 %v740
  %v1341 = vunpack.c.h.b16 %v740
  %v1342 = vunpack.c.l.b16 %v741
  %v1343 = vunpack.c.h.b16 %v741
  %v1344 = vunpack.c.l.b16 %v742
  %v1345 = vunpack.c.h.b16 %v742
  %v1346 = vunpack.c.l.b16 %v743
  %v1347 = vunpack.c.h.b16 %v743
  %v1348 = vunpack.c.l.b16 %v744
  %v1349 = vunpack.c.h.b16 %v744
  %v1350 = vunpack.c.l.b16 %v745
  %v1351 = vunpack.c.h.b16 %v745
  %v1352 = vunpack.c.l.b16 %v746
  %v1353 = vunpack.c.h.b16 %v746
  %v1354 = vunpack.c.l.b16 %v747
  %v1355 = vunpack.c.h.b16 %v747
  %v1356 = vunpack.c.l.b16 %v748
  %v1357 = vunpack.c.h.b16 %v748
  %v1358 = vunpack.c.l.b16 %v749
  %v1359 = vunpack.c.h.b16 %v749
  %v1360 = vunpack.c.l.b16 %v750
  %v1361 = vunpack.c.h.b16 %v750
  %v1362 = vunpack.c.l.b16 %v751
  %v1363 = vunpack.c.h.b16 %v751
  %v1364 = vunpack.c.l.b16 %v752
  %v1365 = vunpack.c.h.b16 %v752
  %v1366 = vunpack.c.l.b16 %v753
  %v1367 = vunpack.c.h.b16 %v753
  %v1368 = vunpack.c.l.b16 %v754
  %v1369 = vunpack.c.h.b16 %v754
  %v1370 = vunpack.c.l.b16 %v755
  %v1371 = vunpack.c.h.b16 %v755
  %v1372 = vunpack.c.l.b16 %v756
  %v1373 = vunpack.c.h.b16 %v756
  %v1374 = vunpack.c.l.b16 %v757
  %v1375 = vunpack.c.h.b16 %v757
  %v1376 = vunpack.c.l.b16 %v758
  %v1377 = vunpack.c.h.b16 %v758
  %v1378 = vunpack.c.l.b16 %v759
  %v1379 = vunpack.c.h.b16 %v759
  %v1380 = vunpack.c.l.b16 %v760
  %v1381 = vunpack.c.h.b16 %v760
  %v1382 = vunpack.c.l.b16 %v761
  %v1383 = vunpack.c.h.b16 %v761
  %v1384 = vunpack.c.l.b16 %v762
  %v1385 = vunpack.c.h.b16 %v762
  %v1386 = vunpack.c.l.b16 %v763
  %v1387 = vunpack.c.h.b16 %v763
  %v1388 = vunpack.c.l.b16 %v764
  %v1389 = vunpack.c.h.b16 %v764
  %v1390 = vunpack.c.l.b16 %v765
  %v1391 = vunpack.c.h.b16 %v765
  %v1392 = vunpack.c.l.b16 %v766
  %v1393 = vunpack.c.h.b16 %v766
  %v1394 = vunpack.c.l.b16 %v767
  %v1395 = vunpack.c.h.b16 %v767
  %v1396 = vunpack.c.l.b16 %v768
  %v1397 = vunpack.c.h.b16 %v768
  %v1398 = vunpack.c.l.b16 %v769
  %v1399 = vunpack.c.h.b16 %v769
  %v1400 = vunpack.c.l.b16 %v770
  %v1401 = vunpack.c.h.b16 %v770
  %v1402 = vunpack.c.l.b16 %v771
  %v1403 = vunpack.c.h.b16 %v771
  %v1404 = vunpack.c.l.b16 %v772
  %v1405 = vunpack.c.h.b16 %v772
  %v1406 = vunpack.c.l.b16 %v773
  %v1407 = vunpack.c.h.b16 %v773
  %v1408 = vunpack.c.l.b16 %v774
  %v1409 = vunpack.c.h.b16 %v774
  %v1410 = vunpack.c.l.b16 %v775
  %v1411 = vunpack.c.h.b16 %v775
  %v1412 = vunpack.c.l.b16 %v776
  %v1413 = vunpack.c.h.b16 %v776
  %v1414 = vunpack.c.l.b16 %v777
  %v1415 = vunpack.c.h.b16 %v777
  %v1416 = vunpack.c.l.b16 %v778
  %v1417 = vunpack.c.h.b16 %v778
  %v1418 = vunpack.c.l.b16 %v779
  %v1419 = vunpack.c.h.b16 %v779
  %v1420 = vunpack.c.l.b16 %v780
  %v1421 = vunpack.c.h.b16 %v780
  %v1422 = vunpack.c.l.b16 %v781
  %v1423 = vunpack.c.h.b16 %v781
  %v1424 = vunpack.c.l.b16 %v782
  %v1425 = vunpack.c.h.b16 %v782
  %v1426 = vunpack.c.l.b16 %v783
  %v1427 = vunpack.c.h.b16 %v783
  %v1428 = vunpack.c.l.b16 %v784
  %v1429 = vunpack.c.h.b16 %v784
  %v1430 = vunpack.c.l.b16 %v785
  %v1431 = vunpack.c.h.b16 %v785
  %v1432 = vunpack.c.l.b16 %v786
  %v1433 = vunpack.c.h.b16 %v786
  %v1434 = vunpack.c.l.b16 %v787
  %v1435 = vunpack.c.h.b16 %v787
  %v1436 = vunpack.c.l.b16 %v788
  %v1437 = vunpack.c.h.b16 %v788
  %v1438 = vunpack.c.l.b16 %v789
  %v1439 = vunpack.c.h.b16 %v789
  %v1440 = vunpack.c.l.b16 %v790
  %v1441 = vunpack.c.h.b16 %v790
  %v1442 = vunpack.c.l.b16 %v791
  %v1443 = vunpack.c.h.b16 %v791
  %v1444 = vunpack.c.l.b16 %v792
  %v1445 = vunpack.c.h.b16 %v792
  %v1446 = vunpack.c.l.b16 %v793
  %v1447 = vunpack.c.h.b16 %v793
  %v1448 = vunpack.c.l.b16 %v794
  %v1449 = vunpack.c.h.b16 %v794
  %v1450 = vunpack.c.l.b16 %v795
  %v1451 = vunpack.c.h.b16 %v795
  %v1452 = vunpack.c.l.b16 %v796
  %v1453 = vunpack.c.h.b16 %v796
  %v1454 = vunpack.c.l.b16 %v797
  %v1455 = vunpack.c.h.b16 %v797
  %v1456 = vunpack.c.l.b16 %v798
  %v1457 = vunpack.c.h.b16 %v798
  %v1458 = vunpack.c.l.b16 %v799
  %v1459 = vunpack.c.h.b16 %v799
  %v1460 = vunpack.c.l.b16 %v800
  %v1461 = vunpack.c.h.b16 %v800
  %v1462 = vunpack.c.l.b16 %v801
  %v1463 = vunpack.c.h.b16 %v801
  %v1464 = vunpack.c.l.b16 %v802
  %v1465 = vunpack.c.h.b16 %v802
  %v1466 = vunpack.c.l.b16 %v803
  %v1467 = vunpack.c.h.b16 %v803
  %v1468 = vunpack.c.l.b16 %v804
  %v1469 = vunpack.c.h.b16 %v804
  %v1470 = vunpack.c.l.b16 %v805
  %v1471 = vunpack.c.h.b16 %v805
  %v1472 = vunpack.c.l.b16 %v806
  %v1473 = vunpack.c.h.b16 %v806
  %v1474 = vunpack.c.l.b16 %v807
  %v1475 = vunpack.c.h.b16 %v807
  %v1476 = vunpack.c.l.b16 %v808
  %v1477 = vunpack.c.h.b16 %v808
  %v1478 = vunpack.c.l.b16 %v809
  %v1479 = vunpack.c.h.b16 %v809
  %v1480 = vunpack.c.l.b16 %v810
  %v1481 = vunpack.c.h.b16 %v810
  %v1482 = vunpack.c.l.b16 %v811
  %v1483 = vunpack.c.h.b16 %v811
  %v1484 = vunpack.c.l.b16 %v812
  %v1485 = vunpack.c.h.b16 %v812
  %v1486 = vunpack.c.l.b16 %v813
  %v1487 = vunpack.c.h.b16 %v813
  %v1488 = vunpack.c.l.b16 %v814
  %v1489 = vunpack.c.h.b16 %v814
  %v1490 = vunpack.c.l.b16 %v815
  %v1491 = vunpack.c.h.b16 %v815
  %v1492 = vunpack.c.l.b16 %v816
  %v1493 = vunpack.c.h.b16 %v816
  %v1494 = vunpack.c.l.b16 %v817
  %v1495 = vunpack.c.h.b16 %v817
  %v1496 = vunpack.c.l.b16 %v818
  %v1497 = vunpack.c.h.b16 %v818
  %v1498 = vunpack.c.l.b16 %v819
  %v1499 = vunpack.c.h.b16 %v819
  %v1500 = vunpack.c.l.b16 %v820
  %v1501 = vunpack.c.h.b16 %v820
  %v1502 = vunpack.c.l.b16 %v821
  %v1503 = vunpack.c.h.b16 %v821
  %v1504 = vunpack.c.l.b16 %v822
  %v1505 = vunpack.c.h.b16 %v822
  %v1506 = vunpack.c.l.b16 %v823
  %v1507 = vunpack.c.h.b16 %v823
  %v1508 = vunpack.c.l.b16 %v824
  %v1509 = vunpack.c.h.b16 %v824
  %v1510 = vunpack.c.l.b16 %v825
  %v1511 = vunpack.c.h.b16 %v825
  %v1512 = vunpack.c.l.b16 %v826
  %v1513 = vunpack.c.h.b16 %v826
  %v1514 = vunpack.c.l.b16 %v827
  %v1515 = vunpack.c.h.b16 %v827
  %v1516 = vunpack.c.l.b16 %v828
  %v1517 = vunpack.c.h.b16 %v828
  %v1518 = vunpack.c.l.b16 %v829
  %v1519 = vunpack.c.h.b16 %v829
  %v1520 = vunpack.c.l.b16 %v830
  %v1521 = vunpack.c.h.b16 %v830
  %v1522 = vunpack.c.l.b16 %v831
  %v1523 = vunpack.c.h.b16 %v831
  %v1524 = vunpack.c.l.b16 %v832
  %v1525 = vunpack.c.h.b16 %v832
  %v1526 = vunpack.c.l.b16 %v833
  %v1527 = vunpack.c.h.b16 %v833
  %v1528 = vunpack.c.l.b16 %v834
  %v1529 = vunpack.c.h.b16 %v834
  %v1530 = vunpack.c.l.b16 %v835
  %v1531 = vunpack.c.h.b16 %v835
  %v1532 = vunpack.c.l.b16 %v836
  %v1533 = vunpack.c.h.b16 %v836
  %v1534 = vunpack.c.l.b16 %v837
  %v1535 = vunpack.c.h.b16 %v837
  %v1536 = vunpack.c.l.b16 %v838
  %v1537 = vunpack.c.h.b16 %v838
  %v1538 = vunpack.c.l.b16 %v839
  %v1539 = vunpack.c.h.b16 %v839
  %v1540 = vunpack.c.l.b16 %v840
  %v1541 = vunpack.c.h.b16 %v840
  %v1542 = vunpack.c.l.b16 %v841
  %v1543 = vunpack.c.h.b16 %v841
  %v1544 = vunpack.c.l.b16 %v842
  %v1545 = vunpack.c.h.b16 %v842
  %v1546 = vunpack.c.l.b16 %v843
  %v1547 = vunpack.c.h.b16 %v843
  %v1548 = vunpack.c.l.b16 %v844
  %v1549 = vunpack.c.h.b16 %v844
  %v1550 = vunpack.c.l.b16 %v845
  %v1551 = vunpack.c.h.b16 %v845
  %v1552 = vunpack.c.l.b16 %v846
  %v1553 = vunpack.c.h.b16 %v846
  %v1554 = vunpack.c.l.b16 %v847
  %v1555 = vunpack.c.h.b16 %v847
  %v1556 = vunpack.c.l.b16 %v848
  %v1557 = vunpack.c.h.b16 %v848
  %v1558 = vunpack.c.l.b16 %v849
  %v1559 = vunpack.c.h.b16 %v849
  %v1560 = vunpack.c.l.b16 %v850
  %v1561 = vunpack.c.h.b16 %v850
  %v1562 = vunpack.c.l.b16 %v851
  %v1563 = vunpack.c.h.b16 %v851
  %v1564 = vunpack.c.l.b16 %v852
  %v1565 = vunpack.c.h.b16 %v852
  %v1566 = vunpack.c.l.b16 %v853
  %v1567 = vunpack.c.h.b16 %v853
  %v1568 = vunpack.c.l.b16 %v854
  %v1569 = vunpack.c.h.b16 %v854
  %v1570 = vunpack.c.l.b16 %v855
  %v1571 = vunpack.c.h.b16 %v855
  %v1572 = vunpack.c.l.b16 %v856
  %v1573 = vunpack.c.h.b16 %v856
  %v1574 = vunpack.c.l.b16 %v857
  %v1575 = vunpack.c.h.b16 %v857
  %v1576 = vunpack.c.l.b16 %v858
  %v1577 = vunpack.c.h.b16 %v858
  %v1578 = vunpack.c.l.b16 %v859
  %v1579 = vunpack.c.h.b16 %v859
  %v1580 = vunpack.c.l.b16 %v860
  %v1581 = vunpack.c.h.b16 %v860
  %v1582 = vunpack.c.l.b16 %v861
  %v1583 = vunpack.c.h.b16 %v861
  %v1584 = vunpack.c.l.b16 %v862
  %v1585 = vunpack.c.h.b16 %v862
  %v1586 = vunpack.c.l.b16 %v863
  %v1587 = vunpack.c.h.b16 %v863
  %v1588 = vunpack.c.l.b16 %v864
  %v1589 = vunpack.c.h.b16 %v864
  %v1590 = vunpack.c.l.b16 %v865
  %v1591 = vunpack.c.h.b16 %v865
  %v1592 = vunpack.c.l.b16 %v866
  %v1593 = vunpack.c.h.b16 %v866
  %v1594 = vunpack.c.l.b16 %v867
  %v1595 = vunpack.c.h.b16 %v867
  %v1596 = vunpack.c.l.b16 %v868
  %v1597 = vunpack.c.h.b16 %v868
  %v1598 = vunpack.c.l.b16 %v869
  %v1599 = vunpack.c.h.b16 %v869
  %v1600 = vunpack.c.l.b16 %v870
  %v1601 = vunpack.c.h.b16 %v870
  %v1602 = vunpack.c.l.b16 %v871
  %v1603 = vunpack.c.h.b16 %v871
  %v1604 = vunpack.c.l.b16 %v872
  %v1605 = vunpack.c.h.b16 %v872
  %v1606 = vunpack.c.l.b16 %v873
  %v1607 = vunpack.c.h.b16 %v873
  %v1608 = vunpack.c.l.b16 %v874
  %v1609 = vunpack.c.h.b16 %v874
  %v1610 = vunpack.c.l.b16 %v875
  %v1611 = vunpack.c.h.b16 %v875
  %v1612 = vunpack.c.l.b16 %v876
  %v1613 = vunpack.c.h.b16 %v876
  %v1614 = vunpack.c.l.b16 %v877
  %v1615 = vunpack.c.h.b16 %v877
  %v1616 = vunpack.c.l.b16 %v878
  %v1617 = vunpack.c.h.b16 %v878
  %v1618 = vunpack.c.l.b16 %v879
  %v1619 = vunpack.c.h.b16 %v879
  %v1620 = vunpack.c.l.b16 %v880
  %v1621 = vunpack.c.h.b16 %v880
  %v1622 = vunpack.c.l.b16 %v881
  %v1623 = vunpack.c.h.b16 %v881
  %v1624 = vunpack.c.l.b16 %v882
  %v1625 = vunpack.c.h.b16 %v882
  %v1626 = vunpack.c.l.b16 %v883
  %v1627 = vunpack.c.h.b16 %v883
  %v1628 = vunpack.c.l.b16 %v884
  %v1629 = vunpack.c.h.b16 %v884
  %v1630 = vunpack.c.l.b16 %v885
  %v1631 = vunpack.c.h.b16 %v885
  %v1632 = vunpack.c.l.b16 %v886
  %v1633 = vunpack.c.h.b16 %v886
  %v1634 = vunpack.c.l.b16 %v887
  %v1635 = vunpack.c.h.b16 %v887
  %v1636 = vunpack.c.l.b16 %v888
  %v1637 = vunpack.c.h.b16 %v888
  %v1638 = vunpack.c.l.b16 %v889
  %v1639 = vunpack.c.h.b16 %v889
  %v1640 = vunpack.c.l.b16 %v890
  %v1641 = vunpack.c.h.b16 %v890
  %v1642 = vunpack.c.l.b16 %v891
  %v1643 = vunpack.c.h.b16 %v891
  %v1644 = vunpack.c.l.b16 %v892
  %v1645 = vunpack.c.h.b16 %v892
  %v1646 = vunpack.c.l.b16 %v893
  %v1647 = vunpack.c.h.b16 %v893
  %v1648 = vunpack.c.l.b16 %v894
  %v1649 = vunpack.c.h.b16 %v894
  %v1650 = vunpack.c.l.b16 %v895
  %v1651 = vunpack.c.h.b16 %v895
  %v1652 = vunpack.c.l.b16 %v896
  %v1653 = vunpack.c.h.b16 %v896
  %v1654 = vunpack.c.l.b16 %v897
  %v1655 = vunpack.c.h.b16 %v897
  %v1656 = vunpack.c.l.b16 %v898
  %v1657 = vunpack.c.h.b16 %v898
  %v1658 = vunpack.c.l.b16 %v899
  %v1659 = vunpack.c.h.b16 %v899
  %v1660 = vunpack.c.l.b16 %v900
  %v1661 = vunpack.c.h.b16 %v900
  %v1662 = vunpack.c.l.b16 %v901
  %v1663 = vunpack.c.h.b16 %v901
  %v1664 = vunpack.c.l.b16 %v902
  %v1665 = vunpack.c.h.b16 %v902
  %v1666 = vunpack.c.l.b16 %v903
  %v1667 = vunpack.c.h.b16 %v903
  %v1668 = vunpack.c.l.b16 %v904
  %v1669 = vunpack.c.h.b16 %v904
  %v1670 = vunpack.c.l.b16 %v905
  %v1671 = vunpack.c.h.b16 %v905
  %v1672 = vunpack.c.l.b16 %v906
  %v1673 = vunpack.c.h.b16 %v906
  %v1674 = vunpack.c.l.b16 %v907
  %v1675 = vunpack.c.h.b16 %v907
  %v1676 = vunpack.c.l.b16 %v908
  %v1677 = vunpack.c.h.b16 %v908
  %v1678 = vunpack.c.l.b16 %v909
  %v1679 = vunpack.c.h.b16 %v909
  %v1680 = vunpack.c.l.b16 %v910
  %v1681 = vunpack.c.h.b16 %v910
  %v1682 = vunpack.c.l.b16 %v911
  %v1683 = vunpack.c.h.b16 %v911
  %v1684 = vunpack.c.l.b16 %v912
  %v1685 = vunpack.c.h.b16 %v912
  %v1686 = vunpack.c.l.b16 %v913
  %v1687 = vunpack.c.h.b16 %v913
  %v1688 = vunpack.c.l.b16 %v914
  %v1689 = vunpack.c.h.b16 %v914
  %v1690 = vunpack.c.l.b16 %v915
  %v1691 = vunpack.c.h.b16 %v915
  %v1692 = vunpack.c.l.b16 %v916
  %v1693 = vunpack.c.h.b16 %v916
  %v1694 = vunpack.c.l.b16 %v917
  %v1695 = vunpack.c.h.b16 %v917
  %v1696 = vunpack.c.l.b16 %v918
  %v1697 = vunpack.c.h.b16 %v918
  %v1698 = vunpack.c.l.b16 %v919
  %v1699 = vunpack.c.h.b16 %v919
  %v1700 = vunpack.c.l.b16 %v920
  %v1701 = vunpack.c.h.b16 %v920
  %v1702 = vunpack.c.l.b16 %v921
  %v1703 = vunpack.c.h.b16 %v921
  %v1704 = vunpack.c.l.b16 %v922
  %v1705 = vunpack.c.h.b16 %v922
  %v1706 = vunpack.c.l.b16 %v923
  %v1707 = vunpack.c.h.b16 %v923
  %v1708 = vunpack.c.l.b16 %v924
  %v1709 = vunpack.c.h.b16 %v924
  %v1710 = vunpack.c.l.b16 %v925
  %v1711 = vunpack.c.h.b16 %v925
  %v1712 = vunpack.c.l.b16 %v926
  %v1713 = vunpack.c.h.b16 %v926
  %v1714 = vunpack.c.l.b16 %v927
  %v1715 = vunpack.c.h.b16 %v927
  %v1716 = vunpack.c.l.b16 %v928
  %v1717 = vunpack.c.h.b16 %v928
  %v1718 = vunpack.c.l.b16 %v929
  %v1719 = vunpack.c.h.b16 %v929
  %v1720 = vpack.c.b16 %v1212, %v1208
  %v1721 = vpack.c.b16 %v1213, %v1209
  %v1722 = vpack.c.b16 %v1214, %v1210
  %v1723 = vpack.c.b16 %v1215, %v1211
  %v1724 = vpack.c.b16 %v1220, %v1216
  %v1725 = vpack.c.b16 %v1221, %v1217
  %v1726 = vpack.c.b16 %v1222, %v1218
  %v1727 = vpack.c.b16 %v1223, %v1219
  %v1728 = vpack.c.b16 %v1228, %v1224
  %v1729 = vpack.c.b16 %v1229, %v1225
  %v1730 = vpack.c.b16 %v1230, %v1226
  %v1731 = vpack.c.b16 %v1231, %v1227
  %v1732 = vpack.c.b16 %v1236, %v1232
  %v1733 = vpack.c.b16 %v1237, %v1233
  %v1734 = vpack.c.b16 %v1238, %v1234
  %v1735 = vpack.c.b16 %v1239, %v1235
  %v1736 = vpack.c.b16 %v1244, %v1240
  %v1737 = vpack.c.b16 %v1245, %v1241
  %v1738 = vpack.c.b16 %v1246, %v1242
  %v1739 = vpack.c.b16 %v1247, %v1243
  %v1740 = vpack.c.b16 %v1252, %v1248
  %v1741 = vpack.c.b16 %v1253, %v1249
  %v1742 = vpack.c.b16 %v1254, %v1250
  %v1743 = vpack.c.b16 %v1255, %v1251
  %v1744 = vpack.c.b16 %v1260, %v1256
  %v1745 = vpack.c.b16 %v1261, %v1257
  %v1746 = vpack.c.b16 %v1262, %v1258
  %v1747 = vpack.c.b16 %v1263, %v1259
  %v1748 = vpack.c.b16 %v1268, %v1264
  %v1749 = vpack.c.b16 %v1269, %v1265
  %v1750 = vpack.c.b16 %v1270, %v1266
  %v1751 = vpack.c.b16 %v1271, %v1267
  %v1752 = vpack.c.b16 %v1276, %v1272
  %v1753 = vpack.c.b16 %v1277, %v1273
  %v1754 = vpack.c.b16 %v1278, %v1274
  %v1755 = vpack.c.b16 %v1279, %v1275
  %v1756 = vpack.c.b16 %v1284, %v1280
  %v1757 = vpack.c.b16 %v1285, %v1281
  %v1758 = vpack.c.b16 %v1286, %v1282
  %v1759 = vpack.c.b16 %v1287, %v1283
  %v1760 = vpack.c.b16 %v1292, %v1288
  %v1761 = vpack.c.b16 %v1293, %v1289
  %v1762 = vpack.c.b16 %v1294, %v1290
  %v1763 = vpack.c.b16 %v1295, %v1291
  %v1764 = vpack.c.b16 %v1300, %v1296
  %v1765 = vpack.c.b16 %v1301, %v1297
  %v1766 = vpack.c.b16 %v1302, %v1298
  %v1767 = vpack.c.b16 %v1303, %v1299
  %v1768 = vpack.c.b16 %v1308, %v1304
  %v1769 = vpack.c.b16 %v1309, %v1305
  %v1770 = vpack.c.b16 %v1310, %v1306
  %v1771 = vpack.c.b16 %v1311, %v1307
  %v1772 = vpack.c.b16 %v1316, %v1312
  %v1773 = vpack.c.b16 %v1317, %v1313
  %v1774 = vpack.c.b16 %v1318, %v1314
  %v1775 = vpack.c.b16 %v1319, %v1315
  %v1776 = vpack.c.b16 %v1324, %v1320
  %v1777 = vpack.c.b16 %v1325, %v1321
  %v1778 = vpack.c.b16 %v1326, %v1322
  %v1779 = vpack.c.b16 %v1327, %v1323
  %v1780 = vpack.c.b16 %v1332, %v1328
  %v1781 = vpack.c.b16 %v1333, %v1329
  %v1782 = vpack.c.b16 %v1334, %v1330
  %v1783 = vpack.c.b16 %v1335, %v1331
  %v1784 = vpack.c.b16 %v1340, %v1336
  %v1785 = vpack.c.b16 %v1341, %v1337
  %v1786 = vpack.c.b16 %v1342, %v1338
  %v1787 = vpack.c.b16 %v1343, %v1339
  %v1788 = vpack.c.b16 %v1348, %v1344
  %v1789 = vpack.c.b16 %v1349, %v1345
  %v1790 = vpack.c.b16 %v1350, %v1346
  %v1791 = vpack.c.b16 %v1351, %v1347
  %v1792 = vpack.c.b16 %v1356, %v1352
  %v1793 = vpack.c.b16 %v1357, %v1353
  %v1794 = vpack.c.b16 %v1358, %v1354
  %v1795 = vpack.c.b16 %v1359, %v1355
  %v1796 = vpack.c.b16 %v1364, %v1360
  %v1797 = vpack.c.b16 %v1365, %v1361
  %v1798 = vpack.c.b16 %v1366, %v1362
  %v1799 = vpack.c.b16 %v1367, %v1363
  %v1800 = vpack.c.b16 %v1372, %v1368
  %v1801 = vpack.c.b16 %v1373, %v1369
  %v1802 = vpack.c.b16 %v1374, %v1370
  %v1803 = vpack.c.b16 %v1375, %v1371
  %v1804 = vpack.c.b16 %v1380, %v1376
  %v1805 = vpack.c.b16 %v1381, %v1377
  %v1806 = vpack.c.b16 %v1382, %v1378
  %v1807 = vpack.c.b16 %v1383, %v1379
  %v1808 = vpack.c.b16 %v1388, %v1384
  %v1809 = vpack.c.b16 %v1389, %v1385
  %v1810 = vpack.c.b16 %v1390, %v1386
  %v1811 = vpack.c.b16 %v1391, %v1387
  %v1812 = vpack.c.b16 %v1396, %v1392
  %v1813 = vpack.c.b16 %v1397, %v1393
  %v1814 = vpack.c.b16 %v1398, %v1394
  %v1815 = vpack.c.b16 %v1399, %v1395
  %v1816 = vpack.c.b16 %v1404, %v1400
  %v1817 = vpack.c.b16 %v1405, %v1401
  %v1818 = vpack.c.b16 %v1406, %v1402
  %v1819 = vpack.c.b16 %v1407, %v1403
  %v1820 = vpack.c.b16 %v1412, %v1408
  %v1821 = vpack.c.b16 %v1413, %v1409
  %v1822 = vpack.c.b16 %v1414, %v1410
  %v1823 = vpack.c.b16 %v1415, %v1411
  %v1824 = vpack.c.b16 %v1420, %v1416
  %v1825 = vpack.c.b16 %v1421, %v1417
  %v1826 = vpack.c.b16 %v1422, %v1418
  %v1827 = vpack.c.b16 %v1423, %v1419
  %v1828 = vpack.c.b16 %v1428, %v1424
  %v1829 = vpack.c.b16 %v1429, %v1425
  %v1830 = vpack.c.b16 %v1430, %v1426
  %v1831 = vpack.c.b16 %v1431, %v1427
  %v1832 = vpack.c.b16 %v1436, %v1432
  %v1833 = vpack.c.b16 %v1437, %v1433
  %v1834 = vpack.c.b16 %v1438, %v1434
  %v1835 = vpack.c.b16 %v1439, %v1435
  %v1836 = vpack.c.b16 %v1444, %v1440
  %v1837 = vpack.c.b16 %v1445, %v1441
  %v1838 = vpack.c.b16 %v1446, %v1442
  %v1839 = vpack.c.b16 %v1447, %v1443
  %v1840 = vpack.c.b16 %v1452, %v1448
  %v1841 = vpack.c.b16 %v1453, %v1449
  %v1842 = vpack.c.b16 %v1454, %v1450
  %v1843 = vpack.c.b16 %v1455, %v1451
  %v1844 = vpack.c.b16 %v1460, %v1456
  %v1845 = vpack.c.b16 %v1461, %v1457
  %v1846 = vpack.c.b16 %v1462, %v1458
  %v1847 = vpack.c.b16 %v1463, %v1459
  %v1848 = vpack.c.b16 %v1468, %v1464
  %v1849 = vpack.c.b16 %v1469, %v1465
  %v1850 = vpack.c.b16 %v1470, %v1466
  %v1851 = vpack.c.b16 %v1471, %v1467
  %v1852 = vpack.c.b16 %v1476, %v1472
  %v1853 = vpack.c.b16 %v1477, %v1473
  %v1854 = vpack.c.b16 %v1478, %v1474
  %v1855 = vpack.c.b16 %v1479, %v1475
  %v1856 = vpack.c.b16 %v1484, %v1480
  %v1857 = vpack.c.b16 %v1485, %v1481
  %v1858 = vpack.c.b16 %v1486, %v1482
  %v1859 = vpack.c.b16 %v1487, %v1483
  %v1860 = vpack.c.b16 %v1492, %v1488
  %v1861 = vpack.c.b16 %v1493, %v1489
  %v1862 = vpack.c.b16 %v1494, %v1490
  %v1863 = vpack.c.b16 %v1495, %v1491
  %v1864 = vpack.c.b16 %v1500, %v1496
  %v1865 = vpack.c.b16 %v1501, %v1497
  %v1866 = vpack.c.b16 %v1502, %v1498
  %v1867 = vpack.c.b16 %v1503, %v1499
  %v1868 = vpack.c.b16 %v1508, %v1504
  %v1869 = vpack.c.b16 %v1509, %v1505
  %v1870 = vpack.c.b16 %v1510, %v1506
  %v1871 = vpack.c.b16 %v1511, %v1507
  %v1872 = vpack.c.b16 %v1516, %v1512
  %v1873 = vpack.c.b16 %v1517, %v1513
  %v1874 = vpack.c.b16 %v1518, %v1514
  %v1875 = vpack.c.b16 %v1519, %v1515
  %v1876 = vpack.c.b16 %v1524, %v1520
  %v1877 = vpack.c.b16 %v1525, %v1521
  %v1878 = vpack.c.b16 %v1526, %v1522
  %v1879 = vpack.c.b16 %v1527, %v1523
  %v1880 = vpack.c.b16 %v1532, %v1528
  %v1881 = vpack.c.b16 %v1533, %v1529
  %v1882 = vpack.c.b16 %v1534, %v1530
  %v1883 = vpack.c.b16 %v1535, %v1531
  %v1884 = vpack.c.b16 %v1540, %v1536
  %v1885 = vpack.c.b16 %v1541, %v1537
  %v1886 = vpack.c.b16 %v1542, %v1538
  %v1887 = vpack.c.b16 %v1543, %v1539
  %v1888 = vpack.c.b16 %v1548, %v1544
  %v1889 = vpack.c.b16 %v1549, %v1545
  %v1890 = vpack.c.b16 %v1550, %v1546
  %v1891 = vpack.c.b16 %v1551, %v1547
  %v1892 = vpack.c.b16 %v1556, %v1552
  %v1893 = vpack.c.b16 %v1557, %v1553
  %v1894 = vpack.c.b16 %v1558, %v1554
  %v1895 = vpack.c.b16 %v1559, %v1555
  %v1896 = vpack.c.b16 %v1564, %v1560
  %v1897 = vpack.c.b16 %v1565, %v1561
  %v1898 = vpack.c.b16 %v1566, %v1562
  %v1899 = vpack.c.b16 %v1567, %v1563
  %v1900 = vpack.c.b16 %v1572, %v1568
  %v1901 = vpack.c.b16 %v1573, %v1569
  %v1902 = vpack.c.b16 %v1574, %v1570
  %v1903 = vpack.c.b16 %v1575, %v1571
  %v1904 = vpack.c.b16 %v1580, %v1576
  %v1905 = vpack.c.b16 %v1581, %v1577
  %v1906 = vpack.c.b16 %v1582, %v1578
  %v1907 = vpack.c.b16 %v1583, %v1579
  %v1908 = vpack.c.b16 %v1588, %v1584
  %v1909 = vpack.c.b16 %v1589, %v1585
  %v1910 = vpack.c.b16 %v1590, %v1586
  %v1911 = vpack.c.b16 %v1591, %v1587
  %v1912 = vpack.c.b16 %v1596, %v1592
  %v1913 = vpack.c.b16 %v1597, %v1593
  %v1914 = vpack.c.b16 %v1598, %v1594
  %v1915 = vpack.c.b16 %v1599, %v1595
  %v1916 = vpack.c.b16 %v1604, %v1600
  %v1917 = vpack.c.b16 %v1605, %v1601
  %v1918 = vpack.c.b16 %v1606, %v1602
  %v1919 = vpack.c.b16 %v1607, %v1603
  %v1920 = vpack.c.b16 %v1612, %v1608
  %v1921 = vpack.c.b16 %v1613, %v1609
  %v1922 = vpack.c.b16 %v1614, %v1610
  %v1923 = vpack.c.b16 %v1615, %v1611
  %v1924 = vpack.c.b16 %v1620, %v1616
  %v1925 = vpack.c.b16 %v1621, %v1617
  %v1926 = vpack.c.b16 %v1622, %v1618
  %v1927 = vpack.c.b16 %v1623, %v1619
  %v1928 = vpack.c.b16 %v1628, %v1624
  %v1929 = vpack.c.b16 %v1629, %v1625
  %v1930 = vpack.c.b16 %v1630, %v1626
  %v1931 = vpack.c.b16 %v1631, %v1627
  %v1932 = vpack.c.b16 %v1636, %v1632
  %v1933 = vpack.c.b16 %v1637, %v1633
  %v1934 = vpack.c.b16 %v1638, %v1634
  %v1935 = vpack.c.b16 %v1639, %v1635
  %v1936 = vpack.c.b16 %v1644, %v1640
  %v1937 = vpack.c.b16 %v1645, %v1641
  %v1938 = vpack.c.b16 %v1646, %v1642
  %v1939 = vpack.c.b16 %v1647, %v1643
  %v1940 = vpack.c.b16 %v1652, %v1648
  %v1941 = vpack.c.b16 %v1653, %v1649
  %v1942 = vpack.c.b16 %v1654, %v1650
  %v1943 = vpack.c.b16 %v1655, %v1651
  %v1944 = vpack.c.b16 %v1660, %v1656
  %v1945 = vpack.c.b16 %v1661, %v1657
  %v1946 = vpack.c.b16 %v1662, %v1658
  %v1947 = vpack.c.b16 %v1663, %v1659
  %v1948 = vpack.c.b16 %v1668, %v1664
  %v1949 = vpack.c.b16 %v1669, %v1665
  %v1950 = vpack.c.b16 %v1670, %v1666
  %v1951 = vpack.c.b16 %v1671, %v1667
  %v1952 = vpack.c.b16 %v1676, %v1672
  %v1953 = vpack.c.b16 %v1677, %v1673
  %v1954 = vpack.c.b16 %v1678, %v1674
  %v1955 = vpack.c.b16 %v1679, %v1675
  %v1956 = vpack.c.b16 %v1684, %v1680
  %v1957 = vpack.c.b16 %v1685, %v1681
  %v1958 = vpack.c.b16 %v1686, %v1682
  %v1959 = vpack.c.b16 %v1687, %v1683
  %v1960 = vpack.c.b16 %v1692, %v1688
  %v1961 = vpack.c.b16 %v1693, %v1689
  %v1962 = vpack.c.b16 %v1694, %v1690
  %v1963 = vpack.c.b16 %v1695, %v1691
  %v1964 = vpack.c.b16 %v1700, %v1696
  %v1965 = vpack.c.b16 %v1701, %v1697
  %v1966 = vpack.c.b16 %v1702, %v1698
  %v1967 = vpack.c.b16 %v1703, %v1699
  %v1968 = vpack.c.b16 %v1708, %v1704
  %v1969 = vpack.c.b16 %v1709, %v1705
  %v1970 = vpack.c.b16 %v1710, %v1706
  %v1971 = vpack.c.b16 %v1711, %v1707
  %v1972 = vpack.c.b16 %v1716, %v1712
  %v1973 = vpack.c.b16 %v1717, %v1713
  %v1974 = vpack.c.b16 %v1718, %v1714
  %v1975 = vpack.c.b16 %v1719, %v1715
  %2232 = vmatprep.subr.bf16.mxu0 %v1721
  %2233 = vmatpush1.bf16.msra.mxu0 %v1720
  %2234 = vmatprep.subr.bf16.mxu0 %v1725
  %2235 = vmatpush1.bf16.msra.mxu0 %v1724
  %2236 = vmatprep.subr.bf16.mxu0 %v1729
  %2237 = vmatpush1.bf16.msra.mxu0 %v1728
  %2238 = vmatprep.subr.bf16.mxu0 %v1733
  %2239 = vmatpush1.bf16.msra.mxu0 %v1732
  %2240 = vmatprep.subr.bf16.mxu0 %v1737
  %2241 = vmatpush1.bf16.msra.mxu0 %v1736
  %2242 = vmatprep.subr.bf16.mxu0 %v1741
  %2243 = vmatpush1.bf16.msra.mxu0 %v1740
  %2244 = vmatprep.subr.bf16.mxu0 %v1745
  %2245 = vmatpush1.bf16.msra.mxu0 %v1744
  %2246 = vmatprep.subr.bf16.mxu0 %v1749
  %2247 = vmatpush1.bf16.msra.mxu0 %v1748
  %2248 = vmatprep.subr.bf16.mxu0 %v1753
  %2249 = vmatpush1.bf16.msra.mxu0 %v1752
  %2250 = vmatprep.subr.bf16.mxu0 %v1757
  %2251 = vmatpush1.bf16.msra.mxu0 %v1756
  %2252 = vmatprep.subr.bf16.mxu0 %v1761
  %2253 = vmatpush1.bf16.msra.mxu0 %v1760
  %2254 = vmatprep.subr.bf16.mxu0 %v1765
  %2255 = vmatpush1.bf16.msra.mxu0 %v1764
  %2256 = vmatprep.subr.bf16.mxu0 %v1769
  %2257 = vmatpush1.bf16.msra.mxu0 %v1768
  %2258 = vmatprep.subr.bf16.mxu0 %v1773
  %2259 = vmatpush1.bf16.msra.mxu0 %v1772
  %2260 = vmatprep.subr.bf16.mxu0 %v1777
  %2261 = vmatpush1.bf16.msra.mxu0 %v1776
  %2262 = vmatprep.subr.bf16.mxu0 %v1781
  %2263 = vmatpush1.bf16.msra.mxu0 %v1780
  %2264 = vmatprep.mubr.bf16.mxu0 %v667
  %2265 = vmatmul.mubr.bf16.gmra.mrb[0].mxu0 %v666
  %v2266 = vpop.f32.mrb[0].mxu0
  %v2267 = vadd.f32 %v935, %v2266
  %v2268 = vpop.f32.mrb[0].mxu0
  %v2269 = vadd.f32 %v939, %v2268
  %v2270 = vpop.f32.mrb[0].mxu0
  %v2271 = vpop.f32.mrb[0].mxu0
  %2272 = vdwg.mxu0
  %2273 = vmatprep.subr.bf16.mxu0 %v1785
  %2274 = vmatpush1.bf16.msra.mxu0 %v1784
  %2275 = vmatprep.subr.bf16.mxu0 %v1789
  %2276 = vmatpush1.bf16.msra.mxu0 %v1788
  %2277 = vmatprep.subr.bf16.mxu0 %v1793
  %2278 = vmatpush1.bf16.msra.mxu0 %v1792
  %2279 = vmatprep.subr.bf16.mxu0 %v1797
  %2280 = vmatpush1.bf16.msra.mxu0 %v1796
  %2281 = vmatprep.subr.bf16.mxu0 %v1801
  %2282 = vmatpush1.bf16.msra.mxu0 %v1800
  %2283 = vmatprep.subr.bf16.mxu0 %v1805
  %2284 = vmatpush1.bf16.msra.mxu0 %v1804
  %2285 = vmatprep.subr.bf16.mxu0 %v1809
  %2286 = vmatpush1.bf16.msra.mxu0 %v1808
  %2287 = vmatprep.subr.bf16.mxu0 %v1813
  %2288 = vmatpush1.bf16.msra.mxu0 %v1812
  %2289 = vmatprep.subr.bf16.mxu0 %v1817
  %2290 = vmatpush1.bf16.msra.mxu0 %v1816
  %2291 = vmatprep.subr.bf16.mxu0 %v1821
  %2292 = vmatpush1.bf16.msra.mxu0 %v1820
  %2293 = vmatprep.subr.bf16.mxu0 %v1825
  %2294 = vmatpush1.bf16.msra.mxu0 %v1824
  %2295 = vmatprep.subr.bf16.mxu0 %v1829
  %2296 = vmatpush1.bf16.msra.mxu0 %v1828
  %2297 = vmatprep.subr.bf16.mxu0 %v1833
  %2298 = vmatpush1.bf16.msra.mxu0 %v1832
  %2299 = vmatprep.subr.bf16.mxu0 %v1837
  %2300 = vmatpush1.bf16.msra.mxu0 %v1836
  %2301 = vmatprep.subr.bf16.mxu0 %v1841
  %2302 = vmatpush1.bf16.msra.mxu0 %v1840
  %2303 = vmatprep.subr.bf16.mxu0 %v1845
  %2304 = vmatpush1.bf16.msra.mxu0 %v1844
  %2305 = vmatprep.mubr.bf16.mxu0 %v669
  %2306 = vmatmul.mubr.bf16.gmra.mrb[0].mxu0 %v668
  %v2307 = vpop.f32.mrb[0].mxu0
  %v2308 = vadd.f32 %v2267, %v2307
  %v2309 = vpop.f32.mrb[0].mxu0
  %v2310 = vadd.f32 %v2269, %v2309
  %v2311 = vpop.f32.mrb[0].mxu0
  %v2312 = vpop.f32.mrb[0].mxu0
  %2313 = vdwg.mxu0
  %2314 = vmatprep.subr.bf16.mxu0 %v1849
  %2315 = vmatpush1.bf16.msra.mxu0 %v1848
  %2316 = vmatprep.subr.bf16.mxu0 %v1853
  %2317 = vmatpush1.bf16.msra.mxu0 %v1852
  %2318 = vmatprep.subr.bf16.mxu0 %v1857
  %2319 = vmatpush1.bf16.msra.mxu0 %v1856
  %2320 = vmatprep.subr.bf16.mxu0 %v1861
  %2321 = vmatpush1.bf16.msra.mxu0 %v1860
  %2322 = vmatprep.subr.bf16.mxu0 %v1865
  %2323 = vmatpush1.bf16.msra.mxu0 %v1864
  %2324 = vmatprep.subr.bf16.mxu0 %v1869
  %2325 = vmatpush1.bf16.msra.mxu0 %v1868
  %2326 = vmatprep.subr.bf16.mxu0 %v1873
  %2327 = vmatpush1.bf16.msra.mxu0 %v1872
  %2328 = vmatprep.subr.bf16.mxu0 %v1877
  %2329 = vmatpush1.bf16.msra.mxu0 %v1876
  %2330 = vmatprep.subr.bf16.mxu0 %v1881
  %2331 = vmatpush1.bf16.msra.mxu0 %v1880
  %2332 = vmatprep.subr.bf16.mxu0 %v1885
  %2333 = vmatpush1.bf16.msra.mxu0 %v1884
  %2334 = vmatprep.subr.bf16.mxu0 %v1889
  %2335 = vmatpush1.bf16.msra.mxu0 %v1888
  %2336 = vmatprep.subr.bf16.mxu0 %v1893
  %2337 = vmatpush1.bf16.msra.mxu0 %v1892
  %2338 = vmatprep.subr.bf16.mxu0 %v1897
  %2339 = vmatpush1.bf16.msra.mxu0 %v1896
  %2340 = vmatprep.subr.bf16.mxu0 %v1901
  %2341 = vmatpush1.bf16.msra.mxu0 %v1900
  %2342 = vmatprep.subr.bf16.mxu0 %v1905
  %2343 = vmatpush1.bf16.msra.mxu0 %v1904
  %2344 = vmatprep.subr.bf16.mxu0 %v1909
  %2345 = vmatpush1.bf16.msra.mxu0 %v1908
  %2346 = vmatprep.mubr.bf16.mxu0 %v671
  %2347 = vmatmul.mubr.bf16.gmra.mrb[0].mxu0 %v670
  %v2348 = vpop.f32.mrb[0].mxu0
  %v2349 = vadd.f32 %v2308, %v2348
  %v2350 = vpop.f32.mrb[0].mxu0
  %v2351 = vadd.f32 %v2310, %v2350
  %v2352 = vpop.f32.mrb[0].mxu0
  %v2353 = vpop.f32.mrb[0].mxu0
  %2354 = vdwg.mxu0
  %2355 = vmatprep.subr.bf16.mxu0 %v1913
  %2356 = vmatpush1.bf16.msra.mxu0 %v1912
  %2357 = vmatprep.subr.bf16.mxu0 %v1917
  %2358 = vmatpush1.bf16.msra.mxu0 %v1916
  %2359 = vmatprep.subr.bf16.mxu0 %v1921
  %2360 = vmatpush1.bf16.msra.mxu0 %v1920
  %2361 = vmatprep.subr.bf16.mxu0 %v1925
  %2362 = vmatpush1.bf16.msra.mxu0 %v1924
  %2363 = vmatprep.subr.bf16.mxu0 %v1929
  %2364 = vmatpush1.bf16.msra.mxu0 %v1928
  %2365 = vmatprep.subr.bf16.mxu0 %v1933
  %2366 = vmatpush1.bf16.msra.mxu0 %v1932
  %2367 = vmatprep.subr.bf16.mxu0 %v1937
  %2368 = vmatpush1.bf16.msra.mxu0 %v1936
  %2369 = vmatprep.subr.bf16.mxu0 %v1941
  %2370 = vmatpush1.bf16.msra.mxu0 %v1940
  %2371 = vmatprep.subr.bf16.mxu0 %v1945
  %2372 = vmatpush1.bf16.msra.mxu0 %v1944
  %2373 = vmatprep.subr.bf16.mxu0 %v1949
  %2374 = vmatpush1.bf16.msra.mxu0 %v1948
  %2375 = vmatprep.subr.bf16.mxu0 %v1953
  %2376 = vmatpush1.bf16.msra.mxu0 %v1952
  %2377 = vmatprep.subr.bf16.mxu0 %v1957
  %2378 = vmatpush1.bf16.msra.mxu0 %v1956
  %2379 = vmatprep.subr.bf16.mxu0 %v1961
  %2380 = vmatpush1.bf16.msra.mxu0 %v1960
  %2381 = vmatprep.subr.bf16.mxu0 %v1965
  %2382 = vmatpush1.bf16.msra.mxu0 %v1964
  %2383 = vmatprep.subr.bf16.mxu0 %v1969
  %2384 = vmatpush1.bf16.msra.mxu0 %v1968
  %2385 = vmatprep.subr.bf16.mxu0 %v1973
  %2386 = vmatpush1.bf16.msra.mxu0 %v1972
  %2387 = vmatprep.mubr.bf16.mxu0 %v673
  %2388 = vmatmul.mubr.bf16.gmra.mrb[0].mxu0 %v672
  %v2389 = vpop.f32.mrb[0].mxu0
  %v2390 = vadd.f32 %v2349, %v2389
  %v2391 = vpop.f32.mrb[0].mxu0
  %v2392 = vadd.f32 %v2351, %v2391
  %v2393 = vpop.f32.mrb[0].mxu0
  %v2394 = vpop.f32.mrb[0].mxu0
  %2395 = vdwg.mxu0
  %2396 = vmatprep.subr.bf16.mxu0 %v1723
  %2397 = vmatpush1.bf16.msra.mxu0 %v1722
  %2398 = vmatprep.subr.bf16.mxu0 %v1727
  %2399 = vmatpush1.bf16.msra.mxu0 %v1726
  %2400 = vmatprep.subr.bf16.mxu0 %v1731
  %2401 = vmatpush1.bf16.msra.mxu0 %v1730
  %2402 = vmatprep.subr.bf16.mxu0 %v1735
  %2403 = vmatpush1.bf16.msra.mxu0 %v1734
  %2404 = vmatprep.subr.bf16.mxu0 %v1739
  %2405 = vmatpush1.bf16.msra.mxu0 %v1738
  %2406 = vmatprep.subr.bf16.mxu0 %v1743
  %2407 = vmatpush1.bf16.msra.mxu0 %v1742
  %2408 = vmatprep.subr.bf16.mxu0 %v1747
  %2409 = vmatpush1.bf16.msra.mxu0 %v1746
  %2410 = vmatprep.subr.bf16.mxu0 %v1751
  %2411 = vmatpush1.bf16.msra.mxu0 %v1750
  %2412 = vmatprep.subr.bf16.mxu0 %v1755
  %2413 = vmatpush1.bf16.msra.mxu0 %v1754
  %2414 = vmatprep.subr.bf16.mxu0 %v1759
  %2415 = vmatpush1.bf16.msra.mxu0 %v1758
  %2416 = vmatprep.subr.bf16.mxu0 %v1763
  %2417 = vmatpush1.bf16.msra.mxu0 %v1762
  %2418 = vmatprep.subr.bf16.mxu0 %v1767
  %2419 = vmatpush1.bf16.msra.mxu0 %v1766
  %2420 = vmatprep.subr.bf16.mxu0 %v1771
  %2421 = vmatpush1.bf16.msra.mxu0 %v1770
  %2422 = vmatprep.subr.bf16.mxu0 %v1775
  %2423 = vmatpush1.bf16.msra.mxu0 %v1774
  %2424 = vmatprep.subr.bf16.mxu0 %v1779
  %2425 = vmatpush1.bf16.msra.mxu0 %v1778
  %2426 = vmatprep.subr.bf16.mxu0 %v1783
  %2427 = vmatpush1.bf16.msra.mxu0 %v1782
  %2428 = vmatprep.mubr.bf16.mxu0 %v667
  %2429 = vmatmul.mubr.bf16.gmra.mrb[0].mxu0 %v666
  %v2430 = vpop.f32.mrb[0].mxu0
  %v2431 = vadd.f32 %v943, %v2430
  %v2432 = vpop.f32.mrb[0].mxu0
  %v2433 = vadd.f32 %v947, %v2432
  %v2434 = vpop.f32.mrb[0].mxu0
  %v2435 = vpop.f32.mrb[0].mxu0
  %2436 = vdwg.mxu0
  %2437 = vmatprep.subr.bf16.mxu0 %v1787
  %2438 = vmatpush1.bf16.msra.mxu0 %v1786
  %2439 = vmatprep.subr.bf16.mxu0 %v1791
  %2440 = vmatpush1.bf16.msra.mxu0 %v1790
  %2441 = vmatprep.subr.bf16.mxu0 %v1795
  %2442 = vmatpush1.bf16.msra.mxu0 %v1794
  %2443 = vmatprep.subr.bf16.mxu0 %v1799
  %2444 = vmatpush1.bf16.msra.mxu0 %v1798
  %2445 = vmatprep.subr.bf16.mxu0 %v1803
  %2446 = vmatpush1.bf16.msra.mxu0 %v1802
  %2447 = vmatprep.subr.bf16.mxu0 %v1807
  %2448 = vmatpush1.bf16.msra.mxu0 %v1806
  %2449 = vmatprep.subr.bf16.mxu0 %v1811
  %2450 = vmatpush1.bf16.msra.mxu0 %v1810
  %2451 = vmatprep.subr.bf16.mxu0 %v1815
  %2452 = vmatpush1.bf16.msra.mxu0 %v1814
  %2453 = vmatprep.subr.bf16.mxu0 %v1819
  %2454 = vmatpush1.bf16.msra.mxu0 %v1818
  %2455 = vmatprep.subr.bf16.mxu0 %v1823
  %2456 = vmatpush1.bf16.msra.mxu0 %v1822
  %2457 = vmatprep.subr.bf16.mxu0 %v1827
  %2458 = vmatpush1.bf16.msra.mxu0 %v1826
  %2459 = vmatprep.subr.bf16.mxu0 %v1831
  %2460 = vmatpush1.bf16.msra.mxu0 %v1830
  %2461 = vmatprep.subr.bf16.mxu0 %v1835
  %2462 = vmatpush1.bf16.msra.mxu0 %v1834
  %2463 = vmatprep.subr.bf16.mxu0 %v1839
  %2464 = vmatpush1.bf16.msra.mxu0 %v1838
  %2465 = vmatprep.subr.bf16.mxu0 %v1843
  %2466 = vmatpush1.bf16.msra.mxu0 %v1842
  %2467 = vmatprep.subr.bf16.mxu0 %v1847
  %2468 = vmatpush1.bf16.msra.mxu0 %v1846
  %2469 = vmatprep.mubr.bf16.mxu0 %v669
  %2470 = vmatmul.mubr.bf16.gmra.mrb[0].mxu0 %v668
  %v2471 = vpop.f32.mrb[0].mxu0
  %v2472 = vadd.f32 %v2431, %v2471
  %v2473 = vpop.f32.mrb[0].mxu0
  %v2474 = vadd.f32 %v2433, %v2473
  %v2475 = vpop.f32.mrb[0].mxu0
  %v2476 = vpop.f32.mrb[0].mxu0
  %2477 = vdwg.mxu0
  %2478 = vmatprep.subr.bf16.mxu0 %v1851
  %2479 = vmatpush1.bf16.msra.mxu0 %v1850
  %2480 = vmatprep.subr.bf16.mxu0 %v1855
  %2481 = vmatpush1.bf16.msra.mxu0 %v1854
  %2482 = vmatprep.subr.bf16.mxu0 %v1859
  %2483 = vmatpush1.bf16.msra.mxu0 %v1858
  %2484 = vmatprep.subr.bf16.mxu0 %v1863
  %2485 = vmatpush1.bf16.msra.mxu0 %v1862
  %2486 = vmatprep.subr.bf16.mxu0 %v1867
  %2487 = vmatpush1.bf16.msra.mxu0 %v1866
  %2488 = vmatprep.subr.bf16.mxu0 %v1871
  %2489 = vmatpush1.bf16.msra.mxu0 %v1870
  %2490 = vmatprep.subr.bf16.mxu0 %v1875
  %2491 = vmatpush1.bf16.msra.mxu0 %v1874
  %2492 = vmatprep.subr.bf16.mxu0 %v1879
  %2493 = vmatpush1.bf16.msra.mxu0 %v1878
  %2494 = vmatprep.subr.bf16.mxu0 %v1883
  %2495 = vmatpush1.bf16.msra.mxu0 %v1882
  %2496 = vmatprep.subr.bf16.mxu0 %v1887
  %2497 = vmatpush1.bf16.msra.mxu0 %v1886
  %2498 = vmatprep.subr.bf16.mxu0 %v1891
  %2499 = vmatpush1.bf16.msra.mxu0 %v1890
  %2500 = vmatprep.subr.bf16.mxu0 %v1895
  %2501 = vmatpush1.bf16.msra.mxu0 %v1894
  %2502 = vmatprep.subr.bf16.mxu0 %v1899
  %2503 = vmatpush1.bf16.msra.mxu0 %v1898
  %2504 = vmatprep.subr.bf16.mxu0 %v1903
  %2505 = vmatpush1.bf16.msra.mxu0 %v1902
  %2506 = vmatprep.subr.bf16.mxu0 %v1907
  %2507 = vmatpush1.bf16.msra.mxu0 %v1906
  %2508 = vmatprep.subr.bf16.mxu0 %v1911
  %2509 = vmatpush1.bf16.msra.mxu0 %v1910
  %2510 = vmatprep.mubr.bf16.mxu0 %v671
  %2511 = vmatmul.mubr.bf16.gmra.mrb[0].mxu0 %v670
  %v2512 = vpop.f32.mrb[0].mxu0
  %v2513 = vadd.f32 %v2472, %v2512
  %v2514 = vpop.f32.mrb[0].mxu0
  %v2515 = vadd.f32 %v2474, %v2514
  %v2516 = vpop.f32.mrb[0].mxu0
  %v2517 = vpop.f32.mrb[0].mxu0
  %2518 = vdwg.mxu0
  %2519 = vmatprep.subr.bf16.mxu0 %v1915
  %2520 = vmatpush1.bf16.msra.mxu0 %v1914
  %2521 = vmatprep.subr.bf16.mxu0 %v1919
  %2522 = vmatpush1.bf16.msra.mxu0 %v1918
  %2523 = vmatprep.subr.bf16.mxu0 %v1923
  %2524 = vmatpush1.bf16.msra.mxu0 %v1922
  %2525 = vmatprep.subr.bf16.mxu0 %v1927
  %2526 = vmatpush1.bf16.msra.mxu0 %v1926
  %2527 = vmatprep.subr.bf16.mxu0 %v1931
  %2528 = vmatpush1.bf16.msra.mxu0 %v1930
  %2529 = vmatprep.subr.bf16.mxu0 %v1935
  %2530 = vmatpush1.bf16.msra.mxu0 %v1934
  %2531 = vmatprep.subr.bf16.mxu0 %v1939
  %2532 = vmatpush1.bf16.msra.mxu0 %v1938
  %2533 = vmatprep.subr.bf16.mxu0 %v1943
  %2534 = vmatpush1.bf16.msra.mxu0 %v1942
  %2535 = vmatprep.subr.bf16.mxu0 %v1947
  %2536 = vmatpush1.bf16.msra.mxu0 %v1946
  %2537 = vmatprep.subr.bf16.mxu0 %v1951
  %2538 = vmatpush1.bf16.msra.mxu0 %v1950
  %2539 = vmatprep.subr.bf16.mxu0 %v1955
  %2540 = vmatpush1.bf16.msra.mxu0 %v1954
  %2541 = vmatprep.subr.bf16.mxu0 %v1959
  %2542 = vmatpush1.bf16.msra.mxu0 %v1958
  %2543 = vmatprep.subr.bf16.mxu0 %v1963
  %2544 = vmatpush1.bf16.msra.mxu0 %v1962
  %2545 = vmatprep.subr.bf16.mxu0 %v1967
  %2546 = vmatpush1.bf16.msra.mxu0 %v1966
  %2547 = vmatprep.subr.bf16.mxu0 %v1971
  %2548 = vmatpush1.bf16.msra.mxu0 %v1970
  %2549 = vmatprep.subr.bf16.mxu0 %v1975
  %2550 = vmatpush1.bf16.msra.mxu0 %v1974
  %2551 = vmatprep.mubr.bf16.mxu0 %v673
  %2552 = vmatmul.mubr.bf16.gmra.mrb[0].mxu0 %v672
  %v2553 = vpop.f32.mrb[0].mxu0
  %v2554 = vadd.f32 %v2513, %v2553
  %v2555 = vpop.f32.mrb[0].mxu0
  %v2556 = vadd.f32 %v2515, %v2555
  %v2557 = vpop.f32.mrb[0].mxu0
  %v2558 = vpop.f32.mrb[0].mxu0
  %2559 = vdwg.mxu0
  %v2560 = vmax.f32 %v2390, 0.0
  %v2561 = vmax.f32 %v2392, 0.0
  %v2562 = vmax.f32 %v2554, 0.0
  %v2563 = vmax.f32 %v2556, 0.0
  %v2564 = vpack.c.bf16 %v2560, %v2560
  %v2565 = vpack.c.bf16 %v2561, %v2561
  %v2566 = vpack.c.bf16 %v2562, %v2562
  %v2567 = vpack.c.bf16 %v2563, %v2563
  %v2568 = vld [vmem:[%s6] sm:$0xff]
  %v2569 = vld [vmem:[%s6 + $0x8] sm:$0xff]
  %v2570 = vld [vmem:[%s6 + $0x10] sm:$0xff]
  %v2571 = vld [vmem:[%s6 + $0x18] sm:$0xff]
  %v2572 = vld [vmem:[%s6 + $0x20] sm:$0xff]
  %v2573 = vld [vmem:[%s6 + $0x28] sm:$0xff]
  %v2574 = vld [vmem:[%s6 + $0x30] sm:$0xff]
  %v2575 = vld [vmem:[%s6 + $0x38] sm:$0xff]
  %v2576 = vld [vmem:[%s6 + $0x40] sm:$0xff]
  %v2577 = vld [vmem:[%s6 + $0x48] sm:$0xff]
  %v2578 = vld [vmem:[%s6 + $0x50] sm:$0xff]
  %v2579 = vld [vmem:[%s6 + $0x58] sm:$0xff]
  %v2580 = vld [vmem:[%s6 + $0x60] sm:$0xff]
  %v2581 = vld [vmem:[%s6 + $0x68] sm:$0xff]
  %v2582 = vld [vmem:[%s6 + $0x70] sm:$0xff]
  %v2583 = vld [vmem:[%s6 + $0x78] sm:$0xff]
  %v2584 = vld [vmem:[%s6 + $0x80] sm:$0xff]
  %v2585 = vld [vmem:[%s6 + $0x88] sm:$0xff]
  %v2586 = vld [vmem:[%s6 + $0x90] sm:$0xff]
  %v2587 = vld [vmem:[%s6 + $0x98] sm:$0xff]
  %v2588 = vld [vmem:[%s6 + $0xa0] sm:$0xff]
  %v2589 = vld [vmem:[%s6 + $0xa8] sm:$0xff]
  %v2590 = vld [vmem:[%s6 + $0xb0] sm:$0xff]
  %v2591 = vld [vmem:[%s6 + $0xb8] sm:$0xff]
  %v2592 = vld [vmem:[%s6 + $0xc0] sm:$0xff]
  %v2593 = vld [vmem:[%s6 + $0xc8] sm:$0xff]
  %v2594 = vld [vmem:[%s6 + $0xd0] sm:$0xff]
  %v2595 = vld [vmem:[%s6 + $0xd8] sm:$0xff]
  %v2596 = vld [vmem:[%s6 + $0xe0] sm:$0xff]
  %v2597 = vld [vmem:[%s6 + $0xe8] sm:$0xff]
  %v2598 = vld [vmem:[%s6 + $0xf0] sm:$0xff]
  %v2599 = vld [vmem:[%s6 + $0xf8] sm:$0xff]
  %v2600 = vld [vmem:[%s6 + $0x100] sm:$0xff]
  %v2601 = vld [vmem:[%s6 + $0x108] sm:$0xff]
  %v2602 = vld [vmem:[%s6 + $0x110] sm:$0xff]
  %v2603 = vld [vmem:[%s6 + $0x118] sm:$0xff]
  %v2604 = vld [vmem:[%s6 + $0x120] sm:$0xff]
  %v2605 = vld [vmem:[%s6 + $0x128] sm:$0xff]
  %v2606 = vld [vmem:[%s6 + $0x130] sm:$0xff]
  %v2607 = vld [vmem:[%s6 + $0x138] sm:$0xff]
  %v2608 = vld [vmem:[%s6 + $0x140] sm:$0xff]
  %v2609 = vld [vmem:[%s6 + $0x148] sm:$0xff]
  %v2610 = vld [vmem:[%s6 + $0x150] sm:$0xff]
  %v2611 = vld [vmem:[%s6 + $0x158] sm:$0xff]
  %v2612 = vld [vmem:[%s6 + $0x160] sm:$0xff]
  %v2613 = vld [vmem:[%s6 + $0x168] sm:$0xff]
  %v2614 = vld [vmem:[%s6 + $0x170] sm:$0xff]
  %v2615 = vld [vmem:[%s6 + $0x178] sm:$0xff]
  %v2616 = vld [vmem:[%s6 + $0x180] sm:$0xff]
  %v2617 = vld [vmem:[%s6 + $0x188] sm:$0xff]
  %v2618 = vld [vmem:[%s6 + $0x190] sm:$0xff]
  %v2619 = vld [vmem:[%s6 + $0x198] sm:$0xff]
  %v2620 = vld [vmem:[%s6 + $0x1a0] sm:$0xff]
  %v2621 = vld [vmem:[%s6 + $0x1a8] sm:$0xff]
  %v2622 = vld [vmem:[%s6 + $0x1b0] sm:$0xff]
  %v2623 = vld [vmem:[%s6 + $0x1b8] sm:$0xff]
  %v2624 = vld [vmem:[%s6 + $0x1c0] sm:$0xff]
  %v2625 = vld [vmem:[%s6 + $0x1c8] sm:$0xff]
  %v2626 = vld [vmem:[%s6 + $0x1d0] sm:$0xff]
  %v2627 = vld [vmem:[%s6 + $0x1d8] sm:$0xff]
  %v2628 = vld [vmem:[%s6 + $0x1e0] sm:$0xff]
  %v2629 = vld [vmem:[%s6 + $0x1e8] sm:$0xff]
  %v2630 = vld [vmem:[%s6 + $0x1f0] sm:$0xff]
  %v2631 = vld [vmem:[%s6 + $0x1f8] sm:$0xff]
  %v2632 = vld [vmem:[%s6 + $0x200] sm:$0xff]
  %v2633 = vld [vmem:[%s6 + $0x208] sm:$0xff]
  %v2634 = vld [vmem:[%s6 + $0x210] sm:$0xff]
  %v2635 = vld [vmem:[%s6 + $0x218] sm:$0xff]
  %v2636 = vld [vmem:[%s6 + $0x220] sm:$0xff]
  %v2637 = vld [vmem:[%s6 + $0x228] sm:$0xff]
  %v2638 = vld [vmem:[%s6 + $0x230] sm:$0xff]
  %v2639 = vld [vmem:[%s6 + $0x238] sm:$0xff]
  %v2640 = vld [vmem:[%s6 + $0x240] sm:$0xff]
  %v2641 = vld [vmem:[%s6 + $0x248] sm:$0xff]
  %v2642 = vld [vmem:[%s6 + $0x250] sm:$0xff]
  %v2643 = vld [vmem:[%s6 + $0x258] sm:$0xff]
  %v2644 = vld [vmem:[%s6 + $0x260] sm:$0xff]
  %v2645 = vld [vmem:[%s6 + $0x268] sm:$0xff]
  %v2646 = vld [vmem:[%s6 + $0x270] sm:$0xff]
  %v2647 = vld [vmem:[%s6 + $0x278] sm:$0xff]
  %v2648 = vld [vmem:[%s6 + $0x280] sm:$0xff]
  %v2649 = vld [vmem:[%s6 + $0x288] sm:$0xff]
  %v2650 = vld [vmem:[%s6 + $0x290] sm:$0xff]
  %v2651 = vld [vmem:[%s6 + $0x298] sm:$0xff]
  %v2652 = vld [vmem:[%s6 + $0x2a0] sm:$0xff]
  %v2653 = vld [vmem:[%s6 + $0x2a8] sm:$0xff]
  %v2654 = vld [vmem:[%s6 + $0x2b0] sm:$0xff]
  %v2655 = vld [vmem:[%s6 + $0x2b8] sm:$0xff]
  %v2656 = vld [vmem:[%s6 + $0x2c0] sm:$0xff]
  %v2657 = vld [vmem:[%s6 + $0x2c8] sm:$0xff]
  %v2658 = vld [vmem:[%s6 + $0x2d0] sm:$0xff]
  %v2659 = vld [vmem:[%s6 + $0x2d8] sm:$0xff]
  %v2660 = vld [vmem:[%s6 + $0x2e0] sm:$0xff]
  %v2661 = vld [vmem:[%s6 + $0x2e8] sm:$0xff]
  %v2662 = vld [vmem:[%s6 + $0x2f0] sm:$0xff]
  %v2663 = vld [vmem:[%s6 + $0x2f8] sm:$0xff]
  %v2664 = vld [vmem:[%s6 + $0x300] sm:$0xff]
  %v2665 = vld [vmem:[%s6 + $0x308] sm:$0xff]
  %v2666 = vld [vmem:[%s6 + $0x310] sm:$0xff]
  %v2667 = vld [vmem:[%s6 + $0x318] sm:$0xff]
  %v2668 = vld [vmem:[%s6 + $0x320] sm:$0xff]
  %v2669 = vld [vmem:[%s6 + $0x328] sm:$0xff]
  %v2670 = vld [vmem:[%s6 + $0x330] sm:$0xff]
  %v2671 = vld [vmem:[%s6 + $0x338] sm:$0xff]
  %v2672 = vld [vmem:[%s6 + $0x340] sm:$0xff]
  %v2673 = vld [vmem:[%s6 + $0x348] sm:$0xff]
  %v2674 = vld [vmem:[%s6 + $0x350] sm:$0xff]
  %v2675 = vld [vmem:[%s6 + $0x358] sm:$0xff]
  %v2676 = vld [vmem:[%s6 + $0x360] sm:$0xff]
  %v2677 = vld [vmem:[%s6 + $0x368] sm:$0xff]
  %v2678 = vld [vmem:[%s6 + $0x370] sm:$0xff]
  %v2679 = vld [vmem:[%s6 + $0x378] sm:$0xff]
  %v2680 = vld [vmem:[%s6 + $0x380] sm:$0xff]
  %v2681 = vld [vmem:[%s6 + $0x388] sm:$0xff]
  %v2682 = vld [vmem:[%s6 + $0x390] sm:$0xff]
  %v2683 = vld [vmem:[%s6 + $0x398] sm:$0xff]
  %v2684 = vld [vmem:[%s6 + $0x3a0] sm:$0xff]
  %v2685 = vld [vmem:[%s6 + $0x3a8] sm:$0xff]
  %v2686 = vld [vmem:[%s6 + $0x3b0] sm:$0xff]
  %v2687 = vld [vmem:[%s6 + $0x3b8] sm:$0xff]
  %v2688 = vld [vmem:[%s6 + $0x3c0] sm:$0xff]
  %v2689 = vld [vmem:[%s6 + $0x3c8] sm:$0xff]
  %v2690 = vld [vmem:[%s6 + $0x3d0] sm:$0xff]
  %v2691 = vld [vmem:[%s6 + $0x3d8] sm:$0xff]
  %v2692 = vld [vmem:[%s6 + $0x3e0] sm:$0xff]
  %v2693 = vld [vmem:[%s6 + $0x3e8] sm:$0xff]
  %v2694 = vld [vmem:[%s6 + $0x3f0] sm:$0xff]
  %v2695 = vld [vmem:[%s6 + $0x3f8] sm:$0xff]
  %v2696 = vld [vmem:[%s7] sm:$0xf]
  %v2698 = vlaneseq
  %v2699 = vshrl.u32 %v2698, 7
  %v2700 = vsub.s32 0, %v2699
  %v2701 = vrot.slane %v2696, %v2700
  %v2702 = vlaneseq
  %v2703 = vshrl.u32 %v2702, 7
  %v2704 = vsub.s32 1, %v2703
  %v2705 = vrot.slane %v2696, %v2704
  %v2706 = vlaneseq
  %v2707 = vshrl.u32 %v2706, 7
  %v2708 = vsub.s32 2, %v2707
  %v2709 = vrot.slane %v2696, %v2708
  %v2710 = vlaneseq
  %v2711 = vshrl.u32 %v2710, 7
  %v2712 = vsub.s32 3, %v2711
  %v2713 = vrot.slane %v2696, %v2712
  %v2846 = vunpack.c.l.b16 %v2568
  %v2847 = vunpack.c.h.b16 %v2568
  %v2848 = vunpack.c.l.b16 %v2569
  %v2849 = vunpack.c.h.b16 %v2569
  %v2850 = vunpack.c.l.b16 %v2570
  %v2851 = vunpack.c.h.b16 %v2570
  %v2852 = vunpack.c.l.b16 %v2571
  %v2853 = vunpack.c.h.b16 %v2571
  %v2854 = vunpack.c.l.b16 %v2572
  %v2855 = vunpack.c.h.b16 %v2572
  %v2856 = vunpack.c.l.b16 %v2573
  %v2857 = vunpack.c.h.b16 %v2573
  %v2858 = vunpack.c.l.b16 %v2574
  %v2859 = vunpack.c.h.b16 %v2574
  %v2860 = vunpack.c.l.b16 %v2575
  %v2861 = vunpack.c.h.b16 %v2575
  %v2862 = vunpack.c.l.b16 %v2576
  %v2863 = vunpack.c.h.b16 %v2576
  %v2864 = vunpack.c.l.b16 %v2577
  %v2865 = vunpack.c.h.b16 %v2577
  %v2866 = vunpack.c.l.b16 %v2578
  %v2867 = vunpack.c.h.b16 %v2578
  %v2868 = vunpack.c.l.b16 %v2579
  %v2869 = vunpack.c.h.b16 %v2579
  %v2870 = vunpack.c.l.b16 %v2580
  %v2871 = vunpack.c.h.b16 %v2580
  %v2872 = vunpack.c.l.b16 %v2581
  %v2873 = vunpack.c.h.b16 %v2581
  %v2874 = vunpack.c.l.b16 %v2582
  %v2875 = vunpack.c.h.b16 %v2582
  %v2876 = vunpack.c.l.b16 %v2583
  %v2877 = vunpack.c.h.b16 %v2583
  %v2878 = vunpack.c.l.b16 %v2584
  %v2879 = vunpack.c.h.b16 %v2584
  %v2880 = vunpack.c.l.b16 %v2585
  %v2881 = vunpack.c.h.b16 %v2585
  %v2882 = vunpack.c.l.b16 %v2586
  %v2883 = vunpack.c.h.b16 %v2586
  %v2884 = vunpack.c.l.b16 %v2587
  %v2885 = vunpack.c.h.b16 %v2587
  %v2886 = vunpack.c.l.b16 %v2588
  %v2887 = vunpack.c.h.b16 %v2588
  %v2888 = vunpack.c.l.b16 %v2589
  %v2889 = vunpack.c.h.b16 %v2589
  %v2890 = vunpack.c.l.b16 %v2590
  %v2891 = vunpack.c.h.b16 %v2590
  %v2892 = vunpack.c.l.b16 %v2591
  %v2893 = vunpack.c.h.b16 %v2591
  %v2894 = vunpack.c.l.b16 %v2592
  %v2895 = vunpack.c.h.b16 %v2592
  %v2896 = vunpack.c.l.b16 %v2593
  %v2897 = vunpack.c.h.b16 %v2593
  %v2898 = vunpack.c.l.b16 %v2594
  %v2899 = vunpack.c.h.b16 %v2594
  %v2900 = vunpack.c.l.b16 %v2595
  %v2901 = vunpack.c.h.b16 %v2595
  %v2902 = vunpack.c.l.b16 %v2596
  %v2903 = vunpack.c.h.b16 %v2596
  %v2904 = vunpack.c.l.b16 %v2597
  %v2905 = vunpack.c.h.b16 %v2597
  %v2906 = vunpack.c.l.b16 %v2598
  %v2907 = vunpack.c.h.b16 %v2598
  %v2908 = vunpack.c.l.b16 %v2599
  %v2909 = vunpack.c.h.b16 %v2599
  %v2910 = vunpack.c.l.b16 %v2600
  %v2911 = vunpack.c.h.b16 %v2600
  %v2912 = vunpack.c.l.b16 %v2601
  %v2913 = vunpack.c.h.b16 %v2601
  %v2914 = vunpack.c.l.b16 %v2602
  %v2915 = vunpack.c.h.b16 %v2602
  %v2916 = vunpack.c.l.b16 %v2603
  %v2917 = vunpack.c.h.b16 %v2603
  %v2918 = vunpack.c.l.b16 %v2604
  %v2919 = vunpack.c.h.b16 %v2604
  %v2920 = vunpack.c.l.b16 %v2605
  %v2921 = vunpack.c.h.b16 %v2605
  %v2922 = vunpack.c.l.b16 %v2606
  %v2923 = vunpack.c.h.b16 %v2606
  %v2924 = vunpack.c.l.b16 %v2607
  %v2925 = vunpack.c.h.b16 %v2607
  %v2926 = vunpack.c.l.b16 %v2608
  %v2927 = vunpack.c.h.b16 %v2608
  %v2928 = vunpack.c.l.b16 %v2609
  %v2929 = vunpack.c.h.b16 %v2609
  %v2930 = vunpack.c.l.b16 %v2610
  %v2931 = vunpack.c.h.b16 %v2610
  %v2932 = vunpack.c.l.b16 %v2611
  %v2933 = vunpack.c.h.b16 %v2611
  %v2934 = vunpack.c.l.b16 %v2612
  %v2935 = vunpack.c.h.b16 %v2612
  %v2936 = vunpack.c.l.b16 %v2613
  %v2937 = vunpack.c.h.b16 %v2613
  %v2938 = vunpack.c.l.b16 %v2614
  %v2939 = vunpack.c.h.b16 %v2614
  %v2940 = vunpack.c.l.b16 %v2615
  %v2941 = vunpack.c.h.b16 %v2615
  %v2942 = vunpack.c.l.b16 %v2616
  %v2943 = vunpack.c.h.b16 %v2616
  %v2944 = vunpack.c.l.b16 %v2617
  %v2945 = vunpack.c.h.b16 %v2617
  %v2946 = vunpack.c.l.b16 %v2618
  %v2947 = vunpack.c.h.b16 %v2618
  %v2948 = vunpack.c.l.b16 %v2619
  %v2949 = vunpack.c.h.b16 %v2619
  %v2950 = vunpack.c.l.b16 %v2620
  %v2951 = vunpack.c.h.b16 %v2620
  %v2952 = vunpack.c.l.b16 %v2621
  %v2953 = vunpack.c.h.b16 %v2621
  %v2954 = vunpack.c.l.b16 %v2622
  %v2955 = vunpack.c.h.b16 %v2622
  %v2956 = vunpack.c.l.b16 %v2623
  %v2957 = vunpack.c.h.b16 %v2623
  %v2958 = vunpack.c.l.b16 %v2624
  %v2959 = vunpack.c.h.b16 %v2624
  %v2960 = vunpack.c.l.b16 %v2625
  %v2961 = vunpack.c.h.b16 %v2625
  %v2962 = vunpack.c.l.b16 %v2626
  %v2963 = vunpack.c.h.b16 %v2626
  %v2964 = vunpack.c.l.b16 %v2627
  %v2965 = vunpack.c.h.b16 %v2627
  %v2966 = vunpack.c.l.b16 %v2628
  %v2967 = vunpack.c.h.b16 %v2628
  %v2968 = vunpack.c.l.b16 %v2629
  %v2969 = vunpack.c.h.b16 %v2629
  %v2970 = vunpack.c.l.b16 %v2630
  %v2971 = vunpack.c.h.b16 %v2630
  %v2972 = vunpack.c.l.b16 %v2631
  %v2973 = vunpack.c.h.b16 %v2631
  %v2974 = vunpack.c.l.b16 %v2632
  %v2975 = vunpack.c.h.b16 %v2632
  %v2976 = vunpack.c.l.b16 %v2633
  %v2977 = vunpack.c.h.b16 %v2633
  %v2978 = vunpack.c.l.b16 %v2634
  %v2979 = vunpack.c.h.b16 %v2634
  %v2980 = vunpack.c.l.b16 %v2635
  %v2981 = vunpack.c.h.b16 %v2635
  %v2982 = vunpack.c.l.b16 %v2636
  %v2983 = vunpack.c.h.b16 %v2636
  %v2984 = vunpack.c.l.b16 %v2637
  %v2985 = vunpack.c.h.b16 %v2637
  %v2986 = vunpack.c.l.b16 %v2638
  %v2987 = vunpack.c.h.b16 %v2638
  %v2988 = vunpack.c.l.b16 %v2639
  %v2989 = vunpack.c.h.b16 %v2639
  %v2990 = vunpack.c.l.b16 %v2640
  %v2991 = vunpack.c.h.b16 %v2640
  %v2992 = vunpack.c.l.b16 %v2641
  %v2993 = vunpack.c.h.b16 %v2641
  %v2994 = vunpack.c.l.b16 %v2642
  %v2995 = vunpack.c.h.b16 %v2642
  %v2996 = vunpack.c.l.b16 %v2643
  %v2997 = vunpack.c.h.b16 %v2643
  %v2998 = vunpack.c.l.b16 %v2644
  %v2999 = vunpack.c.h.b16 %v2644
  %v3000 = vunpack.c.l.b16 %v2645
  %v3001 = vunpack.c.h.b16 %v2645
  %v3002 = vunpack.c.l.b16 %v2646
  %v3003 = vunpack.c.h.b16 %v2646
  %v3004 = vunpack.c.l.b16 %v2647
  %v3005 = vunpack.c.h.b16 %v2647
  %v3006 = vunpack.c.l.b16 %v2648
  %v3007 = vunpack.c.h.b16 %v2648
  %v3008 = vunpack.c.l.b16 %v2649
  %v3009 = vunpack.c.h.b16 %v2649
  %v3010 = vunpack.c.l.b16 %v2650
  %v3011 = vunpack.c.h.b16 %v2650
  %v3012 = vunpack.c.l.b16 %v2651
  %v3013 = vunpack.c.h.b16 %v2651
  %v3014 = vunpack.c.l.b16 %v2652
  %v3015 = vunpack.c.h.b16 %v2652
  %v3016 = vunpack.c.l.b16 %v2653
  %v3017 = vunpack.c.h.b16 %v2653
  %v3018 = vunpack.c.l.b16 %v2654
  %v3019 = vunpack.c.h.b16 %v2654
  %v3020 = vunpack.c.l.b16 %v2655
  %v3021 = vunpack.c.h.b16 %v2655
  %v3022 = vunpack.c.l.b16 %v2656
  %v3023 = vunpack.c.h.b16 %v2656
  %v3024 = vunpack.c.l.b16 %v2657
  %v3025 = vunpack.c.h.b16 %v2657
  %v3026 = vunpack.c.l.b16 %v2658
  %v3027 = vunpack.c.h.b16 %v2658
  %v3028 = vunpack.c.l.b16 %v2659
  %v3029 = vunpack.c.h.b16 %v2659
  %v3030 = vunpack.c.l.b16 %v2660
  %v3031 = vunpack.c.h.b16 %v2660
  %v3032 = vunpack.c.l.b16 %v2661
  %v3033 = vunpack.c.h.b16 %v2661
  %v3034 = vunpack.c.l.b16 %v2662
  %v3035 = vunpack.c.h.b16 %v2662
  %v3036 = vunpack.c.l.b16 %v2663
  %v3037 = vunpack.c.h.b16 %v2663
  %v3038 = vunpack.c.l.b16 %v2664
  %v3039 = vunpack.c.h.b16 %v2664
  %v3040 = vunpack.c.l.b16 %v2665
  %v3041 = vunpack.c.h.b16 %v2665
  %v3042 = vunpack.c.l.b16 %v2666
  %v3043 = vunpack.c.h.b16 %v2666
  %v3044 = vunpack.c.l.b16 %v2667
  %v3045 = vunpack.c.h.b16 %v2667
  %v3046 = vunpack.c.l.b16 %v2668
  %v3047 = vunpack.c.h.b16 %v2668
  %v3048 = vunpack.c.l.b16 %v2669
  %v3049 = vunpack.c.h.b16 %v2669
  %v3050 = vunpack.c.l.b16 %v2670
  %v3051 = vunpack.c.h.b16 %v2670
  %v3052 = vunpack.c.l.b16 %v2671
  %v3053 = vunpack.c.h.b16 %v2671
  %v3054 = vunpack.c.l.b16 %v2672
  %v3055 = vunpack.c.h.b16 %v2672
  %v3056 = vunpack.c.l.b16 %v2673
  %v3057 = vunpack.c.h.b16 %v2673
  %v3058 = vunpack.c.l.b16 %v2674
  %v3059 = vunpack.c.h.b16 %v2674
  %v3060 = vunpack.c.l.b16 %v2675
  %v3061 = vunpack.c.h.b16 %v2675
  %v3062 = vunpack.c.l.b16 %v2676
  %v3063 = vunpack.c.h.b16 %v2676
  %v3064 = vunpack.c.l.b16 %v2677
  %v3065 = vunpack.c.h.b16 %v2677
  %v3066 = vunpack.c.l.b16 %v2678
  %v3067 = vunpack.c.h.b16 %v2678
  %v3068 = vunpack.c.l.b16 %v2679
  %v3069 = vunpack.c.h.b16 %v2679
  %v3070 = vunpack.c.l.b16 %v2680
  %v3071 = vunpack.c.h.b16 %v2680
  %v3072 = vunpack.c.l.b16 %v2681
  %v3073 = vunpack.c.h.b16 %v2681
  %v3074 = vunpack.c.l.b16 %v2682
  %v3075 = vunpack.c.h.b16 %v2682
  %v3076 = vunpack.c.l.b16 %v2683
  %v3077 = vunpack.c.h.b16 %v2683
  %v3078 = vunpack.c.l.b16 %v2684
  %v3079 = vunpack.c.h.b16 %v2684
  %v3080 = vunpack.c.l.b16 %v2685
  %v3081 = vunpack.c.h.b16 %v2685
  %v3082 = vunpack.c.l.b16 %v2686
  %v3083 = vunpack.c.h.b16 %v2686
  %v3084 = vunpack.c.l.b16 %v2687
  %v3085 = vunpack.c.h.b16 %v2687
  %v3086 = vunpack.c.l.b16 %v2688
  %v3087 = vunpack.c.h.b16 %v2688
  %v3088 = vunpack.c.l.b16 %v2689
  %v3089 = vunpack.c.h.b16 %v2689
  %v3090 = vunpack.c.l.b16 %v2690
  %v3091 = vunpack.c.h.b16 %v2690
  %v3092 = vunpack.c.l.b16 %v2691
  %v3093 = vunpack.c.h.b16 %v2691
  %v3094 = vunpack.c.l.b16 %v2692
  %v3095 = vunpack.c.h.b16 %v2692
  %v3096 = vunpack.c.l.b16 %v2693
  %v3097 = vunpack.c.h.b16 %v2693
  %v3098 = vunpack.c.l.b16 %v2694
  %v3099 = vunpack.c.h.b16 %v2694
  %v3100 = vunpack.c.l.b16 %v2695
  %v3101 = vunpack.c.h.b16 %v2695
  %v3102 = vpack.c.b16 %v2850, %v2846
  %v3103 = vpack.c.b16 %v2851, %v2847
  %v3104 = vpack.c.b16 %v2852, %v2848
  %v3105 = vpack.c.b16 %v2853, %v2849
  %v3106 = vpack.c.b16 %v2858, %v2854
  %v3107 = vpack.c.b16 %v2859, %v2855
  %v3108 = vpack.c.b16 %v2860, %v2856
  %v3109 = vpack.c.b16 %v2861, %v2857
  %v3110 = vpack.c.b16 %v2866, %v2862
  %v3111 = vpack.c.b16 %v2867, %v2863
  %v3112 = vpack.c.b16 %v2868, %v2864
  %v3113 = vpack.c.b16 %v2869, %v2865
  %v3114 = vpack.c.b16 %v2874, %v2870
  %v3115 = vpack.c.b16 %v2875, %v2871
  %v3116 = vpack.c.b16 %v2876, %v2872
  %v3117 = vpack.c.b16 %v2877, %v2873
  %v3118 = vpack.c.b16 %v2882, %v2878
  %v3119 = vpack.c.b16 %v2883, %v2879
  %v3120 = vpack.c.b16 %v2884, %v2880
  %v3121 = vpack.c.b16 %v2885, %v2881
  %v3122 = vpack.c.b16 %v2890, %v2886
  %v3123 = vpack.c.b16 %v2891, %v2887
  %v3124 = vpack.c.b16 %v2892, %v2888
  %v3125 = vpack.c.b16 %v2893, %v2889
  %v3126 = vpack.c.b16 %v2898, %v2894
  %v3127 = vpack.c.b16 %v2899, %v2895
  %v3128 = vpack.c.b16 %v2900, %v2896
  %v3129 = vpack.c.b16 %v2901, %v2897
  %v3130 = vpack.c.b16 %v2906, %v2902
  %v3131 = vpack.c.b16 %v2907, %v2903
  %v3132 = vpack.c.b16 %v2908, %v2904
  %v3133 = vpack.c.b16 %v2909, %v2905
  %v3134 = vpack.c.b16 %v2914, %v2910
  %v3135 = vpack.c.b16 %v2915, %v2911
  %v3136 = vpack.c.b16 %v2916, %v2912
  %v3137 = vpack.c.b16 %v2917, %v2913
  %v3138 = vpack.c.b16 %v2922, %v2918
  %v3139 = vpack.c.b16 %v2923, %v2919
  %v3140 = vpack.c.b16 %v2924, %v2920
  %v3141 = vpack.c.b16 %v2925, %v2921
  %v3142 = vpack.c.b16 %v2930, %v2926
  %v3143 = vpack.c.b16 %v2931, %v2927
  %v3144 = vpack.c.b16 %v2932, %v2928
  %v3145 = vpack.c.b16 %v2933, %v2929
  %v3146 = vpack.c.b16 %v2938, %v2934
  %v3147 = vpack.c.b16 %v2939, %v2935
  %v3148 = vpack.c.b16 %v2940, %v2936
  %v3149 = vpack.c.b16 %v2941, %v2937
  %v3150 = vpack.c.b16 %v2946, %v2942
  %v3151 = vpack.c.b16 %v2947, %v2943
  %v3152 = vpack.c.b16 %v2948, %v2944
  %v3153 = vpack.c.b16 %v2949, %v2945
  %v3154 = vpack.c.b16 %v2954, %v2950
  %v3155 = vpack.c.b16 %v2955, %v2951
  %v3156 = vpack.c.b16 %v2956, %v2952
  %v3157 = vpack.c.b16 %v2957, %v2953
  %v3158 = vpack.c.b16 %v2962, %v2958
  %v3159 = vpack.c.b16 %v2963, %v2959
  %v3160 = vpack.c.b16 %v2964, %v2960
  %v3161 = vpack.c.b16 %v2965, %v2961
  %v3162 = vpack.c.b16 %v2970, %v2966
  %v3163 = vpack.c.b16 %v2971, %v2967
  %v3164 = vpack.c.b16 %v2972, %v2968
  %v3165 = vpack.c.b16 %v2973, %v2969
  %v3166 = vpack.c.b16 %v2978, %v2974
  %v3167 = vpack.c.b16 %v2979, %v2975
  %v3168 = vpack.c.b16 %v2980, %v2976
  %v3169 = vpack.c.b16 %v2981, %v2977
  %v3170 = vpack.c.b16 %v2986, %v2982
  %v3171 = vpack.c.b16 %v2987, %v2983
  %v3172 = vpack.c.b16 %v2988, %v2984
  %v3173 = vpack.c.b16 %v2989, %v2985
  %v3174 = vpack.c.b16 %v2994, %v2990
  %v3175 = vpack.c.b16 %v2995, %v2991
  %v3176 = vpack.c.b16 %v2996, %v2992
  %v3177 = vpack.c.b16 %v2997, %v2993
  %v3178 = vpack.c.b16 %v3002, %v2998
  %v3179 = vpack.c.b16 %v3003, %v2999
  %v3180 = vpack.c.b16 %v3004, %v3000
  %v3181 = vpack.c.b16 %v3005, %v3001
  %v3182 = vpack.c.b16 %v3010, %v3006
  %v3183 = vpack.c.b16 %v3011, %v3007
  %v3184 = vpack.c.b16 %v3012, %v3008
  %v3185 = vpack.c.b16 %v3013, %v3009
  %v3186 = vpack.c.b16 %v3018, %v3014
  %v3187 = vpack.c.b16 %v3019, %v3015
  %v3188 = vpack.c.b16 %v3020, %v3016
  %v3189 = vpack.c.b16 %v3021, %v3017
  %v3190 = vpack.c.b16 %v3026, %v3022
  %v3191 = vpack.c.b16 %v3027, %v3023
  %v3192 = vpack.c.b16 %v3028, %v3024
  %v3193 = vpack.c.b16 %v3029, %v3025
  %v3194 = vpack.c.b16 %v3034, %v3030
  %v3195 = vpack.c.b16 %v3035, %v3031
  %v3196 = vpack.c.b16 %v3036, %v3032
  %v3197 = vpack.c.b16 %v3037, %v3033
  %v3198 = vpack.c.b16 %v3042, %v3038
  %v3199 = vpack.c.b16 %v3043, %v3039
  %v3200 = vpack.c.b16 %v3044, %v3040
  %v3201 = vpack.c.b16 %v3045, %v3041
  %v3202 = vpack.c.b16 %v3050, %v3046
  %v3203 = vpack.c.b16 %v3051, %v3047
  %v3204 = vpack.c.b16 %v3052, %v3048
  %v3205 = vpack.c.b16 %v3053, %v3049
  %v3206 = vpack.c.b16 %v3058, %v3054
  %v3207 = vpack.c.b16 %v3059, %v3055
  %v3208 = vpack.c.b16 %v3060, %v3056
  %v3209 = vpack.c.b16 %v3061, %v3057
  %v3210 = vpack.c.b16 %v3066, %v3062
  %v3211 = vpack.c.b16 %v3067, %v3063
  %v3212 = vpack.c.b16 %v3068, %v3064
  %v3213 = vpack.c.b16 %v3069, %v3065
  %v3214 = vpack.c.b16 %v3074, %v3070
  %v3215 = vpack.c.b16 %v3075, %v3071
  %v3216 = vpack.c.b16 %v3076, %v3072
  %v3217 = vpack.c.b16 %v3077, %v3073
  %v3218 = vpack.c.b16 %v3082, %v3078
  %v3219 = vpack.c.b16 %v3083, %v3079
  %v3220 = vpack.c.b16 %v3084, %v3080
  %v3221 = vpack.c.b16 %v3085, %v3081
  %v3222 = vpack.c.b16 %v3090, %v3086
  %v3223 = vpack.c.b16 %v3091, %v3087
  %v3224 = vpack.c.b16 %v3092, %v3088
  %v3225 = vpack.c.b16 %v3093, %v3089
  %v3226 = vpack.c.b16 %v3098, %v3094
  %v3227 = vpack.c.b16 %v3099, %v3095
  %v3228 = vpack.c.b16 %v3100, %v3096
  %v3229 = vpack.c.b16 %v3101, %v3097
  %3358 = vmatprep.subr.bf16.mxu0 %v3103
  %3359 = vmatpush1.bf16.msra.mxu0 %v3102
  %3360 = vmatprep.subr.bf16.mxu0 %v3107
  %3361 = vmatpush1.bf16.msra.mxu0 %v3106
  %3362 = vmatprep.subr.bf16.mxu0 %v3111
  %3363 = vmatpush1.bf16.msra.mxu0 %v3110
  %3364 = vmatprep.subr.bf16.mxu0 %v3115
  %3365 = vmatpush1.bf16.msra.mxu0 %v3114
  %3366 = vmatprep.subr.bf16.mxu0 %v3119
  %3367 = vmatpush1.bf16.msra.mxu0 %v3118
  %3368 = vmatprep.subr.bf16.mxu0 %v3123
  %3369 = vmatpush1.bf16.msra.mxu0 %v3122
  %3370 = vmatprep.subr.bf16.mxu0 %v3127
  %3371 = vmatpush1.bf16.msra.mxu0 %v3126
  %3372 = vmatprep.subr.bf16.mxu0 %v3131
  %3373 = vmatpush1.bf16.msra.mxu0 %v3130
  %3374 = vmatprep.subr.bf16.mxu0 %v3135
  %3375 = vmatpush1.bf16.msra.mxu0 %v3134
  %3376 = vmatprep.subr.bf16.mxu0 %v3139
  %3377 = vmatpush1.bf16.msra.mxu0 %v3138
  %3378 = vmatprep.subr.bf16.mxu0 %v3143
  %3379 = vmatpush1.bf16.msra.mxu0 %v3142
  %3380 = vmatprep.subr.bf16.mxu0 %v3147
  %3381 = vmatpush1.bf16.msra.mxu0 %v3146
  %3382 = vmatprep.subr.bf16.mxu0 %v3151
  %3383 = vmatpush1.bf16.msra.mxu0 %v3150
  %3384 = vmatprep.subr.bf16.mxu0 %v3155
  %3385 = vmatpush1.bf16.msra.mxu0 %v3154
  %3386 = vmatprep.subr.bf16.mxu0 %v3159
  %3387 = vmatpush1.bf16.msra.mxu0 %v3158
  %3388 = vmatprep.subr.bf16.mxu0 %v3163
  %3389 = vmatpush1.bf16.msra.mxu0 %v3162
  %3390 = vmatprep.mubr.bf16.mxu0 %v2565
  %3391 = vmatmul.mubr.bf16.gmra.mrb[0].mxu0 %v2564
  %v3392 = vpop.f32.mrb[0].mxu0
  %v3393 = vadd.f32 %v2701, %v3392
  %v3394 = vpop.f32.mrb[0].mxu0
  %v3395 = vadd.f32 %v2705, %v3394
  %v3396 = vpop.f32.mrb[0].mxu0
  %v3397 = vpop.f32.mrb[0].mxu0
  %3398 = vdwg.mxu0
  %3399 = vmatprep.subr.bf16.mxu0 %v3167
  %3400 = vmatpush1.bf16.msra.mxu0 %v3166
  %3401 = vmatprep.subr.bf16.mxu0 %v3171
  %3402 = vmatpush1.bf16.msra.mxu0 %v3170
  %3403 = vmatprep.subr.bf16.mxu0 %v3175
  %3404 = vmatpush1.bf16.msra.mxu0 %v3174
  %3405 = vmatprep.subr.bf16.mxu0 %v3179
  %3406 = vmatpush1.bf16.msra.mxu0 %v3178
  %3407 = vmatprep.subr.bf16.mxu0 %v3183
  %3408 = vmatpush1.bf16.msra.mxu0 %v3182
  %3409 = vmatprep.subr.bf16.mxu0 %v3187
  %3410 = vmatpush1.bf16.msra.mxu0 %v3186
  %3411 = vmatprep.subr.bf16.mxu0 %v3191
  %3412 = vmatpush1.bf16.msra.mxu0 %v3190
  %3413 = vmatprep.subr.bf16.mxu0 %v3195
  %3414 = vmatpush1.bf16.msra.mxu0 %v3194
  %3415 = vmatprep.subr.bf16.mxu0 %v3199
  %3416 = vmatpush1.bf16.msra.mxu0 %v3198
  %3417 = vmatprep.subr.bf16.mxu0 %v3203
  %3418 = vmatpush1.bf16.msra.mxu0 %v3202
  %3419 = vmatprep.subr.bf16.mxu0 %v3207
  %3420 = vmatpush1.bf16.msra.mxu0 %v3206
  %3421 = vmatprep.subr.bf16.mxu0 %v3211
  %3422 = vmatpush1.bf16.msra.mxu0 %v3210
  %3423 = vmatprep.subr.bf16.mxu0 %v3215
  %3424 = vmatpush1.bf16.msra.mxu0 %v3214
  %3425 = vmatprep.subr.bf16.mxu0 %v3219
  %3426 = vmatpush1.bf16.msra.mxu0 %v3218
  %3427 = vmatprep.subr.bf16.mxu0 %v3223
  %3428 = vmatpush1.bf16.msra.mxu0 %v3222
  %3429 = vmatprep.subr.bf16.mxu0 %v3227
  %3430 = vmatpush1.bf16.msra.mxu0 %v3226
  %3431 = vmatprep.mubr.bf16.mxu0 %v2567
  %3432 = vmatmul.mubr.bf16.gmra.mrb[0].mxu0 %v2566
  %v3433 = vpop.f32.mrb[0].mxu0
  %v3434 = vadd.f32 %v3393, %v3433
  %v3435 = vpop.f32.mrb[0].mxu0
  %v3436 = vadd.f32 %v3395, %v3435
  %v3437 = vpop.f32.mrb[0].mxu0
  %v3438 = vpop.f32.mrb[0].mxu0
  %3439 = vdwg.mxu0
  %3440 = vmatprep.subr.bf16.mxu0 %v3105
  %3441 = vmatpush1.bf16.msra.mxu0 %v3104
  %3442 = vmatprep.subr.bf16.mxu0 %v3109
  %3443 = vmatpush1.bf16.msra.mxu0 %v3108
  %3444 = vmatprep.subr.bf16.mxu0 %v3113
  %3445 = vmatpush1.bf16.msra.mxu0 %v3112
  %3446 = vmatprep.subr.bf16.mxu0 %v3117
  %3447 = vmatpush1.bf16.msra.mxu0 %v3116
  %3448 = vmatprep.subr.bf16.mxu0 %v3121
  %3449 = vmatpush1.bf16.msra.mxu0 %v3120
  %3450 = vmatprep.subr.bf16.mxu0 %v3125
  %3451 = vmatpush1.bf16.msra.mxu0 %v3124
  %3452 = vmatprep.subr.bf16.mxu0 %v3129
  %3453 = vmatpush1.bf16.msra.mxu0 %v3128
  %3454 = vmatprep.subr.bf16.mxu0 %v3133
  %3455 = vmatpush1.bf16.msra.mxu0 %v3132
  %3456 = vmatprep.subr.bf16.mxu0 %v3137
  %3457 = vmatpush1.bf16.msra.mxu0 %v3136
  %3458 = vmatprep.subr.bf16.mxu0 %v3141
  %3459 = vmatpush1.bf16.msra.mxu0 %v3140
  %3460 = vmatprep.subr.bf16.mxu0 %v3145
  %3461 = vmatpush1.bf16.msra.mxu0 %v3144
  %3462 = vmatprep.subr.bf16.mxu0 %v3149
  %3463 = vmatpush1.bf16.msra.mxu0 %v3148
  %3464 = vmatprep.subr.bf16.mxu0 %v3153
  %3465 = vmatpush1.bf16.msra.mxu0 %v3152
  %3466 = vmatprep.subr.bf16.mxu0 %v3157
  %3467 = vmatpush1.bf16.msra.mxu0 %v3156
  %3468 = vmatprep.subr.bf16.mxu0 %v3161
  %3469 = vmatpush1.bf16.msra.mxu0 %v3160
  %3470 = vmatprep.subr.bf16.mxu0 %v3165
  %3471 = vmatpush1.bf16.msra.mxu0 %v3164
  %3472 = vmatprep.mubr.bf16.mxu0 %v2565
  %3473 = vmatmul.mubr.bf16.gmra.mrb[0].mxu0 %v2564
  %v3474 = vpop.f32.mrb[0].mxu0
  %v3475 = vadd.f32 %v2709, %v3474
  %v3476 = vpop.f32.mrb[0].mxu0
  %v3477 = vadd.f32 %v2713, %v3476
  %v3478 = vpop.f32.mrb[0].mxu0
  %v3479 = vpop.f32.mrb[0].mxu0
  %3480 = vdwg.mxu0
  %3481 = vmatprep.subr.bf16.mxu0 %v3169
  %3482 = vmatpush1.bf16.msra.mxu0 %v3168
  %3483 = vmatprep.subr.bf16.mxu0 %v3173
  %3484 = vmatpush1.bf16.msra.mxu0 %v3172
  %3485 = vmatprep.subr.bf16.mxu0 %v3177
  %3486 = vmatpush1.bf16.msra.mxu0 %v3176
  %3487 = vmatprep.subr.bf16.mxu0 %v3181
  %3488 = vmatpush1.bf16.msra.mxu0 %v3180
  %3489 = vmatprep.subr.bf16.mxu0 %v3185
  %3490 = vmatpush1.bf16.msra.mxu0 %v3184
  %3491 = vmatprep.subr.bf16.mxu0 %v3189
  %3492 = vmatpush1.bf16.msra.mxu0 %v3188
  %3493 = vmatprep.subr.bf16.mxu0 %v3193
  %3494 = vmatpush1.bf16.msra.mxu0 %v3192
  %3495 = vmatprep.subr.bf16.mxu0 %v3197
  %3496 = vmatpush1.bf16.msra.mxu0 %v3196
  %3497 = vmatprep.subr.bf16.mxu0 %v3201
  %3498 = vmatpush1.bf16.msra.mxu0 %v3200
  %3499 = vmatprep.subr.bf16.mxu0 %v3205
  %3500 = vmatpush1.bf16.msra.mxu0 %v3204
  %3501 = vmatprep.subr.bf16.mxu0 %v3209
  %3502 = vmatpush1.bf16.msra.mxu0 %v3208
  %3503 = vmatprep.subr.bf16.mxu0 %v3213
  %3504 = vmatpush1.bf16.msra.mxu0 %v3212
  %3505 = vmatprep.subr.bf16.mxu0 %v3217
  %3506 = vmatpush1.bf16.msra.mxu0 %v3216
  %3507 = vmatprep.subr.bf16.mxu0 %v3221
  %3508 = vmatpush1.bf16.msra.mxu0 %v3220
  %3509 = vmatprep.subr.bf16.mxu0 %v3225
  %3510 = vmatpush1.bf16.msra.mxu0 %v3224
  %3511 = vmatprep.subr.bf16.mxu0 %v3229
  %3512 = vmatpush1.bf16.msra.mxu0 %v3228
  %3513 = vmatprep.mubr.bf16.mxu0 %v2567
  %3514 = vmatmul.mubr.bf16.gmra.mrb[0].mxu0 %v2566
  %v3515 = vpop.f32.mrb[0].mxu0
  %v3516 = vadd.f32 %v3475, %v3515
  %v3517 = vpop.f32.mrb[0].mxu0
  %v3518 = vadd.f32 %v3477, %v3517
  %v3519 = vpop.f32.mrb[0].mxu0
  %v3520 = vpop.f32.mrb[0].mxu0
  %3521 = vdwg.mxu0
  %v3522 = vmax.f32 %v3434, 0.0
  %v3523 = vmax.f32 %v3436, 0.0
  %v3524 = vmax.f32 %v3516, 0.0
  %v3525 = vmax.f32 %v3518, 0.0
  %v3526 = vpack.c.bf16 %v3522, %v3522
  %v3527 = vpack.c.bf16 %v3523, %v3523
  %v3528 = vpack.c.bf16 %v3524, %v3524
  %v3529 = vpack.c.bf16 %v3525, %v3525
  %v3530 = vld [vmem:[%s8] sm:$0xff]
  %v3531 = vld [vmem:[%s8 + $0x8] sm:$0xff]
  %v3532 = vld [vmem:[%s8 + $0x10] sm:$0xff]
  %v3533 = vld [vmem:[%s8 + $0x18] sm:$0xff]
  %v3534 = vld [vmem:[%s8 + $0x20] sm:$0xff]
  %v3535 = vld [vmem:[%s8 + $0x28] sm:$0xff]
  %v3536 = vld [vmem:[%s8 + $0x30] sm:$0xff]
  %v3537 = vld [vmem:[%s8 + $0x38] sm:$0xff]
  %v3538 = vld [vmem:[%s8 + $0x40] sm:$0xff]
  %v3539 = vld [vmem:[%s8 + $0x48] sm:$0xff]
  %v3540 = vld [vmem:[%s8 + $0x50] sm:$0xff]
  %v3541 = vld [vmem:[%s8 + $0x58] sm:$0xff]
  %v3542 = vld [vmem:[%s8 + $0x60] sm:$0xff]
  %v3543 = vld [vmem:[%s8 + $0x68] sm:$0xff]
  %v3544 = vld [vmem:[%s8 + $0x70] sm:$0xff]
  %v3545 = vld [vmem:[%s8 + $0x78] sm:$0xff]
  %v3546 = vld [vmem:[%s8 + $0x80] sm:$0xff]
  %v3547 = vld [vmem:[%s8 + $0x88] sm:$0xff]
  %v3548 = vld [vmem:[%s8 + $0x90] sm:$0xff]
  %v3549 = vld [vmem:[%s8 + $0x98] sm:$0xff]
  %v3550 = vld [vmem:[%s8 + $0xa0] sm:$0xff]
  %v3551 = vld [vmem:[%s8 + $0xa8] sm:$0xff]
  %v3552 = vld [vmem:[%s8 + $0xb0] sm:$0xff]
  %v3553 = vld [vmem:[%s8 + $0xb8] sm:$0xff]
  %v3554 = vld [vmem:[%s8 + $0xc0] sm:$0xff]
  %v3555 = vld [vmem:[%s8 + $0xc8] sm:$0xff]
  %v3556 = vld [vmem:[%s8 + $0xd0] sm:$0xff]
  %v3557 = vld [vmem:[%s8 + $0xd8] sm:$0xff]
  %v3558 = vld [vmem:[%s8 + $0xe0] sm:$0xff]
  %v3559 = vld [vmem:[%s8 + $0xe8] sm:$0xff]
  %v3560 = vld [vmem:[%s8 + $0xf0] sm:$0xff]
  %v3561 = vld [vmem:[%s8 + $0xf8] sm:$0xff]
  %v3562 = vld [vmem:[%s8 + $0x100] sm:$0xff]
  %v3563 = vld [vmem:[%s8 + $0x108] sm:$0xff]
  %v3564 = vld [vmem:[%s8 + $0x110] sm:$0xff]
  %v3565 = vld [vmem:[%s8 + $0x118] sm:$0xff]
  %v3566 = vld [vmem:[%s8 + $0x120] sm:$0xff]
  %v3567 = vld [vmem:[%s8 + $0x128] sm:$0xff]
  %v3568 = vld [vmem:[%s8 + $0x130] sm:$0xff]
  %v3569 = vld [vmem:[%s8 + $0x138] sm:$0xff]
  %v3570 = vld [vmem:[%s8 + $0x140] sm:$0xff]
  %v3571 = vld [vmem:[%s8 + $0x148] sm:$0xff]
  %v3572 = vld [vmem:[%s8 + $0x150] sm:$0xff]
  %v3573 = vld [vmem:[%s8 + $0x158] sm:$0xff]
  %v3574 = vld [vmem:[%s8 + $0x160] sm:$0xff]
  %v3575 = vld [vmem:[%s8 + $0x168] sm:$0xff]
  %v3576 = vld [vmem:[%s8 + $0x170] sm:$0xff]
  %v3577 = vld [vmem:[%s8 + $0x178] sm:$0xff]
  %v3578 = vld [vmem:[%s8 + $0x180] sm:$0xff]
  %v3579 = vld [vmem:[%s8 + $0x188] sm:$0xff]
  %v3580 = vld [vmem:[%s8 + $0x190] sm:$0xff]
  %v3581 = vld [vmem:[%s8 + $0x198] sm:$0xff]
  %v3582 = vld [vmem:[%s8 + $0x1a0] sm:$0xff]
  %v3583 = vld [vmem:[%s8 + $0x1a8] sm:$0xff]
  %v3584 = vld [vmem:[%s8 + $0x1b0] sm:$0xff]
  %v3585 = vld [vmem:[%s8 + $0x1b8] sm:$0xff]
  %v3586 = vld [vmem:[%s8 + $0x1c0] sm:$0xff]
  %v3587 = vld [vmem:[%s8 + $0x1c8] sm:$0xff]
  %v3588 = vld [vmem:[%s8 + $0x1d0] sm:$0xff]
  %v3589 = vld [vmem:[%s8 + $0x1d8] sm:$0xff]
  %v3590 = vld [vmem:[%s8 + $0x1e0] sm:$0xff]
  %v3591 = vld [vmem:[%s8 + $0x1e8] sm:$0xff]
  %v3592 = vld [vmem:[%s8 + $0x1f0] sm:$0xff]
  %v3593 = vld [vmem:[%s8 + $0x1f8] sm:$0xff]
  %v3594 = vld [vmem:[%s9] sm:$0x3]
  %v3596 = vlaneseq
  %v3597 = vshrl.u32 %v3596, 7
  %v3598 = vsub.s32 0, %v3597
  %v3599 = vrot.slane %v3594, %v3598
  %v3600 = vlaneseq
  %v3601 = vshrl.u32 %v3600, 7
  %v3602 = vsub.s32 1, %v3601
  %v3603 = vrot.slane %v3594, %v3602
  %v3670 = vunpack.c.l.b16 %v3530
  %v3671 = vunpack.c.h.b16 %v3530
  %v3672 = vunpack.c.l.b16 %v3531
  %v3673 = vunpack.c.h.b16 %v3531
  %v3674 = vunpack.c.l.b16 %v3532
  %v3675 = vunpack.c.h.b16 %v3532
  %v3676 = vunpack.c.l.b16 %v3533
  %v3677 = vunpack.c.h.b16 %v3533
  %v3678 = vunpack.c.l.b16 %v3534
  %v3679 = vunpack.c.h.b16 %v3534
  %v3680 = vunpack.c.l.b16 %v3535
  %v3681 = vunpack.c.h.b16 %v3535
  %v3682 = vunpack.c.l.b16 %v3536
  %v3683 = vunpack.c.h.b16 %v3536
  %v3684 = vunpack.c.l.b16 %v3537
  %v3685 = vunpack.c.h.b16 %v3537
  %v3686 = vunpack.c.l.b16 %v3538
  %v3687 = vunpack.c.h.b16 %v3538
  %v3688 = vunpack.c.l.b16 %v3539
  %v3689 = vunpack.c.h.b16 %v3539
  %v3690 = vunpack.c.l.b16 %v3540
  %v3691 = vunpack.c.h.b16 %v3540
  %v3692 = vunpack.c.l.b16 %v3541
  %v3693 = vunpack.c.h.b16 %v3541
  %v3694 = vunpack.c.l.b16 %v3542
  %v3695 = vunpack.c.h.b16 %v3542
  %v3696 = vunpack.c.l.b16 %v3543
  %v3697 = vunpack.c.h.b16 %v3543
  %v3698 = vunpack.c.l.b16 %v3544
  %v3699 = vunpack.c.h.b16 %v3544
  %v3700 = vunpack.c.l.b16 %v3545
  %v3701 = vunpack.c.h.b16 %v3545
  %v3702 = vunpack.c.l.b16 %v3546
  %v3703 = vunpack.c.h.b16 %v3546
  %v3704 = vunpack.c.l.b16 %v3547
  %v3705 = vunpack.c.h.b16 %v3547
  %v3706 = vunpack.c.l.b16 %v3548
  %v3707 = vunpack.c.h.b16 %v3548
  %v3708 = vunpack.c.l.b16 %v3549
  %v3709 = vunpack.c.h.b16 %v3549
  %v3710 = vunpack.c.l.b16 %v3550
  %v3711 = vunpack.c.h.b16 %v3550
  %v3712 = vunpack.c.l.b16 %v3551
  %v3713 = vunpack.c.h.b16 %v3551
  %v3714 = vunpack.c.l.b16 %v3552
  %v3715 = vunpack.c.h.b16 %v3552
  %v3716 = vunpack.c.l.b16 %v3553
  %v3717 = vunpack.c.h.b16 %v3553
  %v3718 = vunpack.c.l.b16 %v3554
  %v3719 = vunpack.c.h.b16 %v3554
  %v3720 = vunpack.c.l.b16 %v3555
  %v3721 = vunpack.c.h.b16 %v3555
  %v3722 = vunpack.c.l.b16 %v3556
  %v3723 = vunpack.c.h.b16 %v3556
  %v3724 = vunpack.c.l.b16 %v3557
  %v3725 = vunpack.c.h.b16 %v3557
  %v3726 = vunpack.c.l.b16 %v3558
  %v3727 = vunpack.c.h.b16 %v3558
  %v3728 = vunpack.c.l.b16 %v3559
  %v3729 = vunpack.c.h.b16 %v3559
  %v3730 = vunpack.c.l.b16 %v3560
  %v3731 = vunpack.c.h.b16 %v3560
  %v3732 = vunpack.c.l.b16 %v3561
  %v3733 = vunpack.c.h.b16 %v3561
  %v3734 = vunpack.c.l.b16 %v3562
  %v3735 = vunpack.c.h.b16 %v3562
  %v3736 = vunpack.c.l.b16 %v3563
  %v3737 = vunpack.c.h.b16 %v3563
  %v3738 = vunpack.c.l.b16 %v3564
  %v3739 = vunpack.c.h.b16 %v3564
  %v3740 = vunpack.c.l.b16 %v3565
  %v3741 = vunpack.c.h.b16 %v3565
  %v3742 = vunpack.c.l.b16 %v3566
  %v3743 = vunpack.c.h.b16 %v3566
  %v3744 = vunpack.c.l.b16 %v3567
  %v3745 = vunpack.c.h.b16 %v3567
  %v3746 = vunpack.c.l.b16 %v3568
  %v3747 = vunpack.c.h.b16 %v3568
  %v3748 = vunpack.c.l.b16 %v3569
  %v3749 = vunpack.c.h.b16 %v3569
  %v3750 = vunpack.c.l.b16 %v3570
  %v3751 = vunpack.c.h.b16 %v3570
  %v3752 = vunpack.c.l.b16 %v3571
  %v3753 = vunpack.c.h.b16 %v3571
  %v3754 = vunpack.c.l.b16 %v3572
  %v3755 = vunpack.c.h.b16 %v3572
  %v3756 = vunpack.c.l.b16 %v3573
  %v3757 = vunpack.c.h.b16 %v3573
  %v3758 = vunpack.c.l.b16 %v3574
  %v3759 = vunpack.c.h.b16 %v3574
  %v3760 = vunpack.c.l.b16 %v3575
  %v3761 = vunpack.c.h.b16 %v3575
  %v3762 = vunpack.c.l.b16 %v3576
  %v3763 = vunpack.c.h.b16 %v3576
  %v3764 = vunpack.c.l.b16 %v3577
  %v3765 = vunpack.c.h.b16 %v3577
  %v3766 = vunpack.c.l.b16 %v3578
  %v3767 = vunpack.c.h.b16 %v3578
  %v3768 = vunpack.c.l.b16 %v3579
  %v3769 = vunpack.c.h.b16 %v3579
  %v3770 = vunpack.c.l.b16 %v3580
  %v3771 = vunpack.c.h.b16 %v3580
  %v3772 = vunpack.c.l.b16 %v3581
  %v3773 = vunpack.c.h.b16 %v3581
  %v3774 = vunpack.c.l.b16 %v3582
  %v3775 = vunpack.c.h.b16 %v3582
  %v3776 = vunpack.c.l.b16 %v3583
  %v3777 = vunpack.c.h.b16 %v3583
  %v3778 = vunpack.c.l.b16 %v3584
  %v3779 = vunpack.c.h.b16 %v3584
  %v3780 = vunpack.c.l.b16 %v3585
  %v3781 = vunpack.c.h.b16 %v3585
  %v3782 = vunpack.c.l.b16 %v3586
  %v3783 = vunpack.c.h.b16 %v3586
  %v3784 = vunpack.c.l.b16 %v3587
  %v3785 = vunpack.c.h.b16 %v3587
  %v3786 = vunpack.c.l.b16 %v3588
  %v3787 = vunpack.c.h.b16 %v3588
  %v3788 = vunpack.c.l.b16 %v3589
  %v3789 = vunpack.c.h.b16 %v3589
  %v3790 = vunpack.c.l.b16 %v3590
  %v3791 = vunpack.c.h.b16 %v3590
  %v3792 = vunpack.c.l.b16 %v3591
  %v3793 = vunpack.c.h.b16 %v3591
  %v3794 = vunpack.c.l.b16 %v3592
  %v3795 = vunpack.c.h.b16 %v3592
  %v3796 = vunpack.c.l.b16 %v3593
  %v3797 = vunpack.c.h.b16 %v3593
  %v3798 = vpack.c.b16 %v3672, %v3670
  %v3799 = vpack.c.b16 %v3673, %v3671
  %v3800 = vpack.c.b16 %v3676, %v3674
  %v3801 = vpack.c.b16 %v3677, %v3675
  %v3802 = vpack.c.b16 %v3680, %v3678
  %v3803 = vpack.c.b16 %v3681, %v3679
  %v3804 = vpack.c.b16 %v3684, %v3682
  %v3805 = vpack.c.b16 %v3685, %v3683
  %v3806 = vpack.c.b16 %v3688, %v3686
  %v3807 = vpack.c.b16 %v3689, %v3687
  %v3808 = vpack.c.b16 %v3692, %v3690
  %v3809 = vpack.c.b16 %v3693, %v3691
  %v3810 = vpack.c.b16 %v3696, %v3694
  %v3811 = vpack.c.b16 %v3697, %v3695
  %v3812 = vpack.c.b16 %v3700, %v3698
  %v3813 = vpack.c.b16 %v3701, %v3699
  %v3814 = vpack.c.b16 %v3704, %v3702
  %v3815 = vpack.c.b16 %v3705, %v3703
  %v3816 = vpack.c.b16 %v3708, %v3706
  %v3817 = vpack.c.b16 %v3709, %v3707
  %v3818 = vpack.c.b16 %v3712, %v3710
  %v3819 = vpack.c.b16 %v3713, %v3711
  %v3820 = vpack.c.b16 %v3716, %v3714
  %v3821 = vpack.c.b16 %v3717, %v3715
  %v3822 = vpack.c.b16 %v3720, %v3718
  %v3823 = vpack.c.b16 %v3721, %v3719
  %v3824 = vpack.c.b16 %v3724, %v3722
  %v3825 = vpack.c.b16 %v3725, %v3723
  %v3826 = vpack.c.b16 %v3728, %v3726
  %v3827 = vpack.c.b16 %v3729, %v3727
  %v3828 = vpack.c.b16 %v3732, %v3730
  %v3829 = vpack.c.b16 %v3733, %v3731
  %v3830 = vpack.c.b16 %v3736, %v3734
  %v3831 = vpack.c.b16 %v3737, %v3735
  %v3832 = vpack.c.b16 %v3740, %v3738
  %v3833 = vpack.c.b16 %v3741, %v3739
  %v3834 = vpack.c.b16 %v3744, %v3742
  %v3835 = vpack.c.b16 %v3745, %v3743
  %v3836 = vpack.c.b16 %v3748, %v3746
  %v3837 = vpack.c.b16 %v3749, %v3747
  %v3838 = vpack.c.b16 %v3752, %v3750
  %v3839 = vpack.c.b16 %v3753, %v3751
  %v3840 = vpack.c.b16 %v3756, %v3754
  %v3841 = vpack.c.b16 %v3757, %v3755
  %v3842 = vpack.c.b16 %v3760, %v3758
  %v3843 = vpack.c.b16 %v3761, %v3759
  %v3844 = vpack.c.b16 %v3764, %v3762
  %v3845 = vpack.c.b16 %v3765, %v3763
  %v3846 = vpack.c.b16 %v3768, %v3766
  %v3847 = vpack.c.b16 %v3769, %v3767
  %v3848 = vpack.c.b16 %v3772, %v3770
  %v3849 = vpack.c.b16 %v3773, %v3771
  %v3850 = vpack.c.b16 %v3776, %v3774
  %v3851 = vpack.c.b16 %v3777, %v3775
  %v3852 = vpack.c.b16 %v3780, %v3778
  %v3853 = vpack.c.b16 %v3781, %v3779
  %v3854 = vpack.c.b16 %v3784, %v3782
  %v3855 = vpack.c.b16 %v3785, %v3783
  %v3856 = vpack.c.b16 %v3788, %v3786
  %v3857 = vpack.c.b16 %v3789, %v3787
  %v3858 = vpack.c.b16 %v3792, %v3790
  %v3859 = vpack.c.b16 %v3793, %v3791
  %v3860 = vpack.c.b16 %v3796, %v3794
  %v3861 = vpack.c.b16 %v3797, %v3795
  %3926 = vmatprep.subr.bf16.mxu0 %v3799
  %3927 = vmatpush1.bf16.msra.mxu0 %v3798
  %3928 = vmatprep.subr.bf16.mxu0 %v3801
  %3929 = vmatpush1.bf16.msra.mxu0 %v3800
  %3930 = vmatprep.subr.bf16.mxu0 %v3803
  %3931 = vmatpush1.bf16.msra.mxu0 %v3802
  %3932 = vmatprep.subr.bf16.mxu0 %v3805
  %3933 = vmatpush1.bf16.msra.mxu0 %v3804
  %3934 = vmatprep.subr.bf16.mxu0 %v3807
  %3935 = vmatpush1.bf16.msra.mxu0 %v3806
  %3936 = vmatprep.subr.bf16.mxu0 %v3809
  %3937 = vmatpush1.bf16.msra.mxu0 %v3808
  %3938 = vmatprep.subr.bf16.mxu0 %v3811
  %3939 = vmatpush1.bf16.msra.mxu0 %v3810
  %3940 = vmatprep.subr.bf16.mxu0 %v3813
  %3941 = vmatpush1.bf16.msra.mxu0 %v3812
  %3942 = vmatprep.subr.bf16.mxu0 %v3815
  %3943 = vmatpush1.bf16.msra.mxu0 %v3814
  %3944 = vmatprep.subr.bf16.mxu0 %v3817
  %3945 = vmatpush1.bf16.msra.mxu0 %v3816
  %3946 = vmatprep.subr.bf16.mxu0 %v3819
  %3947 = vmatpush1.bf16.msra.mxu0 %v3818
  %3948 = vmatprep.subr.bf16.mxu0 %v3821
  %3949 = vmatpush1.bf16.msra.mxu0 %v3820
  %3950 = vmatprep.subr.bf16.mxu0 %v3823
  %3951 = vmatpush1.bf16.msra.mxu0 %v3822
  %3952 = vmatprep.subr.bf16.mxu0 %v3825
  %3953 = vmatpush1.bf16.msra.mxu0 %v3824
  %3954 = vmatprep.subr.bf16.mxu0 %v3827
  %3955 = vmatpush1.bf16.msra.mxu0 %v3826
  %3956 = vmatprep.subr.bf16.mxu0 %v3829
  %3957 = vmatpush1.bf16.msra.mxu0 %v3828
  %3958 = vmatprep.mubr.bf16.mxu0 %v3527
  %3959 = vmatmul.mubr.bf16.gmra.mrb[0].mxu0 %v3526
  %v3960 = vpop.f32.mrb[0].mxu0
  %v3961 = vadd.f32 %v3599, %v3960
  %v3962 = vpop.f32.mrb[0].mxu0
  %v3963 = vadd.f32 %v3603, %v3962
  %v3964 = vpop.f32.mrb[0].mxu0
  %v3965 = vpop.f32.mrb[0].mxu0
  %3966 = vdwg.mxu0
  %3967 = vmatprep.subr.bf16.mxu0 %v3831
  %3968 = vmatpush1.bf16.msra.mxu0 %v3830
  %3969 = vmatprep.subr.bf16.mxu0 %v3833
  %3970 = vmatpush1.bf16.msra.mxu0 %v3832
  %3971 = vmatprep.subr.bf16.mxu0 %v3835
  %3972 = vmatpush1.bf16.msra.mxu0 %v3834
  %3973 = vmatprep.subr.bf16.mxu0 %v3837
  %3974 = vmatpush1.bf16.msra.mxu0 %v3836
  %3975 = vmatprep.subr.bf16.mxu0 %v3839
  %3976 = vmatpush1.bf16.msra.mxu0 %v3838
  %3977 = vmatprep.subr.bf16.mxu0 %v3841
  %3978 = vmatpush1.bf16.msra.mxu0 %v3840
  %3979 = vmatprep.subr.bf16.mxu0 %v3843
  %3980 = vmatpush1.bf16.msra.mxu0 %v3842
  %3981 = vmatprep.subr.bf16.mxu0 %v3845
  %3982 = vmatpush1.bf16.msra.mxu0 %v3844
  %3983 = vmatprep.subr.bf16.mxu0 %v3847
  %3984 = vmatpush1.bf16.msra.mxu0 %v3846
  %3985 = vmatprep.subr.bf16.mxu0 %v3849
  %3986 = vmatpush1.bf16.msra.mxu0 %v3848
  %3987 = vmatprep.subr.bf16.mxu0 %v3851
  %3988 = vmatpush1.bf16.msra.mxu0 %v3850
  %3989 = vmatprep.subr.bf16.mxu0 %v3853
  %3990 = vmatpush1.bf16.msra.mxu0 %v3852
  %3991 = vmatprep.subr.bf16.mxu0 %v3855
  %3992 = vmatpush1.bf16.msra.mxu0 %v3854
  %3993 = vmatprep.subr.bf16.mxu0 %v3857
  %3994 = vmatpush1.bf16.msra.mxu0 %v3856
  %3995 = vmatprep.subr.bf16.mxu0 %v3859
  %3996 = vmatpush1.bf16.msra.mxu0 %v3858
  %3997 = vmatprep.subr.bf16.mxu0 %v3861
  %3998 = vmatpush1.bf16.msra.mxu0 %v3860
  %3999 = vmatprep.mubr.bf16.mxu0 %v3529
  %4000 = vmatmul.mubr.bf16.gmra.mrb[0].mxu0 %v3528
  %v4001 = vpop.f32.mrb[0].mxu0
  %v4002 = vadd.f32 %v3961, %v4001
  %v4003 = vpop.f32.mrb[0].mxu0
  %v4004 = vadd.f32 %v3963, %v4003
  %v4005 = vpop.f32.mrb[0].mxu0
  %v4006 = vpop.f32.mrb[0].mxu0
  %4007 = vdwg.mxu0
  %v4008 = vmax.f32 %v4002, 0.0
  %v4009 = vmax.f32 %v4004, 0.0
  %v4010 = vpack.c.bf16 %v4008, %v4008
  %v4011 = vpack.c.bf16 %v4009, %v4009
  %v4012 = vld [vmem:[%s10] sm:$0xf]
  %v4013 = vld [vmem:[%s10 + $0x4] sm:$0xf]
  %v4014 = vld [vmem:[%s10 + $0x8] sm:$0xf]
  %v4015 = vld [vmem:[%s10 + $0xc] sm:$0xf]
  %v4016 = vld [vmem:[%s10 + $0x10] sm:$0xf]
  %v4017 = vld [vmem:[%s10 + $0x14] sm:$0xf]
  %v4018 = vld [vmem:[%s10 + $0x18] sm:$0xf]
  %v4019 = vld [vmem:[%s10 + $0x1c] sm:$0xf]
  %v4020 = vld [vmem:[%s10 + $0x20] sm:$0xf]
  %v4021 = vld [vmem:[%s10 + $0x24] sm:$0xf]
  %v4022 = vld [vmem:[%s10 + $0x28] sm:$0xf]
  %v4023 = vld [vmem:[%s10 + $0x2c] sm:$0xf]
  %v4024 = vld [vmem:[%s10 + $0x30] sm:$0xf]
  %v4025 = vld [vmem:[%s10 + $0x34] sm:$0xf]
  %v4026 = vld [vmem:[%s10 + $0x38] sm:$0xf]
  %v4027 = vld [vmem:[%s10 + $0x3c] sm:$0xf]
  %v4028 = vld [vmem:[%s10 + $0x40] sm:$0xf]
  %v4029 = vld [vmem:[%s10 + $0x44] sm:$0xf]
  %v4030 = vld [vmem:[%s10 + $0x48] sm:$0xf]
  %v4031 = vld [vmem:[%s10 + $0x4c] sm:$0xf]
  %v4032 = vld [vmem:[%s10 + $0x50] sm:$0xf]
  %v4033 = vld [vmem:[%s10 + $0x54] sm:$0xf]
  %v4034 = vld [vmem:[%s10 + $0x58] sm:$0xf]
  %v4035 = vld [vmem:[%s10 + $0x5c] sm:$0xf]
  %v4036 = vld [vmem:[%s10 + $0x60] sm:$0xf]
  %v4037 = vld [vmem:[%s10 + $0x64] sm:$0xf]
  %v4038 = vld [vmem:[%s10 + $0x68] sm:$0xf]
  %v4039 = vld [vmem:[%s10 + $0x6c] sm:$0xf]
  %v4040 = vld [vmem:[%s10 + $0x70] sm:$0xf]
  %v4041 = vld [vmem:[%s10 + $0x74] sm:$0xf]
  %v4042 = vld [vmem:[%s10 + $0x78] sm:$0xf]
  %v4043 = vld [vmem:[%s10 + $0x7c] sm:$0xf]
  %v4044 = vld [vmem:[%s11] sm:$0x1]
  %v4046 = vlaneseq
  %v4047 = vshrl.u32 %v4046, 7
  %v4048 = vsub.s32 0, %v4047
  %v4049 = vrot.slane %v4044, %v4048
  %v4083 = vunpack.c.l.b16 %v4012
  %v4084 = vunpack.c.l.b16 %v4013
  %v4085 = vunpack.c.l.b16 %v4014
  %v4086 = vunpack.c.l.b16 %v4015
  %v4087 = vunpack.c.l.b16 %v4016
  %v4088 = vunpack.c.l.b16 %v4017
  %v4089 = vunpack.c.l.b16 %v4018
  %v4090 = vunpack.c.l.b16 %v4019
  %v4091 = vunpack.c.l.b16 %v4020
  %v4092 = vunpack.c.l.b16 %v4021
  %v4093 = vunpack.c.l.b16 %v4022
  %v4094 = vunpack.c.l.b16 %v4023
  %v4095 = vunpack.c.l.b16 %v4024
  %v4096 = vunpack.c.l.b16 %v4025
  %v4097 = vunpack.c.l.b16 %v4026
  %v4098 = vunpack.c.l.b16 %v4027
  %v4099 = vunpack.c.l.b16 %v4028
  %v4100 = vunpack.c.l.b16 %v4029
  %v4101 = vunpack.c.l.b16 %v4030
  %v4102 = vunpack.c.l.b16 %v4031
  %v4103 = vunpack.c.l.b16 %v4032
  %v4104 = vunpack.c.l.b16 %v4033
  %v4105 = vunpack.c.l.b16 %v4034
  %v4106 = vunpack.c.l.b16 %v4035
  %v4107 = vunpack.c.l.b16 %v4036
  %v4108 = vunpack.c.l.b16 %v4037
  %v4109 = vunpack.c.l.b16 %v4038
  %v4110 = vunpack.c.l.b16 %v4039
  %v4111 = vunpack.c.l.b16 %v4040
  %v4112 = vunpack.c.l.b16 %v4041
  %v4113 = vunpack.c.l.b16 %v4042
  %v4114 = vunpack.c.l.b16 %v4043
  %v4115 = vpack.c.b16 %v4084, %v4083
  %v4116 = vpack.c.b16 %v4086, %v4085
  %v4117 = vpack.c.b16 %v4088, %v4087
  %v4118 = vpack.c.b16 %v4090, %v4089
  %v4119 = vpack.c.b16 %v4092, %v4091
  %v4120 = vpack.c.b16 %v4094, %v4093
  %v4121 = vpack.c.b16 %v4096, %v4095
  %v4122 = vpack.c.b16 %v4098, %v4097
  %v4123 = vpack.c.b16 %v4100, %v4099
  %v4124 = vpack.c.b16 %v4102, %v4101
  %v4125 = vpack.c.b16 %v4104, %v4103
  %v4126 = vpack.c.b16 %v4106, %v4105
  %v4127 = vpack.c.b16 %v4108, %v4107
  %v4128 = vpack.c.b16 %v4110, %v4109
  %v4129 = vpack.c.b16 %v4112, %v4111
  %v4130 = vpack.c.b16 %v4114, %v4113
  %4147 = vmatprep.subr.bf16.mxu0 0
  %4148 = vmatpush1.bf16.msra.mxu0 %v4115
  %4149 = vmatprep.subr.bf16.mxu0 0
  %4150 = vmatpush1.bf16.msra.mxu0 %v4116
  %4151 = vmatprep.subr.bf16.mxu0 0
  %4152 = vmatpush1.bf16.msra.mxu0 %v4117
  %4153 = vmatprep.subr.bf16.mxu0 0
  %4154 = vmatpush1.bf16.msra.mxu0 %v4118
  %4155 = vmatprep.subr.bf16.mxu0 0
  %4156 = vmatpush1.bf16.msra.mxu0 %v4119
  %4157 = vmatprep.subr.bf16.mxu0 0
  %4158 = vmatpush1.bf16.msra.mxu0 %v4120
  %4159 = vmatprep.subr.bf16.mxu0 0
  %4160 = vmatpush1.bf16.msra.mxu0 %v4121
  %4161 = vmatprep.subr.bf16.mxu0 0
  %4162 = vmatpush1.bf16.msra.mxu0 %v4122
  %4163 = vmatprep.subr.bf16.mxu0 0
  %4164 = vmatpush1.bf16.msra.mxu0 %v4123
  %4165 = vmatprep.subr.bf16.mxu0 0
  %4166 = vmatpush1.bf16.msra.mxu0 %v4124
  %4167 = vmatprep.subr.bf16.mxu0 0
  %4168 = vmatpush1.bf16.msra.mxu0 %v4125
  %4169 = vmatprep.subr.bf16.mxu0 0
  %4170 = vmatpush1.bf16.msra.mxu0 %v4126
  %4171 = vmatprep.subr.bf16.mxu0 0
  %4172 = vmatpush1.bf16.msra.mxu0 %v4127
  %4173 = vmatprep.subr.bf16.mxu0 0
  %4174 = vmatpush1.bf16.msra.mxu0 %v4128
  %4175 = vmatprep.subr.bf16.mxu0 0
  %4176 = vmatpush1.bf16.msra.mxu0 %v4129
  %4177 = vmatprep.subr.bf16.mxu0 0
  %4178 = vmatpush1.bf16.msra.mxu0 %v4130
  %4179 = vmatprep.mubr.bf16.mxu0 %v4011
  %4180 = vmatmul.mubr.bf16.gmra.mrb[0].mxu0 %v4010
  %v4181 = vpop.f32.mrb[0].mxu0
  %v4182 = vadd.f32 %v4049, %v4181
  %v4183 = vpop.f32.mrb[0].mxu0
  %v4184 = vpop.f32.mrb[0].mxu0
  %v4185 = vpop.f32.mrb[0].mxu0
  %4186 = vdwg.mxu0
  %v4187 = vmul.f32 %v4182, 0.9999279
  %v4188 = vsub.f32 %v42, %v4187
  %v4189 = vmul.f32 %v4188, 83.254715
  %v4190 = vmax.f32 %v4189, -1.0
  %v4191 = vmin.f32 %v4190, 1.0
  %v4192 = vmul.f32 %v4191, 0.3795066
  %v4193 = vmul.f32 %v42, 0.027064396
  %v4194 = vadd.f32 %v4192, %v4193
  %s4195 = scalar_lea.vmem %s2, 8
  %v4196 = vld [vmem:[%s4195] sm:$0xff]
  %v4197 = vmul.f32 %v4196, 0.92465967
  %v4198 = vadd.f32 %v4194, %v4197
  %s4199 = scalar_lea.vmem %s0, 8
  %v4200 = vld [vmem:[%s4199] sm:$0xff]
  %v4202 = vlaneseq
  %v4203 = vshrl.u32 %v4202, 7
  %v4204 = vsub.s32 0, %v4203
  %v4205 = vrot.slane %v4200, %v4204
  %v4206 = vlaneseq
  %v4207 = vshrl.u32 %v4206, 7
  %v4208 = vsub.s32 1, %v4207
  %v4209 = vrot.slane %v4200, %v4208
  %v4210 = vlaneseq
  %v4211 = vshrl.u32 %v4210, 7
  %v4212 = vsub.s32 2, %v4211
  %v4213 = vrot.slane %v4200, %v4212
  %v4214 = vlaneseq
  %v4215 = vshrl.u32 %v4214, 7
  %v4216 = vsub.s32 3, %v4215
  %v4217 = vrot.slane %v4200, %v4216
  %v4218 = vlaneseq
  %v4219 = vshrl.u32 %v4218, 7
  %v4220 = vsub.s32 4, %v4219
  %v4221 = vrot.slane %v4200, %v4220
  %v4222 = vlaneseq
  %v4223 = vshrl.u32 %v4222, 7
  %v4224 = vsub.s32 5, %v4223
  %v4225 = vrot.slane %v4200, %v4224
  %v4226 = vlaneseq
  %v4227 = vshrl.u32 %v4226, 7
  %v4228 = vsub.s32 6, %v4227
  %v4229 = vrot.slane %v4200, %v4228
  %v4230 = vlaneseq
  %v4231 = vshrl.u32 %v4230, 7
  %v4232 = vsub.s32 7, %v4231
  %v4233 = vrot.slane %v4200, %v4232
  %v4242 = vadd.f32 %v4205, %v43
  %v4243 = vadd.f32 %v4209, %v44
  %v4244 = vadd.f32 %v4213, %v45
  %v4245 = vadd.f32 %v4217, %v46
  %v4246 = vadd.f32 %v4221, %v47
  %v4247 = vadd.f32 %v4225, %v48
  %v4248 = vadd.f32 %v4229, %v49
  %v4249 = vadd.f32 %v4233, %v50
  %v4250 = vpack.c.bf16 %v4198, %v4198
  %4251 = vmatprep.subr.bf16.mxu0 %v359
  %4252 = vmatpush1.bf16.msra.mxu0 %v358
  %4253 = vmatprep.subr.bf16.mxu0 %v367
  %4254 = vmatpush1.bf16.msra.mxu0 %v366
  %4255 = vmatprep.subr.bf16.mxu0 %v375
  %4256 = vmatpush1.bf16.msra.mxu0 %v374
  %4257 = vmatprep.subr.bf16.mxu0 %v383
  %4258 = vmatpush1.bf16.msra.mxu0 %v382
  %4259 = vmatprep.subr.bf16.mxu0 %v391
  %4260 = vmatpush1.bf16.msra.mxu0 %v390
  %4261 = vmatprep.subr.bf16.mxu0 %v399
  %4262 = vmatpush1.bf16.msra.mxu0 %v398
  %4263 = vmatprep.subr.bf16.mxu0 %v407
  %4264 = vmatpush1.bf16.msra.mxu0 %v406
  %4265 = vmatprep.subr.bf16.mxu0 %v415
  %4266 = vmatpush1.bf16.msra.mxu0 %v414
  %4267 = vmatprep.subr.bf16.mxu0 0
  %4268 = vmatpush1.bf16.msra.mxu0 0
  %4269 = vmatprep.subr.bf16.mxu0 0
  %4270 = vmatpush1.bf16.msra.mxu0 0
  %4271 = vmatprep.subr.bf16.mxu0 0
  %4272 = vmatpush1.bf16.msra.mxu0 0
  %4273 = vmatprep.subr.bf16.mxu0 0
  %4274 = vmatpush1.bf16.msra.mxu0 0
  %4275 = vmatprep.subr.bf16.mxu0 0
  %4276 = vmatpush1.bf16.msra.mxu0 0
  %4277 = vmatprep.subr.bf16.mxu0 0
  %4278 = vmatpush1.bf16.msra.mxu0 0
  %4279 = vmatprep.subr.bf16.mxu0 0
  %4280 = vmatpush1.bf16.msra.mxu0 0
  %4281 = vmatprep.subr.bf16.mxu0 0
  %4282 = vmatpush1.bf16.msra.mxu0 0
  %4283 = vmatprep.mubr.bf16.mxu0 0
  %4284 = vmatmul.mubr.bf16.gmra.mrb[0].mxu0 %v4250
  %v4285 = vpop.f32.mrb[0].mxu0
  %v4286 = vadd.f32 0.0, %v4285
  %v4287 = vpop.f32.mrb[0].mxu0
  %v4288 = vadd.f32 0.0, %v4287
  %v4289 = vpop.f32.mrb[0].mxu0
  %v4290 = vpop.f32.mrb[0].mxu0
  %4291 = vdwg.mxu0
  %4292 = vmatprep.subr.bf16.mxu0 %v361
  %4293 = vmatpush1.bf16.msra.mxu0 %v360
  %4294 = vmatprep.subr.bf16.mxu0 %v369
  %4295 = vmatpush1.bf16.msra.mxu0 %v368
  %4296 = vmatprep.subr.bf16.mxu0 %v377
  %4297 = vmatpush1.bf16.msra.mxu0 %v376
  %4298 = vmatprep.subr.bf16.mxu0 %v385
  %4299 = vmatpush1.bf16.msra.mxu0 %v384
  %4300 = vmatprep.subr.bf16.mxu0 %v393
  %4301 = vmatpush1.bf16.msra.mxu0 %v392
  %4302 = vmatprep.subr.bf16.mxu0 %v401
  %4303 = vmatpush1.bf16.msra.mxu0 %v400
  %4304 = vmatprep.subr.bf16.mxu0 %v409
  %4305 = vmatpush1.bf16.msra.mxu0 %v408
  %4306 = vmatprep.subr.bf16.mxu0 %v417
  %4307 = vmatpush1.bf16.msra.mxu0 %v416
  %4308 = vmatprep.subr.bf16.mxu0 0
  %4309 = vmatpush1.bf16.msra.mxu0 0
  %4310 = vmatprep.subr.bf16.mxu0 0
  %4311 = vmatpush1.bf16.msra.mxu0 0
  %4312 = vmatprep.subr.bf16.mxu0 0
  %4313 = vmatpush1.bf16.msra.mxu0 0
  %4314 = vmatprep.subr.bf16.mxu0 0
  %4315 = vmatpush1.bf16.msra.mxu0 0
  %4316 = vmatprep.subr.bf16.mxu0 0
  %4317 = vmatpush1.bf16.msra.mxu0 0
  %4318 = vmatprep.subr.bf16.mxu0 0
  %4319 = vmatpush1.bf16.msra.mxu0 0
  %4320 = vmatprep.subr.bf16.mxu0 0
  %4321 = vmatpush1.bf16.msra.mxu0 0
  %4322 = vmatprep.subr.bf16.mxu0 0
  %4323 = vmatpush1.bf16.msra.mxu0 0
  %4324 = vmatprep.mubr.bf16.mxu0 0
  %4325 = vmatmul.mubr.bf16.gmra.mrb[0].mxu0 %v4250
  %v4326 = vpop.f32.mrb[0].mxu0
  %v4327 = vadd.f32 0.0, %v4326
  %v4328 = vpop.f32.mrb[0].mxu0
  %v4329 = vadd.f32 0.0, %v4328
  %v4330 = vpop.f32.mrb[0].mxu0
  %v4331 = vpop.f32.mrb[0].mxu0
  %4332 = vdwg.mxu0
  %4333 = vmatprep.subr.bf16.mxu0 %v363
  %4334 = vmatpush1.bf16.msra.mxu0 %v362
  %4335 = vmatprep.subr.bf16.mxu0 %v371
  %4336 = vmatpush1.bf16.msra.mxu0 %v370
  %4337 = vmatprep.subr.bf16.mxu0 %v379
  %4338 = vmatpush1.bf16.msra.mxu0 %v378
  %4339 = vmatprep.subr.bf16.mxu0 %v387
  %4340 = vmatpush1.bf16.msra.mxu0 %v386
  %4341 = vmatprep.subr.bf16.mxu0 %v395
  %4342 = vmatpush1.bf16.msra.mxu0 %v394
  %4343 = vmatprep.subr.bf16.mxu0 %v403
  %4344 = vmatpush1.bf16.msra.mxu0 %v402
  %4345 = vmatprep.subr.bf16.mxu0 %v411
  %4346 = vmatpush1.bf16.msra.mxu0 %v410
  %4347 = vmatprep.subr.bf16.mxu0 %v419
  %4348 = vmatpush1.bf16.msra.mxu0 %v418
  %4349 = vmatprep.subr.bf16.mxu0 0
  %4350 = vmatpush1.bf16.msra.mxu0 0
  %4351 = vmatprep.subr.bf16.mxu0 0
  %4352 = vmatpush1.bf16.msra.mxu0 0
  %4353 = vmatprep.subr.bf16.mxu0 0
  %4354 = vmatpush1.bf16.msra.mxu0 0
  %4355 = vmatprep.subr.bf16.mxu0 0
  %4356 = vmatpush1.bf16.msra.mxu0 0
  %4357 = vmatprep.subr.bf16.mxu0 0
  %4358 = vmatpush1.bf16.msra.mxu0 0
  %4359 = vmatprep.subr.bf16.mxu0 0
  %4360 = vmatpush1.bf16.msra.mxu0 0
  %4361 = vmatprep.subr.bf16.mxu0 0
  %4362 = vmatpush1.bf16.msra.mxu0 0
  %4363 = vmatprep.subr.bf16.mxu0 0
  %4364 = vmatpush1.bf16.msra.mxu0 0
  %4365 = vmatprep.mubr.bf16.mxu0 0
  %4366 = vmatmul.mubr.bf16.gmra.mrb[0].mxu0 %v4250
  %v4367 = vpop.f32.mrb[0].mxu0
  %v4368 = vadd.f32 0.0, %v4367
  %v4369 = vpop.f32.mrb[0].mxu0
  %v4370 = vadd.f32 0.0, %v4369
  %v4371 = vpop.f32.mrb[0].mxu0
  %v4372 = vpop.f32.mrb[0].mxu0
  %4373 = vdwg.mxu0
  %4374 = vmatprep.subr.bf16.mxu0 %v365
  %4375 = vmatpush1.bf16.msra.mxu0 %v364
  %4376 = vmatprep.subr.bf16.mxu0 %v373
  %4377 = vmatpush1.bf16.msra.mxu0 %v372
  %4378 = vmatprep.subr.bf16.mxu0 %v381
  %4379 = vmatpush1.bf16.msra.mxu0 %v380
  %4380 = vmatprep.subr.bf16.mxu0 %v389
  %4381 = vmatpush1.bf16.msra.mxu0 %v388
  %4382 = vmatprep.subr.bf16.mxu0 %v397
  %4383 = vmatpush1.bf16.msra.mxu0 %v396
  %4384 = vmatprep.subr.bf16.mxu0 %v405
  %4385 = vmatpush1.bf16.msra.mxu0 %v404
  %4386 = vmatprep.subr.bf16.mxu0 %v413
  %4387 = vmatpush1.bf16.msra.mxu0 %v412
  %4388 = vmatprep.subr.bf16.mxu0 %v421
  %4389 = vmatpush1.bf16.msra.mxu0 %v420
  %4390 = vmatprep.subr.bf16.mxu0 0
  %4391 = vmatpush1.bf16.msra.mxu0 0
  %4392 = vmatprep.subr.bf16.mxu0 0
  %4393 = vmatpush1.bf16.msra.mxu0 0
  %4394 = vmatprep.subr.bf16.mxu0 0
  %4395 = vmatpush1.bf16.msra.mxu0 0
  %4396 = vmatprep.subr.bf16.mxu0 0
  %4397 = vmatpush1.bf16.msra.mxu0 0
  %4398 = vmatprep.subr.bf16.mxu0 0
  %4399 = vmatpush1.bf16.msra.mxu0 0
  %4400 = vmatprep.subr.bf16.mxu0 0
  %4401 = vmatpush1.bf16.msra.mxu0 0
  %4402 = vmatprep.subr.bf16.mxu0 0
  %4403 = vmatpush1.bf16.msra.mxu0 0
  %4404 = vmatprep.subr.bf16.mxu0 0
  %4405 = vmatpush1.bf16.msra.mxu0 0
  %4406 = vmatprep.mubr.bf16.mxu0 0
  %4407 = vmatmul.mubr.bf16.gmra.mrb[0].mxu0 %v4250
  %v4408 = vpop.f32.mrb[0].mxu0
  %v4409 = vadd.f32 0.0, %v4408
  %v4410 = vpop.f32.mrb[0].mxu0
  %v4411 = vadd.f32 0.0, %v4410
  %v4412 = vpop.f32.mrb[0].mxu0
  %v4413 = vpop.f32.mrb[0].mxu0
  %4414 = vdwg.mxu0
  %v4415 = vadd.f32 %v4242, %v4286
  %v4416 = vadd.f32 %v4243, %v4288
  %v4417 = vadd.f32 %v4244, %v4327
  %v4418 = vadd.f32 %v4245, %v4329
  %v4419 = vadd.f32 %v4246, %v4368
  %v4420 = vadd.f32 %v4247, %v4370
  %v4421 = vadd.f32 %v4248, %v4409
  %v4422 = vadd.f32 %v4249, %v4411
  %v4423 = vmax.f32 %v4415, 0.0
  %v4424 = vmax.f32 %v4416, 0.0
  %v4425 = vmax.f32 %v4417, 0.0
  %v4426 = vmax.f32 %v4418, 0.0
  %v4427 = vmax.f32 %v4419, 0.0
  %v4428 = vmax.f32 %v4420, 0.0
  %v4429 = vmax.f32 %v4421, 0.0
  %v4430 = vmax.f32 %v4422, 0.0
  %v4431 = vpack.c.bf16 %v4423, %v4423
  %v4432 = vpack.c.bf16 %v4424, %v4424
  %v4433 = vpack.c.bf16 %v4425, %v4425
  %v4434 = vpack.c.bf16 %v4426, %v4426
  %v4435 = vpack.c.bf16 %v4427, %v4427
  %v4436 = vpack.c.bf16 %v4428, %v4428
  %v4437 = vpack.c.bf16 %v4429, %v4429
  %v4438 = vpack.c.bf16 %v4430, %v4430
  %4439 = vmatprep.subr.bf16.mxu0 %v1721
  %4440 = vmatpush1.bf16.msra.mxu0 %v1720
  %4441 = vmatprep.subr.bf16.mxu0 %v1725
  %4442 = vmatpush1.bf16.msra.mxu0 %v1724
  %4443 = vmatprep.subr.bf16.mxu0 %v1729
  %4444 = vmatpush1.bf16.msra.mxu0 %v1728
  %4445 = vmatprep.subr.bf16.mxu0 %v1733
  %4446 = vmatpush1.bf16.msra.mxu0 %v1732
  %4447 = vmatprep.subr.bf16.mxu0 %v1737
  %4448 = vmatpush1.bf16.msra.mxu0 %v1736
  %4449 = vmatprep.subr.bf16.mxu0 %v1741
  %4450 = vmatpush1.bf16.msra.mxu0 %v1740
  %4451 = vmatprep.subr.bf16.mxu0 %v1745
  %4452 = vmatpush1.bf16.msra.mxu0 %v1744
  %4453 = vmatprep.subr.bf16.mxu0 %v1749
  %4454 = vmatpush1.bf16.msra.mxu0 %v1748
  %4455 = vmatprep.subr.bf16.mxu0 %v1753
  %4456 = vmatpush1.bf16.msra.mxu0 %v1752
  %4457 = vmatprep.subr.bf16.mxu0 %v1757
  %4458 = vmatpush1.bf16.msra.mxu0 %v1756
  %4459 = vmatprep.subr.bf16.mxu0 %v1761
  %4460 = vmatpush1.bf16.msra.mxu0 %v1760
  %4461 = vmatprep.subr.bf16.mxu0 %v1765
  %4462 = vmatpush1.bf16.msra.mxu0 %v1764
  %4463 = vmatprep.subr.bf16.mxu0 %v1769
  %4464 = vmatpush1.bf16.msra.mxu0 %v1768
  %4465 = vmatprep.subr.bf16.mxu0 %v1773
  %4466 = vmatpush1.bf16.msra.mxu0 %v1772
  %4467 = vmatprep.subr.bf16.mxu0 %v1777
  %4468 = vmatpush1.bf16.msra.mxu0 %v1776
  %4469 = vmatprep.subr.bf16.mxu0 %v1781
  %4470 = vmatpush1.bf16.msra.mxu0 %v1780
  %4471 = vmatprep.mubr.bf16.mxu0 %v4432
  %4472 = vmatmul.mubr.bf16.gmra.mrb[0].mxu0 %v4431
  %v4473 = vpop.f32.mrb[0].mxu0
  %v4474 = vadd.f32 %v935, %v4473
  %v4475 = vpop.f32.mrb[0].mxu0
  %v4476 = vadd.f32 %v939, %v4475
  %v4477 = vpop.f32.mrb[0].mxu0
  %v4478 = vpop.f32.mrb[0].mxu0
  %4479 = vdwg.mxu0
  %4480 = vmatprep.subr.bf16.mxu0 %v1785
  %4481 = vmatpush1.bf16.msra.mxu0 %v1784
  %4482 = vmatprep.subr.bf16.mxu0 %v1789
  %4483 = vmatpush1.bf16.msra.mxu0 %v1788
  %4484 = vmatprep.subr.bf16.mxu0 %v1793
  %4485 = vmatpush1.bf16.msra.mxu0 %v1792
  %4486 = vmatprep.subr.bf16.mxu0 %v1797
  %4487 = vmatpush1.bf16.msra.mxu0 %v1796
  %4488 = vmatprep.subr.bf16.mxu0 %v1801
  %4489 = vmatpush1.bf16.msra.mxu0 %v1800
  %4490 = vmatprep.subr.bf16.mxu0 %v1805
  %4491 = vmatpush1.bf16.msra.mxu0 %v1804
  %4492 = vmatprep.subr.bf16.mxu0 %v1809
  %4493 = vmatpush1.bf16.msra.mxu0 %v1808
  %4494 = vmatprep.subr.bf16.mxu0 %v1813
  %4495 = vmatpush1.bf16.msra.mxu0 %v1812
  %4496 = vmatprep.subr.bf16.mxu0 %v1817
  %4497 = vmatpush1.bf16.msra.mxu0 %v1816
  %4498 = vmatprep.subr.bf16.mxu0 %v1821
  %4499 = vmatpush1.bf16.msra.mxu0 %v1820
  %4500 = vmatprep.subr.bf16.mxu0 %v1825
  %4501 = vmatpush1.bf16.msra.mxu0 %v1824
  %4502 = vmatprep.subr.bf16.mxu0 %v1829
  %4503 = vmatpush1.bf16.msra.mxu0 %v1828
  %4504 = vmatprep.subr.bf16.mxu0 %v1833
  %4505 = vmatpush1.bf16.msra.mxu0 %v1832
  %4506 = vmatprep.subr.bf16.mxu0 %v1837
  %4507 = vmatpush1.bf16.msra.mxu0 %v1836
  %4508 = vmatprep.subr.bf16.mxu0 %v1841
  %4509 = vmatpush1.bf16.msra.mxu0 %v1840
  %4510 = vmatprep.subr.bf16.mxu0 %v1845
  %4511 = vmatpush1.bf16.msra.mxu0 %v1844
  %4512 = vmatprep.mubr.bf16.mxu0 %v4434
  %4513 = vmatmul.mubr.bf16.gmra.mrb[0].mxu0 %v4433
  %v4514 = vpop.f32.mrb[0].mxu0
  %v4515 = vadd.f32 %v4474, %v4514
  %v4516 = vpop.f32.mrb[0].mxu0
  %v4517 = vadd.f32 %v4476, %v4516
  %v4518 = vpop.f32.mrb[0].mxu0
  %v4519 = vpop.f32.mrb[0].mxu0
  %4520 = vdwg.mxu0
  %4521 = vmatprep.subr.bf16.mxu0 %v1849
  %4522 = vmatpush1.bf16.msra.mxu0 %v1848
  %4523 = vmatprep.subr.bf16.mxu0 %v1853
  %4524 = vmatpush1.bf16.msra.mxu0 %v1852
  %4525 = vmatprep.subr.bf16.mxu0 %v1857
  %4526 = vmatpush1.bf16.msra.mxu0 %v1856
  %4527 = vmatprep.subr.bf16.mxu0 %v1861
  %4528 = vmatpush1.bf16.msra.mxu0 %v1860
  %4529 = vmatprep.subr.bf16.mxu0 %v1865
  %4530 = vmatpush1.bf16.msra.mxu0 %v1864
  %4531 = vmatprep.subr.bf16.mxu0 %v1869
  %4532 = vmatpush1.bf16.msra.mxu0 %v1868
  %4533 = vmatprep.subr.bf16.mxu0 %v1873
  %4534 = vmatpush1.bf16.msra.mxu0 %v1872
  %4535 = vmatprep.subr.bf16.mxu0 %v1877
  %4536 = vmatpush1.bf16.msra.mxu0 %v1876
  %4537 = vmatprep.subr.bf16.mxu0 %v1881
  %4538 = vmatpush1.bf16.msra.mxu0 %v1880
  %4539 = vmatprep.subr.bf16.mxu0 %v1885
  %4540 = vmatpush1.bf16.msra.mxu0 %v1884
  %4541 = vmatprep.subr.bf16.mxu0 %v1889
  %4542 = vmatpush1.bf16.msra.mxu0 %v1888
  %4543 = vmatprep.subr.bf16.mxu0 %v1893
  %4544 = vmatpush1.bf16.msra.mxu0 %v1892
  %4545 = vmatprep.subr.bf16.mxu0 %v1897
  %4546 = vmatpush1.bf16.msra.mxu0 %v1896
  %4547 = vmatprep.subr.bf16.mxu0 %v1901
  %4548 = vmatpush1.bf16.msra.mxu0 %v1900
  %4549 = vmatprep.subr.bf16.mxu0 %v1905
  %4550 = vmatpush1.bf16.msra.mxu0 %v1904
  %4551 = vmatprep.subr.bf16.mxu0 %v1909
  %4552 = vmatpush1.bf16.msra.mxu0 %v1908
  %4553 = vmatprep.mubr.bf16.mxu0 %v4436
  %4554 = vmatmul.mubr.bf16.gmra.mrb[0].mxu0 %v4435
  %v4555 = vpop.f32.mrb[0].mxu0
  %v4556 = vadd.f32 %v4515, %v4555
  %v4557 = vpop.f32.mrb[0].mxu0
  %v4558 = vadd.f32 %v4517, %v4557
  %v4559 = vpop.f32.mrb[0].mxu0
  %v4560 = vpop.f32.mrb[0].mxu0
  %4561 = vdwg.mxu0
  %4562 = vmatprep.subr.bf16.mxu0 %v1913
  %4563 = vmatpush1.bf16.msra.mxu0 %v1912
  %4564 = vmatprep.subr.bf16.mxu0 %v1917
  %4565 = vmatpush1.bf16.msra.mxu0 %v1916
  %4566 = vmatprep.subr.bf16.mxu0 %v1921
  %4567 = vmatpush1.bf16.msra.mxu0 %v1920
  %4568 = vmatprep.subr.bf16.mxu0 %v1925
  %4569 = vmatpush1.bf16.msra.mxu0 %v1924
  %4570 = vmatprep.subr.bf16.mxu0 %v1929
  %4571 = vmatpush1.bf16.msra.mxu0 %v1928
  %4572 = vmatprep.subr.bf16.mxu0 %v1933
  %4573 = vmatpush1.bf16.msra.mxu0 %v1932
  %4574 = vmatprep.subr.bf16.mxu0 %v1937
  %4575 = vmatpush1.bf16.msra.mxu0 %v1936
  %4576 = vmatprep.subr.bf16.mxu0 %v1941
  %4577 = vmatpush1.bf16.msra.mxu0 %v1940
  %4578 = vmatprep.subr.bf16.mxu0 %v1945
  %4579 = vmatpush1.bf16.msra.mxu0 %v1944
  %4580 = vmatprep.subr.bf16.mxu0 %v1949
  %4581 = vmatpush1.bf16.msra.mxu0 %v1948
  %4582 = vmatprep.subr.bf16.mxu0 %v1953
  %4583 = vmatpush1.bf16.msra.mxu0 %v1952
  %4584 = vmatprep.subr.bf16.mxu0 %v1957
  %4585 = vmatpush1.bf16.msra.mxu0 %v1956
  %4586 = vmatprep.subr.bf16.mxu0 %v1961
  %4587 = vmatpush1.bf16.msra.mxu0 %v1960
  %4588 = vmatprep.subr.bf16.mxu0 %v1965
  %4589 = vmatpush1.bf16.msra.mxu0 %v1964
  %4590 = vmatprep.subr.bf16.mxu0 %v1969
  %4591 = vmatpush1.bf16.msra.mxu0 %v1968
  %4592 = vmatprep.subr.bf16.mxu0 %v1973
  %4593 = vmatpush1.bf16.msra.mxu0 %v1972
  %4594 = vmatprep.mubr.bf16.mxu0 %v4438
  %4595 = vmatmul.mubr.bf16.gmra.mrb[0].mxu0 %v4437
  %v4596 = vpop.f32.mrb[0].mxu0
  %v4597 = vadd.f32 %v4556, %v4596
  %v4598 = vpop.f32.mrb[0].mxu0
  %v4599 = vadd.f32 %v4558, %v4598
  %v4600 = vpop.f32.mrb[0].mxu0
  %v4601 = vpop.f32.mrb[0].mxu0
  %4602 = vdwg.mxu0
  %4603 = vmatprep.subr.bf16.mxu0 %v1723
  %4604 = vmatpush1.bf16.msra.mxu0 %v1722
  %4605 = vmatprep.subr.bf16.mxu0 %v1727
  %4606 = vmatpush1.bf16.msra.mxu0 %v1726
  %4607 = vmatprep.subr.bf16.mxu0 %v1731
  %4608 = vmatpush1.bf16.msra.mxu0 %v1730
  %4609 = vmatprep.subr.bf16.mxu0 %v1735
  %4610 = vmatpush1.bf16.msra.mxu0 %v1734
  %4611 = vmatprep.subr.bf16.mxu0 %v1739
  %4612 = vmatpush1.bf16.msra.mxu0 %v1738
  %4613 = vmatprep.subr.bf16.mxu0 %v1743
  %4614 = vmatpush1.bf16.msra.mxu0 %v1742
  %4615 = vmatprep.subr.bf16.mxu0 %v1747
  %4616 = vmatpush1.bf16.msra.mxu0 %v1746
  %4617 = vmatprep.subr.bf16.mxu0 %v1751
  %4618 = vmatpush1.bf16.msra.mxu0 %v1750
  %4619 = vmatprep.subr.bf16.mxu0 %v1755
  %4620 = vmatpush1.bf16.msra.mxu0 %v1754
  %4621 = vmatprep.subr.bf16.mxu0 %v1759
  %4622 = vmatpush1.bf16.msra.mxu0 %v1758
  %4623 = vmatprep.subr.bf16.mxu0 %v1763
  %4624 = vmatpush1.bf16.msra.mxu0 %v1762
  %4625 = vmatprep.subr.bf16.mxu0 %v1767
  %4626 = vmatpush1.bf16.msra.mxu0 %v1766
  %4627 = vmatprep.subr.bf16.mxu0 %v1771
  %4628 = vmatpush1.bf16.msra.mxu0 %v1770
  %4629 = vmatprep.subr.bf16.mxu0 %v1775
  %4630 = vmatpush1.bf16.msra.mxu0 %v1774
  %4631 = vmatprep.subr.bf16.mxu0 %v1779
  %4632 = vmatpush1.bf16.msra.mxu0 %v1778
  %4633 = vmatprep.subr.bf16.mxu0 %v1783
  %4634 = vmatpush1.bf16.msra.mxu0 %v1782
  %4635 = vmatprep.mubr.bf16.mxu0 %v4432
  %4636 = vmatmul.mubr.bf16.gmra.mrb[0].mxu0 %v4431
  %v4637 = vpop.f32.mrb[0].mxu0
  %v4638 = vadd.f32 %v943, %v4637
  %v4639 = vpop.f32.mrb[0].mxu0
  %v4640 = vadd.f32 %v947, %v4639
  %v4641 = vpop.f32.mrb[0].mxu0
  %v4642 = vpop.f32.mrb[0].mxu0
  %4643 = vdwg.mxu0
  %4644 = vmatprep.subr.bf16.mxu0 %v1787
  %4645 = vmatpush1.bf16.msra.mxu0 %v1786
  %4646 = vmatprep.subr.bf16.mxu0 %v1791
  %4647 = vmatpush1.bf16.msra.mxu0 %v1790
  %4648 = vmatprep.subr.bf16.mxu0 %v1795
  %4649 = vmatpush1.bf16.msra.mxu0 %v1794
  %4650 = vmatprep.subr.bf16.mxu0 %v1799
  %4651 = vmatpush1.bf16.msra.mxu0 %v1798
  %4652 = vmatprep.subr.bf16.mxu0 %v1803
  %4653 = vmatpush1.bf16.msra.mxu0 %v1802
  %4654 = vmatprep.subr.bf16.mxu0 %v1807
  %4655 = vmatpush1.bf16.msra.mxu0 %v1806
  %4656 = vmatprep.subr.bf16.mxu0 %v1811
  %4657 = vmatpush1.bf16.msra.mxu0 %v1810
  %4658 = vmatprep.subr.bf16.mxu0 %v1815
  %4659 = vmatpush1.bf16.msra.mxu0 %v1814
  %4660 = vmatprep.subr.bf16.mxu0 %v1819
  %4661 = vmatpush1.bf16.msra.mxu0 %v1818
  %4662 = vmatprep.subr.bf16.mxu0 %v1823
  %4663 = vmatpush1.bf16.msra.mxu0 %v1822
  %4664 = vmatprep.subr.bf16.mxu0 %v1827
  %4665 = vmatpush1.bf16.msra.mxu0 %v1826
  %4666 = vmatprep.subr.bf16.mxu0 %v1831
  %4667 = vmatpush1.bf16.msra.mxu0 %v1830
  %4668 = vmatprep.subr.bf16.mxu0 %v1835
  %4669 = vmatpush1.bf16.msra.mxu0 %v1834
  %4670 = vmatprep.subr.bf16.mxu0 %v1839
  %4671 = vmatpush1.bf16.msra.mxu0 %v1838
  %4672 = vmatprep.subr.bf16.mxu0 %v1843
  %4673 = vmatpush1.bf16.msra.mxu0 %v1842
  %4674 = vmatprep.subr.bf16.mxu0 %v1847
  %4675 = vmatpush1.bf16.msra.mxu0 %v1846
  %4676 = vmatprep.mubr.bf16.mxu0 %v4434
  %4677 = vmatmul.mubr.bf16.gmra.mrb[0].mxu0 %v4433
  %v4678 = vpop.f32.mrb[0].mxu0
  %v4679 = vadd.f32 %v4638, %v4678
  %v4680 = vpop.f32.mrb[0].mxu0
  %v4681 = vadd.f32 %v4640, %v4680
  %v4682 = vpop.f32.mrb[0].mxu0
  %v4683 = vpop.f32.mrb[0].mxu0
  %4684 = vdwg.mxu0
  %4685 = vmatprep.subr.bf16.mxu0 %v1851
  %4686 = vmatpush1.bf16.msra.mxu0 %v1850
  %4687 = vmatprep.subr.bf16.mxu0 %v1855
  %4688 = vmatpush1.bf16.msra.mxu0 %v1854
  %4689 = vmatprep.subr.bf16.mxu0 %v1859
  %4690 = vmatpush1.bf16.msra.mxu0 %v1858
  %4691 = vmatprep.subr.bf16.mxu0 %v1863
  %4692 = vmatpush1.bf16.msra.mxu0 %v1862
  %4693 = vmatprep.subr.bf16.mxu0 %v1867
  %4694 = vmatpush1.bf16.msra.mxu0 %v1866
  %4695 = vmatprep.subr.bf16.mxu0 %v1871
  %4696 = vmatpush1.bf16.msra.mxu0 %v1870
  %4697 = vmatprep.subr.bf16.mxu0 %v1875
  %4698 = vmatpush1.bf16.msra.mxu0 %v1874
  %4699 = vmatprep.subr.bf16.mxu0 %v1879
  %4700 = vmatpush1.bf16.msra.mxu0 %v1878
  %4701 = vmatprep.subr.bf16.mxu0 %v1883
  %4702 = vmatpush1.bf16.msra.mxu0 %v1882
  %4703 = vmatprep.subr.bf16.mxu0 %v1887
  %4704 = vmatpush1.bf16.msra.mxu0 %v1886
  %4705 = vmatprep.subr.bf16.mxu0 %v1891
  %4706 = vmatpush1.bf16.msra.mxu0 %v1890
  %4707 = vmatprep.subr.bf16.mxu0 %v1895
  %4708 = vmatpush1.bf16.msra.mxu0 %v1894
  %4709 = vmatprep.subr.bf16.mxu0 %v1899
  %4710 = vmatpush1.bf16.msra.mxu0 %v1898
  %4711 = vmatprep.subr.bf16.mxu0 %v1903
  %4712 = vmatpush1.bf16.msra.mxu0 %v1902
  %4713 = vmatprep.subr.bf16.mxu0 %v1907
  %4714 = vmatpush1.bf16.msra.mxu0 %v1906
  %4715 = vmatprep.subr.bf16.mxu0 %v1911
  %4716 = vmatpush1.bf16.msra.mxu0 %v1910
  %4717 = vmatprep.mubr.bf16.mxu0 %v4436
  %4718 = vmatmul.mubr.bf16.gmra.mrb[0].mxu0 %v4435
  %v4719 = vpop.f32.mrb[0].mxu0
  %v4720 = vadd.f32 %v4679, %v4719
  %v4721 = vpop.f32.mrb[0].mxu0
  %v4722 = vadd.f32 %v4681, %v4721
  %v4723 = vpop.f32.mrb[0].mxu0
  %v4724 = vpop.f32.mrb[0].mxu0
  %4725 = vdwg.mxu0
  %4726 = vmatprep.subr.bf16.mxu0 %v1915
  %4727 = vmatpush1.bf16.msra.mxu0 %v1914
  %4728 = vmatprep.subr.bf16.mxu0 %v1919
  %4729 = vmatpush1.bf16.msra.mxu0 %v1918
  %4730 = vmatprep.subr.bf16.mxu0 %v1923
  %4731 = vmatpush1.bf16.msra.mxu0 %v1922
  %4732 = vmatprep.subr.bf16.mxu0 %v1927
  %4733 = vmatpush1.bf16.msra.mxu0 %v1926
  %4734 = vmatprep.subr.bf16.mxu0 %v1931
  %4735 = vmatpush1.bf16.msra.mxu0 %v1930
  %4736 = vmatprep.subr.bf16.mxu0 %v1935
  %4737 = vmatpush1.bf16.msra.mxu0 %v1934
  %4738 = vmatprep.subr.bf16.mxu0 %v1939
  %4739 = vmatpush1.bf16.msra.mxu0 %v1938
  %4740 = vmatprep.subr.bf16.mxu0 %v1943
  %4741 = vmatpush1.bf16.msra.mxu0 %v1942
  %4742 = vmatprep.subr.bf16.mxu0 %v1947
  %4743 = vmatpush1.bf16.msra.mxu0 %v1946
  %4744 = vmatprep.subr.bf16.mxu0 %v1951
  %4745 = vmatpush1.bf16.msra.mxu0 %v1950
  %4746 = vmatprep.subr.bf16.mxu0 %v1955
  %4747 = vmatpush1.bf16.msra.mxu0 %v1954
  %4748 = vmatprep.subr.bf16.mxu0 %v1959
  %4749 = vmatpush1.bf16.msra.mxu0 %v1958
  %4750 = vmatprep.subr.bf16.mxu0 %v1963
  %4751 = vmatpush1.bf16.msra.mxu0 %v1962
  %4752 = vmatprep.subr.bf16.mxu0 %v1967
  %4753 = vmatpush1.bf16.msra.mxu0 %v1966
  %4754 = vmatprep.subr.bf16.mxu0 %v1971
  %4755 = vmatpush1.bf16.msra.mxu0 %v1970
  %4756 = vmatprep.subr.bf16.mxu0 %v1975
  %4757 = vmatpush1.bf16.msra.mxu0 %v1974
  %4758 = vmatprep.mubr.bf16.mxu0 %v4438
  %4759 = vmatmul.mubr.bf16.gmra.mrb[0].mxu0 %v4437
  %v4760 = vpop.f32.mrb[0].mxu0
  %v4761 = vadd.f32 %v4720, %v4760
  %v4762 = vpop.f32.mrb[0].mxu0
  %v4763 = vadd.f32 %v4722, %v4762
  %v4764 = vpop.f32.mrb[0].mxu0
  %v4765 = vpop.f32.mrb[0].mxu0
  %4766 = vdwg.mxu0
  %v4767 = vmax.f32 %v4597, 0.0
  %v4768 = vmax.f32 %v4599, 0.0
  %v4769 = vmax.f32 %v4761, 0.0
  %v4770 = vmax.f32 %v4763, 0.0
  %v4771 = vpack.c.bf16 %v4767, %v4767
  %v4772 = vpack.c.bf16 %v4768, %v4768
  %v4773 = vpack.c.bf16 %v4769, %v4769
  %v4774 = vpack.c.bf16 %v4770, %v4770
  %4775 = vmatprep.subr.bf16.mxu0 %v3103
  %4776 = vmatpush1.bf16.msra.mxu0 %v3102
  %4777 = vmatprep.subr.bf16.mxu0 %v3107
  %4778 = vmatpush1.bf16.msra.mxu0 %v3106
  %4779 = vmatprep.subr.bf16.mxu0 %v3111
  %4780 = vmatpush1.bf16.msra.mxu0 %v3110
  %4781 = vmatprep.subr.bf16.mxu0 %v3115
  %4782 = vmatpush1.bf16.msra.mxu0 %v3114
  %4783 = vmatprep.subr.bf16.mxu0 %v3119
  %4784 = vmatpush1.bf16.msra.mxu0 %v3118
  %4785 = vmatprep.subr.bf16.mxu0 %v3123
  %4786 = vmatpush1.bf16.msra.mxu0 %v3122
  %4787 = vmatprep.subr.bf16.mxu0 %v3127
  %4788 = vmatpush1.bf16.msra.mxu0 %v3126
  %4789 = vmatprep.subr.bf16.mxu0 %v3131
  %4790 = vmatpush1.bf16.msra.mxu0 %v3130
  %4791 = vmatprep.subr.bf16.mxu0 %v3135
  %4792 = vmatpush1.bf16.msra.mxu0 %v3134
  %4793 = vmatprep.subr.bf16.mxu0 %v3139
  %4794 = vmatpush1.bf16.msra.mxu0 %v3138
  %4795 = vmatprep.subr.bf16.mxu0 %v3143
  %4796 = vmatpush1.bf16.msra.mxu0 %v3142
  %4797 = vmatprep.subr.bf16.mxu0 %v3147
  %4798 = vmatpush1.bf16.msra.mxu0 %v3146
  %4799 = vmatprep.subr.bf16.mxu0 %v3151
  %4800 = vmatpush1.bf16.msra.mxu0 %v3150
  %4801 = vmatprep.subr.bf16.mxu0 %v3155
  %4802 = vmatpush1.bf16.msra.mxu0 %v3154
  %4803 = vmatprep.subr.bf16.mxu0 %v3159
  %4804 = vmatpush1.bf16.msra.mxu0 %v3158
  %4805 = vmatprep.subr.bf16.mxu0 %v3163
  %4806 = vmatpush1.bf16.msra.mxu0 %v3162
  %4807 = vmatprep.mubr.bf16.mxu0 %v4772
  %4808 = vmatmul.mubr.bf16.gmra.mrb[0].mxu0 %v4771
  %v4809 = vpop.f32.mrb[0].mxu0
  %v4810 = vadd.f32 %v2701, %v4809
  %v4811 = vpop.f32.mrb[0].mxu0
  %v4812 = vadd.f32 %v2705, %v4811
  %v4813 = vpop.f32.mrb[0].mxu0
  %v4814 = vpop.f32.mrb[0].mxu0
  %4815 = vdwg.mxu0
  %4816 = vmatprep.subr.bf16.mxu0 %v3167
  %4817 = vmatpush1.bf16.msra.mxu0 %v3166
  %4818 = vmatprep.subr.bf16.mxu0 %v3171
  %4819 = vmatpush1.bf16.msra.mxu0 %v3170
  %4820 = vmatprep.subr.bf16.mxu0 %v3175
  %4821 = vmatpush1.bf16.msra.mxu0 %v3174
  %4822 = vmatprep.subr.bf16.mxu0 %v3179
  %4823 = vmatpush1.bf16.msra.mxu0 %v3178
  %4824 = vmatprep.subr.bf16.mxu0 %v3183
  %4825 = vmatpush1.bf16.msra.mxu0 %v3182
  %4826 = vmatprep.subr.bf16.mxu0 %v3187
  %4827 = vmatpush1.bf16.msra.mxu0 %v3186
  %4828 = vmatprep.subr.bf16.mxu0 %v3191
  %4829 = vmatpush1.bf16.msra.mxu0 %v3190
  %4830 = vmatprep.subr.bf16.mxu0 %v3195
  %4831 = vmatpush1.bf16.msra.mxu0 %v3194
  %4832 = vmatprep.subr.bf16.mxu0 %v3199
  %4833 = vmatpush1.bf16.msra.mxu0 %v3198
  %4834 = vmatprep.subr.bf16.mxu0 %v3203
  %4835 = vmatpush1.bf16.msra.mxu0 %v3202
  %4836 = vmatprep.subr.bf16.mxu0 %v3207
  %4837 = vmatpush1.bf16.msra.mxu0 %v3206
  %4838 = vmatprep.subr.bf16.mxu0 %v3211
  %4839 = vmatpush1.bf16.msra.mxu0 %v3210
  %4840 = vmatprep.subr.bf16.mxu0 %v3215
  %4841 = vmatpush1.bf16.msra.mxu0 %v3214
  %4842 = vmatprep.subr.bf16.mxu0 %v3219
  %4843 = vmatpush1.bf16.msra.mxu0 %v3218
  %4844 = vmatprep.subr.bf16.mxu0 %v3223
  %4845 = vmatpush1.bf16.msra.mxu0 %v3222
  %4846 = vmatprep.subr.bf16.mxu0 %v3227
  %4847 = vmatpush1.bf16.msra.mxu0 %v3226
  %4848 = vmatprep.mubr.bf16.mxu0 %v4774
  %4849 = vmatmul.mubr.bf16.gmra.mrb[0].mxu0 %v4773
  %v4850 = vpop.f32.mrb[0].mxu0
  %v4851 = vadd.f32 %v4810, %v4850
  %v4852 = vpop.f32.mrb[0].mxu0
  %v4853 = vadd.f32 %v4812, %v4852
  %v4854 = vpop.f32.mrb[0].mxu0
  %v4855 = vpop.f32.mrb[0].mxu0
  %4856 = vdwg.mxu0
  %4857 = vmatprep.subr.bf16.mxu0 %v3105
  %4858 = vmatpush1.bf16.msra.mxu0 %v3104
  %4859 = vmatprep.subr.bf16.mxu0 %v3109
  %4860 = vmatpush1.bf16.msra.mxu0 %v3108
  %4861 = vmatprep.subr.bf16.mxu0 %v3113
  %4862 = vmatpush1.bf16.msra.mxu0 %v3112
  %4863 = vmatprep.subr.bf16.mxu0 %v3117
  %4864 = vmatpush1.bf16.msra.mxu0 %v3116
  %4865 = vmatprep.subr.bf16.mxu0 %v3121
  %4866 = vmatpush1.bf16.msra.mxu0 %v3120
  %4867 = vmatprep.subr.bf16.mxu0 %v3125
  %4868 = vmatpush1.bf16.msra.mxu0 %v3124
  %4869 = vmatprep.subr.bf16.mxu0 %v3129
  %4870 = vmatpush1.bf16.msra.mxu0 %v3128
  %4871 = vmatprep.subr.bf16.mxu0 %v3133
  %4872 = vmatpush1.bf16.msra.mxu0 %v3132
  %4873 = vmatprep.subr.bf16.mxu0 %v3137
  %4874 = vmatpush1.bf16.msra.mxu0 %v3136
  %4875 = vmatprep.subr.bf16.mxu0 %v3141
  %4876 = vmatpush1.bf16.msra.mxu0 %v3140
  %4877 = vmatprep.subr.bf16.mxu0 %v3145
  %4878 = vmatpush1.bf16.msra.mxu0 %v3144
  %4879 = vmatprep.subr.bf16.mxu0 %v3149
  %4880 = vmatpush1.bf16.msra.mxu0 %v3148
  %4881 = vmatprep.subr.bf16.mxu0 %v3153
  %4882 = vmatpush1.bf16.msra.mxu0 %v3152
  %4883 = vmatprep.subr.bf16.mxu0 %v3157
  %4884 = vmatpush1.bf16.msra.mxu0 %v3156
  %4885 = vmatprep.subr.bf16.mxu0 %v3161
  %4886 = vmatpush1.bf16.msra.mxu0 %v3160
  %4887 = vmatprep.subr.bf16.mxu0 %v3165
  %4888 = vmatpush1.bf16.msra.mxu0 %v3164
  %4889 = vmatprep.mubr.bf16.mxu0 %v4772
  %4890 = vmatmul.mubr.bf16.gmra.mrb[0].mxu0 %v4771
  %v4891 = vpop.f32.mrb[0].mxu0
  %v4892 = vadd.f32 %v2709, %v4891
  %v4893 = vpop.f32.mrb[0].mxu0
  %v4894 = vadd.f32 %v2713, %v4893
  %v4895 = vpop.f32.mrb[0].mxu0
  %v4896 = vpop.f32.mrb[0].mxu0
  %4897 = vdwg.mxu0
  %4898 = vmatprep.subr.bf16.mxu0 %v3169
  %4899 = vmatpush1.bf16.msra.mxu0 %v3168
  %4900 = vmatprep.subr.bf16.mxu0 %v3173
  %4901 = vmatpush1.bf16.msra.mxu0 %v3172
  %4902 = vmatprep.subr.bf16.mxu0 %v3177
  %4903 = vmatpush1.bf16.msra.mxu0 %v3176
  %4904 = vmatprep.subr.bf16.mxu0 %v3181
  %4905 = vmatpush1.bf16.msra.mxu0 %v3180
  %4906 = vmatprep.subr.bf16.mxu0 %v3185
  %4907 = vmatpush1.bf16.msra.mxu0 %v3184
  %4908 = vmatprep.subr.bf16.mxu0 %v3189
  %4909 = vmatpush1.bf16.msra.mxu0 %v3188
  %4910 = vmatprep.subr.bf16.mxu0 %v3193
  %4911 = vmatpush1.bf16.msra.mxu0 %v3192
  %4912 = vmatprep.subr.bf16.mxu0 %v3197
  %4913 = vmatpush1.bf16.msra.mxu0 %v3196
  %4914 = vmatprep.subr.bf16.mxu0 %v3201
  %4915 = vmatpush1.bf16.msra.mxu0 %v3200
  %4916 = vmatprep.subr.bf16.mxu0 %v3205
  %4917 = vmatpush1.bf16.msra.mxu0 %v3204
  %4918 = vmatprep.subr.bf16.mxu0 %v3209
  %4919 = vmatpush1.bf16.msra.mxu0 %v3208
  %4920 = vmatprep.subr.bf16.mxu0 %v3213
  %4921 = vmatpush1.bf16.msra.mxu0 %v3212
  %4922 = vmatprep.subr.bf16.mxu0 %v3217
  %4923 = vmatpush1.bf16.msra.mxu0 %v3216
  %4924 = vmatprep.subr.bf16.mxu0 %v3221
  %4925 = vmatpush1.bf16.msra.mxu0 %v3220
  %4926 = vmatprep.subr.bf16.mxu0 %v3225
  %4927 = vmatpush1.bf16.msra.mxu0 %v3224
  %4928 = vmatprep.subr.bf16.mxu0 %v3229
  %4929 = vmatpush1.bf16.msra.mxu0 %v3228
  %4930 = vmatprep.mubr.bf16.mxu0 %v4774
  %4931 = vmatmul.mubr.bf16.gmra.mrb[0].mxu0 %v4773
  %v4932 = vpop.f32.mrb[0].mxu0
  %v4933 = vadd.f32 %v4892, %v4932
  %v4934 = vpop.f32.mrb[0].mxu0
  %v4935 = vadd.f32 %v4894, %v4934
  %v4936 = vpop.f32.mrb[0].mxu0
  %v4937 = vpop.f32.mrb[0].mxu0
  %4938 = vdwg.mxu0
  %v4939 = vmax.f32 %v4851, 0.0
  %v4940 = vmax.f32 %v4853, 0.0
  %v4941 = vmax.f32 %v4933, 0.0
  %v4942 = vmax.f32 %v4935, 0.0
  %v4943 = vpack.c.bf16 %v4939, %v4939
  %v4944 = vpack.c.bf16 %v4940, %v4940
  %v4945 = vpack.c.bf16 %v4941, %v4941
  %v4946 = vpack.c.bf16 %v4942, %v4942
  %4947 = vmatprep.subr.bf16.mxu0 %v3799
  %4948 = vmatpush1.bf16.msra.mxu0 %v3798
  %4949 = vmatprep.subr.bf16.mxu0 %v3801
  %4950 = vmatpush1.bf16.msra.mxu0 %v3800
  %4951 = vmatprep.subr.bf16.mxu0 %v3803
  %4952 = vmatpush1.bf16.msra.mxu0 %v3802
  %4953 = vmatprep.subr.bf16.mxu0 %v3805
  %4954 = vmatpush1.bf16.msra.mxu0 %v3804
  %4955 = vmatprep.subr.bf16.mxu0 %v3807
  %4956 = vmatpush1.bf16.msra.mxu0 %v3806
  %4957 = vmatprep.subr.bf16.mxu0 %v3809
  %4958 = vmatpush1.bf16.msra.mxu0 %v3808
  %4959 = vmatprep.subr.bf16.mxu0 %v3811
  %4960 = vmatpush1.bf16.msra.mxu0 %v3810
  %4961 = vmatprep.subr.bf16.mxu0 %v3813
  %4962 = vmatpush1.bf16.msra.mxu0 %v3812
  %4963 = vmatprep.subr.bf16.mxu0 %v3815
  %4964 = vmatpush1.bf16.msra.mxu0 %v3814
  %4965 = vmatprep.subr.bf16.mxu0 %v3817
  %4966 = vmatpush1.bf16.msra.mxu0 %v3816
  %4967 = vmatprep.subr.bf16.mxu0 %v3819
  %4968 = vmatpush1.bf16.msra.mxu0 %v3818
  %4969 = vmatprep.subr.bf16.mxu0 %v3821
  %4970 = vmatpush1.bf16.msra.mxu0 %v3820
  %4971 = vmatprep.subr.bf16.mxu0 %v3823
  %4972 = vmatpush1.bf16.msra.mxu0 %v3822
  %4973 = vmatprep.subr.bf16.mxu0 %v3825
  %4974 = vmatpush1.bf16.msra.mxu0 %v3824
  %4975 = vmatprep.subr.bf16.mxu0 %v3827
  %4976 = vmatpush1.bf16.msra.mxu0 %v3826
  %4977 = vmatprep.subr.bf16.mxu0 %v3829
  %4978 = vmatpush1.bf16.msra.mxu0 %v3828
  %4979 = vmatprep.mubr.bf16.mxu0 %v4944
  %4980 = vmatmul.mubr.bf16.gmra.mrb[0].mxu0 %v4943
  %v4981 = vpop.f32.mrb[0].mxu0
  %v4982 = vadd.f32 %v3599, %v4981
  %v4983 = vpop.f32.mrb[0].mxu0
  %v4984 = vadd.f32 %v3603, %v4983
  %v4985 = vpop.f32.mrb[0].mxu0
  %v4986 = vpop.f32.mrb[0].mxu0
  %4987 = vdwg.mxu0
  %4988 = vmatprep.subr.bf16.mxu0 %v3831
  %4989 = vmatpush1.bf16.msra.mxu0 %v3830
  %4990 = vmatprep.subr.bf16.mxu0 %v3833
  %4991 = vmatpush1.bf16.msra.mxu0 %v3832
  %4992 = vmatprep.subr.bf16.mxu0 %v3835
  %4993 = vmatpush1.bf16.msra.mxu0 %v3834
  %4994 = vmatprep.subr.bf16.mxu0 %v3837
  %4995 = vmatpush1.bf16.msra.mxu0 %v3836
  %4996 = vmatprep.subr.bf16.mxu0 %v3839
  %4997 = vmatpush1.bf16.msra.mxu0 %v3838
  %4998 = vmatprep.subr.bf16.mxu0 %v3841
  %4999 = vmatpush1.bf16.msra.mxu0 %v3840
  %5000 = vmatprep.subr.bf16.mxu0 %v3843
  %5001 = vmatpush1.bf16.msra.mxu0 %v3842
  %5002 = vmatprep.subr.bf16.mxu0 %v3845
  %5003 = vmatpush1.bf16.msra.mxu0 %v3844
  %5004 = vmatprep.subr.bf16.mxu0 %v3847
  %5005 = vmatpush1.bf16.msra.mxu0 %v3846
  %5006 = vmatprep.subr.bf16.mxu0 %v3849
  %5007 = vmatpush1.bf16.msra.mxu0 %v3848
  %5008 = vmatprep.subr.bf16.mxu0 %v3851
  %5009 = vmatpush1.bf16.msra.mxu0 %v3850
  %5010 = vmatprep.subr.bf16.mxu0 %v3853
  %5011 = vmatpush1.bf16.msra.mxu0 %v3852
  %5012 = vmatprep.subr.bf16.mxu0 %v3855
  %5013 = vmatpush1.bf16.msra.mxu0 %v3854
  %5014 = vmatprep.subr.bf16.mxu0 %v3857
  %5015 = vmatpush1.bf16.msra.mxu0 %v3856
  %5016 = vmatprep.subr.bf16.mxu0 %v3859
  %5017 = vmatpush1.bf16.msra.mxu0 %v3858
  %5018 = vmatprep.subr.bf16.mxu0 %v3861
  %5019 = vmatpush1.bf16.msra.mxu0 %v3860
  %5020 = vmatprep.mubr.bf16.mxu0 %v4946
  %5021 = vmatmul.mubr.bf16.gmra.mrb[0].mxu0 %v4945
  %v5022 = vpop.f32.mrb[0].mxu0
  %v5023 = vadd.f32 %v4982, %v5022
  %v5024 = vpop.f32.mrb[0].mxu0
  %v5025 = vadd.f32 %v4984, %v5024
  %v5026 = vpop.f32.mrb[0].mxu0
  %v5027 = vpop.f32.mrb[0].mxu0
  %5028 = vdwg.mxu0
  %v5029 = vmax.f32 %v5023, 0.0
  %v5030 = vmax.f32 %v5025, 0.0
  %v5031 = vpack.c.bf16 %v5029, %v5029
  %v5032 = vpack.c.bf16 %v5030, %v5030
  %5033 = vmatprep.subr.bf16.mxu0 0
  %5034 = vmatpush1.bf16.msra.mxu0 %v4115
  %5035 = vmatprep.subr.bf16.mxu0 0
  %5036 = vmatpush1.bf16.msra.mxu0 %v4116
  %5037 = vmatprep.subr.bf16.mxu0 0
  %5038 = vmatpush1.bf16.msra.mxu0 %v4117
  %5039 = vmatprep.subr.bf16.mxu0 0
  %5040 = vmatpush1.bf16.msra.mxu0 %v4118
  %5041 = vmatprep.subr.bf16.mxu0 0
  %5042 = vmatpush1.bf16.msra.mxu0 %v4119
  %5043 = vmatprep.subr.bf16.mxu0 0
  %5044 = vmatpush1.bf16.msra.mxu0 %v4120
  %5045 = vmatprep.subr.bf16.mxu0 0
  %5046 = vmatpush1.bf16.msra.mxu0 %v4121
  %5047 = vmatprep.subr.bf16.mxu0 0
  %5048 = vmatpush1.bf16.msra.mxu0 %v4122
  %5049 = vmatprep.subr.bf16.mxu0 0
  %5050 = vmatpush1.bf16.msra.mxu0 %v4123
  %5051 = vmatprep.subr.bf16.mxu0 0
  %5052 = vmatpush1.bf16.msra.mxu0 %v4124
  %5053 = vmatprep.subr.bf16.mxu0 0
  %5054 = vmatpush1.bf16.msra.mxu0 %v4125
  %5055 = vmatprep.subr.bf16.mxu0 0
  %5056 = vmatpush1.bf16.msra.mxu0 %v4126
  %5057 = vmatprep.subr.bf16.mxu0 0
  %5058 = vmatpush1.bf16.msra.mxu0 %v4127
  %5059 = vmatprep.subr.bf16.mxu0 0
  %5060 = vmatpush1.bf16.msra.mxu0 %v4128
  %5061 = vmatprep.subr.bf16.mxu0 0
  %5062 = vmatpush1.bf16.msra.mxu0 %v4129
  %5063 = vmatprep.subr.bf16.mxu0 0
  %5064 = vmatpush1.bf16.msra.mxu0 %v4130
  %5065 = vmatprep.mubr.bf16.mxu0 %v5032
  %5066 = vmatmul.mubr.bf16.gmra.mrb[0].mxu0 %v5031
  %v5067 = vpop.f32.mrb[0].mxu0
  %v5068 = vadd.f32 %v4049, %v5067
  %v5069 = vpop.f32.mrb[0].mxu0
  %v5070 = vpop.f32.mrb[0].mxu0
  %v5071 = vpop.f32.mrb[0].mxu0
  %5072 = vdwg.mxu0
  %v5073 = vmul.f32 %v5068, 0.9250556
  %v5074 = vsub.f32 %v4198, %v5073
  %v5075 = vmul.f32 %v5074, 2.632745
  %v5076 = vmax.f32 %v5075, -1.0
  %v5077 = vmin.f32 %v5076, 1.0
  %v5078 = vmul.f32 %v5077, 0.58130705
  %v5079 = vmul.f32 %v4198, 0.31970212
  %v5080 = vadd.f32 %v5078, %v5079
  %s5081 = scalar_lea.vmem %s2, 16
  %v5082 = vld [vmem:[%s5081] sm:$0xff]
  %v5083 = vmul.f32 %v5082, 0.64706486
  %v5084 = vadd.f32 %v5080, %v5083
  %s5085 = scalar_lea.vmem %s0, 16
  %v5086 = vld [vmem:[%s5085] sm:$0xff]
  %v5088 = vlaneseq
  %v5089 = vshrl.u32 %v5088, 7
  %v5090 = vsub.s32 0, %v5089
  %v5091 = vrot.slane %v5086, %v5090
  %v5092 = vlaneseq
  %v5093 = vshrl.u32 %v5092, 7
  %v5094 = vsub.s32 1, %v5093
  %v5095 = vrot.slane %v5086, %v5094
  %v5096 = vlaneseq
  %v5097 = vshrl.u32 %v5096, 7
  %v5098 = vsub.s32 2, %v5097
  %v5099 = vrot.slane %v5086, %v5098
  %v5100 = vlaneseq
  %v5101 = vshrl.u32 %v5100, 7
  %v5102 = vsub.s32 3, %v5101
  %v5103 = vrot.slane %v5086, %v5102
  %v5104 = vlaneseq
  %v5105 = vshrl.u32 %v5104, 7
  %v5106 = vsub.s32 4, %v5105
  %v5107 = vrot.slane %v5086, %v5106
  %v5108 = vlaneseq
  %v5109 = vshrl.u32 %v5108, 7
  %v5110 = vsub.s32 5, %v5109
  %v5111 = vrot.slane %v5086, %v5110
  %v5112 = vlaneseq
  %v5113 = vshrl.u32 %v5112, 7
  %v5114 = vsub.s32 6, %v5113
  %v5115 = vrot.slane %v5086, %v5114
  %v5116 = vlaneseq
  %v5117 = vshrl.u32 %v5116, 7
  %v5118 = vsub.s32 7, %v5117
  %v5119 = vrot.slane %v5086, %v5118
  %v5128 = vadd.f32 %v5091, %v43
  %v5129 = vadd.f32 %v5095, %v44
  %v5130 = vadd.f32 %v5099, %v45
  %v5131 = vadd.f32 %v5103, %v46
  %v5132 = vadd.f32 %v5107, %v47
  %v5133 = vadd.f32 %v5111, %v48
  %v5134 = vadd.f32 %v5115, %v49
  %v5135 = vadd.f32 %v5119, %v50
  %v5136 = vpack.c.bf16 %v5084, %v5084
  %5137 = vmatprep.subr.bf16.mxu0 %v359
  %5138 = vmatpush1.bf16.msra.mxu0 %v358
  %5139 = vmatprep.subr.bf16.mxu0 %v367
  %5140 = vmatpush1.bf16.msra.mxu0 %v366
  %5141 = vmatprep.subr.bf16.mxu0 %v375
  %5142 = vmatpush1.bf16.msra.mxu0 %v374
  %5143 = vmatprep.subr.bf16.mxu0 %v383
  %5144 = vmatpush1.bf16.msra.mxu0 %v382
  %5145 = vmatprep.subr.bf16.mxu0 %v391
  %5146 = vmatpush1.bf16.msra.mxu0 %v390
  %5147 = vmatprep.subr.bf16.mxu0 %v399
  %5148 = vmatpush1.bf16.msra.mxu0 %v398
  %5149 = vmatprep.subr.bf16.mxu0 %v407
  %5150 = vmatpush1.bf16.msra.mxu0 %v406
  %5151 = vmatprep.subr.bf16.mxu0 %v415
  %5152 = vmatpush1.bf16.msra.mxu0 %v414
  %5153 = vmatprep.subr.bf16.mxu0 0
  %5154 = vmatpush1.bf16.msra.mxu0 0
  %5155 = vmatprep.subr.bf16.mxu0 0
  %5156 = vmatpush1.bf16.msra.mxu0 0
  %5157 = vmatprep.subr.bf16.mxu0 0
  %5158 = vmatpush1.bf16.msra.mxu0 0
  %5159 = vmatprep.subr.bf16.mxu0 0
  %5160 = vmatpush1.bf16.msra.mxu0 0
  %5161 = vmatprep.subr.bf16.mxu0 0
  %5162 = vmatpush1.bf16.msra.mxu0 0
  %5163 = vmatprep.subr.bf16.mxu0 0
  %5164 = vmatpush1.bf16.msra.mxu0 0
  %5165 = vmatprep.subr.bf16.mxu0 0
  %5166 = vmatpush1.bf16.msra.mxu0 0
  %5167 = vmatprep.subr.bf16.mxu0 0
  %5168 = vmatpush1.bf16.msra.mxu0 0
  %5169 = vmatprep.mubr.bf16.mxu0 0
  %5170 = vmatmul.mubr.bf16.gmra.mrb[0].mxu0 %v5136
  %v5171 = vpop.f32.mrb[0].mxu0
  %v5172 = vadd.f32 0.0, %v5171
  %v5173 = vpop.f32.mrb[0].mxu0
  %v5174 = vadd.f32 0.0, %v5173
  %v5175 = vpop.f32.mrb[0].mxu0
  %v5176 = vpop.f32.mrb[0].mxu0
  %5177 = vdwg.mxu0
  %5178 = vmatprep.subr.bf16.mxu0 %v361
  %5179 = vmatpush1.bf16.msra.mxu0 %v360
  %5180 = vmatprep.subr.bf16.mxu0 %v369
  %5181 = vmatpush1.bf16.msra.mxu0 %v368
  %5182 = vmatprep.subr.bf16.mxu0 %v377
  %5183 = vmatpush1.bf16.msra.mxu0 %v376
  %5184 = vmatprep.subr.bf16.mxu0 %v385
  %5185 = vmatpush1.bf16.msra.mxu0 %v384
  %5186 = vmatprep.subr.bf16.mxu0 %v393
  %5187 = vmatpush1.bf16.msra.mxu0 %v392
  %5188 = vmatprep.subr.bf16.mxu0 %v401
  %5189 = vmatpush1.bf16.msra.mxu0 %v400
  %5190 = vmatprep.subr.bf16.mxu0 %v409
  %5191 = vmatpush1.bf16.msra.mxu0 %v408
  %5192 = vmatprep.subr.bf16.mxu0 %v417
  %5193 = vmatpush1.bf16.msra.mxu0 %v416
  %5194 = vmatprep.subr.bf16.mxu0 0
  %5195 = vmatpush1.bf16.msra.mxu0 0
  %5196 = vmatprep.subr.bf16.mxu0 0
  %5197 = vmatpush1.bf16.msra.mxu0 0
  %5198 = vmatprep.subr.bf16.mxu0 0
  %5199 = vmatpush1.bf16.msra.mxu0 0
  %5200 = vmatprep.subr.bf16.mxu0 0
  %5201 = vmatpush1.bf16.msra.mxu0 0
  %5202 = vmatprep.subr.bf16.mxu0 0
  %5203 = vmatpush1.bf16.msra.mxu0 0
  %5204 = vmatprep.subr.bf16.mxu0 0
  %5205 = vmatpush1.bf16.msra.mxu0 0
  %5206 = vmatprep.subr.bf16.mxu0 0
  %5207 = vmatpush1.bf16.msra.mxu0 0
  %5208 = vmatprep.subr.bf16.mxu0 0
  %5209 = vmatpush1.bf16.msra.mxu0 0
  %5210 = vmatprep.mubr.bf16.mxu0 0
  %5211 = vmatmul.mubr.bf16.gmra.mrb[0].mxu0 %v5136
  %v5212 = vpop.f32.mrb[0].mxu0
  %v5213 = vadd.f32 0.0, %v5212
  %v5214 = vpop.f32.mrb[0].mxu0
  %v5215 = vadd.f32 0.0, %v5214
  %v5216 = vpop.f32.mrb[0].mxu0
  %v5217 = vpop.f32.mrb[0].mxu0
  %5218 = vdwg.mxu0
  %5219 = vmatprep.subr.bf16.mxu0 %v363
  %5220 = vmatpush1.bf16.msra.mxu0 %v362
  %5221 = vmatprep.subr.bf16.mxu0 %v371
  %5222 = vmatpush1.bf16.msra.mxu0 %v370
  %5223 = vmatprep.subr.bf16.mxu0 %v379
  %5224 = vmatpush1.bf16.msra.mxu0 %v378
  %5225 = vmatprep.subr.bf16.mxu0 %v387
  %5226 = vmatpush1.bf16.msra.mxu0 %v386
  %5227 = vmatprep.subr.bf16.mxu0 %v395
  %5228 = vmatpush1.bf16.msra.mxu0 %v394
  %5229 = vmatprep.subr.bf16.mxu0 %v403
  %5230 = vmatpush1.bf16.msra.mxu0 %v402
  %5231 = vmatprep.subr.bf16.mxu0 %v411
  %5232 = vmatpush1.bf16.msra.mxu0 %v410
  %5233 = vmatprep.subr.bf16.mxu0 %v419
  %5234 = vmatpush1.bf16.msra.mxu0 %v418
  %5235 = vmatprep.subr.bf16.mxu0 0
  %5236 = vmatpush1.bf16.msra.mxu0 0
  %5237 = vmatprep.subr.bf16.mxu0 0
  %5238 = vmatpush1.bf16.msra.mxu0 0
  %5239 = vmatprep.subr.bf16.mxu0 0
  %5240 = vmatpush1.bf16.msra.mxu0 0
  %5241 = vmatprep.subr.bf16.mxu0 0
  %5242 = vmatpush1.bf16.msra.mxu0 0
  %5243 = vmatprep.subr.bf16.mxu0 0
  %5244 = vmatpush1.bf16.msra.mxu0 0
  %5245 = vmatprep.subr.bf16.mxu0 0
  %5246 = vmatpush1.bf16.msra.mxu0 0
  %5247 = vmatprep.subr.bf16.mxu0 0
  %5248 = vmatpush1.bf16.msra.mxu0 0
  %5249 = vmatprep.subr.bf16.mxu0 0
  %5250 = vmatpush1.bf16.msra.mxu0 0
  %5251 = vmatprep.mubr.bf16.mxu0 0
  %5252 = vmatmul.mubr.bf16.gmra.mrb[0].mxu0 %v5136
  %v5253 = vpop.f32.mrb[0].mxu0
  %v5254 = vadd.f32 0.0, %v5253
  %v5255 = vpop.f32.mrb[0].mxu0
  %v5256 = vadd.f32 0.0, %v5255
  %v5257 = vpop.f32.mrb[0].mxu0
  %v5258 = vpop.f32.mrb[0].mxu0
  %5259 = vdwg.mxu0
  %5260 = vmatprep.subr.bf16.mxu0 %v365
  %5261 = vmatpush1.bf16.msra.mxu0 %v364
  %5262 = vmatprep.subr.bf16.mxu0 %v373
  %5263 = vmatpush1.bf16.msra.mxu0 %v372
  %5264 = vmatprep.subr.bf16.mxu0 %v381
  %5265 = vmatpush1.bf16.msra.mxu0 %v380
  %5266 = vmatprep.subr.bf16.mxu0 %v389
  %5267 = vmatpush1.bf16.msra.mxu0 %v388
  %5268 = vmatprep.subr.bf16.mxu0 %v397
  %5269 = vmatpush1.bf16.msra.mxu0 %v396
  %5270 = vmatprep.subr.bf16.mxu0 %v405
  %5271 = vmatpush1.bf16.msra.mxu0 %v404
  %5272 = vmatprep.subr.bf16.mxu0 %v413
  %5273 = vmatpush1.bf16.msra.mxu0 %v412
  %5274 = vmatprep.subr.bf16.mxu0 %v421
  %5275 = vmatpush1.bf16.msra.mxu0 %v420
  %5276 = vmatprep.subr.bf16.mxu0 0
  %5277 = vmatpush1.bf16.msra.mxu0 0
  %5278 = vmatprep.subr.bf16.mxu0 0
  %5279 = vmatpush1.bf16.msra.mxu0 0
  %5280 = vmatprep.subr.bf16.mxu0 0
  %5281 = vmatpush1.bf16.msra.mxu0 0
  %5282 = vmatprep.subr.bf16.mxu0 0
  %5283 = vmatpush1.bf16.msra.mxu0 0
  %5284 = vmatprep.subr.bf16.mxu0 0
  %5285 = vmatpush1.bf16.msra.mxu0 0
  %5286 = vmatprep.subr.bf16.mxu0 0
  %5287 = vmatpush1.bf16.msra.mxu0 0
  %5288 = vmatprep.subr.bf16.mxu0 0
  %5289 = vmatpush1.bf16.msra.mxu0 0
  %5290 = vmatprep.subr.bf16.mxu0 0
  %5291 = vmatpush1.bf16.msra.mxu0 0
  %5292 = vmatprep.mubr.bf16.mxu0 0
  %5293 = vmatmul.mubr.bf16.gmra.mrb[0].mxu0 %v5136
  %v5294 = vpop.f32.mrb[0].mxu0
  %v5295 = vadd.f32 0.0, %v5294
  %v5296 = vpop.f32.mrb[0].mxu0
  %v5297 = vadd.f32 0.0, %v5296
  %v5298 = vpop.f32.mrb[0].mxu0
  %v5299 = vpop.f32.mrb[0].mxu0
  %5300 = vdwg.mxu0
  %v5301 = vadd.f32 %v5128, %v5172
  %v5302 = vadd.f32 %v5129, %v5174
  %v5303 = vadd.f32 %v5130, %v5213
  %v5304 = vadd.f32 %v5131, %v5215
  %v5305 = vadd.f32 %v5132, %v5254
  %v5306 = vadd.f32 %v5133, %v5256
  %v5307 = vadd.f32 %v5134, %v5295
  %v5308 = vadd.f32 %v5135, %v5297
  %v5309 = vmax.f32 %v5301, 0.0
  %v5310 = vmax.f32 %v5302, 0.0
  %v5311 = vmax.f32 %v5303, 0.0
  %v5312 = vmax.f32 %v5304, 0.0
  %v5313 = vmax.f32 %v5305, 0.0
  %v5314 = vmax.f32 %v5306, 0.0
  %v5315 = vmax.f32 %v5307, 0.0
  %v5316 = vmax.f32 %v5308, 0.0
  %v5317 = vpack.c.bf16 %v5309, %v5309
  %v5318 = vpack.c.bf16 %v5310, %v5310
  %v5319 = vpack.c.bf16 %v5311, %v5311
  %v5320 = vpack.c.bf16 %v5312, %v5312
  %v5321 = vpack.c.bf16 %v5313, %v5313
  %v5322 = vpack.c.bf16 %v5314, %v5314
  %v5323 = vpack.c.bf16 %v5315, %v5315
  %v5324 = vpack.c.bf16 %v5316, %v5316
  %5325 = vmatprep.subr.bf16.mxu0 %v1721
  %5326 = vmatpush1.bf16.msra.mxu0 %v1720
  %5327 = vmatprep.subr.bf16.mxu0 %v1725
  %5328 = vmatpush1.bf16.msra.mxu0 %v1724
  %5329 = vmatprep.subr.bf16.mxu0 %v1729
  %5330 = vmatpush1.bf16.msra.mxu0 %v1728
  %5331 = vmatprep.subr.bf16.mxu0 %v1733
  %5332 = vmatpush1.bf16.msra.mxu0 %v1732
  %5333 = vmatprep.subr.bf16.mxu0 %v1737
  %5334 = vmatpush1.bf16.msra.mxu0 %v1736
  %5335 = vmatprep.subr.bf16.mxu0 %v1741
  %5336 = vmatpush1.bf16.msra.mxu0 %v1740
  %5337 = vmatprep.subr.bf16.mxu0 %v1745
  %5338 = vmatpush1.bf16.msra.mxu0 %v1744
  %5339 = vmatprep.subr.bf16.mxu0 %v1749
  %5340 = vmatpush1.bf16.msra.mxu0 %v1748
  %5341 = vmatprep.subr.bf16.mxu0 %v1753
  %5342 = vmatpush1.bf16.msra.mxu0 %v1752
  %5343 = vmatprep.subr.bf16.mxu0 %v1757
  %5344 = vmatpush1.bf16.msra.mxu0 %v1756
  %5345 = vmatprep.subr.bf16.mxu0 %v1761
  %5346 = vmatpush1.bf16.msra.mxu0 %v1760
  %5347 = vmatprep.subr.bf16.mxu0 %v1765
  %5348 = vmatpush1.bf16.msra.mxu0 %v1764
  %5349 = vmatprep.subr.bf16.mxu0 %v1769
  %5350 = vmatpush1.bf16.msra.mxu0 %v1768
  %5351 = vmatprep.subr.bf16.mxu0 %v1773
  %5352 = vmatpush1.bf16.msra.mxu0 %v1772
  %5353 = vmatprep.subr.bf16.mxu0 %v1777
  %5354 = vmatpush1.bf16.msra.mxu0 %v1776
  %5355 = vmatprep.subr.bf16.mxu0 %v1781
  %5356 = vmatpush1.bf16.msra.mxu0 %v1780
  %5357 = vmatprep.mubr.bf16.mxu0 %v5318
  %5358 = vmatmul.mubr.bf16.gmra.mrb[0].mxu0 %v5317
  %v5359 = vpop.f32.mrb[0].mxu0
  %v5360 = vadd.f32 %v935, %v5359
  %v5361 = vpop.f32.mrb[0].mxu0
  %v5362 = vadd.f32 %v939, %v5361
  %v5363 = vpop.f32.mrb[0].mxu0
  %v5364 = vpop.f32.mrb[0].mxu0
  %5365 = vdwg.mxu0
  %5366 = vmatprep.subr.bf16.mxu0 %v1785
  %5367 = vmatpush1.bf16.msra.mxu0 %v1784
  %5368 = vmatprep.subr.bf16.mxu0 %v1789
  %5369 = vmatpush1.bf16.msra.mxu0 %v1788
  %5370 = vmatprep.subr.bf16.mxu0 %v1793
  %5371 = vmatpush1.bf16.msra.mxu0 %v1792
  %5372 = vmatprep.subr.bf16.mxu0 %v1797
  %5373 = vmatpush1.bf16.msra.mxu0 %v1796
  %5374 = vmatprep.subr.bf16.mxu0 %v1801
  %5375 = vmatpush1.bf16.msra.mxu0 %v1800
  %5376 = vmatprep.subr.bf16.mxu0 %v1805
  %5377 = vmatpush1.bf16.msra.mxu0 %v1804
  %5378 = vmatprep.subr.bf16.mxu0 %v1809
  %5379 = vmatpush1.bf16.msra.mxu0 %v1808
  %5380 = vmatprep.subr.bf16.mxu0 %v1813
  %5381 = vmatpush1.bf16.msra.mxu0 %v1812
  %5382 = vmatprep.subr.bf16.mxu0 %v1817
  %5383 = vmatpush1.bf16.msra.mxu0 %v1816
  %5384 = vmatprep.subr.bf16.mxu0 %v1821
  %5385 = vmatpush1.bf16.msra.mxu0 %v1820
  %5386 = vmatprep.subr.bf16.mxu0 %v1825
  %5387 = vmatpush1.bf16.msra.mxu0 %v1824
  %5388 = vmatprep.subr.bf16.mxu0 %v1829
  %5389 = vmatpush1.bf16.msra.mxu0 %v1828
  %5390 = vmatprep.subr.bf16.mxu0 %v1833
  %5391 = vmatpush1.bf16.msra.mxu0 %v1832
  %5392 = vmatprep.subr.bf16.mxu0 %v1837
  %5393 = vmatpush1.bf16.msra.mxu0 %v1836
  %5394 = vmatprep.subr.bf16.mxu0 %v1841
  %5395 = vmatpush1.bf16.msra.mxu0 %v1840
  %5396 = vmatprep.subr.bf16.mxu0 %v1845
  %5397 = vmatpush1.bf16.msra.mxu0 %v1844
  %5398 = vmatprep.mubr.bf16.mxu0 %v5320
  %5399 = vmatmul.mubr.bf16.gmra.mrb[0].mxu0 %v5319
  %v5400 = vpop.f32.mrb[0].mxu0
  %v5401 = vadd.f32 %v5360, %v5400
  %v5402 = vpop.f32.mrb[0].mxu0
  %v5403 = vadd.f32 %v5362, %v5402
  %v5404 = vpop.f32.mrb[0].mxu0
  %v5405 = vpop.f32.mrb[0].mxu0
  %5406 = vdwg.mxu0
  %5407 = vmatprep.subr.bf16.mxu0 %v1849
  %5408 = vmatpush1.bf16.msra.mxu0 %v1848
  %5409 = vmatprep.subr.bf16.mxu0 %v1853
  %5410 = vmatpush1.bf16.msra.mxu0 %v1852
  %5411 = vmatprep.subr.bf16.mxu0 %v1857
  %5412 = vmatpush1.bf16.msra.mxu0 %v1856
  %5413 = vmatprep.subr.bf16.mxu0 %v1861
  %5414 = vmatpush1.bf16.msra.mxu0 %v1860
  %5415 = vmatprep.subr.bf16.mxu0 %v1865
  %5416 = vmatpush1.bf16.msra.mxu0 %v1864
  %5417 = vmatprep.subr.bf16.mxu0 %v1869
  %5418 = vmatpush1.bf16.msra.mxu0 %v1868
  %5419 = vmatprep.subr.bf16.mxu0 %v1873
  %5420 = vmatpush1.bf16.msra.mxu0 %v1872
  %5421 = vmatprep.subr.bf16.mxu0 %v1877
  %5422 = vmatpush1.bf16.msra.mxu0 %v1876
  %5423 = vmatprep.subr.bf16.mxu0 %v1881
  %5424 = vmatpush1.bf16.msra.mxu0 %v1880
  %5425 = vmatprep.subr.bf16.mxu0 %v1885
  %5426 = vmatpush1.bf16.msra.mxu0 %v1884
  %5427 = vmatprep.subr.bf16.mxu0 %v1889
  %5428 = vmatpush1.bf16.msra.mxu0 %v1888
  %5429 = vmatprep.subr.bf16.mxu0 %v1893
  %5430 = vmatpush1.bf16.msra.mxu0 %v1892
  %5431 = vmatprep.subr.bf16.mxu0 %v1897
  %5432 = vmatpush1.bf16.msra.mxu0 %v1896
  %5433 = vmatprep.subr.bf16.mxu0 %v1901
  %5434 = vmatpush1.bf16.msra.mxu0 %v1900
  %5435 = vmatprep.subr.bf16.mxu0 %v1905
  %5436 = vmatpush1.bf16.msra.mxu0 %v1904
  %5437 = vmatprep.subr.bf16.mxu0 %v1909
  %5438 = vmatpush1.bf16.msra.mxu0 %v1908
  %5439 = vmatprep.mubr.bf16.mxu0 %v5322
  %5440 = vmatmul.mubr.bf16.gmra.mrb[0].mxu0 %v5321
  %v5441 = vpop.f32.mrb[0].mxu0
  %v5442 = vadd.f32 %v5401, %v5441
  %v5443 = vpop.f32.mrb[0].mxu0
  %v5444 = vadd.f32 %v5403, %v5443
  %v5445 = vpop.f32.mrb[0].mxu0
  %v5446 = vpop.f32.mrb[0].mxu0
  %5447 = vdwg.mxu0
  %5448 = vmatprep.subr.bf16.mxu0 %v1913
  %5449 = vmatpush1.bf16.msra.mxu0 %v1912
  %5450 = vmatprep.subr.bf16.mxu0 %v1917
  %5451 = vmatpush1.bf16.msra.mxu0 %v1916
  %5452 = vmatprep.subr.bf16.mxu0 %v1921
  %5453 = vmatpush1.bf16.msra.mxu0 %v1920
  %5454 = vmatprep.subr.bf16.mxu0 %v1925
  %5455 = vmatpush1.bf16.msra.mxu0 %v1924
  %5456 = vmatprep.subr.bf16.mxu0 %v1929
  %5457 = vmatpush1.bf16.msra.mxu0 %v1928
  %5458 = vmatprep.subr.bf16.mxu0 %v1933
  %5459 = vmatpush1.bf16.msra.mxu0 %v1932
  %5460 = vmatprep.subr.bf16.mxu0 %v1937
  %5461 = vmatpush1.bf16.msra.mxu0 %v1936
  %5462 = vmatprep.subr.bf16.mxu0 %v1941
  %5463 = vmatpush1.bf16.msra.mxu0 %v1940
  %5464 = vmatprep.subr.bf16.mxu0 %v1945
  %5465 = vmatpush1.bf16.msra.mxu0 %v1944
  %5466 = vmatprep.subr.bf16.mxu0 %v1949
  %5467 = vmatpush1.bf16.msra.mxu0 %v1948
  %5468 = vmatprep.subr.bf16.mxu0 %v1953
  %5469 = vmatpush1.bf16.msra.mxu0 %v1952
  %5470 = vmatprep.subr.bf16.mxu0 %v1957
  %5471 = vmatpush1.bf16.msra.mxu0 %v1956
  %5472 = vmatprep.subr.bf16.mxu0 %v1961
  %5473 = vmatpush1.bf16.msra.mxu0 %v1960
  %5474 = vmatprep.subr.bf16.mxu0 %v1965
  %5475 = vmatpush1.bf16.msra.mxu0 %v1964
  %5476 = vmatprep.subr.bf16.mxu0 %v1969
  %5477 = vmatpush1.bf16.msra.mxu0 %v1968
  %5478 = vmatprep.subr.bf16.mxu0 %v1973
  %5479 = vmatpush1.bf16.msra.mxu0 %v1972
  %5480 = vmatprep.mubr.bf16.mxu0 %v5324
  %5481 = vmatmul.mubr.bf16.gmra.mrb[0].mxu0 %v5323
  %v5482 = vpop.f32.mrb[0].mxu0
  %v5483 = vadd.f32 %v5442, %v5482
  %v5484 = vpop.f32.mrb[0].mxu0
  %v5485 = vadd.f32 %v5444, %v5484
  %v5486 = vpop.f32.mrb[0].mxu0
  %v5487 = vpop.f32.mrb[0].mxu0
  %5488 = vdwg.mxu0
  %5489 = vmatprep.subr.bf16.mxu0 %v1723
  %5490 = vmatpush1.bf16.msra.mxu0 %v1722
  %5491 = vmatprep.subr.bf16.mxu0 %v1727
  %5492 = vmatpush1.bf16.msra.mxu0 %v1726
  %5493 = vmatprep.subr.bf16.mxu0 %v1731
  %5494 = vmatpush1.bf16.msra.mxu0 %v1730
  %5495 = vmatprep.subr.bf16.mxu0 %v1735
  %5496 = vmatpush1.bf16.msra.mxu0 %v1734
  %5497 = vmatprep.subr.bf16.mxu0 %v1739
  %5498 = vmatpush1.bf16.msra.mxu0 %v1738
  %5499 = vmatprep.subr.bf16.mxu0 %v1743
  %5500 = vmatpush1.bf16.msra.mxu0 %v1742
  %5501 = vmatprep.subr.bf16.mxu0 %v1747
  %5502 = vmatpush1.bf16.msra.mxu0 %v1746
  %5503 = vmatprep.subr.bf16.mxu0 %v1751
  %5504 = vmatpush1.bf16.msra.mxu0 %v1750
  %5505 = vmatprep.subr.bf16.mxu0 %v1755
  %5506 = vmatpush1.bf16.msra.mxu0 %v1754
  %5507 = vmatprep.subr.bf16.mxu0 %v1759
  %5508 = vmatpush1.bf16.msra.mxu0 %v1758
  %5509 = vmatprep.subr.bf16.mxu0 %v1763
  %5510 = vmatpush1.bf16.msra.mxu0 %v1762
  %5511 = vmatprep.subr.bf16.mxu0 %v1767
  %5512 = vmatpush1.bf16.msra.mxu0 %v1766
  %5513 = vmatprep.subr.bf16.mxu0 %v1771
  %5514 = vmatpush1.bf16.msra.mxu0 %v1770
  %5515 = vmatprep.subr.bf16.mxu0 %v1775
  %5516 = vmatpush1.bf16.msra.mxu0 %v1774
  %5517 = vmatprep.subr.bf16.mxu0 %v1779
  %5518 = vmatpush1.bf16.msra.mxu0 %v1778
  %5519 = vmatprep.subr.bf16.mxu0 %v1783
  %5520 = vmatpush1.bf16.msra.mxu0 %v1782
  %5521 = vmatprep.mubr.bf16.mxu0 %v5318
  %5522 = vmatmul.mubr.bf16.gmra.mrb[0].mxu0 %v5317
  %v5523 = vpop.f32.mrb[0].mxu0
  %v5524 = vadd.f32 %v943, %v5523
  %v5525 = vpop.f32.mrb[0].mxu0
  %v5526 = vadd.f32 %v947, %v5525
  %v5527 = vpop.f32.mrb[0].mxu0
  %v5528 = vpop.f32.mrb[0].mxu0
  %5529 = vdwg.mxu0
  %5530 = vmatprep.subr.bf16.mxu0 %v1787
  %5531 = vmatpush1.bf16.msra.mxu0 %v1786
  %5532 = vmatprep.subr.bf16.mxu0 %v1791
  %5533 = vmatpush1.bf16.msra.mxu0 %v1790
  %5534 = vmatprep.subr.bf16.mxu0 %v1795
  %5535 = vmatpush1.bf16.msra.mxu0 %v1794
  %5536 = vmatprep.subr.bf16.mxu0 %v1799
  %5537 = vmatpush1.bf16.msra.mxu0 %v1798
  %5538 = vmatprep.subr.bf16.mxu0 %v1803
  %5539 = vmatpush1.bf16.msra.mxu0 %v1802
  %5540 = vmatprep.subr.bf16.mxu0 %v1807
  %5541 = vmatpush1.bf16.msra.mxu0 %v1806
  %5542 = vmatprep.subr.bf16.mxu0 %v1811
  %5543 = vmatpush1.bf16.msra.mxu0 %v1810
  %5544 = vmatprep.subr.bf16.mxu0 %v1815
  %5545 = vmatpush1.bf16.msra.mxu0 %v1814
  %5546 = vmatprep.subr.bf16.mxu0 %v1819
  %5547 = vmatpush1.bf16.msra.mxu0 %v1818
  %5548 = vmatprep.subr.bf16.mxu0 %v1823
  %5549 = vmatpush1.bf16.msra.mxu0 %v1822
  %5550 = vmatprep.subr.bf16.mxu0 %v1827
  %5551 = vmatpush1.bf16.msra.mxu0 %v1826
  %5552 = vmatprep.subr.bf16.mxu0 %v1831
  %5553 = vmatpush1.bf16.msra.mxu0 %v1830
  %5554 = vmatprep.subr.bf16.mxu0 %v1835
  %5555 = vmatpush1.bf16.msra.mxu0 %v1834
  %5556 = vmatprep.subr.bf16.mxu0 %v1839
  %5557 = vmatpush1.bf16.msra.mxu0 %v1838
  %5558 = vmatprep.subr.bf16.mxu0 %v1843
  %5559 = vmatpush1.bf16.msra.mxu0 %v1842
  %5560 = vmatprep.subr.bf16.mxu0 %v1847
  %5561 = vmatpush1.bf16.msra.mxu0 %v1846
  %5562 = vmatprep.mubr.bf16.mxu0 %v5320
  %5563 = vmatmul.mubr.bf16.gmra.mrb[0].mxu0 %v5319
  %v5564 = vpop.f32.mrb[0].mxu0
  %v5565 = vadd.f32 %v5524, %v5564
  %v5566 = vpop.f32.mrb[0].mxu0
  %v5567 = vadd.f32 %v5526, %v5566
  %v5568 = vpop.f32.mrb[0].mxu0
  %v5569 = vpop.f32.mrb[0].mxu0
  %5570 = vdwg.mxu0
  %5571 = vmatprep.subr.bf16.mxu0 %v1851
  %5572 = vmatpush1.bf16.msra.mxu0 %v1850
  %5573 = vmatprep.subr.bf16.mxu0 %v1855
  %5574 = vmatpush1.bf16.msra.mxu0 %v1854
  %5575 = vmatprep.subr.bf16.mxu0 %v1859
  %5576 = vmatpush1.bf16.msra.mxu0 %v1858
  %5577 = vmatprep.subr.bf16.mxu0 %v1863
  %5578 = vmatpush1.bf16.msra.mxu0 %v1862
  %5579 = vmatprep.subr.bf16.mxu0 %v1867
  %5580 = vmatpush1.bf16.msra.mxu0 %v1866
  %5581 = vmatprep.subr.bf16.mxu0 %v1871
  %5582 = vmatpush1.bf16.msra.mxu0 %v1870
  %5583 = vmatprep.subr.bf16.mxu0 %v1875
  %5584 = vmatpush1.bf16.msra.mxu0 %v1874
  %5585 = vmatprep.subr.bf16.mxu0 %v1879
  %5586 = vmatpush1.bf16.msra.mxu0 %v1878
  %5587 = vmatprep.subr.bf16.mxu0 %v1883
  %5588 = vmatpush1.bf16.msra.mxu0 %v1882
  %5589 = vmatprep.subr.bf16.mxu0 %v1887
  %5590 = vmatpush1.bf16.msra.mxu0 %v1886
  %5591 = vmatprep.subr.bf16.mxu0 %v1891
  %5592 = vmatpush1.bf16.msra.mxu0 %v1890
  %5593 = vmatprep.subr.bf16.mxu0 %v1895
  %5594 = vmatpush1.bf16.msra.mxu0 %v1894
  %5595 = vmatprep.subr.bf16.mxu0 %v1899
  %5596 = vmatpush1.bf16.msra.mxu0 %v1898
  %5597 = vmatprep.subr.bf16.mxu0 %v1903
  %5598 = vmatpush1.bf16.msra.mxu0 %v1902
  %5599 = vmatprep.subr.bf16.mxu0 %v1907
  %5600 = vmatpush1.bf16.msra.mxu0 %v1906
  %5601 = vmatprep.subr.bf16.mxu0 %v1911
  %5602 = vmatpush1.bf16.msra.mxu0 %v1910
  %5603 = vmatprep.mubr.bf16.mxu0 %v5322
  %5604 = vmatmul.mubr.bf16.gmra.mrb[0].mxu0 %v5321
  %v5605 = vpop.f32.mrb[0].mxu0
  %v5606 = vadd.f32 %v5565, %v5605
  %v5607 = vpop.f32.mrb[0].mxu0
  %v5608 = vadd.f32 %v5567, %v5607
  %v5609 = vpop.f32.mrb[0].mxu0
  %v5610 = vpop.f32.mrb[0].mxu0
  %5611 = vdwg.mxu0
  %5612 = vmatprep.subr.bf16.mxu0 %v1915
  %5613 = vmatpush1.bf16.msra.mxu0 %v1914
  %5614 = vmatprep.subr.bf16.mxu0 %v1919
  %5615 = vmatpush1.bf16.msra.mxu0 %v1918
  %5616 = vmatprep.subr.bf16.mxu0 %v1923
  %5617 = vmatpush1.bf16.msra.mxu0 %v1922
  %5618 = vmatprep.subr.bf16.mxu0 %v1927
  %5619 = vmatpush1.bf16.msra.mxu0 %v1926
  %5620 = vmatprep.subr.bf16.mxu0 %v1931
  %5621 = vmatpush1.bf16.msra.mxu0 %v1930
  %5622 = vmatprep.subr.bf16.mxu0 %v1935
  %5623 = vmatpush1.bf16.msra.mxu0 %v1934
  %5624 = vmatprep.subr.bf16.mxu0 %v1939
  %5625 = vmatpush1.bf16.msra.mxu0 %v1938
  %5626 = vmatprep.subr.bf16.mxu0 %v1943
  %5627 = vmatpush1.bf16.msra.mxu0 %v1942
  %5628 = vmatprep.subr.bf16.mxu0 %v1947
  %5629 = vmatpush1.bf16.msra.mxu0 %v1946
  %5630 = vmatprep.subr.bf16.mxu0 %v1951
  %5631 = vmatpush1.bf16.msra.mxu0 %v1950
  %5632 = vmatprep.subr.bf16.mxu0 %v1955
  %5633 = vmatpush1.bf16.msra.mxu0 %v1954
  %5634 = vmatprep.subr.bf16.mxu0 %v1959
  %5635 = vmatpush1.bf16.msra.mxu0 %v1958
  %5636 = vmatprep.subr.bf16.mxu0 %v1963
  %5637 = vmatpush1.bf16.msra.mxu0 %v1962
  %5638 = vmatprep.subr.bf16.mxu0 %v1967
  %5639 = vmatpush1.bf16.msra.mxu0 %v1966
  %5640 = vmatprep.subr.bf16.mxu0 %v1971
  %5641 = vmatpush1.bf16.msra.mxu0 %v1970
  %5642 = vmatprep.subr.bf16.mxu0 %v1975
  %5643 = vmatpush1.bf16.msra.mxu0 %v1974
  %5644 = vmatprep.mubr.bf16.mxu0 %v5324
  %5645 = vmatmul.mubr.bf16.gmra.mrb[0].mxu0 %v5323
  %v5646 = vpop.f32.mrb[0].mxu0
  %v5647 = vadd.f32 %v5606, %v5646
  %v5648 = vpop.f32.mrb[0].mxu0
  %v5649 = vadd.f32 %v5608, %v5648
  %v5650 = vpop.f32.mrb[0].mxu0
  %v5651 = vpop.f32.mrb[0].mxu0
  %5652 = vdwg.mxu0
  %v5653 = vmax.f32 %v5483, 0.0
  %v5654 = vmax.f32 %v5485, 0.0
  %v5655 = vmax.f32 %v5647, 0.0
  %v5656 = vmax.f32 %v5649, 0.0
  %v5657 = vpack.c.bf16 %v5653, %v5653
  %v5658 = vpack.c.bf16 %v5654, %v5654
  %v5659 = vpack.c.bf16 %v5655, %v5655
  %v5660 = vpack.c.bf16 %v5656, %v5656
  %5661 = vmatprep.subr.bf16.mxu0 %v3103
  %5662 = vmatpush1.bf16.msra.mxu0 %v3102
  %5663 = vmatprep.subr.bf16.mxu0 %v3107
  %5664 = vmatpush1.bf16.msra.mxu0 %v3106
  %5665 = vmatprep.subr.bf16.mxu0 %v3111
  %5666 = vmatpush1.bf16.msra.mxu0 %v3110
  %5667 = vmatprep.subr.bf16.mxu0 %v3115
  %5668 = vmatpush1.bf16.msra.mxu0 %v3114
  %5669 = vmatprep.subr.bf16.mxu0 %v3119
  %5670 = vmatpush1.bf16.msra.mxu0 %v3118
  %5671 = vmatprep.subr.bf16.mxu0 %v3123
  %5672 = vmatpush1.bf16.msra.mxu0 %v3122
  %5673 = vmatprep.subr.bf16.mxu0 %v3127
  %5674 = vmatpush1.bf16.msra.mxu0 %v3126
  %5675 = vmatprep.subr.bf16.mxu0 %v3131
  %5676 = vmatpush1.bf16.msra.mxu0 %v3130
  %5677 = vmatprep.subr.bf16.mxu0 %v3135
  %5678 = vmatpush1.bf16.msra.mxu0 %v3134
  %5679 = vmatprep.subr.bf16.mxu0 %v3139
  %5680 = vmatpush1.bf16.msra.mxu0 %v3138
  %5681 = vmatprep.subr.bf16.mxu0 %v3143
  %5682 = vmatpush1.bf16.msra.mxu0 %v3142
  %5683 = vmatprep.subr.bf16.mxu0 %v3147
  %5684 = vmatpush1.bf16.msra.mxu0 %v3146
  %5685 = vmatprep.subr.bf16.mxu0 %v3151
  %5686 = vmatpush1.bf16.msra.mxu0 %v3150
  %5687 = vmatprep.subr.bf16.mxu0 %v3155
  %5688 = vmatpush1.bf16.msra.mxu0 %v3154
  %5689 = vmatprep.subr.bf16.mxu0 %v3159
  %5690 = vmatpush1.bf16.msra.mxu0 %v3158
  %5691 = vmatprep.subr.bf16.mxu0 %v3163
  %5692 = vmatpush1.bf16.msra.mxu0 %v3162
  %5693 = vmatprep.mubr.bf16.mxu0 %v5658
  %5694 = vmatmul.mubr.bf16.gmra.mrb[0].mxu0 %v5657
  %v5695 = vpop.f32.mrb[0].mxu0
  %v5696 = vadd.f32 %v2701, %v5695
  %v5697 = vpop.f32.mrb[0].mxu0
  %v5698 = vadd.f32 %v2705, %v5697
  %v5699 = vpop.f32.mrb[0].mxu0
  %v5700 = vpop.f32.mrb[0].mxu0
  %5701 = vdwg.mxu0
  %5702 = vmatprep.subr.bf16.mxu0 %v3167
  %5703 = vmatpush1.bf16.msra.mxu0 %v3166
  %5704 = vmatprep.subr.bf16.mxu0 %v3171
  %5705 = vmatpush1.bf16.msra.mxu0 %v3170
  %5706 = vmatprep.subr.bf16.mxu0 %v3175
  %5707 = vmatpush1.bf16.msra.mxu0 %v3174
  %5708 = vmatprep.subr.bf16.mxu0 %v3179
  %5709 = vmatpush1.bf16.msra.mxu0 %v3178
  %5710 = vmatprep.subr.bf16.mxu0 %v3183
  %5711 = vmatpush1.bf16.msra.mxu0 %v3182
  %5712 = vmatprep.subr.bf16.mxu0 %v3187
  %5713 = vmatpush1.bf16.msra.mxu0 %v3186
  %5714 = vmatprep.subr.bf16.mxu0 %v3191
  %5715 = vmatpush1.bf16.msra.mxu0 %v3190
  %5716 = vmatprep.subr.bf16.mxu0 %v3195
  %5717 = vmatpush1.bf16.msra.mxu0 %v3194
  %5718 = vmatprep.subr.bf16.mxu0 %v3199
  %5719 = vmatpush1.bf16.msra.mxu0 %v3198
  %5720 = vmatprep.subr.bf16.mxu0 %v3203
  %5721 = vmatpush1.bf16.msra.mxu0 %v3202
  %5722 = vmatprep.subr.bf16.mxu0 %v3207
  %5723 = vmatpush1.bf16.msra.mxu0 %v3206
  %5724 = vmatprep.subr.bf16.mxu0 %v3211
  %5725 = vmatpush1.bf16.msra.mxu0 %v3210
  %5726 = vmatprep.subr.bf16.mxu0 %v3215
  %5727 = vmatpush1.bf16.msra.mxu0 %v3214
  %5728 = vmatprep.subr.bf16.mxu0 %v3219
  %5729 = vmatpush1.bf16.msra.mxu0 %v3218
  %5730 = vmatprep.subr.bf16.mxu0 %v3223
  %5731 = vmatpush1.bf16.msra.mxu0 %v3222
  %5732 = vmatprep.subr.bf16.mxu0 %v3227
  %5733 = vmatpush1.bf16.msra.mxu0 %v3226
  %5734 = vmatprep.mubr.bf16.mxu0 %v5660
  %5735 = vmatmul.mubr.bf16.gmra.mrb[0].mxu0 %v5659
  %v5736 = vpop.f32.mrb[0].mxu0
  %v5737 = vadd.f32 %v5696, %v5736
  %v5738 = vpop.f32.mrb[0].mxu0
  %v5739 = vadd.f32 %v5698, %v5738
  %v5740 = vpop.f32.mrb[0].mxu0
  %v5741 = vpop.f32.mrb[0].mxu0
  %5742 = vdwg.mxu0
  %5743 = vmatprep.subr.bf16.mxu0 %v3105
  %5744 = vmatpush1.bf16.msra.mxu0 %v3104
  %5745 = vmatprep.subr.bf16.mxu0 %v3109
  %5746 = vmatpush1.bf16.msra.mxu0 %v3108
  %5747 = vmatprep.subr.bf16.mxu0 %v3113
  %5748 = vmatpush1.bf16.msra.mxu0 %v3112
  %5749 = vmatprep.subr.bf16.mxu0 %v3117
  %5750 = vmatpush1.bf16.msra.mxu0 %v3116
  %5751 = vmatprep.subr.bf16.mxu0 %v3121
  %5752 = vmatpush1.bf16.msra.mxu0 %v3120
  %5753 = vmatprep.subr.bf16.mxu0 %v3125
  %5754 = vmatpush1.bf16.msra.mxu0 %v3124
  %5755 = vmatprep.subr.bf16.mxu0 %v3129
  %5756 = vmatpush1.bf16.msra.mxu0 %v3128
  %5757 = vmatprep.subr.bf16.mxu0 %v3133
  %5758 = vmatpush1.bf16.msra.mxu0 %v3132
  %5759 = vmatprep.subr.bf16.mxu0 %v3137
  %5760 = vmatpush1.bf16.msra.mxu0 %v3136
  %5761 = vmatprep.subr.bf16.mxu0 %v3141
  %5762 = vmatpush1.bf16.msra.mxu0 %v3140
  %5763 = vmatprep.subr.bf16.mxu0 %v3145
  %5764 = vmatpush1.bf16.msra.mxu0 %v3144
  %5765 = vmatprep.subr.bf16.mxu0 %v3149
  %5766 = vmatpush1.bf16.msra.mxu0 %v3148
  %5767 = vmatprep.subr.bf16.mxu0 %v3153
  %5768 = vmatpush1.bf16.msra.mxu0 %v3152
  %5769 = vmatprep.subr.bf16.mxu0 %v3157
  %5770 = vmatpush1.bf16.msra.mxu0 %v3156
  %5771 = vmatprep.subr.bf16.mxu0 %v3161
  %5772 = vmatpush1.bf16.msra.mxu0 %v3160
  %5773 = vmatprep.subr.bf16.mxu0 %v3165
  %5774 = vmatpush1.bf16.msra.mxu0 %v3164
  %5775 = vmatprep.mubr.bf16.mxu0 %v5658
  %5776 = vmatmul.mubr.bf16.gmra.mrb[0].mxu0 %v5657
  %v5777 = vpop.f32.mrb[0].mxu0
  %v5778 = vadd.f32 %v2709, %v5777
  %v5779 = vpop.f32.mrb[0].mxu0
  %v5780 = vadd.f32 %v2713, %v5779
  %v5781 = vpop.f32.mrb[0].mxu0
  %v5782 = vpop.f32.mrb[0].mxu0
  %5783 = vdwg.mxu0
  %5784 = vmatprep.subr.bf16.mxu0 %v3169
  %5785 = vmatpush1.bf16.msra.mxu0 %v3168
  %5786 = vmatprep.subr.bf16.mxu0 %v3173
  %5787 = vmatpush1.bf16.msra.mxu0 %v3172
  %5788 = vmatprep.subr.bf16.mxu0 %v3177
  %5789 = vmatpush1.bf16.msra.mxu0 %v3176
  %5790 = vmatprep.subr.bf16.mxu0 %v3181
  %5791 = vmatpush1.bf16.msra.mxu0 %v3180
  %5792 = vmatprep.subr.bf16.mxu0 %v3185
  %5793 = vmatpush1.bf16.msra.mxu0 %v3184
  %5794 = vmatprep.subr.bf16.mxu0 %v3189
  %5795 = vmatpush1.bf16.msra.mxu0 %v3188
  %5796 = vmatprep.subr.bf16.mxu0 %v3193
  %5797 = vmatpush1.bf16.msra.mxu0 %v3192
  %5798 = vmatprep.subr.bf16.mxu0 %v3197
  %5799 = vmatpush1.bf16.msra.mxu0 %v3196
  %5800 = vmatprep.subr.bf16.mxu0 %v3201
  %5801 = vmatpush1.bf16.msra.mxu0 %v3200
  %5802 = vmatprep.subr.bf16.mxu0 %v3205
  %5803 = vmatpush1.bf16.msra.mxu0 %v3204
  %5804 = vmatprep.subr.bf16.mxu0 %v3209
  %5805 = vmatpush1.bf16.msra.mxu0 %v3208
  %5806 = vmatprep.subr.bf16.mxu0 %v3213
  %5807 = vmatpush1.bf16.msra.mxu0 %v3212
  %5808 = vmatprep.subr.bf16.mxu0 %v3217
  %5809 = vmatpush1.bf16.msra.mxu0 %v3216
  %5810 = vmatprep.subr.bf16.mxu0 %v3221
  %5811 = vmatpush1.bf16.msra.mxu0 %v3220
  %5812 = vmatprep.subr.bf16.mxu0 %v3225
  %5813 = vmatpush1.bf16.msra.mxu0 %v3224
  %5814 = vmatprep.subr.bf16.mxu0 %v3229
  %5815 = vmatpush1.bf16.msra.mxu0 %v3228
  %5816 = vmatprep.mubr.bf16.mxu0 %v5660
  %5817 = vmatmul.mubr.bf16.gmra.mrb[0].mxu0 %v5659
  %v5818 = vpop.f32.mrb[0].mxu0
  %v5819 = vadd.f32 %v5778, %v5818
  %v5820 = vpop.f32.mrb[0].mxu0
  %v5821 = vadd.f32 %v5780, %v5820
  %v5822 = vpop.f32.mrb[0].mxu0
  %v5823 = vpop.f32.mrb[0].mxu0
  %5824 = vdwg.mxu0
  %v5825 = vmax.f32 %v5737, 0.0
  %v5826 = vmax.f32 %v5739, 0.0
  %v5827 = vmax.f32 %v5819, 0.0
  %v5828 = vmax.f32 %v5821, 0.0
  %v5829 = vpack.c.bf16 %v5825, %v5825
  %v5830 = vpack.c.bf16 %v5826, %v5826
  %v5831 = vpack.c.bf16 %v5827, %v5827
  %v5832 = vpack.c.bf16 %v5828, %v5828
  %5833 = vmatprep.subr.bf16.mxu0 %v3799
  %5834 = vmatpush1.bf16.msra.mxu0 %v3798
  %5835 = vmatprep.subr.bf16.mxu0 %v3801
  %5836 = vmatpush1.bf16.msra.mxu0 %v3800
  %5837 = vmatprep.subr.bf16.mxu0 %v3803
  %5838 = vmatpush1.bf16.msra.mxu0 %v3802
  %5839 = vmatprep.subr.bf16.mxu0 %v3805
  %5840 = vmatpush1.bf16.msra.mxu0 %v3804
  %5841 = vmatprep.subr.bf16.mxu0 %v3807
  %5842 = vmatpush1.bf16.msra.mxu0 %v3806
  %5843 = vmatprep.subr.bf16.mxu0 %v3809
  %5844 = vmatpush1.bf16.msra.mxu0 %v3808
  %5845 = vmatprep.subr.bf16.mxu0 %v3811
  %5846 = vmatpush1.bf16.msra.mxu0 %v3810
  %5847 = vmatprep.subr.bf16.mxu0 %v3813
  %5848 = vmatpush1.bf16.msra.mxu0 %v3812
  %5849 = vmatprep.subr.bf16.mxu0 %v3815
  %5850 = vmatpush1.bf16.msra.mxu0 %v3814
  %5851 = vmatprep.subr.bf16.mxu0 %v3817
  %5852 = vmatpush1.bf16.msra.mxu0 %v3816
  %5853 = vmatprep.subr.bf16.mxu0 %v3819
  %5854 = vmatpush1.bf16.msra.mxu0 %v3818
  %5855 = vmatprep.subr.bf16.mxu0 %v3821
  %5856 = vmatpush1.bf16.msra.mxu0 %v3820
  %5857 = vmatprep.subr.bf16.mxu0 %v3823
  %5858 = vmatpush1.bf16.msra.mxu0 %v3822
  %5859 = vmatprep.subr.bf16.mxu0 %v3825
  %5860 = vmatpush1.bf16.msra.mxu0 %v3824
  %5861 = vmatprep.subr.bf16.mxu0 %v3827
  %5862 = vmatpush1.bf16.msra.mxu0 %v3826
  %5863 = vmatprep.subr.bf16.mxu0 %v3829
  %5864 = vmatpush1.bf16.msra.mxu0 %v3828
  %5865 = vmatprep.mubr.bf16.mxu0 %v5830
  %5866 = vmatmul.mubr.bf16.gmra.mrb[0].mxu0 %v5829
  %v5867 = vpop.f32.mrb[0].mxu0
  %v5868 = vadd.f32 %v3599, %v5867
  %v5869 = vpop.f32.mrb[0].mxu0
  %v5870 = vadd.f32 %v3603, %v5869
  %v5871 = vpop.f32.mrb[0].mxu0
  %v5872 = vpop.f32.mrb[0].mxu0
  %5873 = vdwg.mxu0
  %5874 = vmatprep.subr.bf16.mxu0 %v3831
  %5875 = vmatpush1.bf16.msra.mxu0 %v3830
  %5876 = vmatprep.subr.bf16.mxu0 %v3833
  %5877 = vmatpush1.bf16.msra.mxu0 %v3832
  %5878 = vmatprep.subr.bf16.mxu0 %v3835
  %5879 = vmatpush1.bf16.msra.mxu0 %v3834
  %5880 = vmatprep.subr.bf16.mxu0 %v3837
  %5881 = vmatpush1.bf16.msra.mxu0 %v3836
  %5882 = vmatprep.subr.bf16.mxu0 %v3839
  %5883 = vmatpush1.bf16.msra.mxu0 %v3838
  %5884 = vmatprep.subr.bf16.mxu0 %v3841
  %5885 = vmatpush1.bf16.msra.mxu0 %v3840
  %5886 = vmatprep.subr.bf16.mxu0 %v3843
  %5887 = vmatpush1.bf16.msra.mxu0 %v3842
  %5888 = vmatprep.subr.bf16.mxu0 %v3845
  %5889 = vmatpush1.bf16.msra.mxu0 %v3844
  %5890 = vmatprep.subr.bf16.mxu0 %v3847
  %5891 = vmatpush1.bf16.msra.mxu0 %v3846
  %5892 = vmatprep.subr.bf16.mxu0 %v3849
  %5893 = vmatpush1.bf16.msra.mxu0 %v3848
  %5894 = vmatprep.subr.bf16.mxu0 %v3851
  %5895 = vmatpush1.bf16.msra.mxu0 %v3850
  %5896 = vmatprep.subr.bf16.mxu0 %v3853
  %5897 = vmatpush1.bf16.msra.mxu0 %v3852
  %5898 = vmatprep.subr.bf16.mxu0 %v3855
  %5899 = vmatpush1.bf16.msra.mxu0 %v3854
  %5900 = vmatprep.subr.bf16.mxu0 %v3857
  %5901 = vmatpush1.bf16.msra.mxu0 %v3856
  %5902 = vmatprep.subr.bf16.mxu0 %v3859
  %5903 = vmatpush1.bf16.msra.mxu0 %v3858
  %5904 = vmatprep.subr.bf16.mxu0 %v3861
  %5905 = vmatpush1.bf16.msra.mxu0 %v3860
  %5906 = vmatprep.mubr.bf16.mxu0 %v5832
  %5907 = vmatmul.mubr.bf16.gmra.mrb[0].mxu0 %v5831
  %v5908 = vpop.f32.mrb[0].mxu0
  %v5909 = vadd.f32 %v5868, %v5908
  %v5910 = vpop.f32.mrb[0].mxu0
  %v5911 = vadd.f32 %v5870, %v5910
  %v5912 = vpop.f32.mrb[0].mxu0
  %v5913 = vpop.f32.mrb[0].mxu0
  %5914 = vdwg.mxu0
  %v5915 = vmax.f32 %v5909, 0.0
  %v5916 = vmax.f32 %v5911, 0.0
  %v5917 = vpack.c.bf16 %v5915, %v5915
  %v5918 = vpack.c.bf16 %v5916, %v5916
  %5919 = vmatprep.subr.bf16.mxu0 0
  %5920 = vmatpush1.bf16.msra.mxu0 %v4115
  %5921 = vmatprep.subr.bf16.mxu0 0
  %5922 = vmatpush1.bf16.msra.mxu0 %v4116
  %5923 = vmatprep.subr.bf16.mxu0 0
  %5924 = vmatpush1.bf16.msra.mxu0 %v4117
  %5925 = vmatprep.subr.bf16.mxu0 0
  %5926 = vmatpush1.bf16.msra.mxu0 %v4118
  %5927 = vmatprep.subr.bf16.mxu0 0
  %5928 = vmatpush1.bf16.msra.mxu0 %v4119
  %5929 = vmatprep.subr.bf16.mxu0 0
  %5930 = vmatpush1.bf16.msra.mxu0 %v4120
  %5931 = vmatprep.subr.bf16.mxu0 0
  %5932 = vmatpush1.bf16.msra.mxu0 %v4121
  %5933 = vmatprep.subr.bf16.mxu0 0
  %5934 = vmatpush1.bf16.msra.mxu0 %v4122
  %5935 = vmatprep.subr.bf16.mxu0 0
  %5936 = vmatpush1.bf16.msra.mxu0 %v4123
  %5937 = vmatprep.subr.bf16.mxu0 0
  %5938 = vmatpush1.bf16.msra.mxu0 %v4124
  %5939 = vmatprep.subr.bf16.mxu0 0
  %5940 = vmatpush1.bf16.msra.mxu0 %v4125
  %5941 = vmatprep.subr.bf16.mxu0 0
  %5942 = vmatpush1.bf16.msra.mxu0 %v4126
  %5943 = vmatprep.subr.bf16.mxu0 0
  %5944 = vmatpush1.bf16.msra.mxu0 %v4127
  %5945 = vmatprep.subr.bf16.mxu0 0
  %5946 = vmatpush1.bf16.msra.mxu0 %v4128
  %5947 = vmatprep.subr.bf16.mxu0 0
  %5948 = vmatpush1.bf16.msra.mxu0 %v4129
  %5949 = vmatprep.subr.bf16.mxu0 0
  %5950 = vmatpush1.bf16.msra.mxu0 %v4130
  %5951 = vmatprep.mubr.bf16.mxu0 %v5918
  %5952 = vmatmul.mubr.bf16.gmra.mrb[0].mxu0 %v5917
  %v5953 = vpop.f32.mrb[0].mxu0
  %v5954 = vadd.f32 %v4049, %v5953
  %v5955 = vpop.f32.mrb[0].mxu0
  %v5956 = vpop.f32.mrb[0].mxu0
  %v5957 = vpop.f32.mrb[0].mxu0
  %5958 = vdwg.mxu0
  %v5959 = vmul.f32 %v5954, 0.7114467
  %v5960 = vsub.f32 %v5084, %v5959
  %v5961 = vmul.f32 %v5960, 1.4230013
  %v5962 = vmax.f32 %v5961, -1.0
  %v5963 = vmin.f32 %v5962, 1.0
  %v5964 = vmul.f32 %v5963, 0.7581454
  %v5965 = vmul.f32 %v5084, 0.23079269
  %v5966 = vadd.f32 %v5964, %v5965
  %s5967 = scalar_lea.vmem %s2, 24
  %v5968 = vld [vmem:[%s5967] sm:$0xff]
  %v5969 = vmul.f32 %v5968, 0.3550032
  %v5970 = vadd.f32 %v5966, %v5969
  %s5971 = scalar_lea.vmem %s0, 24
  %v5972 = vld [vmem:[%s5971] sm:$0xff]
  %v5974 = vlaneseq
  %v5975 = vshrl.u32 %v5974, 7
  %v5976 = vsub.s32 0, %v5975
  %v5977 = vrot.slane %v5972, %v5976
  %v5978 = vlaneseq
  %v5979 = vshrl.u32 %v5978, 7
  %v5980 = vsub.s32 1, %v5979
  %v5981 = vrot.slane %v5972, %v5980
  %v5982 = vlaneseq
  %v5983 = vshrl.u32 %v5982, 7
  %v5984 = vsub.s32 2, %v5983
  %v5985 = vrot.slane %v5972, %v5984
  %v5986 = vlaneseq
  %v5987 = vshrl.u32 %v5986, 7
  %v5988 = vsub.s32 3, %v5987
  %v5989 = vrot.slane %v5972, %v5988
  %v5990 = vlaneseq
  %v5991 = vshrl.u32 %v5990, 7
  %v5992 = vsub.s32 4, %v5991
  %v5993 = vrot.slane %v5972, %v5992
  %v5994 = vlaneseq
  %v5995 = vshrl.u32 %v5994, 7
  %v5996 = vsub.s32 5, %v5995
  %v5997 = vrot.slane %v5972, %v5996
  %v5998 = vlaneseq
  %v5999 = vshrl.u32 %v5998, 7
  %v6000 = vsub.s32 6, %v5999
  %v6001 = vrot.slane %v5972, %v6000
  %v6002 = vlaneseq
  %v6003 = vshrl.u32 %v6002, 7
  %v6004 = vsub.s32 7, %v6003
  %v6005 = vrot.slane %v5972, %v6004
  %v6014 = vadd.f32 %v5977, %v43
  %v6015 = vadd.f32 %v5981, %v44
  %v6016 = vadd.f32 %v5985, %v45
  %v6017 = vadd.f32 %v5989, %v46
  %v6018 = vadd.f32 %v5993, %v47
  %v6019 = vadd.f32 %v5997, %v48
  %v6020 = vadd.f32 %v6001, %v49
  %v6021 = vadd.f32 %v6005, %v50
  %v6022 = vpack.c.bf16 %v5970, %v5970
  %6023 = vmatprep.subr.bf16.mxu0 %v359
  %6024 = vmatpush1.bf16.msra.mxu0 %v358
  %6025 = vmatprep.subr.bf16.mxu0 %v367
  %6026 = vmatpush1.bf16.msra.mxu0 %v366
  %6027 = vmatprep.subr.bf16.mxu0 %v375
  %6028 = vmatpush1.bf16.msra.mxu0 %v374
  %6029 = vmatprep.subr.bf16.mxu0 %v383
  %6030 = vmatpush1.bf16.msra.mxu0 %v382
  %6031 = vmatprep.subr.bf16.mxu0 %v391
  %6032 = vmatpush1.bf16.msra.mxu0 %v390
  %6033 = vmatprep.subr.bf16.mxu0 %v399
  %6034 = vmatpush1.bf16.msra.mxu0 %v398
  %6035 = vmatprep.subr.bf16.mxu0 %v407
  %6036 = vmatpush1.bf16.msra.mxu0 %v406
  %6037 = vmatprep.subr.bf16.mxu0 %v415
  %6038 = vmatpush1.bf16.msra.mxu0 %v414
  %6039 = vmatprep.subr.bf16.mxu0 0
  %6040 = vmatpush1.bf16.msra.mxu0 0
  %6041 = vmatprep.subr.bf16.mxu0 0
  %6042 = vmatpush1.bf16.msra.mxu0 0
  %6043 = vmatprep.subr.bf16.mxu0 0
  %6044 = vmatpush1.bf16.msra.mxu0 0
  %6045 = vmatprep.subr.bf16.mxu0 0
  %6046 = vmatpush1.bf16.msra.mxu0 0
  %6047 = vmatprep.subr.bf16.mxu0 0
  %6048 = vmatpush1.bf16.msra.mxu0 0
  %6049 = vmatprep.subr.bf16.mxu0 0
  %6050 = vmatpush1.bf16.msra.mxu0 0
  %6051 = vmatprep.subr.bf16.mxu0 0
  %6052 = vmatpush1.bf16.msra.mxu0 0
  %6053 = vmatprep.subr.bf16.mxu0 0
  %6054 = vmatpush1.bf16.msra.mxu0 0
  %6055 = vmatprep.mubr.bf16.mxu0 0
  %6056 = vmatmul.mubr.bf16.gmra.mrb[0].mxu0 %v6022
  %v6057 = vpop.f32.mrb[0].mxu0
  %v6058 = vadd.f32 0.0, %v6057
  %v6059 = vpop.f32.mrb[0].mxu0
  %v6060 = vadd.f32 0.0, %v6059
  %v6061 = vpop.f32.mrb[0].mxu0
  %v6062 = vpop.f32.mrb[0].mxu0
  %6063 = vdwg.mxu0
  %6064 = vmatprep.subr.bf16.mxu0 %v361
  %6065 = vmatpush1.bf16.msra.mxu0 %v360
  %6066 = vmatprep.subr.bf16.mxu0 %v369
  %6067 = vmatpush1.bf16.msra.mxu0 %v368
  %6068 = vmatprep.subr.bf16.mxu0 %v377
  %6069 = vmatpush1.bf16.msra.mxu0 %v376
  %6070 = vmatprep.subr.bf16.mxu0 %v385
  %6071 = vmatpush1.bf16.msra.mxu0 %v384
  %6072 = vmatprep.subr.bf16.mxu0 %v393
  %6073 = vmatpush1.bf16.msra.mxu0 %v392
  %6074 = vmatprep.subr.bf16.mxu0 %v401
  %6075 = vmatpush1.bf16.msra.mxu0 %v400
  %6076 = vmatprep.subr.bf16.mxu0 %v409
  %6077 = vmatpush1.bf16.msra.mxu0 %v408
  %6078 = vmatprep.subr.bf16.mxu0 %v417
  %6079 = vmatpush1.bf16.msra.mxu0 %v416
  %6080 = vmatprep.subr.bf16.mxu0 0
  %6081 = vmatpush1.bf16.msra.mxu0 0
  %6082 = vmatprep.subr.bf16.mxu0 0
  %6083 = vmatpush1.bf16.msra.mxu0 0
  %6084 = vmatprep.subr.bf16.mxu0 0
  %6085 = vmatpush1.bf16.msra.mxu0 0
  %6086 = vmatprep.subr.bf16.mxu0 0
  %6087 = vmatpush1.bf16.msra.mxu0 0
  %6088 = vmatprep.subr.bf16.mxu0 0
  %6089 = vmatpush1.bf16.msra.mxu0 0
  %6090 = vmatprep.subr.bf16.mxu0 0
  %6091 = vmatpush1.bf16.msra.mxu0 0
  %6092 = vmatprep.subr.bf16.mxu0 0
  %6093 = vmatpush1.bf16.msra.mxu0 0
  %6094 = vmatprep.subr.bf16.mxu0 0
  %6095 = vmatpush1.bf16.msra.mxu0 0
  %6096 = vmatprep.mubr.bf16.mxu0 0
  %6097 = vmatmul.mubr.bf16.gmra.mrb[0].mxu0 %v6022
  %v6098 = vpop.f32.mrb[0].mxu0
  %v6099 = vadd.f32 0.0, %v6098
  %v6100 = vpop.f32.mrb[0].mxu0
  %v6101 = vadd.f32 0.0, %v6100
  %v6102 = vpop.f32.mrb[0].mxu0
  %v6103 = vpop.f32.mrb[0].mxu0
  %6104 = vdwg.mxu0
  %6105 = vmatprep.subr.bf16.mxu0 %v363
  %6106 = vmatpush1.bf16.msra.mxu0 %v362
  %6107 = vmatprep.subr.bf16.mxu0 %v371
  %6108 = vmatpush1.bf16.msra.mxu0 %v370
  %6109 = vmatprep.subr.bf16.mxu0 %v379
  %6110 = vmatpush1.bf16.msra.mxu0 %v378
  %6111 = vmatprep.subr.bf16.mxu0 %v387
  %6112 = vmatpush1.bf16.msra.mxu0 %v386
  %6113 = vmatprep.subr.bf16.mxu0 %v395
  %6114 = vmatpush1.bf16.msra.mxu0 %v394
  %6115 = vmatprep.subr.bf16.mxu0 %v403
  %6116 = vmatpush1.bf16.msra.mxu0 %v402
  %6117 = vmatprep.subr.bf16.mxu0 %v411
  %6118 = vmatpush1.bf16.msra.mxu0 %v410
  %6119 = vmatprep.subr.bf16.mxu0 %v419
  %6120 = vmatpush1.bf16.msra.mxu0 %v418
  %6121 = vmatprep.subr.bf16.mxu0 0
  %6122 = vmatpush1.bf16.msra.mxu0 0
  %6123 = vmatprep.subr.bf16.mxu0 0
  %6124 = vmatpush1.bf16.msra.mxu0 0
  %6125 = vmatprep.subr.bf16.mxu0 0
  %6126 = vmatpush1.bf16.msra.mxu0 0
  %6127 = vmatprep.subr.bf16.mxu0 0
  %6128 = vmatpush1.bf16.msra.mxu0 0
  %6129 = vmatprep.subr.bf16.mxu0 0
  %6130 = vmatpush1.bf16.msra.mxu0 0
  %6131 = vmatprep.subr.bf16.mxu0 0
  %6132 = vmatpush1.bf16.msra.mxu0 0
  %6133 = vmatprep.subr.bf16.mxu0 0
  %6134 = vmatpush1.bf16.msra.mxu0 0
  %6135 = vmatprep.subr.bf16.mxu0 0
  %6136 = vmatpush1.bf16.msra.mxu0 0
  %6137 = vmatprep.mubr.bf16.mxu0 0
  %6138 = vmatmul.mubr.bf16.gmra.mrb[0].mxu0 %v6022
  %v6139 = vpop.f32.mrb[0].mxu0
  %v6140 = vadd.f32 0.0, %v6139
  %v6141 = vpop.f32.mrb[0].mxu0
  %v6142 = vadd.f32 0.0, %v6141
  %v6143 = vpop.f32.mrb[0].mxu0
  %v6144 = vpop.f32.mrb[0].mxu0
  %6145 = vdwg.mxu0
  %6146 = vmatprep.subr.bf16.mxu0 %v365
  %6147 = vmatpush1.bf16.msra.mxu0 %v364
  %6148 = vmatprep.subr.bf16.mxu0 %v373
  %6149 = vmatpush1.bf16.msra.mxu0 %v372
  %6150 = vmatprep.subr.bf16.mxu0 %v381
  %6151 = vmatpush1.bf16.msra.mxu0 %v380
  %6152 = vmatprep.subr.bf16.mxu0 %v389
  %6153 = vmatpush1.bf16.msra.mxu0 %v388
  %6154 = vmatprep.subr.bf16.mxu0 %v397
  %6155 = vmatpush1.bf16.msra.mxu0 %v396
  %6156 = vmatprep.subr.bf16.mxu0 %v405
  %6157 = vmatpush1.bf16.msra.mxu0 %v404
  %6158 = vmatprep.subr.bf16.mxu0 %v413
  %6159 = vmatpush1.bf16.msra.mxu0 %v412
  %6160 = vmatprep.subr.bf16.mxu0 %v421
  %6161 = vmatpush1.bf16.msra.mxu0 %v420
  %6162 = vmatprep.subr.bf16.mxu0 0
  %6163 = vmatpush1.bf16.msra.mxu0 0
  %6164 = vmatprep.subr.bf16.mxu0 0
  %6165 = vmatpush1.bf16.msra.mxu0 0
  %6166 = vmatprep.subr.bf16.mxu0 0
  %6167 = vmatpush1.bf16.msra.mxu0 0
  %6168 = vmatprep.subr.bf16.mxu0 0
  %6169 = vmatpush1.bf16.msra.mxu0 0
  %6170 = vmatprep.subr.bf16.mxu0 0
  %6171 = vmatpush1.bf16.msra.mxu0 0
  %6172 = vmatprep.subr.bf16.mxu0 0
  %6173 = vmatpush1.bf16.msra.mxu0 0
  %6174 = vmatprep.subr.bf16.mxu0 0
  %6175 = vmatpush1.bf16.msra.mxu0 0
  %6176 = vmatprep.subr.bf16.mxu0 0
  %6177 = vmatpush1.bf16.msra.mxu0 0
  %6178 = vmatprep.mubr.bf16.mxu0 0
  %6179 = vmatmul.mubr.bf16.gmra.mrb[0].mxu0 %v6022
  %v6180 = vpop.f32.mrb[0].mxu0
  %v6181 = vadd.f32 0.0, %v6180
  %v6182 = vpop.f32.mrb[0].mxu0
  %v6183 = vadd.f32 0.0, %v6182
  %v6184 = vpop.f32.mrb[0].mxu0
  %v6185 = vpop.f32.mrb[0].mxu0
  %6186 = vdwg.mxu0
  %v6187 = vadd.f32 %v6014, %v6058
  %v6188 = vadd.f32 %v6015, %v6060
  %v6189 = vadd.f32 %v6016, %v6099
  %v6190 = vadd.f32 %v6017, %v6101
  %v6191 = vadd.f32 %v6018, %v6140
  %v6192 = vadd.f32 %v6019, %v6142
  %v6193 = vadd.f32 %v6020, %v6181
  %v6194 = vadd.f32 %v6021, %v6183
  %v6195 = vmax.f32 %v6187, 0.0
  %v6196 = vmax.f32 %v6188, 0.0
  %v6197 = vmax.f32 %v6189, 0.0
  %v6198 = vmax.f32 %v6190, 0.0
  %v6199 = vmax.f32 %v6191, 0.0
  %v6200 = vmax.f32 %v6192, 0.0
  %v6201 = vmax.f32 %v6193, 0.0
  %v6202 = vmax.f32 %v6194, 0.0
  %v6203 = vpack.c.bf16 %v6195, %v6195
  %v6204 = vpack.c.bf16 %v6196, %v6196
  %v6205 = vpack.c.bf16 %v6197, %v6197
  %v6206 = vpack.c.bf16 %v6198, %v6198
  %v6207 = vpack.c.bf16 %v6199, %v6199
  %v6208 = vpack.c.bf16 %v6200, %v6200
  %v6209 = vpack.c.bf16 %v6201, %v6201
  %v6210 = vpack.c.bf16 %v6202, %v6202
  %6211 = vmatprep.subr.bf16.mxu0 %v1721
  %6212 = vmatpush1.bf16.msra.mxu0 %v1720
  %6213 = vmatprep.subr.bf16.mxu0 %v1725
  %6214 = vmatpush1.bf16.msra.mxu0 %v1724
  %6215 = vmatprep.subr.bf16.mxu0 %v1729
  %6216 = vmatpush1.bf16.msra.mxu0 %v1728
  %6217 = vmatprep.subr.bf16.mxu0 %v1733
  %6218 = vmatpush1.bf16.msra.mxu0 %v1732
  %6219 = vmatprep.subr.bf16.mxu0 %v1737
  %6220 = vmatpush1.bf16.msra.mxu0 %v1736
  %6221 = vmatprep.subr.bf16.mxu0 %v1741
  %6222 = vmatpush1.bf16.msra.mxu0 %v1740
  %6223 = vmatprep.subr.bf16.mxu0 %v1745
  %6224 = vmatpush1.bf16.msra.mxu0 %v1744
  %6225 = vmatprep.subr.bf16.mxu0 %v1749
  %6226 = vmatpush1.bf16.msra.mxu0 %v1748
  %6227 = vmatprep.subr.bf16.mxu0 %v1753
  %6228 = vmatpush1.bf16.msra.mxu0 %v1752
  %6229 = vmatprep.subr.bf16.mxu0 %v1757
  %6230 = vmatpush1.bf16.msra.mxu0 %v1756
  %6231 = vmatprep.subr.bf16.mxu0 %v1761
  %6232 = vmatpush1.bf16.msra.mxu0 %v1760
  %6233 = vmatprep.subr.bf16.mxu0 %v1765
  %6234 = vmatpush1.bf16.msra.mxu0 %v1764
  %6235 = vmatprep.subr.bf16.mxu0 %v1769
  %6236 = vmatpush1.bf16.msra.mxu0 %v1768
  %6237 = vmatprep.subr.bf16.mxu0 %v1773
  %6238 = vmatpush1.bf16.msra.mxu0 %v1772
  %6239 = vmatprep.subr.bf16.mxu0 %v1777
  %6240 = vmatpush1.bf16.msra.mxu0 %v1776
  %6241 = vmatprep.subr.bf16.mxu0 %v1781
  %6242 = vmatpush1.bf16.msra.mxu0 %v1780
  %6243 = vmatprep.mubr.bf16.mxu0 %v6204
  %6244 = vmatmul.mubr.bf16.gmra.mrb[0].mxu0 %v6203
  %v6245 = vpop.f32.mrb[0].mxu0
  %v6246 = vadd.f32 %v935, %v6245
  %v6247 = vpop.f32.mrb[0].mxu0
  %v6248 = vadd.f32 %v939, %v6247
  %v6249 = vpop.f32.mrb[0].mxu0
  %v6250 = vpop.f32.mrb[0].mxu0
  %6251 = vdwg.mxu0
  %6252 = vmatprep.subr.bf16.mxu0 %v1785
  %6253 = vmatpush1.bf16.msra.mxu0 %v1784
  %6254 = vmatprep.subr.bf16.mxu0 %v1789
  %6255 = vmatpush1.bf16.msra.mxu0 %v1788
  %6256 = vmatprep.subr.bf16.mxu0 %v1793
  %6257 = vmatpush1.bf16.msra.mxu0 %v1792
  %6258 = vmatprep.subr.bf16.mxu0 %v1797
  %6259 = vmatpush1.bf16.msra.mxu0 %v1796
  %6260 = vmatprep.subr.bf16.mxu0 %v1801
  %6261 = vmatpush1.bf16.msra.mxu0 %v1800
  %6262 = vmatprep.subr.bf16.mxu0 %v1805
  %6263 = vmatpush1.bf16.msra.mxu0 %v1804
  %6264 = vmatprep.subr.bf16.mxu0 %v1809
  %6265 = vmatpush1.bf16.msra.mxu0 %v1808
  %6266 = vmatprep.subr.bf16.mxu0 %v1813
  %6267 = vmatpush1.bf16.msra.mxu0 %v1812
  %6268 = vmatprep.subr.bf16.mxu0 %v1817
  %6269 = vmatpush1.bf16.msra.mxu0 %v1816
  %6270 = vmatprep.subr.bf16.mxu0 %v1821
  %6271 = vmatpush1.bf16.msra.mxu0 %v1820
  %6272 = vmatprep.subr.bf16.mxu0 %v1825
  %6273 = vmatpush1.bf16.msra.mxu0 %v1824
  %6274 = vmatprep.subr.bf16.mxu0 %v1829
  %6275 = vmatpush1.bf16.msra.mxu0 %v1828
  %6276 = vmatprep.subr.bf16.mxu0 %v1833
  %6277 = vmatpush1.bf16.msra.mxu0 %v1832
  %6278 = vmatprep.subr.bf16.mxu0 %v1837
  %6279 = vmatpush1.bf16.msra.mxu0 %v1836
  %6280 = vmatprep.subr.bf16.mxu0 %v1841
  %6281 = vmatpush1.bf16.msra.mxu0 %v1840
  %6282 = vmatprep.subr.bf16.mxu0 %v1845
  %6283 = vmatpush1.bf16.msra.mxu0 %v1844
  %6284 = vmatprep.mubr.bf16.mxu0 %v6206
  %6285 = vmatmul.mubr.bf16.gmra.mrb[0].mxu0 %v6205
  %v6286 = vpop.f32.mrb[0].mxu0
  %v6287 = vadd.f32 %v6246, %v6286
  %v6288 = vpop.f32.mrb[0].mxu0
  %v6289 = vadd.f32 %v6248, %v6288
  %v6290 = vpop.f32.mrb[0].mxu0
  %v6291 = vpop.f32.mrb[0].mxu0
  %6292 = vdwg.mxu0
  %6293 = vmatprep.subr.bf16.mxu0 %v1849
  %6294 = vmatpush1.bf16.msra.mxu0 %v1848
  %6295 = vmatprep.subr.bf16.mxu0 %v1853
  %6296 = vmatpush1.bf16.msra.mxu0 %v1852
  %6297 = vmatprep.subr.bf16.mxu0 %v1857
  %6298 = vmatpush1.bf16.msra.mxu0 %v1856
  %6299 = vmatprep.subr.bf16.mxu0 %v1861
  %6300 = vmatpush1.bf16.msra.mxu0 %v1860
  %6301 = vmatprep.subr.bf16.mxu0 %v1865
  %6302 = vmatpush1.bf16.msra.mxu0 %v1864
  %6303 = vmatprep.subr.bf16.mxu0 %v1869
  %6304 = vmatpush1.bf16.msra.mxu0 %v1868
  %6305 = vmatprep.subr.bf16.mxu0 %v1873
  %6306 = vmatpush1.bf16.msra.mxu0 %v1872
  %6307 = vmatprep.subr.bf16.mxu0 %v1877
  %6308 = vmatpush1.bf16.msra.mxu0 %v1876
  %6309 = vmatprep.subr.bf16.mxu0 %v1881
  %6310 = vmatpush1.bf16.msra.mxu0 %v1880
  %6311 = vmatprep.subr.bf16.mxu0 %v1885
  %6312 = vmatpush1.bf16.msra.mxu0 %v1884
  %6313 = vmatprep.subr.bf16.mxu0 %v1889
  %6314 = vmatpush1.bf16.msra.mxu0 %v1888
  %6315 = vmatprep.subr.bf16.mxu0 %v1893
  %6316 = vmatpush1.bf16.msra.mxu0 %v1892
  %6317 = vmatprep.subr.bf16.mxu0 %v1897
  %6318 = vmatpush1.bf16.msra.mxu0 %v1896
  %6319 = vmatprep.subr.bf16.mxu0 %v1901
  %6320 = vmatpush1.bf16.msra.mxu0 %v1900
  %6321 = vmatprep.subr.bf16.mxu0 %v1905
  %6322 = vmatpush1.bf16.msra.mxu0 %v1904
  %6323 = vmatprep.subr.bf16.mxu0 %v1909
  %6324 = vmatpush1.bf16.msra.mxu0 %v1908
  %6325 = vmatprep.mubr.bf16.mxu0 %v6208
  %6326 = vmatmul.mubr.bf16.gmra.mrb[0].mxu0 %v6207
  %v6327 = vpop.f32.mrb[0].mxu0
  %v6328 = vadd.f32 %v6287, %v6327
  %v6329 = vpop.f32.mrb[0].mxu0
  %v6330 = vadd.f32 %v6289, %v6329
  %v6331 = vpop.f32.mrb[0].mxu0
  %v6332 = vpop.f32.mrb[0].mxu0
  %6333 = vdwg.mxu0
  %6334 = vmatprep.subr.bf16.mxu0 %v1913
  %6335 = vmatpush1.bf16.msra.mxu0 %v1912
  %6336 = vmatprep.subr.bf16.mxu0 %v1917
  %6337 = vmatpush1.bf16.msra.mxu0 %v1916
  %6338 = vmatprep.subr.bf16.mxu0 %v1921
  %6339 = vmatpush1.bf16.msra.mxu0 %v1920
  %6340 = vmatprep.subr.bf16.mxu0 %v1925
  %6341 = vmatpush1.bf16.msra.mxu0 %v1924
  %6342 = vmatprep.subr.bf16.mxu0 %v1929
  %6343 = vmatpush1.bf16.msra.mxu0 %v1928
  %6344 = vmatprep.subr.bf16.mxu0 %v1933
  %6345 = vmatpush1.bf16.msra.mxu0 %v1932
  %6346 = vmatprep.subr.bf16.mxu0 %v1937
  %6347 = vmatpush1.bf16.msra.mxu0 %v1936
  %6348 = vmatprep.subr.bf16.mxu0 %v1941
  %6349 = vmatpush1.bf16.msra.mxu0 %v1940
  %6350 = vmatprep.subr.bf16.mxu0 %v1945
  %6351 = vmatpush1.bf16.msra.mxu0 %v1944
  %6352 = vmatprep.subr.bf16.mxu0 %v1949
  %6353 = vmatpush1.bf16.msra.mxu0 %v1948
  %6354 = vmatprep.subr.bf16.mxu0 %v1953
  %6355 = vmatpush1.bf16.msra.mxu0 %v1952
  %6356 = vmatprep.subr.bf16.mxu0 %v1957
  %6357 = vmatpush1.bf16.msra.mxu0 %v1956
  %6358 = vmatprep.subr.bf16.mxu0 %v1961
  %6359 = vmatpush1.bf16.msra.mxu0 %v1960
  %6360 = vmatprep.subr.bf16.mxu0 %v1965
  %6361 = vmatpush1.bf16.msra.mxu0 %v1964
  %6362 = vmatprep.subr.bf16.mxu0 %v1969
  %6363 = vmatpush1.bf16.msra.mxu0 %v1968
  %6364 = vmatprep.subr.bf16.mxu0 %v1973
  %6365 = vmatpush1.bf16.msra.mxu0 %v1972
  %6366 = vmatprep.mubr.bf16.mxu0 %v6210
  %6367 = vmatmul.mubr.bf16.gmra.mrb[0].mxu0 %v6209
  %v6368 = vpop.f32.mrb[0].mxu0
  %v6369 = vadd.f32 %v6328, %v6368
  %v6370 = vpop.f32.mrb[0].mxu0
  %v6371 = vadd.f32 %v6330, %v6370
  %v6372 = vpop.f32.mrb[0].mxu0
  %v6373 = vpop.f32.mrb[0].mxu0
  %6374 = vdwg.mxu0
  %6375 = vmatprep.subr.bf16.mxu0 %v1723
  %6376 = vmatpush1.bf16.msra.mxu0 %v1722
  %6377 = vmatprep.subr.bf16.mxu0 %v1727
  %6378 = vmatpush1.bf16.msra.mxu0 %v1726
  %6379 = vmatprep.subr.bf16.mxu0 %v1731
  %6380 = vmatpush1.bf16.msra.mxu0 %v1730
  %6381 = vmatprep.subr.bf16.mxu0 %v1735
  %6382 = vmatpush1.bf16.msra.mxu0 %v1734
  %6383 = vmatprep.subr.bf16.mxu0 %v1739
  %6384 = vmatpush1.bf16.msra.mxu0 %v1738
  %6385 = vmatprep.subr.bf16.mxu0 %v1743
  %6386 = vmatpush1.bf16.msra.mxu0 %v1742
  %6387 = vmatprep.subr.bf16.mxu0 %v1747
  %6388 = vmatpush1.bf16.msra.mxu0 %v1746
  %6389 = vmatprep.subr.bf16.mxu0 %v1751
  %6390 = vmatpush1.bf16.msra.mxu0 %v1750
  %6391 = vmatprep.subr.bf16.mxu0 %v1755
  %6392 = vmatpush1.bf16.msra.mxu0 %v1754
  %6393 = vmatprep.subr.bf16.mxu0 %v1759
  %6394 = vmatpush1.bf16.msra.mxu0 %v1758
  %6395 = vmatprep.subr.bf16.mxu0 %v1763
  %6396 = vmatpush1.bf16.msra.mxu0 %v1762
  %6397 = vmatprep.subr.bf16.mxu0 %v1767
  %6398 = vmatpush1.bf16.msra.mxu0 %v1766
  %6399 = vmatprep.subr.bf16.mxu0 %v1771
  %6400 = vmatpush1.bf16.msra.mxu0 %v1770
  %6401 = vmatprep.subr.bf16.mxu0 %v1775
  %6402 = vmatpush1.bf16.msra.mxu0 %v1774
  %6403 = vmatprep.subr.bf16.mxu0 %v1779
  %6404 = vmatpush1.bf16.msra.mxu0 %v1778
  %6405 = vmatprep.subr.bf16.mxu0 %v1783
  %6406 = vmatpush1.bf16.msra.mxu0 %v1782
  %6407 = vmatprep.mubr.bf16.mxu0 %v6204
  %6408 = vmatmul.mubr.bf16.gmra.mrb[0].mxu0 %v6203
  %v6409 = vpop.f32.mrb[0].mxu0
  %v6410 = vadd.f32 %v943, %v6409
  %v6411 = vpop.f32.mrb[0].mxu0
  %v6412 = vadd.f32 %v947, %v6411
  %v6413 = vpop.f32.mrb[0].mxu0
  %v6414 = vpop.f32.mrb[0].mxu0
  %6415 = vdwg.mxu0
  %6416 = vmatprep.subr.bf16.mxu0 %v1787
  %6417 = vmatpush1.bf16.msra.mxu0 %v1786
  %6418 = vmatprep.subr.bf16.mxu0 %v1791
  %6419 = vmatpush1.bf16.msra.mxu0 %v1790
  %6420 = vmatprep.subr.bf16.mxu0 %v1795
  %6421 = vmatpush1.bf16.msra.mxu0 %v1794
  %6422 = vmatprep.subr.bf16.mxu0 %v1799
  %6423 = vmatpush1.bf16.msra.mxu0 %v1798
  %6424 = vmatprep.subr.bf16.mxu0 %v1803
  %6425 = vmatpush1.bf16.msra.mxu0 %v1802
  %6426 = vmatprep.subr.bf16.mxu0 %v1807
  %6427 = vmatpush1.bf16.msra.mxu0 %v1806
  %6428 = vmatprep.subr.bf16.mxu0 %v1811
  %6429 = vmatpush1.bf16.msra.mxu0 %v1810
  %6430 = vmatprep.subr.bf16.mxu0 %v1815
  %6431 = vmatpush1.bf16.msra.mxu0 %v1814
  %6432 = vmatprep.subr.bf16.mxu0 %v1819
  %6433 = vmatpush1.bf16.msra.mxu0 %v1818
  %6434 = vmatprep.subr.bf16.mxu0 %v1823
  %6435 = vmatpush1.bf16.msra.mxu0 %v1822
  %6436 = vmatprep.subr.bf16.mxu0 %v1827
  %6437 = vmatpush1.bf16.msra.mxu0 %v1826
  %6438 = vmatprep.subr.bf16.mxu0 %v1831
  %6439 = vmatpush1.bf16.msra.mxu0 %v1830
  %6440 = vmatprep.subr.bf16.mxu0 %v1835
  %6441 = vmatpush1.bf16.msra.mxu0 %v1834
  %6442 = vmatprep.subr.bf16.mxu0 %v1839
  %6443 = vmatpush1.bf16.msra.mxu0 %v1838
  %6444 = vmatprep.subr.bf16.mxu0 %v1843
  %6445 = vmatpush1.bf16.msra.mxu0 %v1842
  %6446 = vmatprep.subr.bf16.mxu0 %v1847
  %6447 = vmatpush1.bf16.msra.mxu0 %v1846
  %6448 = vmatprep.mubr.bf16.mxu0 %v6206
  %6449 = vmatmul.mubr.bf16.gmra.mrb[0].mxu0 %v6205
  %v6450 = vpop.f32.mrb[0].mxu0
  %v6451 = vadd.f32 %v6410, %v6450
  %v6452 = vpop.f32.mrb[0].mxu0
  %v6453 = vadd.f32 %v6412, %v6452
  %v6454 = vpop.f32.mrb[0].mxu0
  %v6455 = vpop.f32.mrb[0].mxu0
  %6456 = vdwg.mxu0
  %6457 = vmatprep.subr.bf16.mxu0 %v1851
  %6458 = vmatpush1.bf16.msra.mxu0 %v1850
  %6459 = vmatprep.subr.bf16.mxu0 %v1855
  %6460 = vmatpush1.bf16.msra.mxu0 %v1854
  %6461 = vmatprep.subr.bf16.mxu0 %v1859
  %6462 = vmatpush1.bf16.msra.mxu0 %v1858
  %6463 = vmatprep.subr.bf16.mxu0 %v1863
  %6464 = vmatpush1.bf16.msra.mxu0 %v1862
  %6465 = vmatprep.subr.bf16.mxu0 %v1867
  %6466 = vmatpush1.bf16.msra.mxu0 %v1866
  %6467 = vmatprep.subr.bf16.mxu0 %v1871
  %6468 = vmatpush1.bf16.msra.mxu0 %v1870
  %6469 = vmatprep.subr.bf16.mxu0 %v1875
  %6470 = vmatpush1.bf16.msra.mxu0 %v1874
  %6471 = vmatprep.subr.bf16.mxu0 %v1879
  %6472 = vmatpush1.bf16.msra.mxu0 %v1878
  %6473 = vmatprep.subr.bf16.mxu0 %v1883
  %6474 = vmatpush1.bf16.msra.mxu0 %v1882
  %6475 = vmatprep.subr.bf16.mxu0 %v1887
  %6476 = vmatpush1.bf16.msra.mxu0 %v1886
  %6477 = vmatprep.subr.bf16.mxu0 %v1891
  %6478 = vmatpush1.bf16.msra.mxu0 %v1890
  %6479 = vmatprep.subr.bf16.mxu0 %v1895
  %6480 = vmatpush1.bf16.msra.mxu0 %v1894
  %6481 = vmatprep.subr.bf16.mxu0 %v1899
  %6482 = vmatpush1.bf16.msra.mxu0 %v1898
  %6483 = vmatprep.subr.bf16.mxu0 %v1903
  %6484 = vmatpush1.bf16.msra.mxu0 %v1902
  %6485 = vmatprep.subr.bf16.mxu0 %v1907
  %6486 = vmatpush1.bf16.msra.mxu0 %v1906
  %6487 = vmatprep.subr.bf16.mxu0 %v1911
  %6488 = vmatpush1.bf16.msra.mxu0 %v1910
  %6489 = vmatprep.mubr.bf16.mxu0 %v6208
  %6490 = vmatmul.mubr.bf16.gmra.mrb[0].mxu0 %v6207
  %v6491 = vpop.f32.mrb[0].mxu0
  %v6492 = vadd.f32 %v6451, %v6491
  %v6493 = vpop.f32.mrb[0].mxu0
  %v6494 = vadd.f32 %v6453, %v6493
  %v6495 = vpop.f32.mrb[0].mxu0
  %v6496 = vpop.f32.mrb[0].mxu0
  %6497 = vdwg.mxu0
  %6498 = vmatprep.subr.bf16.mxu0 %v1915
  %6499 = vmatpush1.bf16.msra.mxu0 %v1914
  %6500 = vmatprep.subr.bf16.mxu0 %v1919
  %6501 = vmatpush1.bf16.msra.mxu0 %v1918
  %6502 = vmatprep.subr.bf16.mxu0 %v1923
  %6503 = vmatpush1.bf16.msra.mxu0 %v1922
  %6504 = vmatprep.subr.bf16.mxu0 %v1927
  %6505 = vmatpush1.bf16.msra.mxu0 %v1926
  %6506 = vmatprep.subr.bf16.mxu0 %v1931
  %6507 = vmatpush1.bf16.msra.mxu0 %v1930
  %6508 = vmatprep.subr.bf16.mxu0 %v1935
  %6509 = vmatpush1.bf16.msra.mxu0 %v1934
  %6510 = vmatprep.subr.bf16.mxu0 %v1939
  %6511 = vmatpush1.bf16.msra.mxu0 %v1938
  %6512 = vmatprep.subr.bf16.mxu0 %v1943
  %6513 = vmatpush1.bf16.msra.mxu0 %v1942
  %6514 = vmatprep.subr.bf16.mxu0 %v1947
  %6515 = vmatpush1.bf16.msra.mxu0 %v1946
  %6516 = vmatprep.subr.bf16.mxu0 %v1951
  %6517 = vmatpush1.bf16.msra.mxu0 %v1950
  %6518 = vmatprep.subr.bf16.mxu0 %v1955
  %6519 = vmatpush1.bf16.msra.mxu0 %v1954
  %6520 = vmatprep.subr.bf16.mxu0 %v1959
  %6521 = vmatpush1.bf16.msra.mxu0 %v1958
  %6522 = vmatprep.subr.bf16.mxu0 %v1963
  %6523 = vmatpush1.bf16.msra.mxu0 %v1962
  %6524 = vmatprep.subr.bf16.mxu0 %v1967
  %6525 = vmatpush1.bf16.msra.mxu0 %v1966
  %6526 = vmatprep.subr.bf16.mxu0 %v1971
  %6527 = vmatpush1.bf16.msra.mxu0 %v1970
  %6528 = vmatprep.subr.bf16.mxu0 %v1975
  %6529 = vmatpush1.bf16.msra.mxu0 %v1974
  %6530 = vmatprep.mubr.bf16.mxu0 %v6210
  %6531 = vmatmul.mubr.bf16.gmra.mrb[0].mxu0 %v6209
  %v6532 = vpop.f32.mrb[0].mxu0
  %v6533 = vadd.f32 %v6492, %v6532
  %v6534 = vpop.f32.mrb[0].mxu0
  %v6535 = vadd.f32 %v6494, %v6534
  %v6536 = vpop.f32.mrb[0].mxu0
  %v6537 = vpop.f32.mrb[0].mxu0
  %6538 = vdwg.mxu0
  %v6539 = vmax.f32 %v6369, 0.0
  %v6540 = vmax.f32 %v6371, 0.0
  %v6541 = vmax.f32 %v6533, 0.0
  %v6542 = vmax.f32 %v6535, 0.0
  %v6543 = vpack.c.bf16 %v6539, %v6539
  %v6544 = vpack.c.bf16 %v6540, %v6540
  %v6545 = vpack.c.bf16 %v6541, %v6541
  %v6546 = vpack.c.bf16 %v6542, %v6542
  %6547 = vmatprep.subr.bf16.mxu0 %v3103
  %6548 = vmatpush1.bf16.msra.mxu0 %v3102
  %6549 = vmatprep.subr.bf16.mxu0 %v3107
  %6550 = vmatpush1.bf16.msra.mxu0 %v3106
  %6551 = vmatprep.subr.bf16.mxu0 %v3111
  %6552 = vmatpush1.bf16.msra.mxu0 %v3110
  %6553 = vmatprep.subr.bf16.mxu0 %v3115
  %6554 = vmatpush1.bf16.msra.mxu0 %v3114
  %6555 = vmatprep.subr.bf16.mxu0 %v3119
  %6556 = vmatpush1.bf16.msra.mxu0 %v3118
  %6557 = vmatprep.subr.bf16.mxu0 %v3123
  %6558 = vmatpush1.bf16.msra.mxu0 %v3122
  %6559 = vmatprep.subr.bf16.mxu0 %v3127
  %6560 = vmatpush1.bf16.msra.mxu0 %v3126
  %6561 = vmatprep.subr.bf16.mxu0 %v3131
  %6562 = vmatpush1.bf16.msra.mxu0 %v3130
  %6563 = vmatprep.subr.bf16.mxu0 %v3135
  %6564 = vmatpush1.bf16.msra.mxu0 %v3134
  %6565 = vmatprep.subr.bf16.mxu0 %v3139
  %6566 = vmatpush1.bf16.msra.mxu0 %v3138
  %6567 = vmatprep.subr.bf16.mxu0 %v3143
  %6568 = vmatpush1.bf16.msra.mxu0 %v3142
  %6569 = vmatprep.subr.bf16.mxu0 %v3147
  %6570 = vmatpush1.bf16.msra.mxu0 %v3146
  %6571 = vmatprep.subr.bf16.mxu0 %v3151
  %6572 = vmatpush1.bf16.msra.mxu0 %v3150
  %6573 = vmatprep.subr.bf16.mxu0 %v3155
  %6574 = vmatpush1.bf16.msra.mxu0 %v3154
  %6575 = vmatprep.subr.bf16.mxu0 %v3159
  %6576 = vmatpush1.bf16.msra.mxu0 %v3158
  %6577 = vmatprep.subr.bf16.mxu0 %v3163
  %6578 = vmatpush1.bf16.msra.mxu0 %v3162
  %6579 = vmatprep.mubr.bf16.mxu0 %v6544
  %6580 = vmatmul.mubr.bf16.gmra.mrb[0].mxu0 %v6543
  %v6581 = vpop.f32.mrb[0].mxu0
  %v6582 = vadd.f32 %v2701, %v6581
  %v6583 = vpop.f32.mrb[0].mxu0
  %v6584 = vadd.f32 %v2705, %v6583
  %v6585 = vpop.f32.mrb[0].mxu0
  %v6586 = vpop.f32.mrb[0].mxu0
  %6587 = vdwg.mxu0
  %6588 = vmatprep.subr.bf16.mxu0 %v3167
  %6589 = vmatpush1.bf16.msra.mxu0 %v3166
  %6590 = vmatprep.subr.bf16.mxu0 %v3171
  %6591 = vmatpush1.bf16.msra.mxu0 %v3170
  %6592 = vmatprep.subr.bf16.mxu0 %v3175
  %6593 = vmatpush1.bf16.msra.mxu0 %v3174
  %6594 = vmatprep.subr.bf16.mxu0 %v3179
  %6595 = vmatpush1.bf16.msra.mxu0 %v3178
  %6596 = vmatprep.subr.bf16.mxu0 %v3183
  %6597 = vmatpush1.bf16.msra.mxu0 %v3182
  %6598 = vmatprep.subr.bf16.mxu0 %v3187
  %6599 = vmatpush1.bf16.msra.mxu0 %v3186
  %6600 = vmatprep.subr.bf16.mxu0 %v3191
  %6601 = vmatpush1.bf16.msra.mxu0 %v3190
  %6602 = vmatprep.subr.bf16.mxu0 %v3195
  %6603 = vmatpush1.bf16.msra.mxu0 %v3194
  %6604 = vmatprep.subr.bf16.mxu0 %v3199
  %6605 = vmatpush1.bf16.msra.mxu0 %v3198
  %6606 = vmatprep.subr.bf16.mxu0 %v3203
  %6607 = vmatpush1.bf16.msra.mxu0 %v3202
  %6608 = vmatprep.subr.bf16.mxu0 %v3207
  %6609 = vmatpush1.bf16.msra.mxu0 %v3206
  %6610 = vmatprep.subr.bf16.mxu0 %v3211
  %6611 = vmatpush1.bf16.msra.mxu0 %v3210
  %6612 = vmatprep.subr.bf16.mxu0 %v3215
  %6613 = vmatpush1.bf16.msra.mxu0 %v3214
  %6614 = vmatprep.subr.bf16.mxu0 %v3219
  %6615 = vmatpush1.bf16.msra.mxu0 %v3218
  %6616 = vmatprep.subr.bf16.mxu0 %v3223
  %6617 = vmatpush1.bf16.msra.mxu0 %v3222
  %6618 = vmatprep.subr.bf16.mxu0 %v3227
  %6619 = vmatpush1.bf16.msra.mxu0 %v3226
  %6620 = vmatprep.mubr.bf16.mxu0 %v6546
  %6621 = vmatmul.mubr.bf16.gmra.mrb[0].mxu0 %v6545
  %v6622 = vpop.f32.mrb[0].mxu0
  %v6623 = vadd.f32 %v6582, %v6622
  %v6624 = vpop.f32.mrb[0].mxu0
  %v6625 = vadd.f32 %v6584, %v6624
  %v6626 = vpop.f32.mrb[0].mxu0
  %v6627 = vpop.f32.mrb[0].mxu0
  %6628 = vdwg.mxu0
  %6629 = vmatprep.subr.bf16.mxu0 %v3105
  %6630 = vmatpush1.bf16.msra.mxu0 %v3104
  %6631 = vmatprep.subr.bf16.mxu0 %v3109
  %6632 = vmatpush1.bf16.msra.mxu0 %v3108
  %6633 = vmatprep.subr.bf16.mxu0 %v3113
  %6634 = vmatpush1.bf16.msra.mxu0 %v3112
  %6635 = vmatprep.subr.bf16.mxu0 %v3117
  %6636 = vmatpush1.bf16.msra.mxu0 %v3116
  %6637 = vmatprep.subr.bf16.mxu0 %v3121
  %6638 = vmatpush1.bf16.msra.mxu0 %v3120
  %6639 = vmatprep.subr.bf16.mxu0 %v3125
  %6640 = vmatpush1.bf16.msra.mxu0 %v3124
  %6641 = vmatprep.subr.bf16.mxu0 %v3129
  %6642 = vmatpush1.bf16.msra.mxu0 %v3128
  %6643 = vmatprep.subr.bf16.mxu0 %v3133
  %6644 = vmatpush1.bf16.msra.mxu0 %v3132
  %6645 = vmatprep.subr.bf16.mxu0 %v3137
  %6646 = vmatpush1.bf16.msra.mxu0 %v3136
  %6647 = vmatprep.subr.bf16.mxu0 %v3141
  %6648 = vmatpush1.bf16.msra.mxu0 %v3140
  %6649 = vmatprep.subr.bf16.mxu0 %v3145
  %6650 = vmatpush1.bf16.msra.mxu0 %v3144
  %6651 = vmatprep.subr.bf16.mxu0 %v3149
  %6652 = vmatpush1.bf16.msra.mxu0 %v3148
  %6653 = vmatprep.subr.bf16.mxu0 %v3153
  %6654 = vmatpush1.bf16.msra.mxu0 %v3152
  %6655 = vmatprep.subr.bf16.mxu0 %v3157
  %6656 = vmatpush1.bf16.msra.mxu0 %v3156
  %6657 = vmatprep.subr.bf16.mxu0 %v3161
  %6658 = vmatpush1.bf16.msra.mxu0 %v3160
  %6659 = vmatprep.subr.bf16.mxu0 %v3165
  %6660 = vmatpush1.bf16.msra.mxu0 %v3164
  %6661 = vmatprep.mubr.bf16.mxu0 %v6544
  %6662 = vmatmul.mubr.bf16.gmra.mrb[0].mxu0 %v6543
  %v6663 = vpop.f32.mrb[0].mxu0
  %v6664 = vadd.f32 %v2709, %v6663
  %v6665 = vpop.f32.mrb[0].mxu0
  %v6666 = vadd.f32 %v2713, %v6665
  %v6667 = vpop.f32.mrb[0].mxu0
  %v6668 = vpop.f32.mrb[0].mxu0
  %6669 = vdwg.mxu0
  %6670 = vmatprep.subr.bf16.mxu0 %v3169
  %6671 = vmatpush1.bf16.msra.mxu0 %v3168
  %6672 = vmatprep.subr.bf16.mxu0 %v3173
  %6673 = vmatpush1.bf16.msra.mxu0 %v3172
  %6674 = vmatprep.subr.bf16.mxu0 %v3177
  %6675 = vmatpush1.bf16.msra.mxu0 %v3176
  %6676 = vmatprep.subr.bf16.mxu0 %v3181
  %6677 = vmatpush1.bf16.msra.mxu0 %v3180
  %6678 = vmatprep.subr.bf16.mxu0 %v3185
  %6679 = vmatpush1.bf16.msra.mxu0 %v3184
  %6680 = vmatprep.subr.bf16.mxu0 %v3189
  %6681 = vmatpush1.bf16.msra.mxu0 %v3188
  %6682 = vmatprep.subr.bf16.mxu0 %v3193
  %6683 = vmatpush1.bf16.msra.mxu0 %v3192
  %6684 = vmatprep.subr.bf16.mxu0 %v3197
  %6685 = vmatpush1.bf16.msra.mxu0 %v3196
  %6686 = vmatprep.subr.bf16.mxu0 %v3201
  %6687 = vmatpush1.bf16.msra.mxu0 %v3200
  %6688 = vmatprep.subr.bf16.mxu0 %v3205
  %6689 = vmatpush1.bf16.msra.mxu0 %v3204
  %6690 = vmatprep.subr.bf16.mxu0 %v3209
  %6691 = vmatpush1.bf16.msra.mxu0 %v3208
  %6692 = vmatprep.subr.bf16.mxu0 %v3213
  %6693 = vmatpush1.bf16.msra.mxu0 %v3212
  %6694 = vmatprep.subr.bf16.mxu0 %v3217
  %6695 = vmatpush1.bf16.msra.mxu0 %v3216
  %6696 = vmatprep.subr.bf16.mxu0 %v3221
  %6697 = vmatpush1.bf16.msra.mxu0 %v3220
  %6698 = vmatprep.subr.bf16.mxu0 %v3225
  %6699 = vmatpush1.bf16.msra.mxu0 %v3224
  %6700 = vmatprep.subr.bf16.mxu0 %v3229
  %6701 = vmatpush1.bf16.msra.mxu0 %v3228
  %6702 = vmatprep.mubr.bf16.mxu0 %v6546
  %6703 = vmatmul.mubr.bf16.gmra.mrb[0].mxu0 %v6545
  %v6704 = vpop.f32.mrb[0].mxu0
  %v6705 = vadd.f32 %v6664, %v6704
  %v6706 = vpop.f32.mrb[0].mxu0
  %v6707 = vadd.f32 %v6666, %v6706
  %v6708 = vpop.f32.mrb[0].mxu0
  %v6709 = vpop.f32.mrb[0].mxu0
  %6710 = vdwg.mxu0
  %v6711 = vmax.f32 %v6623, 0.0
  %v6712 = vmax.f32 %v6625, 0.0
  %v6713 = vmax.f32 %v6705, 0.0
  %v6714 = vmax.f32 %v6707, 0.0
  %v6715 = vpack.c.bf16 %v6711, %v6711
  %v6716 = vpack.c.bf16 %v6712, %v6712
  %v6717 = vpack.c.bf16 %v6713, %v6713
  %v6718 = vpack.c.bf16 %v6714, %v6714
  %6719 = vmatprep.subr.bf16.mxu0 %v3799
  %6720 = vmatpush1.bf16.msra.mxu0 %v3798
  %6721 = vmatprep.subr.bf16.mxu0 %v3801
  %6722 = vmatpush1.bf16.msra.mxu0 %v3800
  %6723 = vmatprep.subr.bf16.mxu0 %v3803
  %6724 = vmatpush1.bf16.msra.mxu0 %v3802
  %6725 = vmatprep.subr.bf16.mxu0 %v3805
  %6726 = vmatpush1.bf16.msra.mxu0 %v3804
  %6727 = vmatprep.subr.bf16.mxu0 %v3807
  %6728 = vmatpush1.bf16.msra.mxu0 %v3806
  %6729 = vmatprep.subr.bf16.mxu0 %v3809
  %6730 = vmatpush1.bf16.msra.mxu0 %v3808
  %6731 = vmatprep.subr.bf16.mxu0 %v3811
  %6732 = vmatpush1.bf16.msra.mxu0 %v3810
  %6733 = vmatprep.subr.bf16.mxu0 %v3813
  %6734 = vmatpush1.bf16.msra.mxu0 %v3812
  %6735 = vmatprep.subr.bf16.mxu0 %v3815
  %6736 = vmatpush1.bf16.msra.mxu0 %v3814
  %6737 = vmatprep.subr.bf16.mxu0 %v3817
  %6738 = vmatpush1.bf16.msra.mxu0 %v3816
  %6739 = vmatprep.subr.bf16.mxu0 %v3819
  %6740 = vmatpush1.bf16.msra.mxu0 %v3818
  %6741 = vmatprep.subr.bf16.mxu0 %v3821
  %6742 = vmatpush1.bf16.msra.mxu0 %v3820
  %6743 = vmatprep.subr.bf16.mxu0 %v3823
  %6744 = vmatpush1.bf16.msra.mxu0 %v3822
  %6745 = vmatprep.subr.bf16.mxu0 %v3825
  %6746 = vmatpush1.bf16.msra.mxu0 %v3824
  %6747 = vmatprep.subr.bf16.mxu0 %v3827
  %6748 = vmatpush1.bf16.msra.mxu0 %v3826
  %6749 = vmatprep.subr.bf16.mxu0 %v3829
  %6750 = vmatpush1.bf16.msra.mxu0 %v3828
  %6751 = vmatprep.mubr.bf16.mxu0 %v6716
  %6752 = vmatmul.mubr.bf16.gmra.mrb[0].mxu0 %v6715
  %v6753 = vpop.f32.mrb[0].mxu0
  %v6754 = vadd.f32 %v3599, %v6753
  %v6755 = vpop.f32.mrb[0].mxu0
  %v6756 = vadd.f32 %v3603, %v6755
  %v6757 = vpop.f32.mrb[0].mxu0
  %v6758 = vpop.f32.mrb[0].mxu0
  %6759 = vdwg.mxu0
  %6760 = vmatprep.subr.bf16.mxu0 %v3831
  %6761 = vmatpush1.bf16.msra.mxu0 %v3830
  %6762 = vmatprep.subr.bf16.mxu0 %v3833
  %6763 = vmatpush1.bf16.msra.mxu0 %v3832
  %6764 = vmatprep.subr.bf16.mxu0 %v3835
  %6765 = vmatpush1.bf16.msra.mxu0 %v3834
  %6766 = vmatprep.subr.bf16.mxu0 %v3837
  %6767 = vmatpush1.bf16.msra.mxu0 %v3836
  %6768 = vmatprep.subr.bf16.mxu0 %v3839
  %6769 = vmatpush1.bf16.msra.mxu0 %v3838
  %6770 = vmatprep.subr.bf16.mxu0 %v3841
  %6771 = vmatpush1.bf16.msra.mxu0 %v3840
  %6772 = vmatprep.subr.bf16.mxu0 %v3843
  %6773 = vmatpush1.bf16.msra.mxu0 %v3842
  %6774 = vmatprep.subr.bf16.mxu0 %v3845
  %6775 = vmatpush1.bf16.msra.mxu0 %v3844
  %6776 = vmatprep.subr.bf16.mxu0 %v3847
  %6777 = vmatpush1.bf16.msra.mxu0 %v3846
  %6778 = vmatprep.subr.bf16.mxu0 %v3849
  %6779 = vmatpush1.bf16.msra.mxu0 %v3848
  %6780 = vmatprep.subr.bf16.mxu0 %v3851
  %6781 = vmatpush1.bf16.msra.mxu0 %v3850
  %6782 = vmatprep.subr.bf16.mxu0 %v3853
  %6783 = vmatpush1.bf16.msra.mxu0 %v3852
  %6784 = vmatprep.subr.bf16.mxu0 %v3855
  %6785 = vmatpush1.bf16.msra.mxu0 %v3854
  %6786 = vmatprep.subr.bf16.mxu0 %v3857
  %6787 = vmatpush1.bf16.msra.mxu0 %v3856
  %6788 = vmatprep.subr.bf16.mxu0 %v3859
  %6789 = vmatpush1.bf16.msra.mxu0 %v3858
  %6790 = vmatprep.subr.bf16.mxu0 %v3861
  %6791 = vmatpush1.bf16.msra.mxu0 %v3860
  %6792 = vmatprep.mubr.bf16.mxu0 %v6718
  %6793 = vmatmul.mubr.bf16.gmra.mrb[0].mxu0 %v6717
  %v6794 = vpop.f32.mrb[0].mxu0
  %v6795 = vadd.f32 %v6754, %v6794
  %v6796 = vpop.f32.mrb[0].mxu0
  %v6797 = vadd.f32 %v6756, %v6796
  %v6798 = vpop.f32.mrb[0].mxu0
  %v6799 = vpop.f32.mrb[0].mxu0
  %6800 = vdwg.mxu0
  %v6801 = vmax.f32 %v6795, 0.0
  %v6802 = vmax.f32 %v6797, 0.0
  %v6803 = vpack.c.bf16 %v6801, %v6801
  %v6804 = vpack.c.bf16 %v6802, %v6802
  %6805 = vmatprep.subr.bf16.mxu0 0
  %6806 = vmatpush1.bf16.msra.mxu0 %v4115
  %6807 = vmatprep.subr.bf16.mxu0 0
  %6808 = vmatpush1.bf16.msra.mxu0 %v4116
  %6809 = vmatprep.subr.bf16.mxu0 0
  %6810 = vmatpush1.bf16.msra.mxu0 %v4117
  %6811 = vmatprep.subr.bf16.mxu0 0
  %6812 = vmatpush1.bf16.msra.mxu0 %v4118
  %6813 = vmatprep.subr.bf16.mxu0 0
  %6814 = vmatpush1.bf16.msra.mxu0 %v4119
  %6815 = vmatprep.subr.bf16.mxu0 0
  %6816 = vmatpush1.bf16.msra.mxu0 %v4120
  %6817 = vmatprep.subr.bf16.mxu0 0
  %6818 = vmatpush1.bf16.msra.mxu0 %v4121
  %6819 = vmatprep.subr.bf16.mxu0 0
  %6820 = vmatpush1.bf16.msra.mxu0 %v4122
  %6821 = vmatprep.subr.bf16.mxu0 0
  %6822 = vmatpush1.bf16.msra.mxu0 %v4123
  %6823 = vmatprep.subr.bf16.mxu0 0
  %6824 = vmatpush1.bf16.msra.mxu0 %v4124
  %6825 = vmatprep.subr.bf16.mxu0 0
  %6826 = vmatpush1.bf16.msra.mxu0 %v4125
  %6827 = vmatprep.subr.bf16.mxu0 0
  %6828 = vmatpush1.bf16.msra.mxu0 %v4126
  %6829 = vmatprep.subr.bf16.mxu0 0
  %6830 = vmatpush1.bf16.msra.mxu0 %v4127
  %6831 = vmatprep.subr.bf16.mxu0 0
  %6832 = vmatpush1.bf16.msra.mxu0 %v4128
  %6833 = vmatprep.subr.bf16.mxu0 0
  %6834 = vmatpush1.bf16.msra.mxu0 %v4129
  %6835 = vmatprep.subr.bf16.mxu0 0
  %6836 = vmatpush1.bf16.msra.mxu0 %v4130
  %6837 = vmatprep.mubr.bf16.mxu0 %v6804
  %6838 = vmatmul.mubr.bf16.gmra.mrb[0].mxu0 %v6803
  %v6839 = vpop.f32.mrb[0].mxu0
  %v6840 = vadd.f32 %v4049, %v6839
  %v6841 = vpop.f32.mrb[0].mxu0
  %v6842 = vpop.f32.mrb[0].mxu0
  %v6843 = vpop.f32.mrb[0].mxu0
  %6844 = vdwg.mxu0
  %v6845 = vmul.f32 %v6840, 0.3911366
  %v6846 = vsub.f32 %v5970, %v6845
  %v6847 = vmul.f32 %v6846, 1.0865637
  %v6848 = vmax.f32 %v6847, -1.0
  %v6849 = vmin.f32 %v6848, 1.0
  %v6850 = vmul.f32 %v5970, 0.0
  %v6851 = vadd.f32 %v6849, %v6850
  %6852 = vst [vmem:[%s12] sm:$0xff] %v6851
  // Predicated region
  $region50: #{get_actions.1} parent=0 // pred_check
    _
  $region51: #{get_actions.1} parent=0 // pred_check_branch
    %6854 = sbr.rel (0) target = $region53
  $region52: #{get_actions.1} parent=0 // pred_region
    _
  $region53: #{get_actions.1} parent=0 // pred_fallthru
    _
  // Predicated region
  $region54: #{get_actions.1} parent=0 // pred_check
    _
  $region55: #{get_actions.1} parent=0 // pred_check_branch
    %6856 = sbr.rel (0) target = $region57
  $region56: #{get_actions.1} parent=0 // pred_region
    _
  $region57: #{get_actions.1} parent=0 // pred_fallthru
    _

</llo_original>
